<compile_context>
chip_gen: v7x
topology: tpu7x:2x2x1
jax: 0.10.0
libtpu: 0.0.40
codegen_flags: <defaults>
</compile_context>

<pallas_src>
import numpy as np
import jax
import jax.numpy as jnp
from jax.experimental import pallas as pl
from jax.experimental.pallas import tpu as pltpu


# ------------------------------ the fused kernel ------------------------------

def _simplenet_kernel(
    patches_ref,                      # (M1, 3*49) conv1 im2col patches
    w1_ref, b1_ref,                   # (147, 64), (1, 64)
    gp1_ref,                          # (9*M2, M1) maxpool-1 tap selector
    w2_ref, b2_ref,                   # (64, 64),  (1, 64)
    gc3_ref,                          # (9*M2, M2) conv3 3x3 tap selector
    w3_ref, b3_ref,                   # (9, 64, 64), (1, 64)
    w4_ref, b4_ref,                   # (64, 256), (1, 256)
    gp2_ref,                          # (9*M3, M2) maxpool-2 tap selector
    w5_ref, b5_ref,                   # (256, 128), (1, 128)
    gc6_ref,                          # (9*M3, M3) conv6 3x3 tap selector
    w6_ref, b6_ref,                   # (9, 128, 128), (1, 128)
    w7_ref, b7_ref,                   # (128, 512), (1, 512)
    fcw_ref, fcb_ref,                 # (512, NC), (1, NC)
    out_ref,                          # (B, NC)
):
    def mm(a, b):
        return jnp.dot(a, b, preferred_element_type=jnp.float32)

    def tree_max(parts):
        # pairwise-tree reduction (shallower VPU dependency chain than a serial fold)
        while len(parts) > 1:
            nxt = [jnp.maximum(parts[i], parts[i + 1]) for i in range(0, len(parts) - 1, 2)]
            if len(parts) % 2:
                nxt.append(parts[-1])
            parts = nxt
        return parts[0]

    def conv1x1_relu(y, w_ref, b_ref):
        return jnp.maximum(mm(y, w_ref[...]) + b_ref[...], 0.0)

    def maxpool_3x3(sel_ref, y):
        # y is post-ReLU (>= 0), so the selector's zero rows (padded taps) never win the max.
        taps = mm(sel_ref[...], y)                              # (9*Mo, C)
        mo = taps.shape[0] // 9
        return tree_max([taps[i * mo:(i + 1) * mo] for i in range(9)])

    def conv3x3_relu(sel_ref, w_ref, b_ref, y):
        # one stacked selection matmul gathers all 9 zero-padded taps on the MXU,
        # then 9 small tile-aligned matmuls accumulate the 3x3 contraction in f32.
        taps = mm(sel_ref[...], y)                              # (9*Mo, Cin)
        mo = taps.shape[0] // 9
        acc = mm(taps[0:mo], w_ref[0])
        for i in range(1, 9):
            acc = acc + mm(taps[i * mo:(i + 1) * mo], w_ref[i])
        return jnp.maximum(acc + b_ref[...], 0.0)

    # conv1 7x7/s2/p3 (im2col matmul) + ReLU                       (M1, 64)
    y = conv1x1_relu(patches_ref[...], w1_ref, b1_ref)
    # maxpool 3x3/s2/p1                                            (M2, 64)
    y = maxpool_3x3(gp1_ref, y)
    # conv2 1x1 + ReLU                                             (M2, 64)
    y = conv1x1_relu(y, w2_ref, b2_ref)
    # conv3 3x3/p1 + ReLU                                          (M2, 64)
    y = conv3x3_relu(gc3_ref, w3_ref, b3_ref, y)
    # conv4 1x1 64->256 + ReLU                                     (M2, 256)
    y = conv1x1_relu(y, w4_ref, b4_ref)
    # maxpool 3x3/s2/p1                                            (M3, 256)
    y = maxpool_3x3(gp2_ref, y)
    # conv5 1x1 256->128 + ReLU                                    (M3, 128)
    y = conv1x1_relu(y, w5_ref, b5_ref)
    # conv6 3x3/p1 + ReLU                                          (M3, 128)
    y = conv3x3_relu(gc6_ref, w6_ref, b6_ref, y)
    # conv7 1x1 128->512 + ReLU                                    (M3, 512)
    y = conv1x1_relu(y, w7_ref, b7_ref)

    # global average pool (reshape keeps the lane dim) + fc        (B, NC)
    batch = out_ref.shape[0]
    hw = y.shape[0] // batch
    pooled = jnp.sum(y.reshape(batch, hw, y.shape[1]), axis=1) * (1.0 / hw)
    out_ref[...] = (mm(pooled, fcw_ref[...]) + fcb_ref[...]).astype(out_ref.dtype)


# -------------------- one-time prep (hoisted out of forward) --------------------

def _window_selector(B, Hi, Wi, ksize, stride, pad):
    """Stacked 0/1 tap-selection matrix G of shape (k*k*Mo, Mi) such that
    (G @ y)[t*Mo + m] = y[input row of tap t at output position m], 0 for padded taps."""
    Ho = (Hi + 2 * pad - ksize) // stride + 1
    Wo = (Wi + 2 * pad - ksize) // stride + 1
    Mi, Mo = B * Hi * Wi, B * Ho * Wo
    G = np.zeros((ksize * ksize, Mo, Mi), np.float32)
    for kh in range(ksize):
        for kw in range(ksize):
            t = kh * ksize + kw
            for b in range(B):
                for ho in range(Ho):
                    hi = ho * stride - pad + kh
                    if hi < 0 or hi >= Hi:
                        continue
                    for wo in range(Wo):
                        wi = wo * stride - pad + kw
                        if wi < 0 or wi >= Wi:
                            continue
                        G[t, b * Ho * Wo + ho * Wo + wo, b * Hi * Wi + hi * Wi + wi] = 1.0
    return G.reshape(ksize * ksize * Mo, Mi), Ho, Wo


def prepare_params(params, batch, height, width):
    """One-time: re-layout PyTorch-style weights and build the constant tap selectors."""
    H1 = (height + 2 * 3 - 7) // 2 + 1                 # conv1 output spatial
    W1 = (width + 2 * 3 - 7) // 2 + 1
    gp1, H2, W2 = _window_selector(batch, H1, W1, 3, 2, 1)   # maxpool1
    gc3, _, _ = _window_selector(batch, H2, W2, 3, 1, 1)     # conv3 taps
    gp2, H3, W3 = _window_selector(batch, H2, W2, 3, 2, 1)   # maxpool2
    gc6, _, _ = _window_selector(batch, H3, W3, 3, 1, 1)     # conv6 taps

    def bias(name, n):
        return params[name].reshape(1, n)

    return {
        "w1": params["c1_w"].reshape(64, 3 * 49).T, "b1": bias("c1_b", 64),
        "gp1": jnp.asarray(gp1),
        "w2": params["c2_w"].reshape(64, 64).T, "b2": bias("c2_b", 64),
        "gc3": jnp.asarray(gc3),
        "w3": jnp.transpose(params["c3_w"], (2, 3, 1, 0)).reshape(9, 64, 64), "b3": bias("c3_b", 64),
        "w4": params["c4_w"].reshape(256, 64).T, "b4": bias("c4_b", 256),
        "gp2": jnp.asarray(gp2),
        "w5": params["c5_w"].reshape(128, 256).T, "b5": bias("c5_b", 128),
        "gc6": jnp.asarray(gc6),
        "w6": jnp.transpose(params["c6_w"], (2, 3, 1, 0)).reshape(9, 128, 128), "b6": bias("c6_b", 128),
        "w7": params["c7_w"].reshape(512, 128).T, "b7": bias("c7_b", 512),
        "fcw": params["fc_w"].T, "fcb": params["fc_b"].reshape(1, -1),
    }


# ------------------------------ forward (jitted) ------------------------------

def _im2col_7x7_s2_p3(xh):
    """(B, H, W, 3) NHWC -> (B*Ho*Wo, 3*49) patches, feature order (cin, kh, kw)."""
    B, H, W, C = xh.shape
    Ho = (H + 2 * 3 - 7) // 2 + 1
    Wo = (W + 2 * 3 - 7) // 2 + 1
    xp = jnp.pad(xh, ((0, 0), (3, 3), (3, 3), (0, 0)))
    cols = []
    for kh in range(7):
        for kw in range(7):
            cols.append(xp[:, kh:kh + 2 * Ho:2, kw:kw + 2 * Wo:2, :])
    pat = jnp.stack(cols, axis=0)                                   # (49, B, Ho, Wo, 3)
    return jnp.transpose(pat, (1, 2, 3, 4, 0)).reshape(B * Ho * Wo, C * 49)


def simplenet_forward(prep, x):
    """x: (B, 3, H, W) NCHW float32 -> logits (B, num_classes).  Single pallas_call."""
    B = x.shape[0]
    num_classes = prep["fcw"].shape[1]
    xh = jnp.transpose(x, (0, 2, 3, 1))                             # NCHW -> NHWC
    patches = _im2col_7x7_s2_p3(xh)                                 # only XLA glue
    return pl.pallas_call(
        _simplenet_kernel,
        out_shape=jax.ShapeDtypeStruct((B, num_classes), jnp.float32),
        compiler_params=pltpu.CompilerParams(vmem_limit_bytes=32 * 1024 * 1024),
    )(
        patches,
        prep["w1"], prep["b1"],
        prep["gp1"],
        prep["w2"], prep["b2"],
        prep["gc3"],
        prep["w3"], prep["b3"],
        prep["w4"], prep["b4"],
        prep["gp2"],
        prep["w5"], prep["b5"],
        prep["gc6"],
        prep["w6"], prep["b6"],
        prep["w7"], prep["b7"],
        prep["fcw"], prep["fcb"],
    )


# -------------------------------- init & main ---------------------------------

def _he_normal(key, shape, fan_in):
    return jax.random.normal(key, shape, dtype=jnp.float32) * jnp.sqrt(2.0 / fan_in)


def init_params(key, num_classes):
    ks = jax.random.split(key, 8)
    return {
        "c1_w": _he_normal(ks[0], (64, 3, 7, 7), 3 * 49), "c1_b": jnp.zeros((64,), jnp.float32),
        "c2_w": _he_normal(ks[1], (64, 64, 1, 1), 64), "c2_b": jnp.zeros((64,), jnp.float32),
        "c3_w": _he_normal(ks[2], (64, 64, 3, 3), 64 * 9), "c3_b": jnp.zeros((64,), jnp.float32),
        "c4_w": _he_normal(ks[3], (256, 64, 1, 1), 64), "c4_b": jnp.zeros((256,), jnp.float32),
        "c5_w": _he_normal(ks[4], (128, 256, 1, 1), 256), "c5_b": jnp.zeros((128,), jnp.float32),
        "c6_w": _he_normal(ks[5], (128, 128, 3, 3), 128 * 9), "c6_b": jnp.zeros((128,), jnp.float32),
        "c7_w": _he_normal(ks[6], (512, 128, 1, 1), 128), "c7_b": jnp.zeros((512,), jnp.float32),
        "fc_w": jax.random.normal(ks[7], (num_classes, 512), dtype=jnp.float32) * (1.0 / jnp.sqrt(512.0)),
        "fc_b": jnp.zeros((num_classes,), jnp.float32),
    }


if __name__ == "__main__":
    num_classes = 100
    B, H, W = 2, 3, 32
    key = jax.random.PRNGKey(0)
    k_param, k_x = jax.random.split(key)

    params = init_params(k_param, num_classes)
    prep = prepare_params(params, B, 32, 32)        # weight re-layout + selectors, once
    x = jax.random.normal(k_x, (B, 3, 32, 32), dtype=jnp.float32)

    fwd = jax.jit(simplenet_forward)
    logits = fwd(prep, x)
    logits = jax.block_until_ready(logits)

    assert logits.shape == (B, num_classes)
    assert bool(jnp.all(jnp.isfinite(logits)))
    print("KERNEL_OK")
</pallas_src>

<mosaic_0001>
module attributes {stable_mosaic.version = 11 : i64} {
  func.func @_simplenet_kernel(%arg0: memref<512x147xf32, #tpu.memory_space<vmem>>, %arg1: memref<147x64xf32, #tpu.memory_space<vmem>>, %arg2: memref<1x64xf32, #tpu.memory_space<vmem>>, %arg3: memref<1152x512xf32, #tpu.memory_space<vmem>>, %arg4: memref<64x64xf32, #tpu.memory_space<vmem>>, %arg5: memref<1x64xf32, #tpu.memory_space<vmem>>, %arg6: memref<1152x128xf32, #tpu.memory_space<vmem>>, %arg7: memref<9x64x64xf32, #tpu.memory_space<vmem>>, %arg8: memref<1x64xf32, #tpu.memory_space<vmem>>, %arg9: memref<64x256xf32, #tpu.memory_space<vmem>>, %arg10: memref<1x256xf32, #tpu.memory_space<vmem>>, %arg11: memref<288x128xf32, #tpu.memory_space<vmem>>, %arg12: memref<256x128xf32, #tpu.memory_space<vmem>>, %arg13: memref<1x128xf32, #tpu.memory_space<vmem>>, %arg14: memref<288x32xf32, #tpu.memory_space<vmem>>, %arg15: memref<9x128x128xf32, #tpu.memory_space<vmem>>, %arg16: memref<1x128xf32, #tpu.memory_space<vmem>>, %arg17: memref<128x512xf32, #tpu.memory_space<vmem>>, %arg18: memref<1x512xf32, #tpu.memory_space<vmem>>, %arg19: memref<512x100xf32, #tpu.memory_space<vmem>>, %arg20: memref<1x100xf32, #tpu.memory_space<vmem>>, %arg21: memref<2x100xf32, #tpu.memory_space<vmem>>) attributes {dimension_semantics = [], scalar_prefetch = 0 : i64, scratch_operands = 0 : i64, tpu.core_type = #tpu.core_type<tc>} {
    %c0 = arith.constant 0 : index
    %c0_0 = arith.constant 0 : index
    %0 = vector.load %arg0[%c0, %c0_0] : memref<512x147xf32, #tpu.memory_space<vmem>>, vector<512x147xf32>
    %c0_1 = arith.constant 0 : index
    %c0_2 = arith.constant 0 : index
    %1 = vector.load %arg1[%c0_1, %c0_2] : memref<147x64xf32, #tpu.memory_space<vmem>>, vector<147x64xf32>
    %cst = arith.constant dense<0.000000e+00> : vector<512x64xf32>
    %2 = tpu.matmul %0, %1, %cst {dimension_numbers = #tpu.dot_dimension_numbers<[1], [0], [0], [1], [0, 0, 1, 1], [], []>} : vector<512x147xf32>, vector<147x64xf32>, vector<512x64xf32> -> vector<512x64xf32>
    %c0_3 = arith.constant 0 : index
    %c0_4 = arith.constant 0 : index
    %3 = vector.load %arg2[%c0_3, %c0_4] : memref<1x64xf32, #tpu.memory_space<vmem>>, vector<1x64xf32>
    %4 = vector.broadcast %3 : vector<1x64xf32> to vector<512x64xf32>
    %5 = arith.addf %2, %4 : vector<512x64xf32>
    %cst_5 = arith.constant 0.000000e+00 : f32
    %6 = vector.broadcast %cst_5 : f32 to vector<512x64xf32>
    %7 = arith.maximumf %5, %6 : vector<512x64xf32>
    %c0_6 = arith.constant 0 : index
    %c0_7 = arith.constant 0 : index
    %8 = vector.load %arg3[%c0_6, %c0_7] : memref<1152x512xf32, #tpu.memory_space<vmem>>, vector<1152x512xf32>
    %cst_8 = arith.constant dense<0.000000e+00> : vector<1152x64xf32>
    %9 = tpu.matmul %8, %7, %cst_8 {dimension_numbers = #tpu.dot_dimension_numbers<[1], [0], [0], [1], [0, 0, 1, 1], [], []>} : vector<1152x512xf32>, vector<512x64xf32>, vector<1152x64xf32> -> vector<1152x64xf32>
    %10 = vector.extract_strided_slice %9 {offsets = [0, 0], sizes = [128, 64], strides = [1, 1]} : vector<1152x64xf32> to vector<128x64xf32>
    %11 = vector.extract_strided_slice %9 {offsets = [128, 0], sizes = [128, 64], strides = [1, 1]} : vector<1152x64xf32> to vector<128x64xf32>
    %12 = vector.extract_strided_slice %9 {offsets = [256, 0], sizes = [128, 64], strides = [1, 1]} : vector<1152x64xf32> to vector<128x64xf32>
    %13 = vector.extract_strided_slice %9 {offsets = [384, 0], sizes = [128, 64], strides = [1, 1]} : vector<1152x64xf32> to vector<128x64xf32>
    %14 = vector.extract_strided_slice %9 {offsets = [512, 0], sizes = [128, 64], strides = [1, 1]} : vector<1152x64xf32> to vector<128x64xf32>
    %15 = vector.extract_strided_slice %9 {offsets = [640, 0], sizes = [128, 64], strides = [1, 1]} : vector<1152x64xf32> to vector<128x64xf32>
    %16 = vector.extract_strided_slice %9 {offsets = [768, 0], sizes = [128, 64], strides = [1, 1]} : vector<1152x64xf32> to vector<128x64xf32>
    %17 = vector.extract_strided_slice %9 {offsets = [896, 0], sizes = [128, 64], strides = [1, 1]} : vector<1152x64xf32> to vector<128x64xf32>
    %18 = vector.extract_strided_slice %9 {offsets = [1024, 0], sizes = [128, 64], strides = [1, 1]} : vector<1152x64xf32> to vector<128x64xf32>
    %19 = arith.maximumf %10, %11 : vector<128x64xf32>
    %20 = arith.maximumf %12, %13 : vector<128x64xf32>
    %21 = arith.maximumf %14, %15 : vector<128x64xf32>
    %22 = arith.maximumf %16, %17 : vector<128x64xf32>
    %23 = arith.maximumf %19, %20 : vector<128x64xf32>
    %24 = arith.maximumf %21, %22 : vector<128x64xf32>
    %25 = arith.maximumf %23, %24 : vector<128x64xf32>
    %26 = arith.maximumf %25, %18 : vector<128x64xf32>
    %c0_9 = arith.constant 0 : index
    %c0_10 = arith.constant 0 : index
    %27 = vector.load %arg4[%c0_9, %c0_10] : memref<64x64xf32, #tpu.memory_space<vmem>>, vector<64x64xf32>
    %cst_11 = arith.constant dense<0.000000e+00> : vector<128x64xf32>
    %28 = tpu.matmul %26, %27, %cst_11 {dimension_numbers = #tpu.dot_dimension_numbers<[1], [0], [0], [1], [0, 0, 1, 1], [], []>} : vector<128x64xf32>, vector<64x64xf32>, vector<128x64xf32> -> vector<128x64xf32>
    %c0_12 = arith.constant 0 : index
    %c0_13 = arith.constant 0 : index
    %29 = vector.load %arg5[%c0_12, %c0_13] : memref<1x64xf32, #tpu.memory_space<vmem>>, vector<1x64xf32>
    %30 = vector.broadcast %29 : vector<1x64xf32> to vector<128x64xf32>
    %31 = arith.addf %28, %30 : vector<128x64xf32>
    %cst_14 = arith.constant 0.000000e+00 : f32
    %32 = vector.broadcast %cst_14 : f32 to vector<128x64xf32>
    %33 = arith.maximumf %31, %32 : vector<128x64xf32>
    %c0_15 = arith.constant 0 : index
    %c0_16 = arith.constant 0 : index
    %34 = vector.load %arg6[%c0_15, %c0_16] : memref<1152x128xf32, #tpu.memory_space<vmem>>, vector<1152x128xf32>
    %cst_17 = arith.constant dense<0.000000e+00> : vector<1152x64xf32>
    %35 = tpu.matmul %34, %33, %cst_17 {dimension_numbers = #tpu.dot_dimension_numbers<[1], [0], [0], [1], [0, 0, 1, 1], [], []>} : vector<1152x128xf32>, vector<128x64xf32>, vector<1152x64xf32> -> vector<1152x64xf32>
    %36 = vector.extract_strided_slice %35 {offsets = [0, 0], sizes = [128, 64], strides = [1, 1]} : vector<1152x64xf32> to vector<128x64xf32>
    %c0_18 = arith.constant 0 : index
    %c0_19 = arith.constant 0 : index
    %c0_20 = arith.constant 0 : index
    %37 = vector.load %arg7[%c0_18, %c0_19, %c0_20] : memref<9x64x64xf32, #tpu.memory_space<vmem>>, vector<1x64x64xf32>
    %38 = vector.shape_cast %37 : vector<1x64x64xf32> to vector<64x64xf32>
    %cst_21 = arith.constant dense<0.000000e+00> : vector<128x64xf32>
    %39 = tpu.matmul %36, %38, %cst_21 {dimension_numbers = #tpu.dot_dimension_numbers<[1], [0], [0], [1], [0, 0, 1, 1], [], []>} : vector<128x64xf32>, vector<64x64xf32>, vector<128x64xf32> -> vector<128x64xf32>
    %40 = vector.extract_strided_slice %35 {offsets = [128, 0], sizes = [128, 64], strides = [1, 1]} : vector<1152x64xf32> to vector<128x64xf32>
    %c1 = arith.constant 1 : index
    %c0_22 = arith.constant 0 : index
    %c0_23 = arith.constant 0 : index
    %41 = vector.load %arg7[%c1, %c0_22, %c0_23] : memref<9x64x64xf32, #tpu.memory_space<vmem>>, vector<1x64x64xf32>
    %42 = vector.shape_cast %41 : vector<1x64x64xf32> to vector<64x64xf32>
    %cst_24 = arith.constant dense<0.000000e+00> : vector<128x64xf32>
    %43 = tpu.matmul %40, %42, %cst_24 {dimension_numbers = #tpu.dot_dimension_numbers<[1], [0], [0], [1], [0, 0, 1, 1], [], []>} : vector<128x64xf32>, vector<64x64xf32>, vector<128x64xf32> -> vector<128x64xf32>
    %44 = arith.addf %39, %43 : vector<128x64xf32>
    %45 = vector.extract_strided_slice %35 {offsets = [256, 0], sizes = [128, 64], strides = [1, 1]} : vector<1152x64xf32> to vector<128x64xf32>
    %c2 = arith.constant 2 : index
    %c0_25 = arith.constant 0 : index
    %c0_26 = arith.constant 0 : index
    %46 = vector.load %arg7[%c2, %c0_25, %c0_26] : memref<9x64x64xf32, #tpu.memory_space<vmem>>, vector<1x64x64xf32>
    %47 = vector.shape_cast %46 : vector<1x64x64xf32> to vector<64x64xf32>
    %cst_27 = arith.constant dense<0.000000e+00> : vector<128x64xf32>
    %48 = tpu.matmul %45, %47, %cst_27 {dimension_numbers = #tpu.dot_dimension_numbers<[1], [0], [0], [1], [0, 0, 1, 1], [], []>} : vector<128x64xf32>, vector<64x64xf32>, vector<128x64xf32> -> vector<128x64xf32>
    %49 = arith.addf %44, %48 : vector<128x64xf32>
    %50 = vector.extract_strided_slice %35 {offsets = [384, 0], sizes = [128, 64], strides = [1, 1]} : vector<1152x64xf32> to vector<128x64xf32>
    %c3 = arith.constant 3 : index
    %c0_28 = arith.constant 0 : index
    %c0_29 = arith.constant 0 : index
    %51 = vector.load %arg7[%c3, %c0_28, %c0_29] : memref<9x64x64xf32, #tpu.memory_space<vmem>>, vector<1x64x64xf32>
    %52 = vector.shape_cast %51 : vector<1x64x64xf32> to vector<64x64xf32>
    %cst_30 = arith.constant dense<0.000000e+00> : vector<128x64xf32>
    %53 = tpu.matmul %50, %52, %cst_30 {dimension_numbers = #tpu.dot_dimension_numbers<[1], [0], [0], [1], [0, 0, 1, 1], [], []>} : vector<128x64xf32>, vector<64x64xf32>, vector<128x64xf32> -> vector<128x64xf32>
    %54 = arith.addf %49, %53 : vector<128x64xf32>
    %55 = vector.extract_strided_slice %35 {offsets = [512, 0], sizes = [128, 64], strides = [1, 1]} : vector<1152x64xf32> to vector<128x64xf32>
    %c4 = arith.constant 4 : index
    %c0_31 = arith.constant 0 : index
    %c0_32 = arith.constant 0 : index
    %56 = vector.load %arg7[%c4, %c0_31, %c0_32] : memref<9x64x64xf32, #tpu.memory_space<vmem>>, vector<1x64x64xf32>
    %57 = vector.shape_cast %56 : vector<1x64x64xf32> to vector<64x64xf32>
    %cst_33 = arith.constant dense<0.000000e+00> : vector<128x64xf32>
    %58 = tpu.matmul %55, %57, %cst_33 {dimension_numbers = #tpu.dot_dimension_numbers<[1], [0], [0], [1], [0, 0, 1, 1], [], []>} : vector<128x64xf32>, vector<64x64xf32>, vector<128x64xf32> -> vector<128x64xf32>
    %59 = arith.addf %54, %58 : vector<128x64xf32>
    %60 = vector.extract_strided_slice %35 {offsets = [640, 0], sizes = [128, 64], strides = [1, 1]} : vector<1152x64xf32> to vector<128x64xf32>
    %c5 = arith.constant 5 : index
    %c0_34 = arith.constant 0 : index
    %c0_35 = arith.constant 0 : index
    %61 = vector.load %arg7[%c5, %c0_34, %c0_35] : memref<9x64x64xf32, #tpu.memory_space<vmem>>, vector<1x64x64xf32>
    %62 = vector.shape_cast %61 : vector<1x64x64xf32> to vector<64x64xf32>
    %cst_36 = arith.constant dense<0.000000e+00> : vector<128x64xf32>
    %63 = tpu.matmul %60, %62, %cst_36 {dimension_numbers = #tpu.dot_dimension_numbers<[1], [0], [0], [1], [0, 0, 1, 1], [], []>} : vector<128x64xf32>, vector<64x64xf32>, vector<128x64xf32> -> vector<128x64xf32>
    %64 = arith.addf %59, %63 : vector<128x64xf32>
    %65 = vector.extract_strided_slice %35 {offsets = [768, 0], sizes = [128, 64], strides = [1, 1]} : vector<1152x64xf32> to vector<128x64xf32>
    %c6 = arith.constant 6 : index
    %c0_37 = arith.constant 0 : index
    %c0_38 = arith.constant 0 : index
    %66 = vector.load %arg7[%c6, %c0_37, %c0_38] : memref<9x64x64xf32, #tpu.memory_space<vmem>>, vector<1x64x64xf32>
    %67 = vector.shape_cast %66 : vector<1x64x64xf32> to vector<64x64xf32>
    %cst_39 = arith.constant dense<0.000000e+00> : vector<128x64xf32>
    %68 = tpu.matmul %65, %67, %cst_39 {dimension_numbers = #tpu.dot_dimension_numbers<[1], [0], [0], [1], [0, 0, 1, 1], [], []>} : vector<128x64xf32>, vector<64x64xf32>, vector<128x64xf32> -> vector<128x64xf32>
    %69 = arith.addf %64, %68 : vector<128x64xf32>
    %70 = vector.extract_strided_slice %35 {offsets = [896, 0], sizes = [128, 64], strides = [1, 1]} : vector<1152x64xf32> to vector<128x64xf32>
    %c7 = arith.constant 7 : index
    %c0_40 = arith.constant 0 : index
    %c0_41 = arith.constant 0 : index
    %71 = vector.load %arg7[%c7, %c0_40, %c0_41] : memref<9x64x64xf32, #tpu.memory_space<vmem>>, vector<1x64x64xf32>
    %72 = vector.shape_cast %71 : vector<1x64x64xf32> to vector<64x64xf32>
    %cst_42 = arith.constant dense<0.000000e+00> : vector<128x64xf32>
    %73 = tpu.matmul %70, %72, %cst_42 {dimension_numbers = #tpu.dot_dimension_numbers<[1], [0], [0], [1], [0, 0, 1, 1], [], []>} : vector<128x64xf32>, vector<64x64xf32>, vector<128x64xf32> -> vector<128x64xf32>
    %74 = arith.addf %69, %73 : vector<128x64xf32>
    %75 = vector.extract_strided_slice %35 {offsets = [1024, 0], sizes = [128, 64], strides = [1, 1]} : vector<1152x64xf32> to vector<128x64xf32>
    %c8 = arith.constant 8 : index
    %c0_43 = arith.constant 0 : index
    %c0_44 = arith.constant 0 : index
    %76 = vector.load %arg7[%c8, %c0_43, %c0_44] : memref<9x64x64xf32, #tpu.memory_space<vmem>>, vector<1x64x64xf32>
    %77 = vector.shape_cast %76 : vector<1x64x64xf32> to vector<64x64xf32>
    %cst_45 = arith.constant dense<0.000000e+00> : vector<128x64xf32>
    %78 = tpu.matmul %75, %77, %cst_45 {dimension_numbers = #tpu.dot_dimension_numbers<[1], [0], [0], [1], [0, 0, 1, 1], [], []>} : vector<128x64xf32>, vector<64x64xf32>, vector<128x64xf32> -> vector<128x64xf32>
    %79 = arith.addf %74, %78 : vector<128x64xf32>
    %c0_46 = arith.constant 0 : index
    %c0_47 = arith.constant 0 : index
    %80 = vector.load %arg8[%c0_46, %c0_47] : memref<1x64xf32, #tpu.memory_space<vmem>>, vector<1x64xf32>
    %81 = vector.broadcast %80 : vector<1x64xf32> to vector<128x64xf32>
    %82 = arith.addf %79, %81 : vector<128x64xf32>
    %cst_48 = arith.constant 0.000000e+00 : f32
    %83 = vector.broadcast %cst_48 : f32 to vector<128x64xf32>
    %84 = arith.maximumf %82, %83 : vector<128x64xf32>
    %c0_49 = arith.constant 0 : index
    %c0_50 = arith.constant 0 : index
    %85 = vector.load %arg9[%c0_49, %c0_50] : memref<64x256xf32, #tpu.memory_space<vmem>>, vector<64x256xf32>
    %cst_51 = arith.constant dense<0.000000e+00> : vector<128x256xf32>
    %86 = tpu.matmul %84, %85, %cst_51 {dimension_numbers = #tpu.dot_dimension_numbers<[1], [0], [0], [1], [0, 0, 1, 1], [], []>} : vector<128x64xf32>, vector<64x256xf32>, vector<128x256xf32> -> vector<128x256xf32>
    %c0_52 = arith.constant 0 : index
    %c0_53 = arith.constant 0 : index
    %87 = vector.load %arg10[%c0_52, %c0_53] : memref<1x256xf32, #tpu.memory_space<vmem>>, vector<1x256xf32>
    %88 = vector.broadcast %87 : vector<1x256xf32> to vector<128x256xf32>
    %89 = arith.addf %86, %88 : vector<128x256xf32>
    %cst_54 = arith.constant 0.000000e+00 : f32
    %90 = vector.broadcast %cst_54 : f32 to vector<128x256xf32>
    %91 = arith.maximumf %89, %90 : vector<128x256xf32>
    %c0_55 = arith.constant 0 : index
    %c0_56 = arith.constant 0 : index
    %92 = vector.load %arg11[%c0_55, %c0_56] : memref<288x128xf32, #tpu.memory_space<vmem>>, vector<288x128xf32>
    %cst_57 = arith.constant dense<0.000000e+00> : vector<288x256xf32>
    %93 = tpu.matmul %92, %91, %cst_57 {dimension_numbers = #tpu.dot_dimension_numbers<[1], [0], [0], [1], [0, 0, 1, 1], [], []>} : vector<288x128xf32>, vector<128x256xf32>, vector<288x256xf32> -> vector<288x256xf32>
    %94 = vector.extract_strided_slice %93 {offsets = [0, 0], sizes = [32, 256], strides = [1, 1]} : vector<288x256xf32> to vector<32x256xf32>
    %95 = vector.extract_strided_slice %93 {offsets = [32, 0], sizes = [32, 256], strides = [1, 1]} : vector<288x256xf32> to vector<32x256xf32>
    %96 = vector.extract_strided_slice %93 {offsets = [64, 0], sizes = [32, 256], strides = [1, 1]} : vector<288x256xf32> to vector<32x256xf32>
    %97 = vector.extract_strided_slice %93 {offsets = [96, 0], sizes = [32, 256], strides = [1, 1]} : vector<288x256xf32> to vector<32x256xf32>
    %98 = vector.extract_strided_slice %93 {offsets = [128, 0], sizes = [32, 256], strides = [1, 1]} : vector<288x256xf32> to vector<32x256xf32>
    %99 = vector.extract_strided_slice %93 {offsets = [160, 0], sizes = [32, 256], strides = [1, 1]} : vector<288x256xf32> to vector<32x256xf32>
    %100 = vector.extract_strided_slice %93 {offsets = [192, 0], sizes = [32, 256], strides = [1, 1]} : vector<288x256xf32> to vector<32x256xf32>
    %101 = vector.extract_strided_slice %93 {offsets = [224, 0], sizes = [32, 256], strides = [1, 1]} : vector<288x256xf32> to vector<32x256xf32>
    %102 = vector.extract_strided_slice %93 {offsets = [256, 0], sizes = [32, 256], strides = [1, 1]} : vector<288x256xf32> to vector<32x256xf32>
    %103 = arith.maximumf %94, %95 : vector<32x256xf32>
    %104 = arith.maximumf %96, %97 : vector<32x256xf32>
    %105 = arith.maximumf %98, %99 : vector<32x256xf32>
    %106 = arith.maximumf %100, %101 : vector<32x256xf32>
    %107 = arith.maximumf %103, %104 : vector<32x256xf32>
    %108 = arith.maximumf %105, %106 : vector<32x256xf32>
    %109 = arith.maximumf %107, %108 : vector<32x256xf32>
    %110 = arith.maximumf %109, %102 : vector<32x256xf32>
    %c0_58 = arith.constant 0 : index
    %c0_59 = arith.constant 0 : index
    %111 = vector.load %arg12[%c0_58, %c0_59] : memref<256x128xf32, #tpu.memory_space<vmem>>, vector<256x128xf32>
    %cst_60 = arith.constant dense<0.000000e+00> : vector<32x128xf32>
    %112 = tpu.matmul %110, %111, %cst_60 {dimension_numbers = #tpu.dot_dimension_numbers<[1], [0], [0], [1], [0, 0, 1, 1], [], []>} : vector<32x256xf32>, vector<256x128xf32>, vector<32x128xf32> -> vector<32x128xf32>
    %c0_61 = arith.constant 0 : index
    %c0_62 = arith.constant 0 : index
    %113 = vector.load %arg13[%c0_61, %c0_62] : memref<1x128xf32, #tpu.memory_space<vmem>>, vector<1x128xf32>
    %114 = vector.broadcast %113 : vector<1x128xf32> to vector<32x128xf32>
    %115 = arith.addf %112, %114 : vector<32x128xf32>
    %cst_63 = arith.constant 0.000000e+00 : f32
    %116 = vector.broadcast %cst_63 : f32 to vector<32x128xf32>
    %117 = arith.maximumf %115, %116 : vector<32x128xf32>
    %c0_64 = arith.constant 0 : index
    %c0_65 = arith.constant 0 : index
    %118 = vector.load %arg14[%c0_64, %c0_65] : memref<288x32xf32, #tpu.memory_space<vmem>>, vector<288x32xf32>
    %cst_66 = arith.constant dense<0.000000e+00> : vector<288x128xf32>
    %119 = tpu.matmul %118, %117, %cst_66 {dimension_numbers = #tpu.dot_dimension_numbers<[1], [0], [0], [1], [0, 0, 1, 1], [], []>} : vector<288x32xf32>, vector<32x128xf32>, vector<288x128xf32> -> vector<288x128xf32>
    %120 = vector.extract_strided_slice %119 {offsets = [0, 0], sizes = [32, 128], strides = [1, 1]} : vector<288x128xf32> to vector<32x128xf32>
    %c0_67 = arith.constant 0 : index
    %c0_68 = arith.constant 0 : index
    %c0_69 = arith.constant 0 : index
    %121 = vector.load %arg15[%c0_67, %c0_68, %c0_69] : memref<9x128x128xf32, #tpu.memory_space<vmem>>, vector<1x128x128xf32>
    %122 = vector.shape_cast %121 : vector<1x128x128xf32> to vector<128x128xf32>
    %cst_70 = arith.constant dense<0.000000e+00> : vector<32x128xf32>
    %123 = tpu.matmul %120, %122, %cst_70 {dimension_numbers = #tpu.dot_dimension_numbers<[1], [0], [0], [1], [0, 0, 1, 1], [], []>} : vector<32x128xf32>, vector<128x128xf32>, vector<32x128xf32> -> vector<32x128xf32>
    %124 = vector.extract_strided_slice %119 {offsets = [32, 0], sizes = [32, 128], strides = [1, 1]} : vector<288x128xf32> to vector<32x128xf32>
    %c1_71 = arith.constant 1 : index
    %c0_72 = arith.constant 0 : index
    %c0_73 = arith.constant 0 : index
    %125 = vector.load %arg15[%c1_71, %c0_72, %c0_73] : memref<9x128x128xf32, #tpu.memory_space<vmem>>, vector<1x128x128xf32>
    %126 = vector.shape_cast %125 : vector<1x128x128xf32> to vector<128x128xf32>
    %cst_74 = arith.constant dense<0.000000e+00> : vector<32x128xf32>
    %127 = tpu.matmul %124, %126, %cst_74 {dimension_numbers = #tpu.dot_dimension_numbers<[1], [0], [0], [1], [0, 0, 1, 1], [], []>} : vector<32x128xf32>, vector<128x128xf32>, vector<32x128xf32> -> vector<32x128xf32>
    %128 = arith.addf %123, %127 : vector<32x128xf32>
    %129 = vector.extract_strided_slice %119 {offsets = [64, 0], sizes = [32, 128], strides = [1, 1]} : vector<288x128xf32> to vector<32x128xf32>
    %c2_75 = arith.constant 2 : index
    %c0_76 = arith.constant 0 : index
    %c0_77 = arith.constant 0 : index
    %130 = vector.load %arg15[%c2_75, %c0_76, %c0_77] : memref<9x128x128xf32, #tpu.memory_space<vmem>>, vector<1x128x128xf32>
    %131 = vector.shape_cast %130 : vector<1x128x128xf32> to vector<128x128xf32>
    %cst_78 = arith.constant dense<0.000000e+00> : vector<32x128xf32>
    %132 = tpu.matmul %129, %131, %cst_78 {dimension_numbers = #tpu.dot_dimension_numbers<[1], [0], [0], [1], [0, 0, 1, 1], [], []>} : vector<32x128xf32>, vector<128x128xf32>, vector<32x128xf32> -> vector<32x128xf32>
    %133 = arith.addf %128, %132 : vector<32x128xf32>
    %134 = vector.extract_strided_slice %119 {offsets = [96, 0], sizes = [32, 128], strides = [1, 1]} : vector<288x128xf32> to vector<32x128xf32>
    %c3_79 = arith.constant 3 : index
    %c0_80 = arith.constant 0 : index
    %c0_81 = arith.constant 0 : index
    %135 = vector.load %arg15[%c3_79, %c0_80, %c0_81] : memref<9x128x128xf32, #tpu.memory_space<vmem>>, vector<1x128x128xf32>
    %136 = vector.shape_cast %135 : vector<1x128x128xf32> to vector<128x128xf32>
    %cst_82 = arith.constant dense<0.000000e+00> : vector<32x128xf32>
    %137 = tpu.matmul %134, %136, %cst_82 {dimension_numbers = #tpu.dot_dimension_numbers<[1], [0], [0], [1], [0, 0, 1, 1], [], []>} : vector<32x128xf32>, vector<128x128xf32>, vector<32x128xf32> -> vector<32x128xf32>
    %138 = arith.addf %133, %137 : vector<32x128xf32>
    %139 = vector.extract_strided_slice %119 {offsets = [128, 0], sizes = [32, 128], strides = [1, 1]} : vector<288x128xf32> to vector<32x128xf32>
    %c4_83 = arith.constant 4 : index
    %c0_84 = arith.constant 0 : index
    %c0_85 = arith.constant 0 : index
    %140 = vector.load %arg15[%c4_83, %c0_84, %c0_85] : memref<9x128x128xf32, #tpu.memory_space<vmem>>, vector<1x128x128xf32>
    %141 = vector.shape_cast %140 : vector<1x128x128xf32> to vector<128x128xf32>
    %cst_86 = arith.constant dense<0.000000e+00> : vector<32x128xf32>
    %142 = tpu.matmul %139, %141, %cst_86 {dimension_numbers = #tpu.dot_dimension_numbers<[1], [0], [0], [1], [0, 0, 1, 1], [], []>} : vector<32x128xf32>, vector<128x128xf32>, vector<32x128xf32> -> vector<32x128xf32>
    %143 = arith.addf %138, %142 : vector<32x128xf32>
    %144 = vector.extract_strided_slice %119 {offsets = [160, 0], sizes = [32, 128], strides = [1, 1]} : vector<288x128xf32> to vector<32x128xf32>
    %c5_87 = arith.constant 5 : index
    %c0_88 = arith.constant 0 : index
    %c0_89 = arith.constant 0 : index
    %145 = vector.load %arg15[%c5_87, %c0_88, %c0_89] : memref<9x128x128xf32, #tpu.memory_space<vmem>>, vector<1x128x128xf32>
    %146 = vector.shape_cast %145 : vector<1x128x128xf32> to vector<128x128xf32>
    %cst_90 = arith.constant dense<0.000000e+00> : vector<32x128xf32>
    %147 = tpu.matmul %144, %146, %cst_90 {dimension_numbers = #tpu.dot_dimension_numbers<[1], [0], [0], [1], [0, 0, 1, 1], [], []>} : vector<32x128xf32>, vector<128x128xf32>, vector<32x128xf32> -> vector<32x128xf32>
    %148 = arith.addf %143, %147 : vector<32x128xf32>
    %149 = vector.extract_strided_slice %119 {offsets = [192, 0], sizes = [32, 128], strides = [1, 1]} : vector<288x128xf32> to vector<32x128xf32>
    %c6_91 = arith.constant 6 : index
    %c0_92 = arith.constant 0 : index
    %c0_93 = arith.constant 0 : index
    %150 = vector.load %arg15[%c6_91, %c0_92, %c0_93] : memref<9x128x128xf32, #tpu.memory_space<vmem>>, vector<1x128x128xf32>
    %151 = vector.shape_cast %150 : vector<1x128x128xf32> to vector<128x128xf32>
    %cst_94 = arith.constant dense<0.000000e+00> : vector<32x128xf32>
    %152 = tpu.matmul %149, %151, %cst_94 {dimension_numbers = #tpu.dot_dimension_numbers<[1], [0], [0], [1], [0, 0, 1, 1], [], []>} : vector<32x128xf32>, vector<128x128xf32>, vector<32x128xf32> -> vector<32x128xf32>
    %153 = arith.addf %148, %152 : vector<32x128xf32>
    %154 = vector.extract_strided_slice %119 {offsets = [224, 0], sizes = [32, 128], strides = [1, 1]} : vector<288x128xf32> to vector<32x128xf32>
    %c7_95 = arith.constant 7 : index
    %c0_96 = arith.constant 0 : index
    %c0_97 = arith.constant 0 : index
    %155 = vector.load %arg15[%c7_95, %c0_96, %c0_97] : memref<9x128x128xf32, #tpu.memory_space<vmem>>, vector<1x128x128xf32>
    %156 = vector.shape_cast %155 : vector<1x128x128xf32> to vector<128x128xf32>
    %cst_98 = arith.constant dense<0.000000e+00> : vector<32x128xf32>
    %157 = tpu.matmul %154, %156, %cst_98 {dimension_numbers = #tpu.dot_dimension_numbers<[1], [0], [0], [1], [0, 0, 1, 1], [], []>} : vector<32x128xf32>, vector<128x128xf32>, vector<32x128xf32> -> vector<32x128xf32>
    %158 = arith.addf %153, %157 : vector<32x128xf32>
    %159 = vector.extract_strided_slice %119 {offsets = [256, 0], sizes = [32, 128], strides = [1, 1]} : vector<288x128xf32> to vector<32x128xf32>
    %c8_99 = arith.constant 8 : index
    %c0_100 = arith.constant 0 : index
    %c0_101 = arith.constant 0 : index
    %160 = vector.load %arg15[%c8_99, %c0_100, %c0_101] : memref<9x128x128xf32, #tpu.memory_space<vmem>>, vector<1x128x128xf32>
    %161 = vector.shape_cast %160 : vector<1x128x128xf32> to vector<128x128xf32>
    %cst_102 = arith.constant dense<0.000000e+00> : vector<32x128xf32>
    %162 = tpu.matmul %159, %161, %cst_102 {dimension_numbers = #tpu.dot_dimension_numbers<[1], [0], [0], [1], [0, 0, 1, 1], [], []>} : vector<32x128xf32>, vector<128x128xf32>, vector<32x128xf32> -> vector<32x128xf32>
    %163 = arith.addf %158, %162 : vector<32x128xf32>
    %c0_103 = arith.constant 0 : index
    %c0_104 = arith.constant 0 : index
    %164 = vector.load %arg16[%c0_103, %c0_104] : memref<1x128xf32, #tpu.memory_space<vmem>>, vector<1x128xf32>
    %165 = vector.broadcast %164 : vector<1x128xf32> to vector<32x128xf32>
    %166 = arith.addf %163, %165 : vector<32x128xf32>
    %cst_105 = arith.constant 0.000000e+00 : f32
    %167 = vector.broadcast %cst_105 : f32 to vector<32x128xf32>
    %168 = arith.maximumf %166, %167 : vector<32x128xf32>
    %c0_106 = arith.constant 0 : index
    %c0_107 = arith.constant 0 : index
    %169 = vector.load %arg17[%c0_106, %c0_107] : memref<128x512xf32, #tpu.memory_space<vmem>>, vector<128x512xf32>
    %cst_108 = arith.constant dense<0.000000e+00> : vector<32x512xf32>
    %170 = tpu.matmul %168, %169, %cst_108 {dimension_numbers = #tpu.dot_dimension_numbers<[1], [0], [0], [1], [0, 0, 1, 1], [], []>} : vector<32x128xf32>, vector<128x512xf32>, vector<32x512xf32> -> vector<32x512xf32>
    %c0_109 = arith.constant 0 : index
    %c0_110 = arith.constant 0 : index
    %171 = vector.load %arg18[%c0_109, %c0_110] : memref<1x512xf32, #tpu.memory_space<vmem>>, vector<1x512xf32>
    %172 = vector.broadcast %171 : vector<1x512xf32> to vector<32x512xf32>
    %173 = arith.addf %170, %172 : vector<32x512xf32>
    %cst_111 = arith.constant 0.000000e+00 : f32
    %174 = vector.broadcast %cst_111 : f32 to vector<32x512xf32>
    %175 = arith.maximumf %173, %174 : vector<32x512xf32>
    %176 = vector.shape_cast %175 : vector<32x512xf32> to vector<2x16x512xf32>
    %cst_112 = arith.constant dense<0.000000e+00> : vector<2x512xf32>
    %177 = vector.multi_reduction <add>, %176, %cst_112 [1] : vector<2x16x512xf32> to vector<2x512xf32>
    %cst_113 = arith.constant 6.250000e-02 : f32
    %178 = vector.broadcast %cst_113 : f32 to vector<2x512xf32>
    %179 = arith.mulf %177, %178 : vector<2x512xf32>
    %c0_114 = arith.constant 0 : index
    %c0_115 = arith.constant 0 : index
    %180 = vector.load %arg19[%c0_114, %c0_115] : memref<512x100xf32, #tpu.memory_space<vmem>>, vector<512x100xf32>
    %cst_116 = arith.constant dense<0.000000e+00> : vector<2x100xf32>
    %181 = tpu.matmul %179, %180, %cst_116 {dimension_numbers = #tpu.dot_dimension_numbers<[1], [0], [0], [1], [0, 0, 1, 1], [], []>} : vector<2x512xf32>, vector<512x100xf32>, vector<2x100xf32> -> vector<2x100xf32>
    %c0_117 = arith.constant 0 : index
    %c0_118 = arith.constant 0 : index
    %182 = vector.load %arg20[%c0_117, %c0_118] : memref<1x100xf32, #tpu.memory_space<vmem>>, vector<1x100xf32>
    %183 = vector.broadcast %182 : vector<1x100xf32> to vector<2x100xf32>
    %184 = arith.addf %181, %183 : vector<2x100xf32>
    %c0_119 = arith.constant 0 : index
    %c0_120 = arith.constant 0 : index
    %185 = vector.load %arg21[%c0_119, %c0_120] : memref<2x100xf32, #tpu.memory_space<vmem>>, vector<2x100xf32>
    tpu.vector_store %arg21[%c0_119, %c0_120], %184 {strides = array<i32>} : memref<2x100xf32, #tpu.memory_space<vmem>>, vector<2x100xf32>,
    return
  }
}

</mosaic_0001>

<llo_original>
// kernel: simplenet_forward.1
$region0: #{simplenet_forward.1}
  #allocation0 [shape = 'u32[]', space=smem, size = 0x4, offset = 0x4, fixed_abs, tag = 'smem constant byte address 0x4 - core index']
  #allocation1 [shape = 'u32[144,128]{1,0:T(1,128)}', space=vmem, size = 0x12000, scoped, tag = 'internal scratch']
  %s0 = inlined_call_operand.vmem [shape: f32[512,147], index: 0, kind: input, shape index: {}]
  %s1 = inlined_call_operand.vmem [shape: f32[147,64], index: 1, kind: input, shape index: {}]
  %s2 = inlined_call_operand.vmem [shape: f32[1,64], index: 2, kind: input, shape index: {}]
  %s3 = inlined_call_operand.vmem [shape: f32[1152,512], index: 3, kind: input, shape index: {}]
  %s4 = inlined_call_operand.vmem [shape: f32[64,64], index: 4, kind: input, shape index: {}]
  %s5 = inlined_call_operand.vmem [shape: f32[1,64], index: 5, kind: input, shape index: {}]
  %s6 = inlined_call_operand.vmem [shape: f32[1152,128], index: 6, kind: input, shape index: {}]
  %s7 = inlined_call_operand.vmem [shape: f32[9,64,64], index: 7, kind: input, shape index: {}]
  %s8 = inlined_call_operand.vmem [shape: f32[1,64], index: 8, kind: input, shape index: {}]
  %s9 = inlined_call_operand.vmem [shape: f32[64,256], index: 9, kind: input, shape index: {}]
  %s10 = inlined_call_operand.vmem [shape: f32[1,256], index: 10, kind: input, shape index: {}]
  %s11 = inlined_call_operand.vmem [shape: f32[288,128], index: 11, kind: input, shape index: {}]
  %s12 = inlined_call_operand.hbm [shape: f32[256,128], index: 12, kind: input, shape index: {}]
  %s13 = inlined_call_operand.vmem [shape: f32[1,128], index: 13, kind: input, shape index: {}]
  %s14 = inlined_call_operand.vmem [shape: f32[288,32], index: 14, kind: input, shape index: {}]
  %s15 = inlined_call_operand.vmem [shape: f32[9,128,128], index: 15, kind: input, shape index: {}]
  %s16 = inlined_call_operand.vmem [shape: f32[1,128], index: 16, kind: input, shape index: {}]
  %s17 = inlined_call_operand.vmem [shape: f32[128,512], index: 17, kind: input, shape index: {}]
  %s18 = inlined_call_operand.vmem [shape: f32[1,512], index: 18, kind: input, shape index: {}]
  %s19 = inlined_call_operand.vmem [shape: f32[512,100], index: 19, kind: input, shape index: {}]
  %s20 = inlined_call_operand.vmem [shape: f32[1,100], index: 20, kind: input, shape index: {}]
  %s21 = inlined_call_operand.hbm [shape: f32[2,100], index: 21, kind: output, shape index: {}]
  %s22 = sld [smem:[#allocation0]]
  $region98: #{simplenet_forward.1} parent=0
    _
  %s24 = ssub.s32 1, %s22
  %s25 = scalar_select 0, %s24, %s22
  $region1: #{simplenet_forward.1} parent=0
    #allocation2 [shape = 'u8[131072]{0}', space=vmem, size = 0x20000, scoped, tag = 'input window, operand 12, single buffered']
    #allocation3 [shape = 's32[1]{0}', space=sflag, size = 0x4, scoped, tag = 'scoped memory for simplenet_forward.1']
    #allocation4 [shape = 's32[1]{0}', space=sflag, size = 0x4, scoped, tag = 'scoped memory for simplenet_forward.1']
    #allocation5 [shape = 'u8[1024]{0}', space=vmem, size = 0x400, scoped, tag = 'output window, operand 0, single buffered']
    %26 = vsyncpa [#allocation3], 0
    %27 = vsyncpa [#allocation4], 0
    // Predicated region
    $region2: #{simplenet_forward.1} parent=1 // pred_check
      _
    $region3: #{simplenet_forward.1} parent=1 // pred_check_branch
      %29 = sbr.rel (0) target = $region5
    $region4: #{simplenet_forward.1} parent=1 // pred_region
      _
    $region5: #{simplenet_forward.1} parent=1 // pred_fallthru
      _
    // Predicated region
    $region6: #{simplenet_forward.1} parent=1 // pred_check
      _
    $region7: #{simplenet_forward.1} parent=1 // pred_check_branch
      %31 = sbr.rel (0) target = $region9
    $region8: #{simplenet_forward.1} parent=1 // pred_region
      _
    $region9: #{simplenet_forward.1} parent=1 // pred_fallthru
      _
    // Predicated region
    $region10: #{simplenet_forward.1} parent=1 // pred_check
      _
    $region11: #{simplenet_forward.1} parent=1 // pred_check_branch
      %33 = sbr.rel (0) target = $region13
    $region12: #{simplenet_forward.1} parent=1 // pred_region
      _
    $region13: #{simplenet_forward.1} parent=1 // pred_fallthru
      _
    // Predicated region
    $region14: #{simplenet_forward.1} parent=1 // pred_check
      _
    $region15: #{simplenet_forward.1} parent=1 // pred_check_branch
      %35 = sbr.rel (0) target = $region17
    $region16: #{simplenet_forward.1} parent=1 // pred_region
      _
    $region17: #{simplenet_forward.1} parent=1 // pred_fallthru
      _
    // Predicated region
    $region18: #{simplenet_forward.1} parent=1 // pred_check
      _
    $region19: #{simplenet_forward.1} parent=1 // pred_check_branch
      %37 = sbr.rel (0) target = $region21
    $region20: #{simplenet_forward.1} parent=1 // pred_region
      _
    $region21: #{simplenet_forward.1} parent=1 // pred_fallthru
      _
    // Predicated region
    $region22: #{simplenet_forward.1} parent=1 // pred_check
      _
    $region23: #{simplenet_forward.1} parent=1 // pred_check_branch
      %39 = sbr.rel (0) target = $region25
    $region24: #{simplenet_forward.1} parent=1 // pred_region
      _
    $region25: #{simplenet_forward.1} parent=1 // pred_fallthru
      _
    // Predicated region
    $region26: #{simplenet_forward.1} parent=1 // pred_check
      _
    $region27: #{simplenet_forward.1} parent=1 // pred_check_branch
      %41 = sbr.rel (0) target = $region29
    $region28: #{simplenet_forward.1} parent=1 // pred_region
      _
    $region29: #{simplenet_forward.1} parent=1 // pred_fallthru
      _
    // Predicated region
    $region30: #{simplenet_forward.1} parent=1 // pred_check
      _
    $region31: #{simplenet_forward.1} parent=1 // pred_check_branch
      %43 = sbr.rel (0) target = $region33
    $region32: #{simplenet_forward.1} parent=1 // pred_region
      _
    $region33: #{simplenet_forward.1} parent=1 // pred_fallthru
      _
    // Predicated region
    $region34: #{simplenet_forward.1} parent=1 // pred_check
      _
    $region35: #{simplenet_forward.1} parent=1 // pred_check_branch
      %45 = sbr.rel (0) target = $region37
    $region36: #{simplenet_forward.1} parent=1 // pred_region
      _
    $region37: #{simplenet_forward.1} parent=1 // pred_fallthru
      _
    // Predicated region
    $region38: #{simplenet_forward.1} parent=1 // pred_check
      _
    $region39: #{simplenet_forward.1} parent=1 // pred_check_branch
      %47 = sbr.rel (0) target = $region41
    $region40: #{simplenet_forward.1} parent=1 // pred_region
      _
    $region41: #{simplenet_forward.1} parent=1 // pred_fallthru
      _
    // Predicated region
    $region42: #{simplenet_forward.1} parent=1 // pred_check
      _
    $region43: #{simplenet_forward.1} parent=1 // pred_check_branch
      %49 = sbr.rel (0) target = $region45
    $region44: #{simplenet_forward.1} parent=1 // pred_region
      _
    $region45: #{simplenet_forward.1} parent=1 // pred_fallthru
      _
    // Predicated region
    $region46: #{simplenet_forward.1} parent=1 // pred_check
      _
    $region47: #{simplenet_forward.1} parent=1 // pred_check_branch
      %51 = sbr.rel (0) target = $region49
    $region48: #{simplenet_forward.1} parent=1 // pred_region
      _
    $region49: #{simplenet_forward.1} parent=1 // pred_fallthru
      _
    // Predicated region
    $region50: #{simplenet_forward.1} parent=1 // pred_check
      _
    $region51: #{simplenet_forward.1} parent=1 // pred_check_branch
      %53 = sbr.rel (0) target = $region53
    $region52: #{simplenet_forward.1} parent=1 // pred_region
      %s55 = ssub.s32 4096, 4096
      %56 = vsyncadd [#allocation3], %s55
      %s57 = sshll.u32 [#allocation2], 4
      %s58 = int_to_ptr.vmem [resolvable:$true] %s57
      %63 = dma.hbm_to_vmem [thread:$0]  %s12, 4096, %s58, [#allocation3], 128, 128, 8
    $region53: #{simplenet_forward.1} parent=1 // pred_fallthru
      _
    // Predicated region
    $region54: #{simplenet_forward.1} parent=1 // pred_check
      _
    $region55: #{simplenet_forward.1} parent=1 // pred_check_branch
      %65 = sbr.rel (0) target = $region57
    $region56: #{simplenet_forward.1} parent=1 // pred_region
      _
    $region57: #{simplenet_forward.1} parent=1 // pred_fallthru
      _
    // Predicated region
    $region58: #{simplenet_forward.1} parent=1 // pred_check
      _
    $region59: #{simplenet_forward.1} parent=1 // pred_check_branch
      %67 = sbr.rel (0) target = $region61
    $region60: #{simplenet_forward.1} parent=1 // pred_region
      _
    $region61: #{simplenet_forward.1} parent=1 // pred_fallthru
      _
    // Predicated region
    $region62: #{simplenet_forward.1} parent=1 // pred_check
      _
    $region63: #{simplenet_forward.1} parent=1 // pred_check_branch
      %69 = sbr.rel (0) target = $region65
    $region64: #{simplenet_forward.1} parent=1 // pred_region
      _
    $region65: #{simplenet_forward.1} parent=1 // pred_fallthru
      _
    // Predicated region
    $region66: #{simplenet_forward.1} parent=1 // pred_check
      _
    $region67: #{simplenet_forward.1} parent=1 // pred_check_branch
      %71 = sbr.rel (0) target = $region69
    $region68: #{simplenet_forward.1} parent=1 // pred_region
      _
    $region69: #{simplenet_forward.1} parent=1 // pred_fallthru
      _
    // Predicated region
    $region70: #{simplenet_forward.1} parent=1 // pred_check
      _
    $region71: #{simplenet_forward.1} parent=1 // pred_check_branch
      %73 = sbr.rel (0) target = $region73
    $region72: #{simplenet_forward.1} parent=1 // pred_region
      _
    $region73: #{simplenet_forward.1} parent=1 // pred_fallthru
      _
    // Predicated region
    $region74: #{simplenet_forward.1} parent=1 // pred_check
      _
    $region75: #{simplenet_forward.1} parent=1 // pred_check_branch
      %75 = sbr.rel (0) target = $region77
    $region76: #{simplenet_forward.1} parent=1 // pred_region
      _
    $region77: #{simplenet_forward.1} parent=1 // pred_fallthru
      _
    // Predicated region
    $region78: #{simplenet_forward.1} parent=1 // pred_check
      _
    $region79: #{simplenet_forward.1} parent=1 // pred_check_branch
      %77 = sbr.rel (0) target = $region81
    $region80: #{simplenet_forward.1} parent=1 // pred_region
      _
    $region81: #{simplenet_forward.1} parent=1 // pred_fallthru
      _
    // Predicated region
    $region82: #{simplenet_forward.1} parent=1 // pred_check
      _
    $region83: #{simplenet_forward.1} parent=1 // pred_check_branch
      %79 = sbr.rel (0) target = $region85
    $region84: #{simplenet_forward.1} parent=1 // pred_region
      _
    $region85: #{simplenet_forward.1} parent=1 // pred_fallthru
      _
    // Predicated region
    $region86: #{simplenet_forward.1} parent=1 // pred_check
      _
    $region87: #{simplenet_forward.1} parent=1 // pred_check_branch
      %81 = sbr.rel (0) target = $region89
    $region88: #{simplenet_forward.1} parent=1 // pred_region
      %82 = dma.done [#allocation3], 4096
    $region89: #{simplenet_forward.1} parent=1 // pred_fallthru
      _
    %v83 = vld [vmem:[%s0] sm:$0xff]
    %v84 = vld [vmem:[%s0 + $0x8] sm:$0xff]
    %v85 = vld [vmem:[%s0 + $0x10] sm:$0xff]
    %v86 = vld [vmem:[%s0 + $0x18] sm:$0xff]
    %v87 = vld [vmem:[%s0 + $0x20] sm:$0xff]
    %v88 = vld [vmem:[%s0 + $0x28] sm:$0xff]
    %v89 = vld [vmem:[%s0 + $0x30] sm:$0xff]
    %v90 = vld [vmem:[%s0 + $0x38] sm:$0xff]
    %v91 = vld [vmem:[%s0 + $0x40] sm:$0xff]
    %v92 = vld [vmem:[%s0 + $0x48] sm:$0xff]
    %v93 = vld [vmem:[%s0 + $0x50] sm:$0xff]
    %v94 = vld [vmem:[%s0 + $0x58] sm:$0xff]
    %v95 = vld [vmem:[%s0 + $0x60] sm:$0xff]
    %v96 = vld [vmem:[%s0 + $0x68] sm:$0xff]
    %v97 = vld [vmem:[%s0 + $0x70] sm:$0xff]
    %v98 = vld [vmem:[%s0 + $0x78] sm:$0xff]
    %v99 = vld [vmem:[%s0 + $0x80] sm:$0xff]
    %v100 = vld [vmem:[%s0 + $0x88] sm:$0xff]
    %v101 = vld [vmem:[%s0 + $0x90] sm:$0xff]
    %v102 = vld [vmem:[%s0 + $0x98] sm:$0xff]
    %v103 = vld [vmem:[%s0 + $0xa0] sm:$0xff]
    %v104 = vld [vmem:[%s0 + $0xa8] sm:$0xff]
    %v105 = vld [vmem:[%s0 + $0xb0] sm:$0xff]
    %v106 = vld [vmem:[%s0 + $0xb8] sm:$0xff]
    %v107 = vld [vmem:[%s0 + $0xc0] sm:$0xff]
    %v108 = vld [vmem:[%s0 + $0xc8] sm:$0xff]
    %v109 = vld [vmem:[%s0 + $0xd0] sm:$0xff]
    %v110 = vld [vmem:[%s0 + $0xd8] sm:$0xff]
    %v111 = vld [vmem:[%s0 + $0xe0] sm:$0xff]
    %v112 = vld [vmem:[%s0 + $0xe8] sm:$0xff]
    %v113 = vld [vmem:[%s0 + $0xf0] sm:$0xff]
    %v114 = vld [vmem:[%s0 + $0xf8] sm:$0xff]
    %v115 = vld [vmem:[%s0 + $0x100] sm:$0xff]
    %v116 = vld [vmem:[%s0 + $0x108] sm:$0xff]
    %v117 = vld [vmem:[%s0 + $0x110] sm:$0xff]
    %v118 = vld [vmem:[%s0 + $0x118] sm:$0xff]
    %v119 = vld [vmem:[%s0 + $0x120] sm:$0xff]
    %v120 = vld [vmem:[%s0 + $0x128] sm:$0xff]
    %v121 = vld [vmem:[%s0 + $0x130] sm:$0xff]
    %v122 = vld [vmem:[%s0 + $0x138] sm:$0xff]
    %v123 = vld [vmem:[%s0 + $0x140] sm:$0xff]
    %v124 = vld [vmem:[%s0 + $0x148] sm:$0xff]
    %v125 = vld [vmem:[%s0 + $0x150] sm:$0xff]
    %v126 = vld [vmem:[%s0 + $0x158] sm:$0xff]
    %v127 = vld [vmem:[%s0 + $0x160] sm:$0xff]
    %v128 = vld [vmem:[%s0 + $0x168] sm:$0xff]
    %v129 = vld [vmem:[%s0 + $0x170] sm:$0xff]
    %v130 = vld [vmem:[%s0 + $0x178] sm:$0xff]
    %v131 = vld [vmem:[%s0 + $0x180] sm:$0xff]
    %v132 = vld [vmem:[%s0 + $0x188] sm:$0xff]
    %v133 = vld [vmem:[%s0 + $0x190] sm:$0xff]
    %v134 = vld [vmem:[%s0 + $0x198] sm:$0xff]
    %v135 = vld [vmem:[%s0 + $0x1a0] sm:$0xff]
    %v136 = vld [vmem:[%s0 + $0x1a8] sm:$0xff]
    %v137 = vld [vmem:[%s0 + $0x1b0] sm:$0xff]
    %v138 = vld [vmem:[%s0 + $0x1b8] sm:$0xff]
    %v139 = vld [vmem:[%s0 + $0x1c0] sm:$0xff]
    %v140 = vld [vmem:[%s0 + $0x1c8] sm:$0xff]
    %v141 = vld [vmem:[%s0 + $0x1d0] sm:$0xff]
    %v142 = vld [vmem:[%s0 + $0x1d8] sm:$0xff]
    %v143 = vld [vmem:[%s0 + $0x1e0] sm:$0xff]
    %v144 = vld [vmem:[%s0 + $0x1e8] sm:$0xff]
    %v145 = vld [vmem:[%s0 + $0x1f0] sm:$0xff]
    %v146 = vld [vmem:[%s0 + $0x1f8] sm:$0xff]
    %v147 = vld [vmem:[%s0 + $0x200] sm:$0xff]
    %v148 = vld [vmem:[%s0 + $0x208] sm:$0xff]
    %v149 = vld [vmem:[%s0 + $0x210] sm:$0xff]
    %v150 = vld [vmem:[%s0 + $0x218] sm:$0xff]
    %v151 = vld [vmem:[%s0 + $0x220] sm:$0xff]
    %v152 = vld [vmem:[%s0 + $0x228] sm:$0xff]
    %v153 = vld [vmem:[%s0 + $0x230] sm:$0xff]
    %v154 = vld [vmem:[%s0 + $0x238] sm:$0xff]
    %v155 = vld [vmem:[%s0 + $0x240] sm:$0xff]
    %v156 = vld [vmem:[%s0 + $0x248] sm:$0xff]
    %v157 = vld [vmem:[%s0 + $0x250] sm:$0xff]
    %v158 = vld [vmem:[%s0 + $0x258] sm:$0xff]
    %v159 = vld [vmem:[%s0 + $0x260] sm:$0xff]
    %v160 = vld [vmem:[%s0 + $0x268] sm:$0xff]
    %v161 = vld [vmem:[%s0 + $0x270] sm:$0xff]
    %v162 = vld [vmem:[%s0 + $0x278] sm:$0xff]
    %v163 = vld [vmem:[%s0 + $0x280] sm:$0xff]
    %v164 = vld [vmem:[%s0 + $0x288] sm:$0xff]
    %v165 = vld [vmem:[%s0 + $0x290] sm:$0xff]
    %v166 = vld [vmem:[%s0 + $0x298] sm:$0xff]
    %v167 = vld [vmem:[%s0 + $0x2a0] sm:$0xff]
    %v168 = vld [vmem:[%s0 + $0x2a8] sm:$0xff]
    %v169 = vld [vmem:[%s0 + $0x2b0] sm:$0xff]
    %v170 = vld [vmem:[%s0 + $0x2b8] sm:$0xff]
    %v171 = vld [vmem:[%s0 + $0x2c0] sm:$0xff]
    %v172 = vld [vmem:[%s0 + $0x2c8] sm:$0xff]
    %v173 = vld [vmem:[%s0 + $0x2d0] sm:$0xff]
    %v174 = vld [vmem:[%s0 + $0x2d8] sm:$0xff]
    %v175 = vld [vmem:[%s0 + $0x2e0] sm:$0xff]
    %v176 = vld [vmem:[%s0 + $0x2e8] sm:$0xff]
    %v177 = vld [vmem:[%s0 + $0x2f0] sm:$0xff]
    %v178 = vld [vmem:[%s0 + $0x2f8] sm:$0xff]
    %v179 = vld [vmem:[%s0 + $0x300] sm:$0xff]
    %v180 = vld [vmem:[%s0 + $0x308] sm:$0xff]
    %v181 = vld [vmem:[%s0 + $0x310] sm:$0xff]
    %v182 = vld [vmem:[%s0 + $0x318] sm:$0xff]
    %v183 = vld [vmem:[%s0 + $0x320] sm:$0xff]
    %v184 = vld [vmem:[%s0 + $0x328] sm:$0xff]
    %v185 = vld [vmem:[%s0 + $0x330] sm:$0xff]
    %v186 = vld [vmem:[%s0 + $0x338] sm:$0xff]
    %v187 = vld [vmem:[%s0 + $0x340] sm:$0xff]
    %v188 = vld [vmem:[%s0 + $0x348] sm:$0xff]
    %v189 = vld [vmem:[%s0 + $0x350] sm:$0xff]
    %v190 = vld [vmem:[%s0 + $0x358] sm:$0xff]
    %v191 = vld [vmem:[%s0 + $0x360] sm:$0xff]
    %v192 = vld [vmem:[%s0 + $0x368] sm:$0xff]
    %v193 = vld [vmem:[%s0 + $0x370] sm:$0xff]
    %v194 = vld [vmem:[%s0 + $0x378] sm:$0xff]
    %v195 = vld [vmem:[%s0 + $0x380] sm:$0xff]
    %v196 = vld [vmem:[%s0 + $0x388] sm:$0xff]
    %v197 = vld [vmem:[%s0 + $0x390] sm:$0xff]
    %v198 = vld [vmem:[%s0 + $0x398] sm:$0xff]
    %v199 = vld [vmem:[%s0 + $0x3a0] sm:$0xff]
    %v200 = vld [vmem:[%s0 + $0x3a8] sm:$0xff]
    %v201 = vld [vmem:[%s0 + $0x3b0] sm:$0xff]
    %v202 = vld [vmem:[%s0 + $0x3b8] sm:$0xff]
    %v203 = vld [vmem:[%s0 + $0x3c0] sm:$0xff]
    %v204 = vld [vmem:[%s0 + $0x3c8] sm:$0xff]
    %v205 = vld [vmem:[%s0 + $0x3d0] sm:$0xff]
    %v206 = vld [vmem:[%s0 + $0x3d8] sm:$0xff]
    %v207 = vld [vmem:[%s0 + $0x3e0] sm:$0xff]
    %v208 = vld [vmem:[%s0 + $0x3e8] sm:$0xff]
    %v209 = vld [vmem:[%s0 + $0x3f0] sm:$0xff]
    %v210 = vld [vmem:[%s0 + $0x3f8] sm:$0xff]
    %v211 = vld [vmem:[%s1] sm:$0xff]
    %v212 = vld [vmem:[%s1 + $0x8] sm:$0xff]
    %v213 = vld [vmem:[%s1 + $0x10] sm:$0xff]
    %v214 = vld [vmem:[%s1 + $0x18] sm:$0xff]
    %v215 = vld [vmem:[%s1 + $0x20] sm:$0xff]
    %v216 = vld [vmem:[%s1 + $0x28] sm:$0xff]
    %v217 = vld [vmem:[%s1 + $0x30] sm:$0xff]
    %v218 = vld [vmem:[%s1 + $0x38] sm:$0xff]
    %v219 = vld [vmem:[%s1 + $0x40] sm:$0xff]
    %v220 = vld [vmem:[%s1 + $0x48] sm:$0xff]
    %v221 = vld [vmem:[%s1 + $0x50] sm:$0xff]
    %v222 = vld [vmem:[%s1 + $0x58] sm:$0xff]
    %v223 = vld [vmem:[%s1 + $0x60] sm:$0xff]
    %v224 = vld [vmem:[%s1 + $0x68] sm:$0xff]
    %v225 = vld [vmem:[%s1 + $0x70] sm:$0xff]
    %v226 = vld [vmem:[%s1 + $0x78] sm:$0xff]
    %v227 = vld [vmem:[%s1 + $0x80] sm:$0xff]
    %v228 = vld [vmem:[%s1 + $0x88] sm:$0xff]
    %v229 = vld [vmem:[%s1 + $0x90] sm:$0x7]
    %v230 = vld [vmem:[%s2] sm:$0x1]
    %v232 = vlaneseq
    %v233 = vshrl.u32 %v232, 7
    %v234 = vsub.s32 0, %v233
    %v235 = vrot.slane %v230, %v234
    %vm237 = vcmask 154624
    %v239 = vsel %vm237, %v84, 0
    %v242 = vsel %vm237, %v86, 0
    %v245 = vsel %vm237, %v88, 0
    %v248 = vsel %vm237, %v90, 0
    %v251 = vsel %vm237, %v92, 0
    %v254 = vsel %vm237, %v94, 0
    %v257 = vsel %vm237, %v96, 0
    %v260 = vsel %vm237, %v98, 0
    %v263 = vsel %vm237, %v100, 0
    %v266 = vsel %vm237, %v102, 0
    %v269 = vsel %vm237, %v104, 0
    %v272 = vsel %vm237, %v106, 0
    %v275 = vsel %vm237, %v108, 0
    %v278 = vsel %vm237, %v110, 0
    %v281 = vsel %vm237, %v112, 0
    %v284 = vsel %vm237, %v114, 0
    %v287 = vsel %vm237, %v116, 0
    %v290 = vsel %vm237, %v118, 0
    %v293 = vsel %vm237, %v120, 0
    %v296 = vsel %vm237, %v122, 0
    %v299 = vsel %vm237, %v124, 0
    %v302 = vsel %vm237, %v126, 0
    %v305 = vsel %vm237, %v128, 0
    %v308 = vsel %vm237, %v130, 0
    %v311 = vsel %vm237, %v132, 0
    %v314 = vsel %vm237, %v134, 0
    %v317 = vsel %vm237, %v136, 0
    %v320 = vsel %vm237, %v138, 0
    %v323 = vsel %vm237, %v140, 0
    %v326 = vsel %vm237, %v142, 0
    %v329 = vsel %vm237, %v144, 0
    %v332 = vsel %vm237, %v146, 0
    %v335 = vsel %vm237, %v148, 0
    %v338 = vsel %vm237, %v150, 0
    %v341 = vsel %vm237, %v152, 0
    %v344 = vsel %vm237, %v154, 0
    %v347 = vsel %vm237, %v156, 0
    %v350 = vsel %vm237, %v158, 0
    %v353 = vsel %vm237, %v160, 0
    %v356 = vsel %vm237, %v162, 0
    %v359 = vsel %vm237, %v164, 0
    %v362 = vsel %vm237, %v166, 0
    %v365 = vsel %vm237, %v168, 0
    %v368 = vsel %vm237, %v170, 0
    %v371 = vsel %vm237, %v172, 0
    %v374 = vsel %vm237, %v174, 0
    %v377 = vsel %vm237, %v176, 0
    %v380 = vsel %vm237, %v178, 0
    %v383 = vsel %vm237, %v180, 0
    %v386 = vsel %vm237, %v182, 0
    %v389 = vsel %vm237, %v184, 0
    %v392 = vsel %vm237, %v186, 0
    %v395 = vsel %vm237, %v188, 0
    %v398 = vsel %vm237, %v190, 0
    %v401 = vsel %vm237, %v192, 0
    %v404 = vsel %vm237, %v194, 0
    %v407 = vsel %vm237, %v196, 0
    %v410 = vsel %vm237, %v198, 0
    %v413 = vsel %vm237, %v200, 0
    %v416 = vsel %vm237, %v202, 0
    %v419 = vsel %vm237, %v204, 0
    %v422 = vsel %vm237, %v206, 0
    %v425 = vsel %vm237, %v208, 0
    %v428 = vsel %vm237, %v210, 0
    %vm430 = vcmask 1042432
    %v432 = vsel %vm430, %v229, 0
    %434 = vmatprep.subr.mxu0 0.0
    %435 = vmatpush1.msra.mxu0 %v211
    %436 = vmatprep.subr.mxu0 0.0
    %437 = vmatpush1.msra.mxu0 %v212
    %438 = vmatprep.subr.mxu0 0.0
    %439 = vmatpush1.msra.mxu0 %v213
    %440 = vmatprep.subr.mxu0 0.0
    %441 = vmatpush1.msra.mxu0 %v214
    %442 = vmatprep.subr.mxu0 0.0
    %443 = vmatpush1.msra.mxu0 %v215
    %444 = vmatprep.subr.mxu0 0.0
    %445 = vmatpush1.msra.mxu0 %v216
    %446 = vmatprep.subr.mxu0 0.0
    %447 = vmatpush1.msra.mxu0 %v217
    %448 = vmatprep.subr.mxu0 0.0
    %449 = vmatpush1.msra.mxu0 %v218
    %450 = vmatprep.subr.mxu0 0.0
    %451 = vmatpush1.msra.mxu0 %v219
    %452 = vmatprep.subr.mxu0 0.0
    %453 = vmatpush1.msra.mxu0 %v220
    %454 = vmatprep.subr.mxu0 0.0
    %455 = vmatpush1.msra.mxu0 %v221
    %456 = vmatprep.subr.mxu0 0.0
    %457 = vmatpush1.msra.mxu0 %v222
    %458 = vmatprep.subr.mxu0 0.0
    %459 = vmatpush1.msra.mxu0 %v223
    %460 = vmatprep.subr.mxu0 0.0
    %461 = vmatpush1.msra.mxu0 %v224
    %462 = vmatprep.subr.mxu0 0.0
    %463 = vmatpush1.msra.mxu0 %v225
    %464 = vmatprep.subr.mxu0 0.0
    %465 = vmatpush1.msra.mxu0 %v226
    %466 = vmatprep.subr.mxu0 0.0
    %467 = vmatpush1.msra.mxu0 %v227
    %468 = vmatprep.subr.mxu0 0.0
    %469 = vmatpush1.msra.mxu0 %v228
    %470 = vmatprep.subr.mxu0 0.0
    %471 = vmatpush1.msra.mxu0 %v432
    %472 = vmatprep.subr.mxu0 0.0
    %473 = vmatpush1.msra.mxu0 0.0
    %474 = vmatprep.subr.mxu0 0.0
    %475 = vmatpush1.msra.mxu0 0.0
    %476 = vmatprep.subr.mxu0 0.0
    %477 = vmatpush1.msra.mxu0 0.0
    %478 = vmatprep.subr.mxu0 0.0
    %479 = vmatpush1.msra.mxu0 0.0
    %480 = vmatprep.subr.mxu0 0.0
    %481 = vmatpush1.msra.mxu0 0.0
    %482 = vmatprep.subr.mxu0 0.0
    %483 = vmatpush1.msra.mxu0 0.0
    %484 = vmatprep.subr.mxu0 0.0
    %485 = vmatpush1.msra.mxu0 0.0
    %486 = vmatprep.subr.mxu0 0.0
    %487 = vmatpush1.msra.mxu0 0.0
    %488 = vmatprep.subr.mxu0 0.0
    %489 = vmatpush1.msra.mxu0 0.0
    %490 = vmatprep.subr.mxu0 0.0
    %491 = vmatpush1.msra.mxu0 0.0
    %492 = vmatprep.subr.mxu0 0.0
    %493 = vmatpush1.msra.mxu0 0.0
    %494 = vmatprep.subr.mxu0 0.0
    %495 = vmatpush1.msra.mxu0 0.0
    %496 = vmatprep.subr.mxu0 0.0
    %497 = vmatpush1.msra.mxu0 0.0
    %498 = vmatprep.mubr.f32.mxu0 %v239
    %499 = vmatmul.mubr.f32.gmra.mrb[0].mxu0 %v83
    %v500 = vpop.f32.mrb[0].mxu0
    %v501 = vadd.f32 %v235, %v500
    %v502 = vpop.f32.mrb[0].mxu0
    %503 = vmatprep.mubr.f32.mxu0 %v242
    %504 = vmatmul.mubr.f32.gmra.mrb[0].mxu0 %v85
    %v505 = vpop.f32.mrb[0].mxu0
    %v506 = vadd.f32 %v235, %v505
    %v507 = vpop.f32.mrb[0].mxu0
    %508 = vmatprep.mubr.f32.mxu0 %v245
    %509 = vmatmul.mubr.f32.gmra.mrb[0].mxu0 %v87
    %v510 = vpop.f32.mrb[0].mxu0
    %v511 = vadd.f32 %v235, %v510
    %v512 = vpop.f32.mrb[0].mxu0
    %513 = vmatprep.mubr.f32.mxu0 %v248
    %514 = vmatmul.mubr.f32.gmra.mrb[0].mxu0 %v89
    %v515 = vpop.f32.mrb[0].mxu0
    %v516 = vadd.f32 %v235, %v515
    %v517 = vpop.f32.mrb[0].mxu0
    %518 = vmatprep.mubr.f32.mxu0 %v251
    %519 = vmatmul.mubr.f32.gmra.mrb[0].mxu0 %v91
    %v520 = vpop.f32.mrb[0].mxu0
    %v521 = vadd.f32 %v235, %v520
    %v522 = vpop.f32.mrb[0].mxu0
    %523 = vmatprep.mubr.f32.mxu0 %v254
    %524 = vmatmul.mubr.f32.gmra.mrb[0].mxu0 %v93
    %v525 = vpop.f32.mrb[0].mxu0
    %v526 = vadd.f32 %v235, %v525
    %v527 = vpop.f32.mrb[0].mxu0
    %528 = vmatprep.mubr.f32.mxu0 %v257
    %529 = vmatmul.mubr.f32.gmra.mrb[0].mxu0 %v95
    %v530 = vpop.f32.mrb[0].mxu0
    %v531 = vadd.f32 %v235, %v530
    %v532 = vpop.f32.mrb[0].mxu0
    %533 = vmatprep.mubr.f32.mxu0 %v260
    %534 = vmatmul.mubr.f32.gmra.mrb[0].mxu0 %v97
    %v535 = vpop.f32.mrb[0].mxu0
    %v536 = vadd.f32 %v235, %v535
    %v537 = vpop.f32.mrb[0].mxu0
    %538 = vmatprep.mubr.f32.mxu0 %v263
    %539 = vmatmul.mubr.f32.gmra.mrb[0].mxu0 %v99
    %v540 = vpop.f32.mrb[0].mxu0
    %v541 = vadd.f32 %v235, %v540
    %v542 = vpop.f32.mrb[0].mxu0
    %543 = vmatprep.mubr.f32.mxu0 %v266
    %544 = vmatmul.mubr.f32.gmra.mrb[0].mxu0 %v101
    %v545 = vpop.f32.mrb[0].mxu0
    %v546 = vadd.f32 %v235, %v545
    %v547 = vpop.f32.mrb[0].mxu0
    %548 = vmatprep.mubr.f32.mxu0 %v269
    %549 = vmatmul.mubr.f32.gmra.mrb[0].mxu0 %v103
    %v550 = vpop.f32.mrb[0].mxu0
    %v551 = vadd.f32 %v235, %v550
    %v552 = vpop.f32.mrb[0].mxu0
    %553 = vmatprep.mubr.f32.mxu0 %v272
    %554 = vmatmul.mubr.f32.gmra.mrb[0].mxu0 %v105
    %v555 = vpop.f32.mrb[0].mxu0
    %v556 = vadd.f32 %v235, %v555
    %v557 = vpop.f32.mrb[0].mxu0
    %558 = vmatprep.mubr.f32.mxu0 %v275
    %559 = vmatmul.mubr.f32.gmra.mrb[0].mxu0 %v107
    %v560 = vpop.f32.mrb[0].mxu0
    %v561 = vadd.f32 %v235, %v560
    %v562 = vpop.f32.mrb[0].mxu0
    %563 = vmatprep.mubr.f32.mxu0 %v278
    %564 = vmatmul.mubr.f32.gmra.mrb[0].mxu0 %v109
    %v565 = vpop.f32.mrb[0].mxu0
    %v566 = vadd.f32 %v235, %v565
    %v567 = vpop.f32.mrb[0].mxu0
    %568 = vmatprep.mubr.f32.mxu0 %v281
    %569 = vmatmul.mubr.f32.gmra.mrb[0].mxu0 %v111
    %v570 = vpop.f32.mrb[0].mxu0
    %v571 = vadd.f32 %v235, %v570
    %v572 = vpop.f32.mrb[0].mxu0
    %573 = vmatprep.mubr.f32.mxu0 %v284
    %574 = vmatmul.mubr.f32.gmra.mrb[0].mxu0 %v113
    %v575 = vpop.f32.mrb[0].mxu0
    %v576 = vadd.f32 %v235, %v575
    %v577 = vpop.f32.mrb[0].mxu0
    %578 = vmatprep.mubr.f32.mxu0 %v287
    %579 = vmatmul.mubr.f32.gmra.mrb[0].mxu0 %v115
    %v580 = vpop.f32.mrb[0].mxu0
    %v581 = vadd.f32 %v235, %v580
    %v582 = vpop.f32.mrb[0].mxu0
    %583 = vmatprep.mubr.f32.mxu0 %v290
    %584 = vmatmul.mubr.f32.gmra.mrb[0].mxu0 %v117
    %v585 = vpop.f32.mrb[0].mxu0
    %v586 = vadd.f32 %v235, %v585
    %v587 = vpop.f32.mrb[0].mxu0
    %588 = vmatprep.mubr.f32.mxu0 %v293
    %589 = vmatmul.mubr.f32.gmra.mrb[0].mxu0 %v119
    %v590 = vpop.f32.mrb[0].mxu0
    %v591 = vadd.f32 %v235, %v590
    %v592 = vpop.f32.mrb[0].mxu0
    %593 = vmatprep.mubr.f32.mxu0 %v296
    %594 = vmatmul.mubr.f32.gmra.mrb[0].mxu0 %v121
    %v595 = vpop.f32.mrb[0].mxu0
    %v596 = vadd.f32 %v235, %v595
    %v597 = vpop.f32.mrb[0].mxu0
    %598 = vmatprep.mubr.f32.mxu0 %v299
    %599 = vmatmul.mubr.f32.gmra.mrb[0].mxu0 %v123
    %v600 = vpop.f32.mrb[0].mxu0
    %v601 = vadd.f32 %v235, %v600
    %v602 = vpop.f32.mrb[0].mxu0
    %603 = vmatprep.mubr.f32.mxu0 %v302
    %604 = vmatmul.mubr.f32.gmra.mrb[0].mxu0 %v125
    %v605 = vpop.f32.mrb[0].mxu0
    %v606 = vadd.f32 %v235, %v605
    %v607 = vpop.f32.mrb[0].mxu0
    %608 = vmatprep.mubr.f32.mxu0 %v305
    %609 = vmatmul.mubr.f32.gmra.mrb[0].mxu0 %v127
    %v610 = vpop.f32.mrb[0].mxu0
    %v611 = vadd.f32 %v235, %v610
    %v612 = vpop.f32.mrb[0].mxu0
    %613 = vmatprep.mubr.f32.mxu0 %v308
    %614 = vmatmul.mubr.f32.gmra.mrb[0].mxu0 %v129
    %v615 = vpop.f32.mrb[0].mxu0
    %v616 = vadd.f32 %v235, %v615
    %v617 = vpop.f32.mrb[0].mxu0
    %618 = vmatprep.mubr.f32.mxu0 %v311
    %619 = vmatmul.mubr.f32.gmra.mrb[0].mxu0 %v131
    %v620 = vpop.f32.mrb[0].mxu0
    %v621 = vadd.f32 %v235, %v620
    %v622 = vpop.f32.mrb[0].mxu0
    %623 = vmatprep.mubr.f32.mxu0 %v314
    %624 = vmatmul.mubr.f32.gmra.mrb[0].mxu0 %v133
    %v625 = vpop.f32.mrb[0].mxu0
    %v626 = vadd.f32 %v235, %v625
    %v627 = vpop.f32.mrb[0].mxu0
    %628 = vmatprep.mubr.f32.mxu0 %v317
    %629 = vmatmul.mubr.f32.gmra.mrb[0].mxu0 %v135
    %v630 = vpop.f32.mrb[0].mxu0
    %v631 = vadd.f32 %v235, %v630
    %v632 = vpop.f32.mrb[0].mxu0
    %633 = vmatprep.mubr.f32.mxu0 %v320
    %634 = vmatmul.mubr.f32.gmra.mrb[0].mxu0 %v137
    %v635 = vpop.f32.mrb[0].mxu0
    %v636 = vadd.f32 %v235, %v635
    %v637 = vpop.f32.mrb[0].mxu0
    %638 = vmatprep.mubr.f32.mxu0 %v323
    %639 = vmatmul.mubr.f32.gmra.mrb[0].mxu0 %v139
    %v640 = vpop.f32.mrb[0].mxu0
    %v641 = vadd.f32 %v235, %v640
    %v642 = vpop.f32.mrb[0].mxu0
    %643 = vmatprep.mubr.f32.mxu0 %v326
    %644 = vmatmul.mubr.f32.gmra.mrb[0].mxu0 %v141
    %v645 = vpop.f32.mrb[0].mxu0
    %v646 = vadd.f32 %v235, %v645
    %v647 = vpop.f32.mrb[0].mxu0
    %648 = vmatprep.mubr.f32.mxu0 %v329
    %649 = vmatmul.mubr.f32.gmra.mrb[0].mxu0 %v143
    %v650 = vpop.f32.mrb[0].mxu0
    %v651 = vadd.f32 %v235, %v650
    %v652 = vpop.f32.mrb[0].mxu0
    %653 = vmatprep.mubr.f32.mxu0 %v332
    %654 = vmatmul.mubr.f32.gmra.mrb[0].mxu0 %v145
    %v655 = vpop.f32.mrb[0].mxu0
    %v656 = vadd.f32 %v235, %v655
    %v657 = vpop.f32.mrb[0].mxu0
    %658 = vmatprep.mubr.f32.mxu0 %v335
    %659 = vmatmul.mubr.f32.gmra.mrb[0].mxu0 %v147
    %v660 = vpop.f32.mrb[0].mxu0
    %v661 = vadd.f32 %v235, %v660
    %v662 = vpop.f32.mrb[0].mxu0
    %663 = vmatprep.mubr.f32.mxu0 %v338
    %664 = vmatmul.mubr.f32.gmra.mrb[0].mxu0 %v149
    %v665 = vpop.f32.mrb[0].mxu0
    %v666 = vadd.f32 %v235, %v665
    %v667 = vpop.f32.mrb[0].mxu0
    %668 = vmatprep.mubr.f32.mxu0 %v341
    %669 = vmatmul.mubr.f32.gmra.mrb[0].mxu0 %v151
    %v670 = vpop.f32.mrb[0].mxu0
    %v671 = vadd.f32 %v235, %v670
    %v672 = vpop.f32.mrb[0].mxu0
    %673 = vmatprep.mubr.f32.mxu0 %v344
    %674 = vmatmul.mubr.f32.gmra.mrb[0].mxu0 %v153
    %v675 = vpop.f32.mrb[0].mxu0
    %v676 = vadd.f32 %v235, %v675
    %v677 = vpop.f32.mrb[0].mxu0
    %678 = vmatprep.mubr.f32.mxu0 %v347
    %679 = vmatmul.mubr.f32.gmra.mrb[0].mxu0 %v155
    %v680 = vpop.f32.mrb[0].mxu0
    %v681 = vadd.f32 %v235, %v680
    %v682 = vpop.f32.mrb[0].mxu0
    %683 = vmatprep.mubr.f32.mxu0 %v350
    %684 = vmatmul.mubr.f32.gmra.mrb[0].mxu0 %v157
    %v685 = vpop.f32.mrb[0].mxu0
    %v686 = vadd.f32 %v235, %v685
    %v687 = vpop.f32.mrb[0].mxu0
    %688 = vmatprep.mubr.f32.mxu0 %v353
    %689 = vmatmul.mubr.f32.gmra.mrb[0].mxu0 %v159
    %v690 = vpop.f32.mrb[0].mxu0
    %v691 = vadd.f32 %v235, %v690
    %v692 = vpop.f32.mrb[0].mxu0
    %693 = vmatprep.mubr.f32.mxu0 %v356
    %694 = vmatmul.mubr.f32.gmra.mrb[0].mxu0 %v161
    %v695 = vpop.f32.mrb[0].mxu0
    %v696 = vadd.f32 %v235, %v695
    %v697 = vpop.f32.mrb[0].mxu0
    %698 = vmatprep.mubr.f32.mxu0 %v359
    %699 = vmatmul.mubr.f32.gmra.mrb[0].mxu0 %v163
    %v700 = vpop.f32.mrb[0].mxu0
    %v701 = vadd.f32 %v235, %v700
    %v702 = vpop.f32.mrb[0].mxu0
    %703 = vmatprep.mubr.f32.mxu0 %v362
    %704 = vmatmul.mubr.f32.gmra.mrb[0].mxu0 %v165
    %v705 = vpop.f32.mrb[0].mxu0
    %v706 = vadd.f32 %v235, %v705
    %v707 = vpop.f32.mrb[0].mxu0
    %708 = vmatprep.mubr.f32.mxu0 %v365
    %709 = vmatmul.mubr.f32.gmra.mrb[0].mxu0 %v167
    %v710 = vpop.f32.mrb[0].mxu0
    %v711 = vadd.f32 %v235, %v710
    %v712 = vpop.f32.mrb[0].mxu0
    %713 = vmatprep.mubr.f32.mxu0 %v368
    %714 = vmatmul.mubr.f32.gmra.mrb[0].mxu0 %v169
    %v715 = vpop.f32.mrb[0].mxu0
    %v716 = vadd.f32 %v235, %v715
    %v717 = vpop.f32.mrb[0].mxu0
    %718 = vmatprep.mubr.f32.mxu0 %v371
    %719 = vmatmul.mubr.f32.gmra.mrb[0].mxu0 %v171
    %v720 = vpop.f32.mrb[0].mxu0
    %v721 = vadd.f32 %v235, %v720
    %v722 = vpop.f32.mrb[0].mxu0
    %723 = vmatprep.mubr.f32.mxu0 %v374
    %724 = vmatmul.mubr.f32.gmra.mrb[0].mxu0 %v173
    %v725 = vpop.f32.mrb[0].mxu0
    %v726 = vadd.f32 %v235, %v725
    %v727 = vpop.f32.mrb[0].mxu0
    %728 = vmatprep.mubr.f32.mxu0 %v377
    %729 = vmatmul.mubr.f32.gmra.mrb[0].mxu0 %v175
    %v730 = vpop.f32.mrb[0].mxu0
    %v731 = vadd.f32 %v235, %v730
    %v732 = vpop.f32.mrb[0].mxu0
    %733 = vmatprep.mubr.f32.mxu0 %v380
    %734 = vmatmul.mubr.f32.gmra.mrb[0].mxu0 %v177
    %v735 = vpop.f32.mrb[0].mxu0
    %v736 = vadd.f32 %v235, %v735
    %v737 = vpop.f32.mrb[0].mxu0
    %738 = vmatprep.mubr.f32.mxu0 %v383
    %739 = vmatmul.mubr.f32.gmra.mrb[0].mxu0 %v179
    %v740 = vpop.f32.mrb[0].mxu0
    %v741 = vadd.f32 %v235, %v740
    %v742 = vpop.f32.mrb[0].mxu0
    %743 = vmatprep.mubr.f32.mxu0 %v386
    %744 = vmatmul.mubr.f32.gmra.mrb[0].mxu0 %v181
    %v745 = vpop.f32.mrb[0].mxu0
    %v746 = vadd.f32 %v235, %v745
    %v747 = vpop.f32.mrb[0].mxu0
    %748 = vmatprep.mubr.f32.mxu0 %v389
    %749 = vmatmul.mubr.f32.gmra.mrb[0].mxu0 %v183
    %v750 = vpop.f32.mrb[0].mxu0
    %v751 = vadd.f32 %v235, %v750
    %v752 = vpop.f32.mrb[0].mxu0
    %753 = vmatprep.mubr.f32.mxu0 %v392
    %754 = vmatmul.mubr.f32.gmra.mrb[0].mxu0 %v185
    %v755 = vpop.f32.mrb[0].mxu0
    %v756 = vadd.f32 %v235, %v755
    %v757 = vpop.f32.mrb[0].mxu0
    %758 = vmatprep.mubr.f32.mxu0 %v395
    %759 = vmatmul.mubr.f32.gmra.mrb[0].mxu0 %v187
    %v760 = vpop.f32.mrb[0].mxu0
    %v761 = vadd.f32 %v235, %v760
    %v762 = vpop.f32.mrb[0].mxu0
    %763 = vmatprep.mubr.f32.mxu0 %v398
    %764 = vmatmul.mubr.f32.gmra.mrb[0].mxu0 %v189
    %v765 = vpop.f32.mrb[0].mxu0
    %v766 = vadd.f32 %v235, %v765
    %v767 = vpop.f32.mrb[0].mxu0
    %768 = vmatprep.mubr.f32.mxu0 %v401
    %769 = vmatmul.mubr.f32.gmra.mrb[0].mxu0 %v191
    %v770 = vpop.f32.mrb[0].mxu0
    %v771 = vadd.f32 %v235, %v770
    %v772 = vpop.f32.mrb[0].mxu0
    %773 = vmatprep.mubr.f32.mxu0 %v404
    %774 = vmatmul.mubr.f32.gmra.mrb[0].mxu0 %v193
    %v775 = vpop.f32.mrb[0].mxu0
    %v776 = vadd.f32 %v235, %v775
    %v777 = vpop.f32.mrb[0].mxu0
    %778 = vmatprep.mubr.f32.mxu0 %v407
    %779 = vmatmul.mubr.f32.gmra.mrb[0].mxu0 %v195
    %v780 = vpop.f32.mrb[0].mxu0
    %v781 = vadd.f32 %v235, %v780
    %v782 = vpop.f32.mrb[0].mxu0
    %783 = vmatprep.mubr.f32.mxu0 %v410
    %784 = vmatmul.mubr.f32.gmra.mrb[0].mxu0 %v197
    %v785 = vpop.f32.mrb[0].mxu0
    %v786 = vadd.f32 %v235, %v785
    %v787 = vpop.f32.mrb[0].mxu0
    %788 = vmatprep.mubr.f32.mxu0 %v413
    %789 = vmatmul.mubr.f32.gmra.mrb[0].mxu0 %v199
    %v790 = vpop.f32.mrb[0].mxu0
    %v791 = vadd.f32 %v235, %v790
    %v792 = vpop.f32.mrb[0].mxu0
    %793 = vmatprep.mubr.f32.mxu0 %v416
    %794 = vmatmul.mubr.f32.gmra.mrb[0].mxu0 %v201
    %v795 = vpop.f32.mrb[0].mxu0
    %v796 = vadd.f32 %v235, %v795
    %v797 = vpop.f32.mrb[0].mxu0
    %798 = vmatprep.mubr.f32.mxu0 %v419
    %799 = vmatmul.mubr.f32.gmra.mrb[0].mxu0 %v203
    %v800 = vpop.f32.mrb[0].mxu0
    %v801 = vadd.f32 %v235, %v800
    %v802 = vpop.f32.mrb[0].mxu0
    %803 = vmatprep.mubr.f32.mxu0 %v422
    %804 = vmatmul.mubr.f32.gmra.mrb[0].mxu0 %v205
    %v805 = vpop.f32.mrb[0].mxu0
    %v806 = vadd.f32 %v235, %v805
    %v807 = vpop.f32.mrb[0].mxu0
    %808 = vmatprep.mubr.f32.mxu0 %v425
    %809 = vmatmul.mubr.f32.gmra.mrb[0].mxu0 %v207
    %v810 = vpop.f32.mrb[0].mxu0
    %v811 = vadd.f32 %v235, %v810
    %v812 = vpop.f32.mrb[0].mxu0
    %813 = vmatprep.mubr.f32.mxu0 %v428
    %814 = vmatmul.mubr.f32.gmra.mrb[0].mxu0 %v209
    %v815 = vpop.f32.mrb[0].mxu0
    %v816 = vadd.f32 %v235, %v815
    %v817 = vpop.f32.mrb[0].mxu0
    %818 = vdwg.mxu0
    %v819 = vmax.f32 %v501, 0.0
    %v820 = vmax.f32 %v506, 0.0
    %v821 = vmax.f32 %v511, 0.0
    %v822 = vmax.f32 %v516, 0.0
    %v823 = vmax.f32 %v521, 0.0
    %v824 = vmax.f32 %v526, 0.0
    %v825 = vmax.f32 %v531, 0.0
    %v826 = vmax.f32 %v536, 0.0
    %v827 = vmax.f32 %v541, 0.0
    %v828 = vmax.f32 %v546, 0.0
    %v829 = vmax.f32 %v551, 0.0
    %v830 = vmax.f32 %v556, 0.0
    %v831 = vmax.f32 %v561, 0.0
    %v832 = vmax.f32 %v566, 0.0
    %v833 = vmax.f32 %v571, 0.0
    %v834 = vmax.f32 %v576, 0.0
    %v835 = vmax.f32 %v581, 0.0
    %v836 = vmax.f32 %v586, 0.0
    %v837 = vmax.f32 %v591, 0.0
    %v838 = vmax.f32 %v596, 0.0
    %v839 = vmax.f32 %v601, 0.0
    %v840 = vmax.f32 %v606, 0.0
    %v841 = vmax.f32 %v611, 0.0
    %v842 = vmax.f32 %v616, 0.0
    %v843 = vmax.f32 %v621, 0.0
    %v844 = vmax.f32 %v626, 0.0
    %v845 = vmax.f32 %v631, 0.0
    %v846 = vmax.f32 %v636, 0.0
    %v847 = vmax.f32 %v641, 0.0
    %v848 = vmax.f32 %v646, 0.0
    %v849 = vmax.f32 %v651, 0.0
    %v850 = vmax.f32 %v656, 0.0
    %v851 = vmax.f32 %v661, 0.0
    %v852 = vmax.f32 %v666, 0.0
    %v853 = vmax.f32 %v671, 0.0
    %v854 = vmax.f32 %v676, 0.0
    %v855 = vmax.f32 %v681, 0.0
    %v856 = vmax.f32 %v686, 0.0
    %v857 = vmax.f32 %v691, 0.0
    %v858 = vmax.f32 %v696, 0.0
    %v859 = vmax.f32 %v701, 0.0
    %v860 = vmax.f32 %v706, 0.0
    %v861 = vmax.f32 %v711, 0.0
    %v862 = vmax.f32 %v716, 0.0
    %v863 = vmax.f32 %v721, 0.0
    %v864 = vmax.f32 %v726, 0.0
    %v865 = vmax.f32 %v731, 0.0
    %v866 = vmax.f32 %v736, 0.0
    %v867 = vmax.f32 %v741, 0.0
    %v868 = vmax.f32 %v746, 0.0
    %v869 = vmax.f32 %v751, 0.0
    %v870 = vmax.f32 %v756, 0.0
    %v871 = vmax.f32 %v761, 0.0
    %v872 = vmax.f32 %v766, 0.0
    %v873 = vmax.f32 %v771, 0.0
    %v874 = vmax.f32 %v776, 0.0
    %v875 = vmax.f32 %v781, 0.0
    %v876 = vmax.f32 %v786, 0.0
    %v877 = vmax.f32 %v791, 0.0
    %v878 = vmax.f32 %v796, 0.0
    %v879 = vmax.f32 %v801, 0.0
    %v880 = vmax.f32 %v806, 0.0
    %v881 = vmax.f32 %v811, 0.0
    %v882 = vmax.f32 %v816, 0.0
    %v883 = vld [vmem:[%s3] sm:$0xff]
    %v884 = vld [vmem:[%s3 + $0x8] sm:$0xff]
    %v885 = vld [vmem:[%s3 + $0x10] sm:$0xff]
    %v886 = vld [vmem:[%s3 + $0x18] sm:$0xff]
    %v887 = vld [vmem:[%s3 + $0x20] sm:$0xff]
    %v888 = vld [vmem:[%s3 + $0x28] sm:$0xff]
    %v889 = vld [vmem:[%s3 + $0x30] sm:$0xff]
    %v890 = vld [vmem:[%s3 + $0x38] sm:$0xff]
    %v891 = vld [vmem:[%s3 + $0x40] sm:$0xff]
    %v892 = vld [vmem:[%s3 + $0x48] sm:$0xff]
    %v893 = vld [vmem:[%s3 + $0x50] sm:$0xff]
    %v894 = vld [vmem:[%s3 + $0x58] sm:$0xff]
    %v895 = vld [vmem:[%s3 + $0x60] sm:$0xff]
    %v896 = vld [vmem:[%s3 + $0x68] sm:$0xff]
    %v897 = vld [vmem:[%s3 + $0x70] sm:$0xff]
    %v898 = vld [vmem:[%s3 + $0x78] sm:$0xff]
    %v899 = vld [vmem:[%s3 + $0x80] sm:$0xff]
    %v900 = vld [vmem:[%s3 + $0x88] sm:$0xff]
    %v901 = vld [vmem:[%s3 + $0x90] sm:$0xff]
    %v902 = vld [vmem:[%s3 + $0x98] sm:$0xff]
    %v903 = vld [vmem:[%s3 + $0xa0] sm:$0xff]
    %v904 = vld [vmem:[%s3 + $0xa8] sm:$0xff]
    %v905 = vld [vmem:[%s3 + $0xb0] sm:$0xff]
    %v906 = vld [vmem:[%s3 + $0xb8] sm:$0xff]
    %v907 = vld [vmem:[%s3 + $0xc0] sm:$0xff]
    %v908 = vld [vmem:[%s3 + $0xc8] sm:$0xff]
    %v909 = vld [vmem:[%s3 + $0xd0] sm:$0xff]
    %v910 = vld [vmem:[%s3 + $0xd8] sm:$0xff]
    %v911 = vld [vmem:[%s3 + $0xe0] sm:$0xff]
    %v912 = vld [vmem:[%s3 + $0xe8] sm:$0xff]
    %v913 = vld [vmem:[%s3 + $0xf0] sm:$0xff]
    %v914 = vld [vmem:[%s3 + $0xf8] sm:$0xff]
    %v915 = vld [vmem:[%s3 + $0x100] sm:$0xff]
    %v916 = vld [vmem:[%s3 + $0x108] sm:$0xff]
    %v917 = vld [vmem:[%s3 + $0x110] sm:$0xff]
    %v918 = vld [vmem:[%s3 + $0x118] sm:$0xff]
    %v919 = vld [vmem:[%s3 + $0x120] sm:$0xff]
    %v920 = vld [vmem:[%s3 + $0x128] sm:$0xff]
    %v921 = vld [vmem:[%s3 + $0x130] sm:$0xff]
    %v922 = vld [vmem:[%s3 + $0x138] sm:$0xff]
    %v923 = vld [vmem:[%s3 + $0x140] sm:$0xff]
    %v924 = vld [vmem:[%s3 + $0x148] sm:$0xff]
    %v925 = vld [vmem:[%s3 + $0x150] sm:$0xff]
    %v926 = vld [vmem:[%s3 + $0x158] sm:$0xff]
    %v927 = vld [vmem:[%s3 + $0x160] sm:$0xff]
    %v928 = vld [vmem:[%s3 + $0x168] sm:$0xff]
    %v929 = vld [vmem:[%s3 + $0x170] sm:$0xff]
    %v930 = vld [vmem:[%s3 + $0x178] sm:$0xff]
    %v931 = vld [vmem:[%s3 + $0x180] sm:$0xff]
    %v932 = vld [vmem:[%s3 + $0x188] sm:$0xff]
    %v933 = vld [vmem:[%s3 + $0x190] sm:$0xff]
    %v934 = vld [vmem:[%s3 + $0x198] sm:$0xff]
    %v935 = vld [vmem:[%s3 + $0x1a0] sm:$0xff]
    %v936 = vld [vmem:[%s3 + $0x1a8] sm:$0xff]
    %v937 = vld [vmem:[%s3 + $0x1b0] sm:$0xff]
    %v938 = vld [vmem:[%s3 + $0x1b8] sm:$0xff]
    %v939 = vld [vmem:[%s3 + $0x1c0] sm:$0xff]
    %v940 = vld [vmem:[%s3 + $0x1c8] sm:$0xff]
    %v941 = vld [vmem:[%s3 + $0x1d0] sm:$0xff]
    %v942 = vld [vmem:[%s3 + $0x1d8] sm:$0xff]
    %v943 = vld [vmem:[%s3 + $0x1e0] sm:$0xff]
    %v944 = vld [vmem:[%s3 + $0x1e8] sm:$0xff]
    %v945 = vld [vmem:[%s3 + $0x1f0] sm:$0xff]
    %v946 = vld [vmem:[%s3 + $0x1f8] sm:$0xff]
    %v947 = vld [vmem:[%s3 + $0x200] sm:$0xff]
    %v948 = vld [vmem:[%s3 + $0x208] sm:$0xff]
    %v949 = vld [vmem:[%s3 + $0x210] sm:$0xff]
    %v950 = vld [vmem:[%s3 + $0x218] sm:$0xff]
    %v951 = vld [vmem:[%s3 + $0x220] sm:$0xff]
    %v952 = vld [vmem:[%s3 + $0x228] sm:$0xff]
    %v953 = vld [vmem:[%s3 + $0x230] sm:$0xff]
    %v954 = vld [vmem:[%s3 + $0x238] sm:$0xff]
    %v955 = vld [vmem:[%s3 + $0x240] sm:$0xff]
    %v956 = vld [vmem:[%s3 + $0x248] sm:$0xff]
    %v957 = vld [vmem:[%s3 + $0x250] sm:$0xff]
    %v958 = vld [vmem:[%s3 + $0x258] sm:$0xff]
    %v959 = vld [vmem:[%s3 + $0x260] sm:$0xff]
    %v960 = vld [vmem:[%s3 + $0x268] sm:$0xff]
    %v961 = vld [vmem:[%s3 + $0x270] sm:$0xff]
    %v962 = vld [vmem:[%s3 + $0x278] sm:$0xff]
    %v963 = vld [vmem:[%s3 + $0x280] sm:$0xff]
    %v964 = vld [vmem:[%s3 + $0x288] sm:$0xff]
    %v965 = vld [vmem:[%s3 + $0x290] sm:$0xff]
    %v966 = vld [vmem:[%s3 + $0x298] sm:$0xff]
    %v967 = vld [vmem:[%s3 + $0x2a0] sm:$0xff]
    %v968 = vld [vmem:[%s3 + $0x2a8] sm:$0xff]
    %v969 = vld [vmem:[%s3 + $0x2b0] sm:$0xff]
    %v970 = vld [vmem:[%s3 + $0x2b8] sm:$0xff]
    %v971 = vld [vmem:[%s3 + $0x2c0] sm:$0xff]
    %v972 = vld [vmem:[%s3 + $0x2c8] sm:$0xff]
    %v973 = vld [vmem:[%s3 + $0x2d0] sm:$0xff]
    %v974 = vld [vmem:[%s3 + $0x2d8] sm:$0xff]
    %v975 = vld [vmem:[%s3 + $0x2e0] sm:$0xff]
    %v976 = vld [vmem:[%s3 + $0x2e8] sm:$0xff]
    %v977 = vld [vmem:[%s3 + $0x2f0] sm:$0xff]
    %v978 = vld [vmem:[%s3 + $0x2f8] sm:$0xff]
    %v979 = vld [vmem:[%s3 + $0x300] sm:$0xff]
    %v980 = vld [vmem:[%s3 + $0x308] sm:$0xff]
    %v981 = vld [vmem:[%s3 + $0x310] sm:$0xff]
    %v982 = vld [vmem:[%s3 + $0x318] sm:$0xff]
    %v983 = vld [vmem:[%s3 + $0x320] sm:$0xff]
    %v984 = vld [vmem:[%s3 + $0x328] sm:$0xff]
    %v985 = vld [vmem:[%s3 + $0x330] sm:$0xff]
    %v986 = vld [vmem:[%s3 + $0x338] sm:$0xff]
    %v987 = vld [vmem:[%s3 + $0x340] sm:$0xff]
    %v988 = vld [vmem:[%s3 + $0x348] sm:$0xff]
    %v989 = vld [vmem:[%s3 + $0x350] sm:$0xff]
    %v990 = vld [vmem:[%s3 + $0x358] sm:$0xff]
    %v991 = vld [vmem:[%s3 + $0x360] sm:$0xff]
    %v992 = vld [vmem:[%s3 + $0x368] sm:$0xff]
    %v993 = vld [vmem:[%s3 + $0x370] sm:$0xff]
    %v994 = vld [vmem:[%s3 + $0x378] sm:$0xff]
    %v995 = vld [vmem:[%s3 + $0x380] sm:$0xff]
    %v996 = vld [vmem:[%s3 + $0x388] sm:$0xff]
    %v997 = vld [vmem:[%s3 + $0x390] sm:$0xff]
    %v998 = vld [vmem:[%s3 + $0x398] sm:$0xff]
    %v999 = vld [vmem:[%s3 + $0x3a0] sm:$0xff]
    %v1000 = vld [vmem:[%s3 + $0x3a8] sm:$0xff]
    %v1001 = vld [vmem:[%s3 + $0x3b0] sm:$0xff]
    %v1002 = vld [vmem:[%s3 + $0x3b8] sm:$0xff]
    %v1003 = vld [vmem:[%s3 + $0x3c0] sm:$0xff]
    %v1004 = vld [vmem:[%s3 + $0x3c8] sm:$0xff]
    %v1005 = vld [vmem:[%s3 + $0x3d0] sm:$0xff]
    %v1006 = vld [vmem:[%s3 + $0x3d8] sm:$0xff]
    %v1007 = vld [vmem:[%s3 + $0x3e0] sm:$0xff]
    %v1008 = vld [vmem:[%s3 + $0x3e8] sm:$0xff]
    %v1009 = vld [vmem:[%s3 + $0x3f0] sm:$0xff]
    %v1010 = vld [vmem:[%s3 + $0x3f8] sm:$0xff]
    %v1011 = vld [vmem:[%s3 + $0x400] sm:$0xff]
    %v1012 = vld [vmem:[%s3 + $0x408] sm:$0xff]
    %v1013 = vld [vmem:[%s3 + $0x410] sm:$0xff]
    %v1014 = vld [vmem:[%s3 + $0x418] sm:$0xff]
    %v1015 = vld [vmem:[%s3 + $0x420] sm:$0xff]
    %v1016 = vld [vmem:[%s3 + $0x428] sm:$0xff]
    %v1017 = vld [vmem:[%s3 + $0x430] sm:$0xff]
    %v1018 = vld [vmem:[%s3 + $0x438] sm:$0xff]
    %v1019 = vld [vmem:[%s3 + $0x440] sm:$0xff]
    %v1020 = vld [vmem:[%s3 + $0x448] sm:$0xff]
    %v1021 = vld [vmem:[%s3 + $0x450] sm:$0xff]
    %v1022 = vld [vmem:[%s3 + $0x458] sm:$0xff]
    %v1023 = vld [vmem:[%s3 + $0x460] sm:$0xff]
    %v1024 = vld [vmem:[%s3 + $0x468] sm:$0xff]
    %v1025 = vld [vmem:[%s3 + $0x470] sm:$0xff]
    %v1026 = vld [vmem:[%s3 + $0x478] sm:$0xff]
    %v1027 = vld [vmem:[%s3 + $0x480] sm:$0xff]
    %v1028 = vld [vmem:[%s3 + $0x488] sm:$0xff]
    %v1029 = vld [vmem:[%s3 + $0x490] sm:$0xff]
    %v1030 = vld [vmem:[%s3 + $0x498] sm:$0xff]
    %v1031 = vld [vmem:[%s3 + $0x4a0] sm:$0xff]
    %v1032 = vld [vmem:[%s3 + $0x4a8] sm:$0xff]
    %v1033 = vld [vmem:[%s3 + $0x4b0] sm:$0xff]
    %v1034 = vld [vmem:[%s3 + $0x4b8] sm:$0xff]
    %v1035 = vld [vmem:[%s3 + $0x4c0] sm:$0xff]
    %v1036 = vld [vmem:[%s3 + $0x4c8] sm:$0xff]
    %v1037 = vld [vmem:[%s3 + $0x4d0] sm:$0xff]
    %v1038 = vld [vmem:[%s3 + $0x4d8] sm:$0xff]
    %v1039 = vld [vmem:[%s3 + $0x4e0] sm:$0xff]
    %v1040 = vld [vmem:[%s3 + $0x4e8] sm:$0xff]
    %v1041 = vld [vmem:[%s3 + $0x4f0] sm:$0xff]
    %v1042 = vld [vmem:[%s3 + $0x4f8] sm:$0xff]
    %v1043 = vld [vmem:[%s3 + $0x500] sm:$0xff]
    %v1044 = vld [vmem:[%s3 + $0x508] sm:$0xff]
    %v1045 = vld [vmem:[%s3 + $0x510] sm:$0xff]
    %v1046 = vld [vmem:[%s3 + $0x518] sm:$0xff]
    %v1047 = vld [vmem:[%s3 + $0x520] sm:$0xff]
    %v1048 = vld [vmem:[%s3 + $0x528] sm:$0xff]
    %v1049 = vld [vmem:[%s3 + $0x530] sm:$0xff]
    %v1050 = vld [vmem:[%s3 + $0x538] sm:$0xff]
    %v1051 = vld [vmem:[%s3 + $0x540] sm:$0xff]
    %v1052 = vld [vmem:[%s3 + $0x548] sm:$0xff]
    %v1053 = vld [vmem:[%s3 + $0x550] sm:$0xff]
    %v1054 = vld [vmem:[%s3 + $0x558] sm:$0xff]
    %v1055 = vld [vmem:[%s3 + $0x560] sm:$0xff]
    %v1056 = vld [vmem:[%s3 + $0x568] sm:$0xff]
    %v1057 = vld [vmem:[%s3 + $0x570] sm:$0xff]
    %v1058 = vld [vmem:[%s3 + $0x578] sm:$0xff]
    %v1059 = vld [vmem:[%s3 + $0x580] sm:$0xff]
    %v1060 = vld [vmem:[%s3 + $0x588] sm:$0xff]
    %v1061 = vld [vmem:[%s3 + $0x590] sm:$0xff]
    %v1062 = vld [vmem:[%s3 + $0x598] sm:$0xff]
    %v1063 = vld [vmem:[%s3 + $0x5a0] sm:$0xff]
    %v1064 = vld [vmem:[%s3 + $0x5a8] sm:$0xff]
    %v1065 = vld [vmem:[%s3 + $0x5b0] sm:$0xff]
    %v1066 = vld [vmem:[%s3 + $0x5b8] sm:$0xff]
    %v1067 = vld [vmem:[%s3 + $0x5c0] sm:$0xff]
    %v1068 = vld [vmem:[%s3 + $0x5c8] sm:$0xff]
    %v1069 = vld [vmem:[%s3 + $0x5d0] sm:$0xff]
    %v1070 = vld [vmem:[%s3 + $0x5d8] sm:$0xff]
    %v1071 = vld [vmem:[%s3 + $0x5e0] sm:$0xff]
    %v1072 = vld [vmem:[%s3 + $0x5e8] sm:$0xff]
    %v1073 = vld [vmem:[%s3 + $0x5f0] sm:$0xff]
    %v1074 = vld [vmem:[%s3 + $0x5f8] sm:$0xff]
    %v1075 = vld [vmem:[%s3 + $0x600] sm:$0xff]
    %v1076 = vld [vmem:[%s3 + $0x608] sm:$0xff]
    %v1077 = vld [vmem:[%s3 + $0x610] sm:$0xff]
    %v1078 = vld [vmem:[%s3 + $0x618] sm:$0xff]
    %v1079 = vld [vmem:[%s3 + $0x620] sm:$0xff]
    %v1080 = vld [vmem:[%s3 + $0x628] sm:$0xff]
    %v1081 = vld [vmem:[%s3 + $0x630] sm:$0xff]
    %v1082 = vld [vmem:[%s3 + $0x638] sm:$0xff]
    %v1083 = vld [vmem:[%s3 + $0x640] sm:$0xff]
    %v1084 = vld [vmem:[%s3 + $0x648] sm:$0xff]
    %v1085 = vld [vmem:[%s3 + $0x650] sm:$0xff]
    %v1086 = vld [vmem:[%s3 + $0x658] sm:$0xff]
    %v1087 = vld [vmem:[%s3 + $0x660] sm:$0xff]
    %v1088 = vld [vmem:[%s3 + $0x668] sm:$0xff]
    %v1089 = vld [vmem:[%s3 + $0x670] sm:$0xff]
    %v1090 = vld [vmem:[%s3 + $0x678] sm:$0xff]
    %v1091 = vld [vmem:[%s3 + $0x680] sm:$0xff]
    %v1092 = vld [vmem:[%s3 + $0x688] sm:$0xff]
    %v1093 = vld [vmem:[%s3 + $0x690] sm:$0xff]
    %v1094 = vld [vmem:[%s3 + $0x698] sm:$0xff]
    %v1095 = vld [vmem:[%s3 + $0x6a0] sm:$0xff]
    %v1096 = vld [vmem:[%s3 + $0x6a8] sm:$0xff]
    %v1097 = vld [vmem:[%s3 + $0x6b0] sm:$0xff]
    %v1098 = vld [vmem:[%s3 + $0x6b8] sm:$0xff]
    %v1099 = vld [vmem:[%s3 + $0x6c0] sm:$0xff]
    %v1100 = vld [vmem:[%s3 + $0x6c8] sm:$0xff]
    %v1101 = vld [vmem:[%s3 + $0x6d0] sm:$0xff]
    %v1102 = vld [vmem:[%s3 + $0x6d8] sm:$0xff]
    %v1103 = vld [vmem:[%s3 + $0x6e0] sm:$0xff]
    %v1104 = vld [vmem:[%s3 + $0x6e8] sm:$0xff]
    %v1105 = vld [vmem:[%s3 + $0x6f0] sm:$0xff]
    %v1106 = vld [vmem:[%s3 + $0x6f8] sm:$0xff]
    %v1107 = vld [vmem:[%s3 + $0x700] sm:$0xff]
    %v1108 = vld [vmem:[%s3 + $0x708] sm:$0xff]
    %v1109 = vld [vmem:[%s3 + $0x710] sm:$0xff]
    %v1110 = vld [vmem:[%s3 + $0x718] sm:$0xff]
    %v1111 = vld [vmem:[%s3 + $0x720] sm:$0xff]
    %v1112 = vld [vmem:[%s3 + $0x728] sm:$0xff]
    %v1113 = vld [vmem:[%s3 + $0x730] sm:$0xff]
    %v1114 = vld [vmem:[%s3 + $0x738] sm:$0xff]
    %v1115 = vld [vmem:[%s3 + $0x740] sm:$0xff]
    %v1116 = vld [vmem:[%s3 + $0x748] sm:$0xff]
    %v1117 = vld [vmem:[%s3 + $0x750] sm:$0xff]
    %v1118 = vld [vmem:[%s3 + $0x758] sm:$0xff]
    %v1119 = vld [vmem:[%s3 + $0x760] sm:$0xff]
    %v1120 = vld [vmem:[%s3 + $0x768] sm:$0xff]
    %v1121 = vld [vmem:[%s3 + $0x770] sm:$0xff]
    %v1122 = vld [vmem:[%s3 + $0x778] sm:$0xff]
    %v1123 = vld [vmem:[%s3 + $0x780] sm:$0xff]
    %v1124 = vld [vmem:[%s3 + $0x788] sm:$0xff]
    %v1125 = vld [vmem:[%s3 + $0x790] sm:$0xff]
    %v1126 = vld [vmem:[%s3 + $0x798] sm:$0xff]
    %v1127 = vld [vmem:[%s3 + $0x7a0] sm:$0xff]
    %v1128 = vld [vmem:[%s3 + $0x7a8] sm:$0xff]
    %v1129 = vld [vmem:[%s3 + $0x7b0] sm:$0xff]
    %v1130 = vld [vmem:[%s3 + $0x7b8] sm:$0xff]
    %v1131 = vld [vmem:[%s3 + $0x7c0] sm:$0xff]
    %v1132 = vld [vmem:[%s3 + $0x7c8] sm:$0xff]
    %v1133 = vld [vmem:[%s3 + $0x7d0] sm:$0xff]
    %v1134 = vld [vmem:[%s3 + $0x7d8] sm:$0xff]
    %v1135 = vld [vmem:[%s3 + $0x7e0] sm:$0xff]
    %v1136 = vld [vmem:[%s3 + $0x7e8] sm:$0xff]
    %v1137 = vld [vmem:[%s3 + $0x7f0] sm:$0xff]
    %v1138 = vld [vmem:[%s3 + $0x7f8] sm:$0xff]
    %v1139 = vld [vmem:[%s3 + $0x800] sm:$0xff]
    %v1140 = vld [vmem:[%s3 + $0x808] sm:$0xff]
    %v1141 = vld [vmem:[%s3 + $0x810] sm:$0xff]
    %v1142 = vld [vmem:[%s3 + $0x818] sm:$0xff]
    %v1143 = vld [vmem:[%s3 + $0x820] sm:$0xff]
    %v1144 = vld [vmem:[%s3 + $0x828] sm:$0xff]
    %v1145 = vld [vmem:[%s3 + $0x830] sm:$0xff]
    %v1146 = vld [vmem:[%s3 + $0x838] sm:$0xff]
    %v1147 = vld [vmem:[%s3 + $0x840] sm:$0xff]
    %v1148 = vld [vmem:[%s3 + $0x848] sm:$0xff]
    %v1149 = vld [vmem:[%s3 + $0x850] sm:$0xff]
    %v1150 = vld [vmem:[%s3 + $0x858] sm:$0xff]
    %v1151 = vld [vmem:[%s3 + $0x860] sm:$0xff]
    %v1152 = vld [vmem:[%s3 + $0x868] sm:$0xff]
    %v1153 = vld [vmem:[%s3 + $0x870] sm:$0xff]
    %v1154 = vld [vmem:[%s3 + $0x878] sm:$0xff]
    %v1155 = vld [vmem:[%s3 + $0x880] sm:$0xff]
    %v1156 = vld [vmem:[%s3 + $0x888] sm:$0xff]
    %v1157 = vld [vmem:[%s3 + $0x890] sm:$0xff]
    %v1158 = vld [vmem:[%s3 + $0x898] sm:$0xff]
    %v1159 = vld [vmem:[%s3 + $0x8a0] sm:$0xff]
    %v1160 = vld [vmem:[%s3 + $0x8a8] sm:$0xff]
    %v1161 = vld [vmem:[%s3 + $0x8b0] sm:$0xff]
    %v1162 = vld [vmem:[%s3 + $0x8b8] sm:$0xff]
    %v1163 = vld [vmem:[%s3 + $0x8c0] sm:$0xff]
    %v1164 = vld [vmem:[%s3 + $0x8c8] sm:$0xff]
    %v1165 = vld [vmem:[%s3 + $0x8d0] sm:$0xff]
    %v1166 = vld [vmem:[%s3 + $0x8d8] sm:$0xff]
    %v1167 = vld [vmem:[%s3 + $0x8e0] sm:$0xff]
    %v1168 = vld [vmem:[%s3 + $0x8e8] sm:$0xff]
    %v1169 = vld [vmem:[%s3 + $0x8f0] sm:$0xff]
    %v1170 = vld [vmem:[%s3 + $0x8f8] sm:$0xff]
    %v1171 = vld [vmem:[%s3 + $0x900] sm:$0xff]
    %v1172 = vld [vmem:[%s3 + $0x908] sm:$0xff]
    %v1173 = vld [vmem:[%s3 + $0x910] sm:$0xff]
    %v1174 = vld [vmem:[%s3 + $0x918] sm:$0xff]
    %v1175 = vld [vmem:[%s3 + $0x920] sm:$0xff]
    %v1176 = vld [vmem:[%s3 + $0x928] sm:$0xff]
    %v1177 = vld [vmem:[%s3 + $0x930] sm:$0xff]
    %v1178 = vld [vmem:[%s3 + $0x938] sm:$0xff]
    %v1179 = vld [vmem:[%s3 + $0x940] sm:$0xff]
    %v1180 = vld [vmem:[%s3 + $0x948] sm:$0xff]
    %v1181 = vld [vmem:[%s3 + $0x950] sm:$0xff]
    %v1182 = vld [vmem:[%s3 + $0x958] sm:$0xff]
    %v1183 = vld [vmem:[%s3 + $0x960] sm:$0xff]
    %v1184 = vld [vmem:[%s3 + $0x968] sm:$0xff]
    %v1185 = vld [vmem:[%s3 + $0x970] sm:$0xff]
    %v1186 = vld [vmem:[%s3 + $0x978] sm:$0xff]
    %v1187 = vld [vmem:[%s3 + $0x980] sm:$0xff]
    %v1188 = vld [vmem:[%s3 + $0x988] sm:$0xff]
    %v1189 = vld [vmem:[%s3 + $0x990] sm:$0xff]
    %v1190 = vld [vmem:[%s3 + $0x998] sm:$0xff]
    %v1191 = vld [vmem:[%s3 + $0x9a0] sm:$0xff]
    %v1192 = vld [vmem:[%s3 + $0x9a8] sm:$0xff]
    %v1193 = vld [vmem:[%s3 + $0x9b0] sm:$0xff]
    %v1194 = vld [vmem:[%s3 + $0x9b8] sm:$0xff]
    %v1195 = vld [vmem:[%s3 + $0x9c0] sm:$0xff]
    %v1196 = vld [vmem:[%s3 + $0x9c8] sm:$0xff]
    %v1197 = vld [vmem:[%s3 + $0x9d0] sm:$0xff]
    %v1198 = vld [vmem:[%s3 + $0x9d8] sm:$0xff]
    %v1199 = vld [vmem:[%s3 + $0x9e0] sm:$0xff]
    %v1200 = vld [vmem:[%s3 + $0x9e8] sm:$0xff]
    %v1201 = vld [vmem:[%s3 + $0x9f0] sm:$0xff]
    %v1202 = vld [vmem:[%s3 + $0x9f8] sm:$0xff]
    %v1203 = vld [vmem:[%s3 + $0xa00] sm:$0xff]
    %v1204 = vld [vmem:[%s3 + $0xa08] sm:$0xff]
    %v1205 = vld [vmem:[%s3 + $0xa10] sm:$0xff]
    %v1206 = vld [vmem:[%s3 + $0xa18] sm:$0xff]
    %v1207 = vld [vmem:[%s3 + $0xa20] sm:$0xff]
    %v1208 = vld [vmem:[%s3 + $0xa28] sm:$0xff]
    %v1209 = vld [vmem:[%s3 + $0xa30] sm:$0xff]
    %v1210 = vld [vmem:[%s3 + $0xa38] sm:$0xff]
    %v1211 = vld [vmem:[%s3 + $0xa40] sm:$0xff]
    %v1212 = vld [vmem:[%s3 + $0xa48] sm:$0xff]
    %v1213 = vld [vmem:[%s3 + $0xa50] sm:$0xff]
    %v1214 = vld [vmem:[%s3 + $0xa58] sm:$0xff]
    %v1215 = vld [vmem:[%s3 + $0xa60] sm:$0xff]
    %v1216 = vld [vmem:[%s3 + $0xa68] sm:$0xff]
    %v1217 = vld [vmem:[%s3 + $0xa70] sm:$0xff]
    %v1218 = vld [vmem:[%s3 + $0xa78] sm:$0xff]
    %v1219 = vld [vmem:[%s3 + $0xa80] sm:$0xff]
    %v1220 = vld [vmem:[%s3 + $0xa88] sm:$0xff]
    %v1221 = vld [vmem:[%s3 + $0xa90] sm:$0xff]
    %v1222 = vld [vmem:[%s3 + $0xa98] sm:$0xff]
    %v1223 = vld [vmem:[%s3 + $0xaa0] sm:$0xff]
    %v1224 = vld [vmem:[%s3 + $0xaa8] sm:$0xff]
    %v1225 = vld [vmem:[%s3 + $0xab0] sm:$0xff]
    %v1226 = vld [vmem:[%s3 + $0xab8] sm:$0xff]
    %v1227 = vld [vmem:[%s3 + $0xac0] sm:$0xff]
    %v1228 = vld [vmem:[%s3 + $0xac8] sm:$0xff]
    %v1229 = vld [vmem:[%s3 + $0xad0] sm:$0xff]
    %v1230 = vld [vmem:[%s3 + $0xad8] sm:$0xff]
    %v1231 = vld [vmem:[%s3 + $0xae0] sm:$0xff]
    %v1232 = vld [vmem:[%s3 + $0xae8] sm:$0xff]
    %v1233 = vld [vmem:[%s3 + $0xaf0] sm:$0xff]
    %v1234 = vld [vmem:[%s3 + $0xaf8] sm:$0xff]
    %v1235 = vld [vmem:[%s3 + $0xb00] sm:$0xff]
    %v1236 = vld [vmem:[%s3 + $0xb08] sm:$0xff]
    %v1237 = vld [vmem:[%s3 + $0xb10] sm:$0xff]
    %v1238 = vld [vmem:[%s3 + $0xb18] sm:$0xff]
    %v1239 = vld [vmem:[%s3 + $0xb20] sm:$0xff]
    %v1240 = vld [vmem:[%s3 + $0xb28] sm:$0xff]
    %v1241 = vld [vmem:[%s3 + $0xb30] sm:$0xff]
    %v1242 = vld [vmem:[%s3 + $0xb38] sm:$0xff]
    %v1243 = vld [vmem:[%s3 + $0xb40] sm:$0xff]
    %v1244 = vld [vmem:[%s3 + $0xb48] sm:$0xff]
    %v1245 = vld [vmem:[%s3 + $0xb50] sm:$0xff]
    %v1246 = vld [vmem:[%s3 + $0xb58] sm:$0xff]
    %v1247 = vld [vmem:[%s3 + $0xb60] sm:$0xff]
    %v1248 = vld [vmem:[%s3 + $0xb68] sm:$0xff]
    %v1249 = vld [vmem:[%s3 + $0xb70] sm:$0xff]
    %v1250 = vld [vmem:[%s3 + $0xb78] sm:$0xff]
    %v1251 = vld [vmem:[%s3 + $0xb80] sm:$0xff]
    %v1252 = vld [vmem:[%s3 + $0xb88] sm:$0xff]
    %v1253 = vld [vmem:[%s3 + $0xb90] sm:$0xff]
    %v1254 = vld [vmem:[%s3 + $0xb98] sm:$0xff]
    %v1255 = vld [vmem:[%s3 + $0xba0] sm:$0xff]
    %v1256 = vld [vmem:[%s3 + $0xba8] sm:$0xff]
    %v1257 = vld [vmem:[%s3 + $0xbb0] sm:$0xff]
    %v1258 = vld [vmem:[%s3 + $0xbb8] sm:$0xff]
    %v1259 = vld [vmem:[%s3 + $0xbc0] sm:$0xff]
    %v1260 = vld [vmem:[%s3 + $0xbc8] sm:$0xff]
    %v1261 = vld [vmem:[%s3 + $0xbd0] sm:$0xff]
    %v1262 = vld [vmem:[%s3 + $0xbd8] sm:$0xff]
    %v1263 = vld [vmem:[%s3 + $0xbe0] sm:$0xff]
    %v1264 = vld [vmem:[%s3 + $0xbe8] sm:$0xff]
    %v1265 = vld [vmem:[%s3 + $0xbf0] sm:$0xff]
    %v1266 = vld [vmem:[%s3 + $0xbf8] sm:$0xff]
    %v1267 = vld [vmem:[%s3 + $0xc00] sm:$0xff]
    %v1268 = vld [vmem:[%s3 + $0xc08] sm:$0xff]
    %v1269 = vld [vmem:[%s3 + $0xc10] sm:$0xff]
    %v1270 = vld [vmem:[%s3 + $0xc18] sm:$0xff]
    %v1271 = vld [vmem:[%s3 + $0xc20] sm:$0xff]
    %v1272 = vld [vmem:[%s3 + $0xc28] sm:$0xff]
    %v1273 = vld [vmem:[%s3 + $0xc30] sm:$0xff]
    %v1274 = vld [vmem:[%s3 + $0xc38] sm:$0xff]
    %v1275 = vld [vmem:[%s3 + $0xc40] sm:$0xff]
    %v1276 = vld [vmem:[%s3 + $0xc48] sm:$0xff]
    %v1277 = vld [vmem:[%s3 + $0xc50] sm:$0xff]
    %v1278 = vld [vmem:[%s3 + $0xc58] sm:$0xff]
    %v1279 = vld [vmem:[%s3 + $0xc60] sm:$0xff]
    %v1280 = vld [vmem:[%s3 + $0xc68] sm:$0xff]
    %v1281 = vld [vmem:[%s3 + $0xc70] sm:$0xff]
    %v1282 = vld [vmem:[%s3 + $0xc78] sm:$0xff]
    %v1283 = vld [vmem:[%s3 + $0xc80] sm:$0xff]
    %v1284 = vld [vmem:[%s3 + $0xc88] sm:$0xff]
    %v1285 = vld [vmem:[%s3 + $0xc90] sm:$0xff]
    %v1286 = vld [vmem:[%s3 + $0xc98] sm:$0xff]
    %v1287 = vld [vmem:[%s3 + $0xca0] sm:$0xff]
    %v1288 = vld [vmem:[%s3 + $0xca8] sm:$0xff]
    %v1289 = vld [vmem:[%s3 + $0xcb0] sm:$0xff]
    %v1290 = vld [vmem:[%s3 + $0xcb8] sm:$0xff]
    %v1291 = vld [vmem:[%s3 + $0xcc0] sm:$0xff]
    %v1292 = vld [vmem:[%s3 + $0xcc8] sm:$0xff]
    %v1293 = vld [vmem:[%s3 + $0xcd0] sm:$0xff]
    %v1294 = vld [vmem:[%s3 + $0xcd8] sm:$0xff]
    %v1295 = vld [vmem:[%s3 + $0xce0] sm:$0xff]
    %v1296 = vld [vmem:[%s3 + $0xce8] sm:$0xff]
    %v1297 = vld [vmem:[%s3 + $0xcf0] sm:$0xff]
    %v1298 = vld [vmem:[%s3 + $0xcf8] sm:$0xff]
    %v1299 = vld [vmem:[%s3 + $0xd00] sm:$0xff]
    %v1300 = vld [vmem:[%s3 + $0xd08] sm:$0xff]
    %v1301 = vld [vmem:[%s3 + $0xd10] sm:$0xff]
    %v1302 = vld [vmem:[%s3 + $0xd18] sm:$0xff]
    %v1303 = vld [vmem:[%s3 + $0xd20] sm:$0xff]
    %v1304 = vld [vmem:[%s3 + $0xd28] sm:$0xff]
    %v1305 = vld [vmem:[%s3 + $0xd30] sm:$0xff]
    %v1306 = vld [vmem:[%s3 + $0xd38] sm:$0xff]
    %v1307 = vld [vmem:[%s3 + $0xd40] sm:$0xff]
    %v1308 = vld [vmem:[%s3 + $0xd48] sm:$0xff]
    %v1309 = vld [vmem:[%s3 + $0xd50] sm:$0xff]
    %v1310 = vld [vmem:[%s3 + $0xd58] sm:$0xff]
    %v1311 = vld [vmem:[%s3 + $0xd60] sm:$0xff]
    %v1312 = vld [vmem:[%s3 + $0xd68] sm:$0xff]
    %v1313 = vld [vmem:[%s3 + $0xd70] sm:$0xff]
    %v1314 = vld [vmem:[%s3 + $0xd78] sm:$0xff]
    %v1315 = vld [vmem:[%s3 + $0xd80] sm:$0xff]
    %v1316 = vld [vmem:[%s3 + $0xd88] sm:$0xff]
    %v1317 = vld [vmem:[%s3 + $0xd90] sm:$0xff]
    %v1318 = vld [vmem:[%s3 + $0xd98] sm:$0xff]
    %v1319 = vld [vmem:[%s3 + $0xda0] sm:$0xff]
    %v1320 = vld [vmem:[%s3 + $0xda8] sm:$0xff]
    %v1321 = vld [vmem:[%s3 + $0xdb0] sm:$0xff]
    %v1322 = vld [vmem:[%s3 + $0xdb8] sm:$0xff]
    %v1323 = vld [vmem:[%s3 + $0xdc0] sm:$0xff]
    %v1324 = vld [vmem:[%s3 + $0xdc8] sm:$0xff]
    %v1325 = vld [vmem:[%s3 + $0xdd0] sm:$0xff]
    %v1326 = vld [vmem:[%s3 + $0xdd8] sm:$0xff]
    %v1327 = vld [vmem:[%s3 + $0xde0] sm:$0xff]
    %v1328 = vld [vmem:[%s3 + $0xde8] sm:$0xff]
    %v1329 = vld [vmem:[%s3 + $0xdf0] sm:$0xff]
    %v1330 = vld [vmem:[%s3 + $0xdf8] sm:$0xff]
    %v1331 = vld [vmem:[%s3 + $0xe00] sm:$0xff]
    %v1332 = vld [vmem:[%s3 + $0xe08] sm:$0xff]
    %v1333 = vld [vmem:[%s3 + $0xe10] sm:$0xff]
    %v1334 = vld [vmem:[%s3 + $0xe18] sm:$0xff]
    %v1335 = vld [vmem:[%s3 + $0xe20] sm:$0xff]
    %v1336 = vld [vmem:[%s3 + $0xe28] sm:$0xff]
    %v1337 = vld [vmem:[%s3 + $0xe30] sm:$0xff]
    %v1338 = vld [vmem:[%s3 + $0xe38] sm:$0xff]
    %v1339 = vld [vmem:[%s3 + $0xe40] sm:$0xff]
    %v1340 = vld [vmem:[%s3 + $0xe48] sm:$0xff]
    %v1341 = vld [vmem:[%s3 + $0xe50] sm:$0xff]
    %v1342 = vld [vmem:[%s3 + $0xe58] sm:$0xff]
    %v1343 = vld [vmem:[%s3 + $0xe60] sm:$0xff]
    %v1344 = vld [vmem:[%s3 + $0xe68] sm:$0xff]
    %v1345 = vld [vmem:[%s3 + $0xe70] sm:$0xff]
    %v1346 = vld [vmem:[%s3 + $0xe78] sm:$0xff]
    %v1347 = vld [vmem:[%s3 + $0xe80] sm:$0xff]
    %v1348 = vld [vmem:[%s3 + $0xe88] sm:$0xff]
    %v1349 = vld [vmem:[%s3 + $0xe90] sm:$0xff]
    %v1350 = vld [vmem:[%s3 + $0xe98] sm:$0xff]
    %v1351 = vld [vmem:[%s3 + $0xea0] sm:$0xff]
    %v1352 = vld [vmem:[%s3 + $0xea8] sm:$0xff]
    %v1353 = vld [vmem:[%s3 + $0xeb0] sm:$0xff]
    %v1354 = vld [vmem:[%s3 + $0xeb8] sm:$0xff]
    %v1355 = vld [vmem:[%s3 + $0xec0] sm:$0xff]
    %v1356 = vld [vmem:[%s3 + $0xec8] sm:$0xff]
    %v1357 = vld [vmem:[%s3 + $0xed0] sm:$0xff]
    %v1358 = vld [vmem:[%s3 + $0xed8] sm:$0xff]
    %v1359 = vld [vmem:[%s3 + $0xee0] sm:$0xff]
    %v1360 = vld [vmem:[%s3 + $0xee8] sm:$0xff]
    %v1361 = vld [vmem:[%s3 + $0xef0] sm:$0xff]
    %v1362 = vld [vmem:[%s3 + $0xef8] sm:$0xff]
    %v1363 = vld [vmem:[%s3 + $0xf00] sm:$0xff]
    %v1364 = vld [vmem:[%s3 + $0xf08] sm:$0xff]
    %v1365 = vld [vmem:[%s3 + $0xf10] sm:$0xff]
    %v1366 = vld [vmem:[%s3 + $0xf18] sm:$0xff]
    %v1367 = vld [vmem:[%s3 + $0xf20] sm:$0xff]
    %v1368 = vld [vmem:[%s3 + $0xf28] sm:$0xff]
    %v1369 = vld [vmem:[%s3 + $0xf30] sm:$0xff]
    %v1370 = vld [vmem:[%s3 + $0xf38] sm:$0xff]
    %v1371 = vld [vmem:[%s3 + $0xf40] sm:$0xff]
    %v1372 = vld [vmem:[%s3 + $0xf48] sm:$0xff]
    %v1373 = vld [vmem:[%s3 + $0xf50] sm:$0xff]
    %v1374 = vld [vmem:[%s3 + $0xf58] sm:$0xff]
    %v1375 = vld [vmem:[%s3 + $0xf60] sm:$0xff]
    %v1376 = vld [vmem:[%s3 + $0xf68] sm:$0xff]
    %v1377 = vld [vmem:[%s3 + $0xf70] sm:$0xff]
    %v1378 = vld [vmem:[%s3 + $0xf78] sm:$0xff]
    %v1379 = vld [vmem:[%s3 + $0xf80] sm:$0xff]
    %v1380 = vld [vmem:[%s3 + $0xf88] sm:$0xff]
    %v1381 = vld [vmem:[%s3 + $0xf90] sm:$0xff]
    %v1382 = vld [vmem:[%s3 + $0xf98] sm:$0xff]
    %v1383 = vld [vmem:[%s3 + $0xfa0] sm:$0xff]
    %v1384 = vld [vmem:[%s3 + $0xfa8] sm:$0xff]
    %v1385 = vld [vmem:[%s3 + $0xfb0] sm:$0xff]
    %v1386 = vld [vmem:[%s3 + $0xfb8] sm:$0xff]
    %v1387 = vld [vmem:[%s3 + $0xfc0] sm:$0xff]
    %v1388 = vld [vmem:[%s3 + $0xfc8] sm:$0xff]
    %v1389 = vld [vmem:[%s3 + $0xfd0] sm:$0xff]
    %v1390 = vld [vmem:[%s3 + $0xfd8] sm:$0xff]
    %v1391 = vld [vmem:[%s3 + $0xfe0] sm:$0xff]
    %v1392 = vld [vmem:[%s3 + $0xfe8] sm:$0xff]
    %v1393 = vld [vmem:[%s3 + $0xff0] sm:$0xff]
    %v1394 = vld [vmem:[%s3 + $0xff8] sm:$0xff]
    %v1395 = vld [vmem:[%s3 + $0x1000] sm:$0xff]
    %v1396 = vld [vmem:[%s3 + $0x1008] sm:$0xff]
    %v1397 = vld [vmem:[%s3 + $0x1010] sm:$0xff]
    %v1398 = vld [vmem:[%s3 + $0x1018] sm:$0xff]
    %v1399 = vld [vmem:[%s3 + $0x1020] sm:$0xff]
    %v1400 = vld [vmem:[%s3 + $0x1028] sm:$0xff]
    %v1401 = vld [vmem:[%s3 + $0x1030] sm:$0xff]
    %v1402 = vld [vmem:[%s3 + $0x1038] sm:$0xff]
    %v1403 = vld [vmem:[%s3 + $0x1040] sm:$0xff]
    %v1404 = vld [vmem:[%s3 + $0x1048] sm:$0xff]
    %v1405 = vld [vmem:[%s3 + $0x1050] sm:$0xff]
    %v1406 = vld [vmem:[%s3 + $0x1058] sm:$0xff]
    %v1407 = vld [vmem:[%s3 + $0x1060] sm:$0xff]
    %v1408 = vld [vmem:[%s3 + $0x1068] sm:$0xff]
    %v1409 = vld [vmem:[%s3 + $0x1070] sm:$0xff]
    %v1410 = vld [vmem:[%s3 + $0x1078] sm:$0xff]
    %v1411 = vld [vmem:[%s3 + $0x1080] sm:$0xff]
    %v1412 = vld [vmem:[%s3 + $0x1088] sm:$0xff]
    %v1413 = vld [vmem:[%s3 + $0x1090] sm:$0xff]
    %v1414 = vld [vmem:[%s3 + $0x1098] sm:$0xff]
    %v1415 = vld [vmem:[%s3 + $0x10a0] sm:$0xff]
    %v1416 = vld [vmem:[%s3 + $0x10a8] sm:$0xff]
    %v1417 = vld [vmem:[%s3 + $0x10b0] sm:$0xff]
    %v1418 = vld [vmem:[%s3 + $0x10b8] sm:$0xff]
    %v1419 = vld [vmem:[%s3 + $0x10c0] sm:$0xff]
    %v1420 = vld [vmem:[%s3 + $0x10c8] sm:$0xff]
    %v1421 = vld [vmem:[%s3 + $0x10d0] sm:$0xff]
    %v1422 = vld [vmem:[%s3 + $0x10d8] sm:$0xff]
    %v1423 = vld [vmem:[%s3 + $0x10e0] sm:$0xff]
    %v1424 = vld [vmem:[%s3 + $0x10e8] sm:$0xff]
    %v1425 = vld [vmem:[%s3 + $0x10f0] sm:$0xff]
    %v1426 = vld [vmem:[%s3 + $0x10f8] sm:$0xff]
    %v1427 = vld [vmem:[%s3 + $0x1100] sm:$0xff]
    %v1428 = vld [vmem:[%s3 + $0x1108] sm:$0xff]
    %v1429 = vld [vmem:[%s3 + $0x1110] sm:$0xff]
    %v1430 = vld [vmem:[%s3 + $0x1118] sm:$0xff]
    %v1431 = vld [vmem:[%s3 + $0x1120] sm:$0xff]
    %v1432 = vld [vmem:[%s3 + $0x1128] sm:$0xff]
    %v1433 = vld [vmem:[%s3 + $0x1130] sm:$0xff]
    %v1434 = vld [vmem:[%s3 + $0x1138] sm:$0xff]
    %v1435 = vld [vmem:[%s3 + $0x1140] sm:$0xff]
    %v1436 = vld [vmem:[%s3 + $0x1148] sm:$0xff]
    %v1437 = vld [vmem:[%s3 + $0x1150] sm:$0xff]
    %v1438 = vld [vmem:[%s3 + $0x1158] sm:$0xff]
    %v1439 = vld [vmem:[%s3 + $0x1160] sm:$0xff]
    %v1440 = vld [vmem:[%s3 + $0x1168] sm:$0xff]
    %v1441 = vld [vmem:[%s3 + $0x1170] sm:$0xff]
    %v1442 = vld [vmem:[%s3 + $0x1178] sm:$0xff]
    %v1443 = vld [vmem:[%s3 + $0x1180] sm:$0xff]
    %v1444 = vld [vmem:[%s3 + $0x1188] sm:$0xff]
    %v1445 = vld [vmem:[%s3 + $0x1190] sm:$0xff]
    %v1446 = vld [vmem:[%s3 + $0x1198] sm:$0xff]
    %v1447 = vld [vmem:[%s3 + $0x11a0] sm:$0xff]
    %v1448 = vld [vmem:[%s3 + $0x11a8] sm:$0xff]
    %v1449 = vld [vmem:[%s3 + $0x11b0] sm:$0xff]
    %v1450 = vld [vmem:[%s3 + $0x11b8] sm:$0xff]
    %v1451 = vld [vmem:[%s3 + $0x11c0] sm:$0xff]
    %v1452 = vld [vmem:[%s3 + $0x11c8] sm:$0xff]
    %v1453 = vld [vmem:[%s3 + $0x11d0] sm:$0xff]
    %v1454 = vld [vmem:[%s3 + $0x11d8] sm:$0xff]
    %v1455 = vld [vmem:[%s3 + $0x11e0] sm:$0xff]
    %v1456 = vld [vmem:[%s3 + $0x11e8] sm:$0xff]
    %v1457 = vld [vmem:[%s3 + $0x11f0] sm:$0xff]
    %v1458 = vld [vmem:[%s3 + $0x11f8] sm:$0xff]
    %1459 = vmatprep.subr.mxu0 0.0
    %1460 = vmatpush1.msra.mxu0 %v819
    %1461 = vmatprep.subr.mxu0 0.0
    %1462 = vmatpush1.msra.mxu0 %v820
    %1463 = vmatprep.subr.mxu0 0.0
    %1464 = vmatpush1.msra.mxu0 %v821
    %1465 = vmatprep.subr.mxu0 0.0
    %1466 = vmatpush1.msra.mxu0 %v822
    %1467 = vmatprep.subr.mxu0 0.0
    %1468 = vmatpush1.msra.mxu0 %v823
    %1469 = vmatprep.subr.mxu0 0.0
    %1470 = vmatpush1.msra.mxu0 %v824
    %1471 = vmatprep.subr.mxu0 0.0
    %1472 = vmatpush1.msra.mxu0 %v825
    %1473 = vmatprep.subr.mxu0 0.0
    %1474 = vmatpush1.msra.mxu0 %v826
    %1475 = vmatprep.subr.mxu0 0.0
    %1476 = vmatpush1.msra.mxu0 %v827
    %1477 = vmatprep.subr.mxu0 0.0
    %1478 = vmatpush1.msra.mxu0 %v828
    %1479 = vmatprep.subr.mxu0 0.0
    %1480 = vmatpush1.msra.mxu0 %v829
    %1481 = vmatprep.subr.mxu0 0.0
    %1482 = vmatpush1.msra.mxu0 %v830
    %1483 = vmatprep.subr.mxu0 0.0
    %1484 = vmatpush1.msra.mxu0 %v831
    %1485 = vmatprep.subr.mxu0 0.0
    %1486 = vmatpush1.msra.mxu0 %v832
    %1487 = vmatprep.subr.mxu0 0.0
    %1488 = vmatpush1.msra.mxu0 %v833
    %1489 = vmatprep.subr.mxu0 0.0
    %1490 = vmatpush1.msra.mxu0 %v834
    %1491 = vmatprep.subr.mxu0 0.0
    %1492 = vmatpush1.msra.mxu0 %v835
    %1493 = vmatprep.subr.mxu0 0.0
    %1494 = vmatpush1.msra.mxu0 %v836
    %1495 = vmatprep.subr.mxu0 0.0
    %1496 = vmatpush1.msra.mxu0 %v837
    %1497 = vmatprep.subr.mxu0 0.0
    %1498 = vmatpush1.msra.mxu0 %v838
    %1499 = vmatprep.subr.mxu0 0.0
    %1500 = vmatpush1.msra.mxu0 %v839
    %1501 = vmatprep.subr.mxu0 0.0
    %1502 = vmatpush1.msra.mxu0 %v840
    %1503 = vmatprep.subr.mxu0 0.0
    %1504 = vmatpush1.msra.mxu0 %v841
    %1505 = vmatprep.subr.mxu0 0.0
    %1506 = vmatpush1.msra.mxu0 %v842
    %1507 = vmatprep.subr.mxu0 0.0
    %1508 = vmatpush1.msra.mxu0 %v843
    %1509 = vmatprep.subr.mxu0 0.0
    %1510 = vmatpush1.msra.mxu0 %v844
    %1511 = vmatprep.subr.mxu0 0.0
    %1512 = vmatpush1.msra.mxu0 %v845
    %1513 = vmatprep.subr.mxu0 0.0
    %1514 = vmatpush1.msra.mxu0 %v846
    %1515 = vmatprep.subr.mxu0 0.0
    %1516 = vmatpush1.msra.mxu0 %v847
    %1517 = vmatprep.subr.mxu0 0.0
    %1518 = vmatpush1.msra.mxu0 %v848
    %1519 = vmatprep.subr.mxu0 0.0
    %1520 = vmatpush1.msra.mxu0 %v849
    %1521 = vmatprep.subr.mxu0 0.0
    %1522 = vmatpush1.msra.mxu0 %v850
    %1523 = vmatprep.mubr.f32.mxu0 %v884
    %1524 = vmatmul.mubr.f32.gmra.mrb[0].mxu0 %v883
    %v1525 = vpop.f32.mrb[0].mxu0
    %v1526 = vadd.f32 0.0, %v1525
    %v1527 = vpop.f32.mrb[0].mxu0
    %1528 = vmatprep.mubr.f32.mxu0 %v888
    %1529 = vmatmul.mubr.f32.gmra.mrb[0].mxu0 %v887
    %v1530 = vpop.f32.mrb[0].mxu0
    %v1531 = vadd.f32 0.0, %v1530
    %v1532 = vpop.f32.mrb[0].mxu0
    %1533 = vmatprep.mubr.f32.mxu0 %v892
    %1534 = vmatmul.mubr.f32.gmra.mrb[0].mxu0 %v891
    %v1535 = vpop.f32.mrb[0].mxu0
    %v1536 = vadd.f32 0.0, %v1535
    %v1537 = vpop.f32.mrb[0].mxu0
    %1538 = vmatprep.mubr.f32.mxu0 %v896
    %1539 = vmatmul.mubr.f32.gmra.mrb[0].mxu0 %v895
    %v1540 = vpop.f32.mrb[0].mxu0
    %v1541 = vadd.f32 0.0, %v1540
    %v1542 = vpop.f32.mrb[0].mxu0
    %1543 = vmatprep.mubr.f32.mxu0 %v900
    %1544 = vmatmul.mubr.f32.gmra.mrb[0].mxu0 %v899
    %v1545 = vpop.f32.mrb[0].mxu0
    %v1546 = vadd.f32 0.0, %v1545
    %v1547 = vpop.f32.mrb[0].mxu0
    %1548 = vmatprep.mubr.f32.mxu0 %v904
    %1549 = vmatmul.mubr.f32.gmra.mrb[0].mxu0 %v903
    %v1550 = vpop.f32.mrb[0].mxu0
    %v1551 = vadd.f32 0.0, %v1550
    %v1552 = vpop.f32.mrb[0].mxu0
    %1553 = vmatprep.mubr.f32.mxu0 %v908
    %1554 = vmatmul.mubr.f32.gmra.mrb[0].mxu0 %v907
    %v1555 = vpop.f32.mrb[0].mxu0
    %v1556 = vadd.f32 0.0, %v1555
    %v1557 = vpop.f32.mrb[0].mxu0
    %1558 = vmatprep.mubr.f32.mxu0 %v912
    %1559 = vmatmul.mubr.f32.gmra.mrb[0].mxu0 %v911
    %v1560 = vpop.f32.mrb[0].mxu0
    %v1561 = vadd.f32 0.0, %v1560
    %v1562 = vpop.f32.mrb[0].mxu0
    %1563 = vmatprep.mubr.f32.mxu0 %v916
    %1564 = vmatmul.mubr.f32.gmra.mrb[0].mxu0 %v915
    %v1565 = vpop.f32.mrb[0].mxu0
    %v1566 = vadd.f32 0.0, %v1565
    %v1567 = vpop.f32.mrb[0].mxu0
    %1568 = vmatprep.mubr.f32.mxu0 %v920
    %1569 = vmatmul.mubr.f32.gmra.mrb[0].mxu0 %v919
    %v1570 = vpop.f32.mrb[0].mxu0
    %v1571 = vadd.f32 0.0, %v1570
    %v1572 = vpop.f32.mrb[0].mxu0
    %1573 = vmatprep.mubr.f32.mxu0 %v924
    %1574 = vmatmul.mubr.f32.gmra.mrb[0].mxu0 %v923
    %v1575 = vpop.f32.mrb[0].mxu0
    %v1576 = vadd.f32 0.0, %v1575
    %v1577 = vpop.f32.mrb[0].mxu0
    %1578 = vmatprep.mubr.f32.mxu0 %v928
    %1579 = vmatmul.mubr.f32.gmra.mrb[0].mxu0 %v927
    %v1580 = vpop.f32.mrb[0].mxu0
    %v1581 = vadd.f32 0.0, %v1580
    %v1582 = vpop.f32.mrb[0].mxu0
    %1583 = vmatprep.mubr.f32.mxu0 %v932
    %1584 = vmatmul.mubr.f32.gmra.mrb[0].mxu0 %v931
    %v1585 = vpop.f32.mrb[0].mxu0
    %v1586 = vadd.f32 0.0, %v1585
    %v1587 = vpop.f32.mrb[0].mxu0
    %1588 = vmatprep.mubr.f32.mxu0 %v936
    %1589 = vmatmul.mubr.f32.gmra.mrb[0].mxu0 %v935
    %v1590 = vpop.f32.mrb[0].mxu0
    %v1591 = vadd.f32 0.0, %v1590
    %v1592 = vpop.f32.mrb[0].mxu0
    %1593 = vmatprep.mubr.f32.mxu0 %v940
    %1594 = vmatmul.mubr.f32.gmra.mrb[0].mxu0 %v939
    %v1595 = vpop.f32.mrb[0].mxu0
    %v1596 = vadd.f32 0.0, %v1595
    %v1597 = vpop.f32.mrb[0].mxu0
    %1598 = vmatprep.mubr.f32.mxu0 %v944
    %1599 = vmatmul.mubr.f32.gmra.mrb[0].mxu0 %v943
    %v1600 = vpop.f32.mrb[0].mxu0
    %v1601 = vadd.f32 0.0, %v1600
    %v1602 = vpop.f32.mrb[0].mxu0
    %1603 = vmatprep.mubr.f32.mxu0 %v948
    %1604 = vmatmul.mubr.f32.gmra.mrb[0].mxu0 %v947
    %v1605 = vpop.f32.mrb[0].mxu0
    %v1606 = vadd.f32 0.0, %v1605
    %v1607 = vpop.f32.mrb[0].mxu0
    %1608 = vmatprep.mubr.f32.mxu0 %v952
    %1609 = vmatmul.mubr.f32.gmra.mrb[0].mxu0 %v951
    %v1610 = vpop.f32.mrb[0].mxu0
    %v1611 = vadd.f32 0.0, %v1610
    %v1612 = vpop.f32.mrb[0].mxu0
    %1613 = vmatprep.mubr.f32.mxu0 %v956
    %1614 = vmatmul.mubr.f32.gmra.mrb[0].mxu0 %v955
    %v1615 = vpop.f32.mrb[0].mxu0
    %v1616 = vadd.f32 0.0, %v1615
    %v1617 = vpop.f32.mrb[0].mxu0
    %1618 = vmatprep.mubr.f32.mxu0 %v960
    %1619 = vmatmul.mubr.f32.gmra.mrb[0].mxu0 %v959
    %v1620 = vpop.f32.mrb[0].mxu0
    %v1621 = vadd.f32 0.0, %v1620
    %v1622 = vpop.f32.mrb[0].mxu0
    %1623 = vmatprep.mubr.f32.mxu0 %v964
    %1624 = vmatmul.mubr.f32.gmra.mrb[0].mxu0 %v963
    %v1625 = vpop.f32.mrb[0].mxu0
    %v1626 = vadd.f32 0.0, %v1625
    %v1627 = vpop.f32.mrb[0].mxu0
    %1628 = vmatprep.mubr.f32.mxu0 %v968
    %1629 = vmatmul.mubr.f32.gmra.mrb[0].mxu0 %v967
    %v1630 = vpop.f32.mrb[0].mxu0
    %v1631 = vadd.f32 0.0, %v1630
    %v1632 = vpop.f32.mrb[0].mxu0
    %1633 = vmatprep.mubr.f32.mxu0 %v972
    %1634 = vmatmul.mubr.f32.gmra.mrb[0].mxu0 %v971
    %v1635 = vpop.f32.mrb[0].mxu0
    %v1636 = vadd.f32 0.0, %v1635
    %v1637 = vpop.f32.mrb[0].mxu0
    %1638 = vmatprep.mubr.f32.mxu0 %v976
    %1639 = vmatmul.mubr.f32.gmra.mrb[0].mxu0 %v975
    %v1640 = vpop.f32.mrb[0].mxu0
    %v1641 = vadd.f32 0.0, %v1640
    %v1642 = vpop.f32.mrb[0].mxu0
    %1643 = vmatprep.mubr.f32.mxu0 %v980
    %1644 = vmatmul.mubr.f32.gmra.mrb[0].mxu0 %v979
    %v1645 = vpop.f32.mrb[0].mxu0
    %v1646 = vadd.f32 0.0, %v1645
    %v1647 = vpop.f32.mrb[0].mxu0
    %1648 = vmatprep.mubr.f32.mxu0 %v984
    %1649 = vmatmul.mubr.f32.gmra.mrb[0].mxu0 %v983
    %v1650 = vpop.f32.mrb[0].mxu0
    %v1651 = vadd.f32 0.0, %v1650
    %v1652 = vpop.f32.mrb[0].mxu0
    %1653 = vmatprep.mubr.f32.mxu0 %v988
    %1654 = vmatmul.mubr.f32.gmra.mrb[0].mxu0 %v987
    %v1655 = vpop.f32.mrb[0].mxu0
    %v1656 = vadd.f32 0.0, %v1655
    %v1657 = vpop.f32.mrb[0].mxu0
    %1658 = vmatprep.mubr.f32.mxu0 %v992
    %1659 = vmatmul.mubr.f32.gmra.mrb[0].mxu0 %v991
    %v1660 = vpop.f32.mrb[0].mxu0
    %v1661 = vadd.f32 0.0, %v1660
    %v1662 = vpop.f32.mrb[0].mxu0
    %1663 = vmatprep.mubr.f32.mxu0 %v996
    %1664 = vmatmul.mubr.f32.gmra.mrb[0].mxu0 %v995
    %v1665 = vpop.f32.mrb[0].mxu0
    %v1666 = vadd.f32 0.0, %v1665
    %v1667 = vpop.f32.mrb[0].mxu0
    %1668 = vmatprep.mubr.f32.mxu0 %v1000
    %1669 = vmatmul.mubr.f32.gmra.mrb[0].mxu0 %v999
    %v1670 = vpop.f32.mrb[0].mxu0
    %v1671 = vadd.f32 0.0, %v1670
    %v1672 = vpop.f32.mrb[0].mxu0
    %1673 = vmatprep.mubr.f32.mxu0 %v1004
    %1674 = vmatmul.mubr.f32.gmra.mrb[0].mxu0 %v1003
    %v1675 = vpop.f32.mrb[0].mxu0
    %v1676 = vadd.f32 0.0, %v1675
    %v1677 = vpop.f32.mrb[0].mxu0
    %1678 = vmatprep.mubr.f32.mxu0 %v1008
    %1679 = vmatmul.mubr.f32.gmra.mrb[0].mxu0 %v1007
    %v1680 = vpop.f32.mrb[0].mxu0
    %v1681 = vadd.f32 0.0, %v1680
    %v1682 = vpop.f32.mrb[0].mxu0
    %1683 = vmatprep.mubr.f32.mxu0 %v1012
    %1684 = vmatmul.mubr.f32.gmra.mrb[0].mxu0 %v1011
    %v1685 = vpop.f32.mrb[0].mxu0
    %v1686 = vadd.f32 0.0, %v1685
    %v1687 = vpop.f32.mrb[0].mxu0
    %1688 = vmatprep.mubr.f32.mxu0 %v1016
    %1689 = vmatmul.mubr.f32.gmra.mrb[0].mxu0 %v1015
    %v1690 = vpop.f32.mrb[0].mxu0
    %v1691 = vadd.f32 0.0, %v1690
    %v1692 = vpop.f32.mrb[0].mxu0
    %1693 = vmatprep.mubr.f32.mxu0 %v1020
    %1694 = vmatmul.mubr.f32.gmra.mrb[0].mxu0 %v1019
    %v1695 = vpop.f32.mrb[0].mxu0
    %v1696 = vadd.f32 0.0, %v1695
    %v1697 = vpop.f32.mrb[0].mxu0
    %1698 = vmatprep.mubr.f32.mxu0 %v1024
    %1699 = vmatmul.mubr.f32.gmra.mrb[0].mxu0 %v1023
    %v1700 = vpop.f32.mrb[0].mxu0
    %v1701 = vadd.f32 0.0, %v1700
    %v1702 = vpop.f32.mrb[0].mxu0
    %1703 = vmatprep.mubr.f32.mxu0 %v1028
    %1704 = vmatmul.mubr.f32.gmra.mrb[0].mxu0 %v1027
    %v1705 = vpop.f32.mrb[0].mxu0
    %v1706 = vadd.f32 0.0, %v1705
    %v1707 = vpop.f32.mrb[0].mxu0
    %1708 = vmatprep.mubr.f32.mxu0 %v1032
    %1709 = vmatmul.mubr.f32.gmra.mrb[0].mxu0 %v1031
    %v1710 = vpop.f32.mrb[0].mxu0
    %v1711 = vadd.f32 0.0, %v1710
    %v1712 = vpop.f32.mrb[0].mxu0
    %1713 = vmatprep.mubr.f32.mxu0 %v1036
    %1714 = vmatmul.mubr.f32.gmra.mrb[0].mxu0 %v1035
    %v1715 = vpop.f32.mrb[0].mxu0
    %v1716 = vadd.f32 0.0, %v1715
    %v1717 = vpop.f32.mrb[0].mxu0
    %1718 = vmatprep.mubr.f32.mxu0 %v1040
    %1719 = vmatmul.mubr.f32.gmra.mrb[0].mxu0 %v1039
    %v1720 = vpop.f32.mrb[0].mxu0
    %v1721 = vadd.f32 0.0, %v1720
    %v1722 = vpop.f32.mrb[0].mxu0
    %1723 = vmatprep.mubr.f32.mxu0 %v1044
    %1724 = vmatmul.mubr.f32.gmra.mrb[0].mxu0 %v1043
    %v1725 = vpop.f32.mrb[0].mxu0
    %v1726 = vadd.f32 0.0, %v1725
    %v1727 = vpop.f32.mrb[0].mxu0
    %1728 = vmatprep.mubr.f32.mxu0 %v1048
    %1729 = vmatmul.mubr.f32.gmra.mrb[0].mxu0 %v1047
    %v1730 = vpop.f32.mrb[0].mxu0
    %v1731 = vadd.f32 0.0, %v1730
    %v1732 = vpop.f32.mrb[0].mxu0
    %1733 = vmatprep.mubr.f32.mxu0 %v1052
    %1734 = vmatmul.mubr.f32.gmra.mrb[0].mxu0 %v1051
    %v1735 = vpop.f32.mrb[0].mxu0
    %v1736 = vadd.f32 0.0, %v1735
    %v1737 = vpop.f32.mrb[0].mxu0
    %1738 = vmatprep.mubr.f32.mxu0 %v1056
    %1739 = vmatmul.mubr.f32.gmra.mrb[0].mxu0 %v1055
    %v1740 = vpop.f32.mrb[0].mxu0
    %v1741 = vadd.f32 0.0, %v1740
    %v1742 = vpop.f32.mrb[0].mxu0
    %1743 = vmatprep.mubr.f32.mxu0 %v1060
    %1744 = vmatmul.mubr.f32.gmra.mrb[0].mxu0 %v1059
    %v1745 = vpop.f32.mrb[0].mxu0
    %v1746 = vadd.f32 0.0, %v1745
    %v1747 = vpop.f32.mrb[0].mxu0
    %1748 = vmatprep.mubr.f32.mxu0 %v1064
    %1749 = vmatmul.mubr.f32.gmra.mrb[0].mxu0 %v1063
    %v1750 = vpop.f32.mrb[0].mxu0
    %v1751 = vadd.f32 0.0, %v1750
    %v1752 = vpop.f32.mrb[0].mxu0
    %1753 = vmatprep.mubr.f32.mxu0 %v1068
    %1754 = vmatmul.mubr.f32.gmra.mrb[0].mxu0 %v1067
    %v1755 = vpop.f32.mrb[0].mxu0
    %v1756 = vadd.f32 0.0, %v1755
    %v1757 = vpop.f32.mrb[0].mxu0
    %1758 = vmatprep.mubr.f32.mxu0 %v1072
    %1759 = vmatmul.mubr.f32.gmra.mrb[0].mxu0 %v1071
    %v1760 = vpop.f32.mrb[0].mxu0
    %v1761 = vadd.f32 0.0, %v1760
    %v1762 = vpop.f32.mrb[0].mxu0
    %1763 = vmatprep.mubr.f32.mxu0 %v1076
    %1764 = vmatmul.mubr.f32.gmra.mrb[0].mxu0 %v1075
    %v1765 = vpop.f32.mrb[0].mxu0
    %v1766 = vadd.f32 0.0, %v1765
    %v1767 = vpop.f32.mrb[0].mxu0
    %1768 = vmatprep.mubr.f32.mxu0 %v1080
    %1769 = vmatmul.mubr.f32.gmra.mrb[0].mxu0 %v1079
    %v1770 = vpop.f32.mrb[0].mxu0
    %v1771 = vadd.f32 0.0, %v1770
    %v1772 = vpop.f32.mrb[0].mxu0
    %1773 = vmatprep.mubr.f32.mxu0 %v1084
    %1774 = vmatmul.mubr.f32.gmra.mrb[0].mxu0 %v1083
    %v1775 = vpop.f32.mrb[0].mxu0
    %v1776 = vadd.f32 0.0, %v1775
    %v1777 = vpop.f32.mrb[0].mxu0
    %1778 = vmatprep.mubr.f32.mxu0 %v1088
    %1779 = vmatmul.mubr.f32.gmra.mrb[0].mxu0 %v1087
    %v1780 = vpop.f32.mrb[0].mxu0
    %v1781 = vadd.f32 0.0, %v1780
    %v1782 = vpop.f32.mrb[0].mxu0
    %1783 = vmatprep.mubr.f32.mxu0 %v1092
    %1784 = vmatmul.mubr.f32.gmra.mrb[0].mxu0 %v1091
    %v1785 = vpop.f32.mrb[0].mxu0
    %v1786 = vadd.f32 0.0, %v1785
    %v1787 = vpop.f32.mrb[0].mxu0
    %1788 = vmatprep.mubr.f32.mxu0 %v1096
    %1789 = vmatmul.mubr.f32.gmra.mrb[0].mxu0 %v1095
    %v1790 = vpop.f32.mrb[0].mxu0
    %v1791 = vadd.f32 0.0, %v1790
    %v1792 = vpop.f32.mrb[0].mxu0
    %1793 = vmatprep.mubr.f32.mxu0 %v1100
    %1794 = vmatmul.mubr.f32.gmra.mrb[0].mxu0 %v1099
    %v1795 = vpop.f32.mrb[0].mxu0
    %v1796 = vadd.f32 0.0, %v1795
    %v1797 = vpop.f32.mrb[0].mxu0
    %1798 = vmatprep.mubr.f32.mxu0 %v1104
    %1799 = vmatmul.mubr.f32.gmra.mrb[0].mxu0 %v1103
    %v1800 = vpop.f32.mrb[0].mxu0
    %v1801 = vadd.f32 0.0, %v1800
    %v1802 = vpop.f32.mrb[0].mxu0
    %1803 = vmatprep.mubr.f32.mxu0 %v1108
    %1804 = vmatmul.mubr.f32.gmra.mrb[0].mxu0 %v1107
    %v1805 = vpop.f32.mrb[0].mxu0
    %v1806 = vadd.f32 0.0, %v1805
    %v1807 = vpop.f32.mrb[0].mxu0
    %1808 = vmatprep.mubr.f32.mxu0 %v1112
    %1809 = vmatmul.mubr.f32.gmra.mrb[0].mxu0 %v1111
    %v1810 = vpop.f32.mrb[0].mxu0
    %v1811 = vadd.f32 0.0, %v1810
    %v1812 = vpop.f32.mrb[0].mxu0
    %1813 = vmatprep.mubr.f32.mxu0 %v1116
    %1814 = vmatmul.mubr.f32.gmra.mrb[0].mxu0 %v1115
    %v1815 = vpop.f32.mrb[0].mxu0
    %v1816 = vadd.f32 0.0, %v1815
    %v1817 = vpop.f32.mrb[0].mxu0
    %1818 = vmatprep.mubr.f32.mxu0 %v1120
    %1819 = vmatmul.mubr.f32.gmra.mrb[0].mxu0 %v1119
    %v1820 = vpop.f32.mrb[0].mxu0
    %v1821 = vadd.f32 0.0, %v1820
    %v1822 = vpop.f32.mrb[0].mxu0
    %1823 = vmatprep.mubr.f32.mxu0 %v1124
    %1824 = vmatmul.mubr.f32.gmra.mrb[0].mxu0 %v1123
    %v1825 = vpop.f32.mrb[0].mxu0
    %v1826 = vadd.f32 0.0, %v1825
    %v1827 = vpop.f32.mrb[0].mxu0
    %1828 = vmatprep.mubr.f32.mxu0 %v1128
    %1829 = vmatmul.mubr.f32.gmra.mrb[0].mxu0 %v1127
    %v1830 = vpop.f32.mrb[0].mxu0
    %v1831 = vadd.f32 0.0, %v1830
    %v1832 = vpop.f32.mrb[0].mxu0
    %1833 = vmatprep.mubr.f32.mxu0 %v1132
    %1834 = vmatmul.mubr.f32.gmra.mrb[0].mxu0 %v1131
    %v1835 = vpop.f32.mrb[0].mxu0
    %v1836 = vadd.f32 0.0, %v1835
    %v1837 = vpop.f32.mrb[0].mxu0
    %1838 = vmatprep.mubr.f32.mxu0 %v1136
    %1839 = vmatmul.mubr.f32.gmra.mrb[0].mxu0 %v1135
    %v1840 = vpop.f32.mrb[0].mxu0
    %v1841 = vadd.f32 0.0, %v1840
    %v1842 = vpop.f32.mrb[0].mxu0
    %1843 = vmatprep.mubr.f32.mxu0 %v1140
    %1844 = vmatmul.mubr.f32.gmra.mrb[0].mxu0 %v1139
    %v1845 = vpop.f32.mrb[0].mxu0
    %v1846 = vadd.f32 0.0, %v1845
    %v1847 = vpop.f32.mrb[0].mxu0
    %1848 = vmatprep.mubr.f32.mxu0 %v1144
    %1849 = vmatmul.mubr.f32.gmra.mrb[0].mxu0 %v1143
    %v1850 = vpop.f32.mrb[0].mxu0
    %v1851 = vadd.f32 0.0, %v1850
    %v1852 = vpop.f32.mrb[0].mxu0
    %1853 = vmatprep.mubr.f32.mxu0 %v1148
    %1854 = vmatmul.mubr.f32.gmra.mrb[0].mxu0 %v1147
    %v1855 = vpop.f32.mrb[0].mxu0
    %v1856 = vadd.f32 0.0, %v1855
    %v1857 = vpop.f32.mrb[0].mxu0
    %1858 = vmatprep.mubr.f32.mxu0 %v1152
    %1859 = vmatmul.mubr.f32.gmra.mrb[0].mxu0 %v1151
    %v1860 = vpop.f32.mrb[0].mxu0
    %v1861 = vadd.f32 0.0, %v1860
    %v1862 = vpop.f32.mrb[0].mxu0
    %1863 = vmatprep.mubr.f32.mxu0 %v1156
    %1864 = vmatmul.mubr.f32.gmra.mrb[0].mxu0 %v1155
    %v1865 = vpop.f32.mrb[0].mxu0
    %v1866 = vadd.f32 0.0, %v1865
    %v1867 = vpop.f32.mrb[0].mxu0
    %1868 = vmatprep.mubr.f32.mxu0 %v1160
    %1869 = vmatmul.mubr.f32.gmra.mrb[0].mxu0 %v1159
    %v1870 = vpop.f32.mrb[0].mxu0
    %v1871 = vadd.f32 0.0, %v1870
    %v1872 = vpop.f32.mrb[0].mxu0
    %1873 = vmatprep.mubr.f32.mxu0 %v1164
    %1874 = vmatmul.mubr.f32.gmra.mrb[0].mxu0 %v1163
    %v1875 = vpop.f32.mrb[0].mxu0
    %v1876 = vadd.f32 0.0, %v1875
    %v1877 = vpop.f32.mrb[0].mxu0
    %1878 = vmatprep.mubr.f32.mxu0 %v1168
    %1879 = vmatmul.mubr.f32.gmra.mrb[0].mxu0 %v1167
    %v1880 = vpop.f32.mrb[0].mxu0
    %v1881 = vadd.f32 0.0, %v1880
    %v1882 = vpop.f32.mrb[0].mxu0
    %1883 = vmatprep.mubr.f32.mxu0 %v1172
    %1884 = vmatmul.mubr.f32.gmra.mrb[0].mxu0 %v1171
    %v1885 = vpop.f32.mrb[0].mxu0
    %v1886 = vadd.f32 0.0, %v1885
    %v1887 = vpop.f32.mrb[0].mxu0
    %1888 = vmatprep.mubr.f32.mxu0 %v1176
    %1889 = vmatmul.mubr.f32.gmra.mrb[0].mxu0 %v1175
    %v1890 = vpop.f32.mrb[0].mxu0
    %v1891 = vadd.f32 0.0, %v1890
    %v1892 = vpop.f32.mrb[0].mxu0
    %1893 = vmatprep.mubr.f32.mxu0 %v1180
    %1894 = vmatmul.mubr.f32.gmra.mrb[0].mxu0 %v1179
    %v1895 = vpop.f32.mrb[0].mxu0
    %v1896 = vadd.f32 0.0, %v1895
    %v1897 = vpop.f32.mrb[0].mxu0
    %1898 = vmatprep.mubr.f32.mxu0 %v1184
    %1899 = vmatmul.mubr.f32.gmra.mrb[0].mxu0 %v1183
    %v1900 = vpop.f32.mrb[0].mxu0
    %v1901 = vadd.f32 0.0, %v1900
    %v1902 = vpop.f32.mrb[0].mxu0
    %1903 = vmatprep.mubr.f32.mxu0 %v1188
    %1904 = vmatmul.mubr.f32.gmra.mrb[0].mxu0 %v1187
    %v1905 = vpop.f32.mrb[0].mxu0
    %v1906 = vadd.f32 0.0, %v1905
    %v1907 = vpop.f32.mrb[0].mxu0
    %1908 = vmatprep.mubr.f32.mxu0 %v1192
    %1909 = vmatmul.mubr.f32.gmra.mrb[0].mxu0 %v1191
    %v1910 = vpop.f32.mrb[0].mxu0
    %v1911 = vadd.f32 0.0, %v1910
    %v1912 = vpop.f32.mrb[0].mxu0
    %1913 = vmatprep.mubr.f32.mxu0 %v1196
    %1914 = vmatmul.mubr.f32.gmra.mrb[0].mxu0 %v1195
    %v1915 = vpop.f32.mrb[0].mxu0
    %v1916 = vadd.f32 0.0, %v1915
    %v1917 = vpop.f32.mrb[0].mxu0
    %1918 = vmatprep.mubr.f32.mxu0 %v1200
    %1919 = vmatmul.mubr.f32.gmra.mrb[0].mxu0 %v1199
    %v1920 = vpop.f32.mrb[0].mxu0
    %v1921 = vadd.f32 0.0, %v1920
    %v1922 = vpop.f32.mrb[0].mxu0
    %1923 = vmatprep.mubr.f32.mxu0 %v1204
    %1924 = vmatmul.mubr.f32.gmra.mrb[0].mxu0 %v1203
    %v1925 = vpop.f32.mrb[0].mxu0
    %v1926 = vadd.f32 0.0, %v1925
    %v1927 = vpop.f32.mrb[0].mxu0
    %1928 = vmatprep.mubr.f32.mxu0 %v1208
    %1929 = vmatmul.mubr.f32.gmra.mrb[0].mxu0 %v1207
    %v1930 = vpop.f32.mrb[0].mxu0
    %v1931 = vadd.f32 0.0, %v1930
    %v1932 = vpop.f32.mrb[0].mxu0
    %1933 = vmatprep.mubr.f32.mxu0 %v1212
    %1934 = vmatmul.mubr.f32.gmra.mrb[0].mxu0 %v1211
    %v1935 = vpop.f32.mrb[0].mxu0
    %v1936 = vadd.f32 0.0, %v1935
    %v1937 = vpop.f32.mrb[0].mxu0
    %1938 = vmatprep.mubr.f32.mxu0 %v1216
    %1939 = vmatmul.mubr.f32.gmra.mrb[0].mxu0 %v1215
    %v1940 = vpop.f32.mrb[0].mxu0
    %v1941 = vadd.f32 0.0, %v1940
    %v1942 = vpop.f32.mrb[0].mxu0
    %1943 = vmatprep.mubr.f32.mxu0 %v1220
    %1944 = vmatmul.mubr.f32.gmra.mrb[0].mxu0 %v1219
    %v1945 = vpop.f32.mrb[0].mxu0
    %v1946 = vadd.f32 0.0, %v1945
    %v1947 = vpop.f32.mrb[0].mxu0
    %1948 = vmatprep.mubr.f32.mxu0 %v1224
    %1949 = vmatmul.mubr.f32.gmra.mrb[0].mxu0 %v1223
    %v1950 = vpop.f32.mrb[0].mxu0
    %v1951 = vadd.f32 0.0, %v1950
    %v1952 = vpop.f32.mrb[0].mxu0
    %1953 = vmatprep.mubr.f32.mxu0 %v1228
    %1954 = vmatmul.mubr.f32.gmra.mrb[0].mxu0 %v1227
    %v1955 = vpop.f32.mrb[0].mxu0
    %v1956 = vadd.f32 0.0, %v1955
    %v1957 = vpop.f32.mrb[0].mxu0
    %1958 = vmatprep.mubr.f32.mxu0 %v1232
    %1959 = vmatmul.mubr.f32.gmra.mrb[0].mxu0 %v1231
    %v1960 = vpop.f32.mrb[0].mxu0
    %v1961 = vadd.f32 0.0, %v1960
    %v1962 = vpop.f32.mrb[0].mxu0
    %1963 = vmatprep.mubr.f32.mxu0 %v1236
    %1964 = vmatmul.mubr.f32.gmra.mrb[0].mxu0 %v1235
    %v1965 = vpop.f32.mrb[0].mxu0
    %v1966 = vadd.f32 0.0, %v1965
    %v1967 = vpop.f32.mrb[0].mxu0
    %1968 = vmatprep.mubr.f32.mxu0 %v1240
    %1969 = vmatmul.mubr.f32.gmra.mrb[0].mxu0 %v1239
    %v1970 = vpop.f32.mrb[0].mxu0
    %v1971 = vadd.f32 0.0, %v1970
    %v1972 = vpop.f32.mrb[0].mxu0
    %1973 = vmatprep.mubr.f32.mxu0 %v1244
    %1974 = vmatmul.mubr.f32.gmra.mrb[0].mxu0 %v1243
    %v1975 = vpop.f32.mrb[0].mxu0
    %v1976 = vadd.f32 0.0, %v1975
    %v1977 = vpop.f32.mrb[0].mxu0
    %1978 = vmatprep.mubr.f32.mxu0 %v1248
    %1979 = vmatmul.mubr.f32.gmra.mrb[0].mxu0 %v1247
    %v1980 = vpop.f32.mrb[0].mxu0
    %v1981 = vadd.f32 0.0, %v1980
    %v1982 = vpop.f32.mrb[0].mxu0
    %1983 = vmatprep.mubr.f32.mxu0 %v1252
    %1984 = vmatmul.mubr.f32.gmra.mrb[0].mxu0 %v1251
    %v1985 = vpop.f32.mrb[0].mxu0
    %v1986 = vadd.f32 0.0, %v1985
    %v1987 = vpop.f32.mrb[0].mxu0
    %1988 = vmatprep.mubr.f32.mxu0 %v1256
    %1989 = vmatmul.mubr.f32.gmra.mrb[0].mxu0 %v1255
    %v1990 = vpop.f32.mrb[0].mxu0
    %v1991 = vadd.f32 0.0, %v1990
    %v1992 = vpop.f32.mrb[0].mxu0
    %1993 = vmatprep.mubr.f32.mxu0 %v1260
    %1994 = vmatmul.mubr.f32.gmra.mrb[0].mxu0 %v1259
    %v1995 = vpop.f32.mrb[0].mxu0
    %v1996 = vadd.f32 0.0, %v1995
    %v1997 = vpop.f32.mrb[0].mxu0
    %1998 = vmatprep.mubr.f32.mxu0 %v1264
    %1999 = vmatmul.mubr.f32.gmra.mrb[0].mxu0 %v1263
    %v2000 = vpop.f32.mrb[0].mxu0
    %v2001 = vadd.f32 0.0, %v2000
    %v2002 = vpop.f32.mrb[0].mxu0
    %2003 = vmatprep.mubr.f32.mxu0 %v1268
    %2004 = vmatmul.mubr.f32.gmra.mrb[0].mxu0 %v1267
    %v2005 = vpop.f32.mrb[0].mxu0
    %v2006 = vadd.f32 0.0, %v2005
    %v2007 = vpop.f32.mrb[0].mxu0
    %2008 = vmatprep.mubr.f32.mxu0 %v1272
    %2009 = vmatmul.mubr.f32.gmra.mrb[0].mxu0 %v1271
    %v2010 = vpop.f32.mrb[0].mxu0
    %v2011 = vadd.f32 0.0, %v2010
    %v2012 = vpop.f32.mrb[0].mxu0
    %2013 = vmatprep.mubr.f32.mxu0 %v1276
    %2014 = vmatmul.mubr.f32.gmra.mrb[0].mxu0 %v1275
    %v2015 = vpop.f32.mrb[0].mxu0
    %v2016 = vadd.f32 0.0, %v2015
    %v2017 = vpop.f32.mrb[0].mxu0
    %2018 = vmatprep.mubr.f32.mxu0 %v1280
    %2019 = vmatmul.mubr.f32.gmra.mrb[0].mxu0 %v1279
    %v2020 = vpop.f32.mrb[0].mxu0
    %v2021 = vadd.f32 0.0, %v2020
    %v2022 = vpop.f32.mrb[0].mxu0
    %2023 = vmatprep.mubr.f32.mxu0 %v1284
    %2024 = vmatmul.mubr.f32.gmra.mrb[0].mxu0 %v1283
    %v2025 = vpop.f32.mrb[0].mxu0
    %v2026 = vadd.f32 0.0, %v2025
    %v2027 = vpop.f32.mrb[0].mxu0
    %2028 = vmatprep.mubr.f32.mxu0 %v1288
    %2029 = vmatmul.mubr.f32.gmra.mrb[0].mxu0 %v1287
    %v2030 = vpop.f32.mrb[0].mxu0
    %v2031 = vadd.f32 0.0, %v2030
    %v2032 = vpop.f32.mrb[0].mxu0
    %2033 = vmatprep.mubr.f32.mxu0 %v1292
    %2034 = vmatmul.mubr.f32.gmra.mrb[0].mxu0 %v1291
    %v2035 = vpop.f32.mrb[0].mxu0
    %v2036 = vadd.f32 0.0, %v2035
    %v2037 = vpop.f32.mrb[0].mxu0
    %2038 = vmatprep.mubr.f32.mxu0 %v1296
    %2039 = vmatmul.mubr.f32.gmra.mrb[0].mxu0 %v1295
    %v2040 = vpop.f32.mrb[0].mxu0
    %v2041 = vadd.f32 0.0, %v2040
    %v2042 = vpop.f32.mrb[0].mxu0
    %2043 = vmatprep.mubr.f32.mxu0 %v1300
    %2044 = vmatmul.mubr.f32.gmra.mrb[0].mxu0 %v1299
    %v2045 = vpop.f32.mrb[0].mxu0
    %v2046 = vadd.f32 0.0, %v2045
    %v2047 = vpop.f32.mrb[0].mxu0
    %2048 = vmatprep.mubr.f32.mxu0 %v1304
    %2049 = vmatmul.mubr.f32.gmra.mrb[0].mxu0 %v1303
    %v2050 = vpop.f32.mrb[0].mxu0
    %v2051 = vadd.f32 0.0, %v2050
    %v2052 = vpop.f32.mrb[0].mxu0
    %2053 = vmatprep.mubr.f32.mxu0 %v1308
    %2054 = vmatmul.mubr.f32.gmra.mrb[0].mxu0 %v1307
    %v2055 = vpop.f32.mrb[0].mxu0
    %v2056 = vadd.f32 0.0, %v2055
    %v2057 = vpop.f32.mrb[0].mxu0
    %2058 = vmatprep.mubr.f32.mxu0 %v1312
    %2059 = vmatmul.mubr.f32.gmra.mrb[0].mxu0 %v1311
    %v2060 = vpop.f32.mrb[0].mxu0
    %v2061 = vadd.f32 0.0, %v2060
    %v2062 = vpop.f32.mrb[0].mxu0
    %2063 = vmatprep.mubr.f32.mxu0 %v1316
    %2064 = vmatmul.mubr.f32.gmra.mrb[0].mxu0 %v1315
    %v2065 = vpop.f32.mrb[0].mxu0
    %v2066 = vadd.f32 0.0, %v2065
    %v2067 = vpop.f32.mrb[0].mxu0
    %2068 = vmatprep.mubr.f32.mxu0 %v1320
    %2069 = vmatmul.mubr.f32.gmra.mrb[0].mxu0 %v1319
    %v2070 = vpop.f32.mrb[0].mxu0
    %v2071 = vadd.f32 0.0, %v2070
    %v2072 = vpop.f32.mrb[0].mxu0
    %2073 = vmatprep.mubr.f32.mxu0 %v1324
    %2074 = vmatmul.mubr.f32.gmra.mrb[0].mxu0 %v1323
    %v2075 = vpop.f32.mrb[0].mxu0
    %v2076 = vadd.f32 0.0, %v2075
    %v2077 = vpop.f32.mrb[0].mxu0
    %2078 = vmatprep.mubr.f32.mxu0 %v1328
    %2079 = vmatmul.mubr.f32.gmra.mrb[0].mxu0 %v1327
    %v2080 = vpop.f32.mrb[0].mxu0
    %v2081 = vadd.f32 0.0, %v2080
    %v2082 = vpop.f32.mrb[0].mxu0
    %2083 = vmatprep.mubr.f32.mxu0 %v1332
    %2084 = vmatmul.mubr.f32.gmra.mrb[0].mxu0 %v1331
    %v2085 = vpop.f32.mrb[0].mxu0
    %v2086 = vadd.f32 0.0, %v2085
    %v2087 = vpop.f32.mrb[0].mxu0
    %2088 = vmatprep.mubr.f32.mxu0 %v1336
    %2089 = vmatmul.mubr.f32.gmra.mrb[0].mxu0 %v1335
    %v2090 = vpop.f32.mrb[0].mxu0
    %v2091 = vadd.f32 0.0, %v2090
    %v2092 = vpop.f32.mrb[0].mxu0
    %2093 = vmatprep.mubr.f32.mxu0 %v1340
    %2094 = vmatmul.mubr.f32.gmra.mrb[0].mxu0 %v1339
    %v2095 = vpop.f32.mrb[0].mxu0
    %v2096 = vadd.f32 0.0, %v2095
    %v2097 = vpop.f32.mrb[0].mxu0
    %2098 = vmatprep.mubr.f32.mxu0 %v1344
    %2099 = vmatmul.mubr.f32.gmra.mrb[0].mxu0 %v1343
    %v2100 = vpop.f32.mrb[0].mxu0
    %v2101 = vadd.f32 0.0, %v2100
    %v2102 = vpop.f32.mrb[0].mxu0
    %2103 = vmatprep.mubr.f32.mxu0 %v1348
    %2104 = vmatmul.mubr.f32.gmra.mrb[0].mxu0 %v1347
    %v2105 = vpop.f32.mrb[0].mxu0
    %v2106 = vadd.f32 0.0, %v2105
    %v2107 = vpop.f32.mrb[0].mxu0
    %2108 = vmatprep.mubr.f32.mxu0 %v1352
    %2109 = vmatmul.mubr.f32.gmra.mrb[0].mxu0 %v1351
    %v2110 = vpop.f32.mrb[0].mxu0
    %v2111 = vadd.f32 0.0, %v2110
    %v2112 = vpop.f32.mrb[0].mxu0
    %2113 = vmatprep.mubr.f32.mxu0 %v1356
    %2114 = vmatmul.mubr.f32.gmra.mrb[0].mxu0 %v1355
    %v2115 = vpop.f32.mrb[0].mxu0
    %v2116 = vadd.f32 0.0, %v2115
    %v2117 = vpop.f32.mrb[0].mxu0
    %2118 = vmatprep.mubr.f32.mxu0 %v1360
    %2119 = vmatmul.mubr.f32.gmra.mrb[0].mxu0 %v1359
    %v2120 = vpop.f32.mrb[0].mxu0
    %v2121 = vadd.f32 0.0, %v2120
    %v2122 = vpop.f32.mrb[0].mxu0
    %2123 = vmatprep.mubr.f32.mxu0 %v1364
    %2124 = vmatmul.mubr.f32.gmra.mrb[0].mxu0 %v1363
    %v2125 = vpop.f32.mrb[0].mxu0
    %v2126 = vadd.f32 0.0, %v2125
    %v2127 = vpop.f32.mrb[0].mxu0
    %2128 = vmatprep.mubr.f32.mxu0 %v1368
    %2129 = vmatmul.mubr.f32.gmra.mrb[0].mxu0 %v1367
    %v2130 = vpop.f32.mrb[0].mxu0
    %v2131 = vadd.f32 0.0, %v2130
    %v2132 = vpop.f32.mrb[0].mxu0
    %2133 = vmatprep.mubr.f32.mxu0 %v1372
    %2134 = vmatmul.mubr.f32.gmra.mrb[0].mxu0 %v1371
    %v2135 = vpop.f32.mrb[0].mxu0
    %v2136 = vadd.f32 0.0, %v2135
    %v2137 = vpop.f32.mrb[0].mxu0
    %2138 = vmatprep.mubr.f32.mxu0 %v1376
    %2139 = vmatmul.mubr.f32.gmra.mrb[0].mxu0 %v1375
    %v2140 = vpop.f32.mrb[0].mxu0
    %v2141 = vadd.f32 0.0, %v2140
    %v2142 = vpop.f32.mrb[0].mxu0
    %2143 = vmatprep.mubr.f32.mxu0 %v1380
    %2144 = vmatmul.mubr.f32.gmra.mrb[0].mxu0 %v1379
    %v2145 = vpop.f32.mrb[0].mxu0
    %v2146 = vadd.f32 0.0, %v2145
    %v2147 = vpop.f32.mrb[0].mxu0
    %2148 = vmatprep.mubr.f32.mxu0 %v1384
    %2149 = vmatmul.mubr.f32.gmra.mrb[0].mxu0 %v1383
    %v2150 = vpop.f32.mrb[0].mxu0
    %v2151 = vadd.f32 0.0, %v2150
    %v2152 = vpop.f32.mrb[0].mxu0
    %2153 = vmatprep.mubr.f32.mxu0 %v1388
    %2154 = vmatmul.mubr.f32.gmra.mrb[0].mxu0 %v1387
    %v2155 = vpop.f32.mrb[0].mxu0
    %v2156 = vadd.f32 0.0, %v2155
    %v2157 = vpop.f32.mrb[0].mxu0
    %2158 = vmatprep.mubr.f32.mxu0 %v1392
    %2159 = vmatmul.mubr.f32.gmra.mrb[0].mxu0 %v1391
    %v2160 = vpop.f32.mrb[0].mxu0
    %v2161 = vadd.f32 0.0, %v2160
    %v2162 = vpop.f32.mrb[0].mxu0
    %2163 = vmatprep.mubr.f32.mxu0 %v1396
    %2164 = vmatmul.mubr.f32.gmra.mrb[0].mxu0 %v1395
    %v2165 = vpop.f32.mrb[0].mxu0
    %v2166 = vadd.f32 0.0, %v2165
    %v2167 = vpop.f32.mrb[0].mxu0
    %2168 = vmatprep.mubr.f32.mxu0 %v1400
    %2169 = vmatmul.mubr.f32.gmra.mrb[0].mxu0 %v1399
    %v2170 = vpop.f32.mrb[0].mxu0
    %v2171 = vadd.f32 0.0, %v2170
    %v2172 = vpop.f32.mrb[0].mxu0
    %2173 = vmatprep.mubr.f32.mxu0 %v1404
    %2174 = vmatmul.mubr.f32.gmra.mrb[0].mxu0 %v1403
    %v2175 = vpop.f32.mrb[0].mxu0
    %v2176 = vadd.f32 0.0, %v2175
    %v2177 = vpop.f32.mrb[0].mxu0
    %2178 = vmatprep.mubr.f32.mxu0 %v1408
    %2179 = vmatmul.mubr.f32.gmra.mrb[0].mxu0 %v1407
    %v2180 = vpop.f32.mrb[0].mxu0
    %v2181 = vadd.f32 0.0, %v2180
    %v2182 = vpop.f32.mrb[0].mxu0
    %2183 = vmatprep.mubr.f32.mxu0 %v1412
    %2184 = vmatmul.mubr.f32.gmra.mrb[0].mxu0 %v1411
    %v2185 = vpop.f32.mrb[0].mxu0
    %v2186 = vadd.f32 0.0, %v2185
    %v2187 = vpop.f32.mrb[0].mxu0
    %2188 = vmatprep.mubr.f32.mxu0 %v1416
    %2189 = vmatmul.mubr.f32.gmra.mrb[0].mxu0 %v1415
    %v2190 = vpop.f32.mrb[0].mxu0
    %v2191 = vadd.f32 0.0, %v2190
    %v2192 = vpop.f32.mrb[0].mxu0
    %2193 = vmatprep.mubr.f32.mxu0 %v1420
    %2194 = vmatmul.mubr.f32.gmra.mrb[0].mxu0 %v1419
    %v2195 = vpop.f32.mrb[0].mxu0
    %v2196 = vadd.f32 0.0, %v2195
    %v2197 = vpop.f32.mrb[0].mxu0
    %2198 = vmatprep.mubr.f32.mxu0 %v1424
    %2199 = vmatmul.mubr.f32.gmra.mrb[0].mxu0 %v1423
    %v2200 = vpop.f32.mrb[0].mxu0
    %v2201 = vadd.f32 0.0, %v2200
    %v2202 = vpop.f32.mrb[0].mxu0
    %2203 = vmatprep.mubr.f32.mxu0 %v1428
    %2204 = vmatmul.mubr.f32.gmra.mrb[0].mxu0 %v1427
    %v2205 = vpop.f32.mrb[0].mxu0
    %v2206 = vadd.f32 0.0, %v2205
    %v2207 = vpop.f32.mrb[0].mxu0
    %2208 = vmatprep.mubr.f32.mxu0 %v1432
    %2209 = vmatmul.mubr.f32.gmra.mrb[0].mxu0 %v1431
    %v2210 = vpop.f32.mrb[0].mxu0
    %v2211 = vadd.f32 0.0, %v2210
    %v2212 = vpop.f32.mrb[0].mxu0
    %2213 = vmatprep.mubr.f32.mxu0 %v1436
    %2214 = vmatmul.mubr.f32.gmra.mrb[0].mxu0 %v1435
    %v2215 = vpop.f32.mrb[0].mxu0
    %v2216 = vadd.f32 0.0, %v2215
    %v2217 = vpop.f32.mrb[0].mxu0
    %2218 = vmatprep.mubr.f32.mxu0 %v1440
    %2219 = vmatmul.mubr.f32.gmra.mrb[0].mxu0 %v1439
    %v2220 = vpop.f32.mrb[0].mxu0
    %v2221 = vadd.f32 0.0, %v2220
    %v2222 = vpop.f32.mrb[0].mxu0
    %2223 = vmatprep.mubr.f32.mxu0 %v1444
    %2224 = vmatmul.mubr.f32.gmra.mrb[0].mxu0 %v1443
    %v2225 = vpop.f32.mrb[0].mxu0
    %v2226 = vadd.f32 0.0, %v2225
    %v2227 = vpop.f32.mrb[0].mxu0
    %2228 = vmatprep.mubr.f32.mxu0 %v1448
    %2229 = vmatmul.mubr.f32.gmra.mrb[0].mxu0 %v1447
    %v2230 = vpop.f32.mrb[0].mxu0
    %v2231 = vadd.f32 0.0, %v2230
    %v2232 = vpop.f32.mrb[0].mxu0
    %2233 = vmatprep.mubr.f32.mxu0 %v1452
    %2234 = vmatmul.mubr.f32.gmra.mrb[0].mxu0 %v1451
    %v2235 = vpop.f32.mrb[0].mxu0
    %v2236 = vadd.f32 0.0, %v2235
    %v2237 = vpop.f32.mrb[0].mxu0
    %2238 = vmatprep.mubr.f32.mxu0 %v1456
    %2239 = vmatmul.mubr.f32.gmra.mrb[0].mxu0 %v1455
    %v2240 = vpop.f32.mrb[0].mxu0
    %v2241 = vadd.f32 0.0, %v2240
    %v2242 = vpop.f32.mrb[0].mxu0
    %2243 = vdwg.mxu0
    %2244 = vmatprep.subr.mxu0 0.0
    %2245 = vmatpush1.msra.mxu0 %v851
    %2246 = vmatprep.subr.mxu0 0.0
    %2247 = vmatpush1.msra.mxu0 %v852
    %2248 = vmatprep.subr.mxu0 0.0
    %2249 = vmatpush1.msra.mxu0 %v853
    %2250 = vmatprep.subr.mxu0 0.0
    %2251 = vmatpush1.msra.mxu0 %v854
    %2252 = vmatprep.subr.mxu0 0.0
    %2253 = vmatpush1.msra.mxu0 %v855
    %2254 = vmatprep.subr.mxu0 0.0
    %2255 = vmatpush1.msra.mxu0 %v856
    %2256 = vmatprep.subr.mxu0 0.0
    %2257 = vmatpush1.msra.mxu0 %v857
    %2258 = vmatprep.subr.mxu0 0.0
    %2259 = vmatpush1.msra.mxu0 %v858
    %2260 = vmatprep.subr.mxu0 0.0
    %2261 = vmatpush1.msra.mxu0 %v859
    %2262 = vmatprep.subr.mxu0 0.0
    %2263 = vmatpush1.msra.mxu0 %v860
    %2264 = vmatprep.subr.mxu0 0.0
    %2265 = vmatpush1.msra.mxu0 %v861
    %2266 = vmatprep.subr.mxu0 0.0
    %2267 = vmatpush1.msra.mxu0 %v862
    %2268 = vmatprep.subr.mxu0 0.0
    %2269 = vmatpush1.msra.mxu0 %v863
    %2270 = vmatprep.subr.mxu0 0.0
    %2271 = vmatpush1.msra.mxu0 %v864
    %2272 = vmatprep.subr.mxu0 0.0
    %2273 = vmatpush1.msra.mxu0 %v865
    %2274 = vmatprep.subr.mxu0 0.0
    %2275 = vmatpush1.msra.mxu0 %v866
    %2276 = vmatprep.subr.mxu0 0.0
    %2277 = vmatpush1.msra.mxu0 %v867
    %2278 = vmatprep.subr.mxu0 0.0
    %2279 = vmatpush1.msra.mxu0 %v868
    %2280 = vmatprep.subr.mxu0 0.0
    %2281 = vmatpush1.msra.mxu0 %v869
    %2282 = vmatprep.subr.mxu0 0.0
    %2283 = vmatpush1.msra.mxu0 %v870
    %2284 = vmatprep.subr.mxu0 0.0
    %2285 = vmatpush1.msra.mxu0 %v871
    %2286 = vmatprep.subr.mxu0 0.0
    %2287 = vmatpush1.msra.mxu0 %v872
    %2288 = vmatprep.subr.mxu0 0.0
    %2289 = vmatpush1.msra.mxu0 %v873
    %2290 = vmatprep.subr.mxu0 0.0
    %2291 = vmatpush1.msra.mxu0 %v874
    %2292 = vmatprep.subr.mxu0 0.0
    %2293 = vmatpush1.msra.mxu0 %v875
    %2294 = vmatprep.subr.mxu0 0.0
    %2295 = vmatpush1.msra.mxu0 %v876
    %2296 = vmatprep.subr.mxu0 0.0
    %2297 = vmatpush1.msra.mxu0 %v877
    %2298 = vmatprep.subr.mxu0 0.0
    %2299 = vmatpush1.msra.mxu0 %v878
    %2300 = vmatprep.subr.mxu0 0.0
    %2301 = vmatpush1.msra.mxu0 %v879
    %2302 = vmatprep.subr.mxu0 0.0
    %2303 = vmatpush1.msra.mxu0 %v880
    %2304 = vmatprep.subr.mxu0 0.0
    %2305 = vmatpush1.msra.mxu0 %v881
    %2306 = vmatprep.subr.mxu0 0.0
    %2307 = vmatpush1.msra.mxu0 %v882
    %2308 = vmatprep.mubr.f32.mxu0 %v886
    %2309 = vmatmul.mubr.f32.gmra.mrb[0].mxu0 %v885
    %v2310 = vpop.f32.mrb[0].mxu0
    %v2311 = vadd.f32 %v1526, %v2310
    %v2312 = vpop.f32.mrb[0].mxu0
    %2313 = vmatprep.mubr.f32.mxu0 %v890
    %2314 = vmatmul.mubr.f32.gmra.mrb[0].mxu0 %v889
    %v2315 = vpop.f32.mrb[0].mxu0
    %v2316 = vadd.f32 %v1531, %v2315
    %v2317 = vpop.f32.mrb[0].mxu0
    %2318 = vmatprep.mubr.f32.mxu0 %v894
    %2319 = vmatmul.mubr.f32.gmra.mrb[0].mxu0 %v893
    %v2320 = vpop.f32.mrb[0].mxu0
    %v2321 = vadd.f32 %v1536, %v2320
    %v2322 = vpop.f32.mrb[0].mxu0
    %2323 = vmatprep.mubr.f32.mxu0 %v898
    %2324 = vmatmul.mubr.f32.gmra.mrb[0].mxu0 %v897
    %v2325 = vpop.f32.mrb[0].mxu0
    %v2326 = vadd.f32 %v1541, %v2325
    %v2327 = vpop.f32.mrb[0].mxu0
    %2328 = vmatprep.mubr.f32.mxu0 %v902
    %2329 = vmatmul.mubr.f32.gmra.mrb[0].mxu0 %v901
    %v2330 = vpop.f32.mrb[0].mxu0
    %v2331 = vadd.f32 %v1546, %v2330
    %v2332 = vpop.f32.mrb[0].mxu0
    %2333 = vmatprep.mubr.f32.mxu0 %v906
    %2334 = vmatmul.mubr.f32.gmra.mrb[0].mxu0 %v905
    %v2335 = vpop.f32.mrb[0].mxu0
    %v2336 = vadd.f32 %v1551, %v2335
    %v2337 = vpop.f32.mrb[0].mxu0
    %2338 = vmatprep.mubr.f32.mxu0 %v910
    %2339 = vmatmul.mubr.f32.gmra.mrb[0].mxu0 %v909
    %v2340 = vpop.f32.mrb[0].mxu0
    %v2341 = vadd.f32 %v1556, %v2340
    %v2342 = vpop.f32.mrb[0].mxu0
    %2343 = vmatprep.mubr.f32.mxu0 %v914
    %2344 = vmatmul.mubr.f32.gmra.mrb[0].mxu0 %v913
    %v2345 = vpop.f32.mrb[0].mxu0
    %v2346 = vadd.f32 %v1561, %v2345
    %v2347 = vpop.f32.mrb[0].mxu0
    %2348 = vmatprep.mubr.f32.mxu0 %v918
    %2349 = vmatmul.mubr.f32.gmra.mrb[0].mxu0 %v917
    %v2350 = vpop.f32.mrb[0].mxu0
    %v2351 = vadd.f32 %v1566, %v2350
    %v2352 = vpop.f32.mrb[0].mxu0
    %2353 = vmatprep.mubr.f32.mxu0 %v922
    %2354 = vmatmul.mubr.f32.gmra.mrb[0].mxu0 %v921
    %v2355 = vpop.f32.mrb[0].mxu0
    %v2356 = vadd.f32 %v1571, %v2355
    %v2357 = vpop.f32.mrb[0].mxu0
    %2358 = vmatprep.mubr.f32.mxu0 %v926
    %2359 = vmatmul.mubr.f32.gmra.mrb[0].mxu0 %v925
    %v2360 = vpop.f32.mrb[0].mxu0
    %v2361 = vadd.f32 %v1576, %v2360
    %v2362 = vpop.f32.mrb[0].mxu0
    %2363 = vmatprep.mubr.f32.mxu0 %v930
    %2364 = vmatmul.mubr.f32.gmra.mrb[0].mxu0 %v929
    %v2365 = vpop.f32.mrb[0].mxu0
    %v2366 = vadd.f32 %v1581, %v2365
    %v2367 = vpop.f32.mrb[0].mxu0
    %2368 = vmatprep.mubr.f32.mxu0 %v934
    %2369 = vmatmul.mubr.f32.gmra.mrb[0].mxu0 %v933
    %v2370 = vpop.f32.mrb[0].mxu0
    %v2371 = vadd.f32 %v1586, %v2370
    %v2372 = vpop.f32.mrb[0].mxu0
    %2373 = vmatprep.mubr.f32.mxu0 %v938
    %2374 = vmatmul.mubr.f32.gmra.mrb[0].mxu0 %v937
    %v2375 = vpop.f32.mrb[0].mxu0
    %v2376 = vadd.f32 %v1591, %v2375
    %v2377 = vpop.f32.mrb[0].mxu0
    %2378 = vmatprep.mubr.f32.mxu0 %v942
    %2379 = vmatmul.mubr.f32.gmra.mrb[0].mxu0 %v941
    %v2380 = vpop.f32.mrb[0].mxu0
    %v2381 = vadd.f32 %v1596, %v2380
    %v2382 = vpop.f32.mrb[0].mxu0
    %2383 = vmatprep.mubr.f32.mxu0 %v946
    %2384 = vmatmul.mubr.f32.gmra.mrb[0].mxu0 %v945
    %v2385 = vpop.f32.mrb[0].mxu0
    %v2386 = vadd.f32 %v1601, %v2385
    %v2387 = vpop.f32.mrb[0].mxu0
    %2388 = vmatprep.mubr.f32.mxu0 %v950
    %2389 = vmatmul.mubr.f32.gmra.mrb[0].mxu0 %v949
    %v2390 = vpop.f32.mrb[0].mxu0
    %v2391 = vadd.f32 %v1606, %v2390
    %v2392 = vpop.f32.mrb[0].mxu0
    %2393 = vmatprep.mubr.f32.mxu0 %v954
    %2394 = vmatmul.mubr.f32.gmra.mrb[0].mxu0 %v953
    %v2395 = vpop.f32.mrb[0].mxu0
    %v2396 = vadd.f32 %v1611, %v2395
    %v2397 = vpop.f32.mrb[0].mxu0
    %2398 = vmatprep.mubr.f32.mxu0 %v958
    %2399 = vmatmul.mubr.f32.gmra.mrb[0].mxu0 %v957
    %v2400 = vpop.f32.mrb[0].mxu0
    %v2401 = vadd.f32 %v1616, %v2400
    %v2402 = vpop.f32.mrb[0].mxu0
    %2403 = vmatprep.mubr.f32.mxu0 %v962
    %2404 = vmatmul.mubr.f32.gmra.mrb[0].mxu0 %v961
    %v2405 = vpop.f32.mrb[0].mxu0
    %v2406 = vadd.f32 %v1621, %v2405
    %v2407 = vpop.f32.mrb[0].mxu0
    %2408 = vmatprep.mubr.f32.mxu0 %v966
    %2409 = vmatmul.mubr.f32.gmra.mrb[0].mxu0 %v965
    %v2410 = vpop.f32.mrb[0].mxu0
    %v2411 = vadd.f32 %v1626, %v2410
    %v2412 = vpop.f32.mrb[0].mxu0
    %2413 = vmatprep.mubr.f32.mxu0 %v970
    %2414 = vmatmul.mubr.f32.gmra.mrb[0].mxu0 %v969
    %v2415 = vpop.f32.mrb[0].mxu0
    %v2416 = vadd.f32 %v1631, %v2415
    %v2417 = vpop.f32.mrb[0].mxu0
    %2418 = vmatprep.mubr.f32.mxu0 %v974
    %2419 = vmatmul.mubr.f32.gmra.mrb[0].mxu0 %v973
    %v2420 = vpop.f32.mrb[0].mxu0
    %v2421 = vadd.f32 %v1636, %v2420
    %v2422 = vpop.f32.mrb[0].mxu0
    %2423 = vmatprep.mubr.f32.mxu0 %v978
    %2424 = vmatmul.mubr.f32.gmra.mrb[0].mxu0 %v977
    %v2425 = vpop.f32.mrb[0].mxu0
    %v2426 = vadd.f32 %v1641, %v2425
    %v2427 = vpop.f32.mrb[0].mxu0
    %2428 = vmatprep.mubr.f32.mxu0 %v982
    %2429 = vmatmul.mubr.f32.gmra.mrb[0].mxu0 %v981
    %v2430 = vpop.f32.mrb[0].mxu0
    %v2431 = vadd.f32 %v1646, %v2430
    %v2432 = vpop.f32.mrb[0].mxu0
    %2433 = vmatprep.mubr.f32.mxu0 %v986
    %2434 = vmatmul.mubr.f32.gmra.mrb[0].mxu0 %v985
    %v2435 = vpop.f32.mrb[0].mxu0
    %v2436 = vadd.f32 %v1651, %v2435
    %v2437 = vpop.f32.mrb[0].mxu0
    %2438 = vmatprep.mubr.f32.mxu0 %v990
    %2439 = vmatmul.mubr.f32.gmra.mrb[0].mxu0 %v989
    %v2440 = vpop.f32.mrb[0].mxu0
    %v2441 = vadd.f32 %v1656, %v2440
    %v2442 = vpop.f32.mrb[0].mxu0
    %2443 = vmatprep.mubr.f32.mxu0 %v994
    %2444 = vmatmul.mubr.f32.gmra.mrb[0].mxu0 %v993
    %v2445 = vpop.f32.mrb[0].mxu0
    %v2446 = vadd.f32 %v1661, %v2445
    %v2447 = vpop.f32.mrb[0].mxu0
    %2448 = vmatprep.mubr.f32.mxu0 %v998
    %2449 = vmatmul.mubr.f32.gmra.mrb[0].mxu0 %v997
    %v2450 = vpop.f32.mrb[0].mxu0
    %v2451 = vadd.f32 %v1666, %v2450
    %v2452 = vpop.f32.mrb[0].mxu0
    %2453 = vmatprep.mubr.f32.mxu0 %v1002
    %2454 = vmatmul.mubr.f32.gmra.mrb[0].mxu0 %v1001
    %v2455 = vpop.f32.mrb[0].mxu0
    %v2456 = vadd.f32 %v1671, %v2455
    %v2457 = vpop.f32.mrb[0].mxu0
    %2458 = vmatprep.mubr.f32.mxu0 %v1006
    %2459 = vmatmul.mubr.f32.gmra.mrb[0].mxu0 %v1005
    %v2460 = vpop.f32.mrb[0].mxu0
    %v2461 = vadd.f32 %v1676, %v2460
    %v2462 = vpop.f32.mrb[0].mxu0
    %2463 = vmatprep.mubr.f32.mxu0 %v1010
    %2464 = vmatmul.mubr.f32.gmra.mrb[0].mxu0 %v1009
    %v2465 = vpop.f32.mrb[0].mxu0
    %v2466 = vadd.f32 %v1681, %v2465
    %v2467 = vpop.f32.mrb[0].mxu0
    %2468 = vmatprep.mubr.f32.mxu0 %v1014
    %2469 = vmatmul.mubr.f32.gmra.mrb[0].mxu0 %v1013
    %v2470 = vpop.f32.mrb[0].mxu0
    %v2471 = vadd.f32 %v1686, %v2470
    %v2472 = vpop.f32.mrb[0].mxu0
    %2473 = vmatprep.mubr.f32.mxu0 %v1018
    %2474 = vmatmul.mubr.f32.gmra.mrb[0].mxu0 %v1017
    %v2475 = vpop.f32.mrb[0].mxu0
    %v2476 = vadd.f32 %v1691, %v2475
    %v2477 = vpop.f32.mrb[0].mxu0
    %2478 = vmatprep.mubr.f32.mxu0 %v1022
    %2479 = vmatmul.mubr.f32.gmra.mrb[0].mxu0 %v1021
    %v2480 = vpop.f32.mrb[0].mxu0
    %v2481 = vadd.f32 %v1696, %v2480
    %v2482 = vpop.f32.mrb[0].mxu0
    %2483 = vmatprep.mubr.f32.mxu0 %v1026
    %2484 = vmatmul.mubr.f32.gmra.mrb[0].mxu0 %v1025
    %v2485 = vpop.f32.mrb[0].mxu0
    %v2486 = vadd.f32 %v1701, %v2485
    %v2487 = vpop.f32.mrb[0].mxu0
    %2488 = vmatprep.mubr.f32.mxu0 %v1030
    %2489 = vmatmul.mubr.f32.gmra.mrb[0].mxu0 %v1029
    %v2490 = vpop.f32.mrb[0].mxu0
    %v2491 = vadd.f32 %v1706, %v2490
    %v2492 = vpop.f32.mrb[0].mxu0
    %2493 = vmatprep.mubr.f32.mxu0 %v1034
    %2494 = vmatmul.mubr.f32.gmra.mrb[0].mxu0 %v1033
    %v2495 = vpop.f32.mrb[0].mxu0
    %v2496 = vadd.f32 %v1711, %v2495
    %v2497 = vpop.f32.mrb[0].mxu0
    %2498 = vmatprep.mubr.f32.mxu0 %v1038
    %2499 = vmatmul.mubr.f32.gmra.mrb[0].mxu0 %v1037
    %v2500 = vpop.f32.mrb[0].mxu0
    %v2501 = vadd.f32 %v1716, %v2500
    %v2502 = vpop.f32.mrb[0].mxu0
    %2503 = vmatprep.mubr.f32.mxu0 %v1042
    %2504 = vmatmul.mubr.f32.gmra.mrb[0].mxu0 %v1041
    %v2505 = vpop.f32.mrb[0].mxu0
    %v2506 = vadd.f32 %v1721, %v2505
    %v2507 = vpop.f32.mrb[0].mxu0
    %2508 = vmatprep.mubr.f32.mxu0 %v1046
    %2509 = vmatmul.mubr.f32.gmra.mrb[0].mxu0 %v1045
    %v2510 = vpop.f32.mrb[0].mxu0
    %v2511 = vadd.f32 %v1726, %v2510
    %v2512 = vpop.f32.mrb[0].mxu0
    %2513 = vmatprep.mubr.f32.mxu0 %v1050
    %2514 = vmatmul.mubr.f32.gmra.mrb[0].mxu0 %v1049
    %v2515 = vpop.f32.mrb[0].mxu0
    %v2516 = vadd.f32 %v1731, %v2515
    %v2517 = vpop.f32.mrb[0].mxu0
    %2518 = vmatprep.mubr.f32.mxu0 %v1054
    %2519 = vmatmul.mubr.f32.gmra.mrb[0].mxu0 %v1053
    %v2520 = vpop.f32.mrb[0].mxu0
    %v2521 = vadd.f32 %v1736, %v2520
    %v2522 = vpop.f32.mrb[0].mxu0
    %2523 = vmatprep.mubr.f32.mxu0 %v1058
    %2524 = vmatmul.mubr.f32.gmra.mrb[0].mxu0 %v1057
    %v2525 = vpop.f32.mrb[0].mxu0
    %v2526 = vadd.f32 %v1741, %v2525
    %v2527 = vpop.f32.mrb[0].mxu0
    %2528 = vmatprep.mubr.f32.mxu0 %v1062
    %2529 = vmatmul.mubr.f32.gmra.mrb[0].mxu0 %v1061
    %v2530 = vpop.f32.mrb[0].mxu0
    %v2531 = vadd.f32 %v1746, %v2530
    %v2532 = vpop.f32.mrb[0].mxu0
    %2533 = vmatprep.mubr.f32.mxu0 %v1066
    %2534 = vmatmul.mubr.f32.gmra.mrb[0].mxu0 %v1065
    %v2535 = vpop.f32.mrb[0].mxu0
    %v2536 = vadd.f32 %v1751, %v2535
    %v2537 = vpop.f32.mrb[0].mxu0
    %2538 = vmatprep.mubr.f32.mxu0 %v1070
    %2539 = vmatmul.mubr.f32.gmra.mrb[0].mxu0 %v1069
    %v2540 = vpop.f32.mrb[0].mxu0
    %v2541 = vadd.f32 %v1756, %v2540
    %v2542 = vpop.f32.mrb[0].mxu0
    %2543 = vmatprep.mubr.f32.mxu0 %v1074
    %2544 = vmatmul.mubr.f32.gmra.mrb[0].mxu0 %v1073
    %v2545 = vpop.f32.mrb[0].mxu0
    %v2546 = vadd.f32 %v1761, %v2545
    %v2547 = vpop.f32.mrb[0].mxu0
    %2548 = vmatprep.mubr.f32.mxu0 %v1078
    %2549 = vmatmul.mubr.f32.gmra.mrb[0].mxu0 %v1077
    %v2550 = vpop.f32.mrb[0].mxu0
    %v2551 = vadd.f32 %v1766, %v2550
    %v2552 = vpop.f32.mrb[0].mxu0
    %2553 = vmatprep.mubr.f32.mxu0 %v1082
    %2554 = vmatmul.mubr.f32.gmra.mrb[0].mxu0 %v1081
    %v2555 = vpop.f32.mrb[0].mxu0
    %v2556 = vadd.f32 %v1771, %v2555
    %v2557 = vpop.f32.mrb[0].mxu0
    %2558 = vmatprep.mubr.f32.mxu0 %v1086
    %2559 = vmatmul.mubr.f32.gmra.mrb[0].mxu0 %v1085
    %v2560 = vpop.f32.mrb[0].mxu0
    %v2561 = vadd.f32 %v1776, %v2560
    %v2562 = vpop.f32.mrb[0].mxu0
    %2563 = vmatprep.mubr.f32.mxu0 %v1090
    %2564 = vmatmul.mubr.f32.gmra.mrb[0].mxu0 %v1089
    %v2565 = vpop.f32.mrb[0].mxu0
    %v2566 = vadd.f32 %v1781, %v2565
    %v2567 = vpop.f32.mrb[0].mxu0
    %2568 = vmatprep.mubr.f32.mxu0 %v1094
    %2569 = vmatmul.mubr.f32.gmra.mrb[0].mxu0 %v1093
    %v2570 = vpop.f32.mrb[0].mxu0
    %v2571 = vadd.f32 %v1786, %v2570
    %v2572 = vpop.f32.mrb[0].mxu0
    %2573 = vmatprep.mubr.f32.mxu0 %v1098
    %2574 = vmatmul.mubr.f32.gmra.mrb[0].mxu0 %v1097
    %v2575 = vpop.f32.mrb[0].mxu0
    %v2576 = vadd.f32 %v1791, %v2575
    %v2577 = vpop.f32.mrb[0].mxu0
    %2578 = vmatprep.mubr.f32.mxu0 %v1102
    %2579 = vmatmul.mubr.f32.gmra.mrb[0].mxu0 %v1101
    %v2580 = vpop.f32.mrb[0].mxu0
    %v2581 = vadd.f32 %v1796, %v2580
    %v2582 = vpop.f32.mrb[0].mxu0
    %2583 = vmatprep.mubr.f32.mxu0 %v1106
    %2584 = vmatmul.mubr.f32.gmra.mrb[0].mxu0 %v1105
    %v2585 = vpop.f32.mrb[0].mxu0
    %v2586 = vadd.f32 %v1801, %v2585
    %v2587 = vpop.f32.mrb[0].mxu0
    %2588 = vmatprep.mubr.f32.mxu0 %v1110
    %2589 = vmatmul.mubr.f32.gmra.mrb[0].mxu0 %v1109
    %v2590 = vpop.f32.mrb[0].mxu0
    %v2591 = vadd.f32 %v1806, %v2590
    %v2592 = vpop.f32.mrb[0].mxu0
    %2593 = vmatprep.mubr.f32.mxu0 %v1114
    %2594 = vmatmul.mubr.f32.gmra.mrb[0].mxu0 %v1113
    %v2595 = vpop.f32.mrb[0].mxu0
    %v2596 = vadd.f32 %v1811, %v2595
    %v2597 = vpop.f32.mrb[0].mxu0
    %2598 = vmatprep.mubr.f32.mxu0 %v1118
    %2599 = vmatmul.mubr.f32.gmra.mrb[0].mxu0 %v1117
    %v2600 = vpop.f32.mrb[0].mxu0
    %v2601 = vadd.f32 %v1816, %v2600
    %v2602 = vpop.f32.mrb[0].mxu0
    %2603 = vmatprep.mubr.f32.mxu0 %v1122
    %2604 = vmatmul.mubr.f32.gmra.mrb[0].mxu0 %v1121
    %v2605 = vpop.f32.mrb[0].mxu0
    %v2606 = vadd.f32 %v1821, %v2605
    %v2607 = vpop.f32.mrb[0].mxu0
    %2608 = vmatprep.mubr.f32.mxu0 %v1126
    %2609 = vmatmul.mubr.f32.gmra.mrb[0].mxu0 %v1125
    %v2610 = vpop.f32.mrb[0].mxu0
    %v2611 = vadd.f32 %v1826, %v2610
    %v2612 = vpop.f32.mrb[0].mxu0
    %2613 = vmatprep.mubr.f32.mxu0 %v1130
    %2614 = vmatmul.mubr.f32.gmra.mrb[0].mxu0 %v1129
    %v2615 = vpop.f32.mrb[0].mxu0
    %v2616 = vadd.f32 %v1831, %v2615
    %v2617 = vpop.f32.mrb[0].mxu0
    %2618 = vmatprep.mubr.f32.mxu0 %v1134
    %2619 = vmatmul.mubr.f32.gmra.mrb[0].mxu0 %v1133
    %v2620 = vpop.f32.mrb[0].mxu0
    %v2621 = vadd.f32 %v1836, %v2620
    %v2622 = vpop.f32.mrb[0].mxu0
    %2623 = vmatprep.mubr.f32.mxu0 %v1138
    %2624 = vmatmul.mubr.f32.gmra.mrb[0].mxu0 %v1137
    %v2625 = vpop.f32.mrb[0].mxu0
    %v2626 = vadd.f32 %v1841, %v2625
    %v2627 = vpop.f32.mrb[0].mxu0
    %2628 = vmatprep.mubr.f32.mxu0 %v1142
    %2629 = vmatmul.mubr.f32.gmra.mrb[0].mxu0 %v1141
    %v2630 = vpop.f32.mrb[0].mxu0
    %v2631 = vadd.f32 %v1846, %v2630
    %v2632 = vpop.f32.mrb[0].mxu0
    %2633 = vmatprep.mubr.f32.mxu0 %v1146
    %2634 = vmatmul.mubr.f32.gmra.mrb[0].mxu0 %v1145
    %v2635 = vpop.f32.mrb[0].mxu0
    %v2636 = vadd.f32 %v1851, %v2635
    %v2637 = vpop.f32.mrb[0].mxu0
    %2638 = vmatprep.mubr.f32.mxu0 %v1150
    %2639 = vmatmul.mubr.f32.gmra.mrb[0].mxu0 %v1149
    %v2640 = vpop.f32.mrb[0].mxu0
    %v2641 = vadd.f32 %v1856, %v2640
    %v2642 = vpop.f32.mrb[0].mxu0
    %2643 = vmatprep.mubr.f32.mxu0 %v1154
    %2644 = vmatmul.mubr.f32.gmra.mrb[0].mxu0 %v1153
    %v2645 = vpop.f32.mrb[0].mxu0
    %v2646 = vadd.f32 %v1861, %v2645
    %v2647 = vpop.f32.mrb[0].mxu0
    %2648 = vmatprep.mubr.f32.mxu0 %v1158
    %2649 = vmatmul.mubr.f32.gmra.mrb[0].mxu0 %v1157
    %v2650 = vpop.f32.mrb[0].mxu0
    %v2651 = vadd.f32 %v1866, %v2650
    %v2652 = vpop.f32.mrb[0].mxu0
    %2653 = vmatprep.mubr.f32.mxu0 %v1162
    %2654 = vmatmul.mubr.f32.gmra.mrb[0].mxu0 %v1161
    %v2655 = vpop.f32.mrb[0].mxu0
    %v2656 = vadd.f32 %v1871, %v2655
    %v2657 = vpop.f32.mrb[0].mxu0
    %2658 = vmatprep.mubr.f32.mxu0 %v1166
    %2659 = vmatmul.mubr.f32.gmra.mrb[0].mxu0 %v1165
    %v2660 = vpop.f32.mrb[0].mxu0
    %v2661 = vadd.f32 %v1876, %v2660
    %v2662 = vpop.f32.mrb[0].mxu0
    %2663 = vmatprep.mubr.f32.mxu0 %v1170
    %2664 = vmatmul.mubr.f32.gmra.mrb[0].mxu0 %v1169
    %v2665 = vpop.f32.mrb[0].mxu0
    %v2666 = vadd.f32 %v1881, %v2665
    %v2667 = vpop.f32.mrb[0].mxu0
    %2668 = vmatprep.mubr.f32.mxu0 %v1174
    %2669 = vmatmul.mubr.f32.gmra.mrb[0].mxu0 %v1173
    %v2670 = vpop.f32.mrb[0].mxu0
    %v2671 = vadd.f32 %v1886, %v2670
    %v2672 = vpop.f32.mrb[0].mxu0
    %2673 = vmatprep.mubr.f32.mxu0 %v1178
    %2674 = vmatmul.mubr.f32.gmra.mrb[0].mxu0 %v1177
    %v2675 = vpop.f32.mrb[0].mxu0
    %v2676 = vadd.f32 %v1891, %v2675
    %v2677 = vpop.f32.mrb[0].mxu0
    %2678 = vmatprep.mubr.f32.mxu0 %v1182
    %2679 = vmatmul.mubr.f32.gmra.mrb[0].mxu0 %v1181
    %v2680 = vpop.f32.mrb[0].mxu0
    %v2681 = vadd.f32 %v1896, %v2680
    %v2682 = vpop.f32.mrb[0].mxu0
    %2683 = vmatprep.mubr.f32.mxu0 %v1186
    %2684 = vmatmul.mubr.f32.gmra.mrb[0].mxu0 %v1185
    %v2685 = vpop.f32.mrb[0].mxu0
    %v2686 = vadd.f32 %v1901, %v2685
    %v2687 = vpop.f32.mrb[0].mxu0
    %2688 = vmatprep.mubr.f32.mxu0 %v1190
    %2689 = vmatmul.mubr.f32.gmra.mrb[0].mxu0 %v1189
    %v2690 = vpop.f32.mrb[0].mxu0
    %v2691 = vadd.f32 %v1906, %v2690
    %v2692 = vpop.f32.mrb[0].mxu0
    %2693 = vmatprep.mubr.f32.mxu0 %v1194
    %2694 = vmatmul.mubr.f32.gmra.mrb[0].mxu0 %v1193
    %v2695 = vpop.f32.mrb[0].mxu0
    %v2696 = vadd.f32 %v1911, %v2695
    %v2697 = vpop.f32.mrb[0].mxu0
    %2698 = vmatprep.mubr.f32.mxu0 %v1198
    %2699 = vmatmul.mubr.f32.gmra.mrb[0].mxu0 %v1197
    %v2700 = vpop.f32.mrb[0].mxu0
    %v2701 = vadd.f32 %v1916, %v2700
    %v2702 = vpop.f32.mrb[0].mxu0
    %2703 = vmatprep.mubr.f32.mxu0 %v1202
    %2704 = vmatmul.mubr.f32.gmra.mrb[0].mxu0 %v1201
    %v2705 = vpop.f32.mrb[0].mxu0
    %v2706 = vadd.f32 %v1921, %v2705
    %v2707 = vpop.f32.mrb[0].mxu0
    %2708 = vmatprep.mubr.f32.mxu0 %v1206
    %2709 = vmatmul.mubr.f32.gmra.mrb[0].mxu0 %v1205
    %v2710 = vpop.f32.mrb[0].mxu0
    %v2711 = vadd.f32 %v1926, %v2710
    %v2712 = vpop.f32.mrb[0].mxu0
    %2713 = vmatprep.mubr.f32.mxu0 %v1210
    %2714 = vmatmul.mubr.f32.gmra.mrb[0].mxu0 %v1209
    %v2715 = vpop.f32.mrb[0].mxu0
    %v2716 = vadd.f32 %v1931, %v2715
    %v2717 = vpop.f32.mrb[0].mxu0
    %2718 = vmatprep.mubr.f32.mxu0 %v1214
    %2719 = vmatmul.mubr.f32.gmra.mrb[0].mxu0 %v1213
    %v2720 = vpop.f32.mrb[0].mxu0
    %v2721 = vadd.f32 %v1936, %v2720
    %v2722 = vpop.f32.mrb[0].mxu0
    %2723 = vmatprep.mubr.f32.mxu0 %v1218
    %2724 = vmatmul.mubr.f32.gmra.mrb[0].mxu0 %v1217
    %v2725 = vpop.f32.mrb[0].mxu0
    %v2726 = vadd.f32 %v1941, %v2725
    %v2727 = vpop.f32.mrb[0].mxu0
    %2728 = vmatprep.mubr.f32.mxu0 %v1222
    %2729 = vmatmul.mubr.f32.gmra.mrb[0].mxu0 %v1221
    %v2730 = vpop.f32.mrb[0].mxu0
    %v2731 = vadd.f32 %v1946, %v2730
    %v2732 = vpop.f32.mrb[0].mxu0
    %2733 = vmatprep.mubr.f32.mxu0 %v1226
    %2734 = vmatmul.mubr.f32.gmra.mrb[0].mxu0 %v1225
    %v2735 = vpop.f32.mrb[0].mxu0
    %v2736 = vadd.f32 %v1951, %v2735
    %v2737 = vpop.f32.mrb[0].mxu0
    %2738 = vmatprep.mubr.f32.mxu0 %v1230
    %2739 = vmatmul.mubr.f32.gmra.mrb[0].mxu0 %v1229
    %v2740 = vpop.f32.mrb[0].mxu0
    %v2741 = vadd.f32 %v1956, %v2740
    %v2742 = vpop.f32.mrb[0].mxu0
    %2743 = vmatprep.mubr.f32.mxu0 %v1234
    %2744 = vmatmul.mubr.f32.gmra.mrb[0].mxu0 %v1233
    %v2745 = vpop.f32.mrb[0].mxu0
    %v2746 = vadd.f32 %v1961, %v2745
    %v2747 = vpop.f32.mrb[0].mxu0
    %2748 = vmatprep.mubr.f32.mxu0 %v1238
    %2749 = vmatmul.mubr.f32.gmra.mrb[0].mxu0 %v1237
    %v2750 = vpop.f32.mrb[0].mxu0
    %v2751 = vadd.f32 %v1966, %v2750
    %v2752 = vpop.f32.mrb[0].mxu0
    %2753 = vmatprep.mubr.f32.mxu0 %v1242
    %2754 = vmatmul.mubr.f32.gmra.mrb[0].mxu0 %v1241
    %v2755 = vpop.f32.mrb[0].mxu0
    %v2756 = vadd.f32 %v1971, %v2755
    %v2757 = vpop.f32.mrb[0].mxu0
    %2758 = vmatprep.mubr.f32.mxu0 %v1246
    %2759 = vmatmul.mubr.f32.gmra.mrb[0].mxu0 %v1245
    %v2760 = vpop.f32.mrb[0].mxu0
    %v2761 = vadd.f32 %v1976, %v2760
    %v2762 = vpop.f32.mrb[0].mxu0
    %2763 = vmatprep.mubr.f32.mxu0 %v1250
    %2764 = vmatmul.mubr.f32.gmra.mrb[0].mxu0 %v1249
    %v2765 = vpop.f32.mrb[0].mxu0
    %v2766 = vadd.f32 %v1981, %v2765
    %v2767 = vpop.f32.mrb[0].mxu0
    %2768 = vmatprep.mubr.f32.mxu0 %v1254
    %2769 = vmatmul.mubr.f32.gmra.mrb[0].mxu0 %v1253
    %v2770 = vpop.f32.mrb[0].mxu0
    %v2771 = vadd.f32 %v1986, %v2770
    %v2772 = vpop.f32.mrb[0].mxu0
    %2773 = vmatprep.mubr.f32.mxu0 %v1258
    %2774 = vmatmul.mubr.f32.gmra.mrb[0].mxu0 %v1257
    %v2775 = vpop.f32.mrb[0].mxu0
    %v2776 = vadd.f32 %v1991, %v2775
    %v2777 = vpop.f32.mrb[0].mxu0
    %2778 = vmatprep.mubr.f32.mxu0 %v1262
    %2779 = vmatmul.mubr.f32.gmra.mrb[0].mxu0 %v1261
    %v2780 = vpop.f32.mrb[0].mxu0
    %v2781 = vadd.f32 %v1996, %v2780
    %v2782 = vpop.f32.mrb[0].mxu0
    %2783 = vmatprep.mubr.f32.mxu0 %v1266
    %2784 = vmatmul.mubr.f32.gmra.mrb[0].mxu0 %v1265
    %v2785 = vpop.f32.mrb[0].mxu0
    %v2786 = vadd.f32 %v2001, %v2785
    %v2787 = vpop.f32.mrb[0].mxu0
    %2788 = vmatprep.mubr.f32.mxu0 %v1270
    %2789 = vmatmul.mubr.f32.gmra.mrb[0].mxu0 %v1269
    %v2790 = vpop.f32.mrb[0].mxu0
    %v2791 = vadd.f32 %v2006, %v2790
    %v2792 = vpop.f32.mrb[0].mxu0
    %2793 = vmatprep.mubr.f32.mxu0 %v1274
    %2794 = vmatmul.mubr.f32.gmra.mrb[0].mxu0 %v1273
    %v2795 = vpop.f32.mrb[0].mxu0
    %v2796 = vadd.f32 %v2011, %v2795
    %v2797 = vpop.f32.mrb[0].mxu0
    %2798 = vmatprep.mubr.f32.mxu0 %v1278
    %2799 = vmatmul.mubr.f32.gmra.mrb[0].mxu0 %v1277
    %v2800 = vpop.f32.mrb[0].mxu0
    %v2801 = vadd.f32 %v2016, %v2800
    %v2802 = vpop.f32.mrb[0].mxu0
    %2803 = vmatprep.mubr.f32.mxu0 %v1282
    %2804 = vmatmul.mubr.f32.gmra.mrb[0].mxu0 %v1281
    %v2805 = vpop.f32.mrb[0].mxu0
    %v2806 = vadd.f32 %v2021, %v2805
    %v2807 = vpop.f32.mrb[0].mxu0
    %2808 = vmatprep.mubr.f32.mxu0 %v1286
    %2809 = vmatmul.mubr.f32.gmra.mrb[0].mxu0 %v1285
    %v2810 = vpop.f32.mrb[0].mxu0
    %v2811 = vadd.f32 %v2026, %v2810
    %v2812 = vpop.f32.mrb[0].mxu0
    %2813 = vmatprep.mubr.f32.mxu0 %v1290
    %2814 = vmatmul.mubr.f32.gmra.mrb[0].mxu0 %v1289
    %v2815 = vpop.f32.mrb[0].mxu0
    %v2816 = vadd.f32 %v2031, %v2815
    %v2817 = vpop.f32.mrb[0].mxu0
    %2818 = vmatprep.mubr.f32.mxu0 %v1294
    %2819 = vmatmul.mubr.f32.gmra.mrb[0].mxu0 %v1293
    %v2820 = vpop.f32.mrb[0].mxu0
    %v2821 = vadd.f32 %v2036, %v2820
    %v2822 = vpop.f32.mrb[0].mxu0
    %2823 = vmatprep.mubr.f32.mxu0 %v1298
    %2824 = vmatmul.mubr.f32.gmra.mrb[0].mxu0 %v1297
    %v2825 = vpop.f32.mrb[0].mxu0
    %v2826 = vadd.f32 %v2041, %v2825
    %v2827 = vpop.f32.mrb[0].mxu0
    %2828 = vmatprep.mubr.f32.mxu0 %v1302
    %2829 = vmatmul.mubr.f32.gmra.mrb[0].mxu0 %v1301
    %v2830 = vpop.f32.mrb[0].mxu0
    %v2831 = vadd.f32 %v2046, %v2830
    %v2832 = vpop.f32.mrb[0].mxu0
    %2833 = vmatprep.mubr.f32.mxu0 %v1306
    %2834 = vmatmul.mubr.f32.gmra.mrb[0].mxu0 %v1305
    %v2835 = vpop.f32.mrb[0].mxu0
    %v2836 = vadd.f32 %v2051, %v2835
    %v2837 = vpop.f32.mrb[0].mxu0
    %2838 = vmatprep.mubr.f32.mxu0 %v1310
    %2839 = vmatmul.mubr.f32.gmra.mrb[0].mxu0 %v1309
    %v2840 = vpop.f32.mrb[0].mxu0
    %v2841 = vadd.f32 %v2056, %v2840
    %v2842 = vpop.f32.mrb[0].mxu0
    %2843 = vmatprep.mubr.f32.mxu0 %v1314
    %2844 = vmatmul.mubr.f32.gmra.mrb[0].mxu0 %v1313
    %v2845 = vpop.f32.mrb[0].mxu0
    %v2846 = vadd.f32 %v2061, %v2845
    %v2847 = vpop.f32.mrb[0].mxu0
    %2848 = vmatprep.mubr.f32.mxu0 %v1318
    %2849 = vmatmul.mubr.f32.gmra.mrb[0].mxu0 %v1317
    %v2850 = vpop.f32.mrb[0].mxu0
    %v2851 = vadd.f32 %v2066, %v2850
    %v2852 = vpop.f32.mrb[0].mxu0
    %2853 = vmatprep.mubr.f32.mxu0 %v1322
    %2854 = vmatmul.mubr.f32.gmra.mrb[0].mxu0 %v1321
    %v2855 = vpop.f32.mrb[0].mxu0
    %v2856 = vadd.f32 %v2071, %v2855
    %v2857 = vpop.f32.mrb[0].mxu0
    %2858 = vmatprep.mubr.f32.mxu0 %v1326
    %2859 = vmatmul.mubr.f32.gmra.mrb[0].mxu0 %v1325
    %v2860 = vpop.f32.mrb[0].mxu0
    %v2861 = vadd.f32 %v2076, %v2860
    %v2862 = vpop.f32.mrb[0].mxu0
    %2863 = vmatprep.mubr.f32.mxu0 %v1330
    %2864 = vmatmul.mubr.f32.gmra.mrb[0].mxu0 %v1329
    %v2865 = vpop.f32.mrb[0].mxu0
    %v2866 = vadd.f32 %v2081, %v2865
    %v2867 = vpop.f32.mrb[0].mxu0
    %2868 = vmatprep.mubr.f32.mxu0 %v1334
    %2869 = vmatmul.mubr.f32.gmra.mrb[0].mxu0 %v1333
    %v2870 = vpop.f32.mrb[0].mxu0
    %v2871 = vadd.f32 %v2086, %v2870
    %v2872 = vpop.f32.mrb[0].mxu0
    %2873 = vmatprep.mubr.f32.mxu0 %v1338
    %2874 = vmatmul.mubr.f32.gmra.mrb[0].mxu0 %v1337
    %v2875 = vpop.f32.mrb[0].mxu0
    %v2876 = vadd.f32 %v2091, %v2875
    %v2877 = vpop.f32.mrb[0].mxu0
    %2878 = vmatprep.mubr.f32.mxu0 %v1342
    %2879 = vmatmul.mubr.f32.gmra.mrb[0].mxu0 %v1341
    %v2880 = vpop.f32.mrb[0].mxu0
    %v2881 = vadd.f32 %v2096, %v2880
    %v2882 = vpop.f32.mrb[0].mxu0
    %2883 = vmatprep.mubr.f32.mxu0 %v1346
    %2884 = vmatmul.mubr.f32.gmra.mrb[0].mxu0 %v1345
    %v2885 = vpop.f32.mrb[0].mxu0
    %v2886 = vadd.f32 %v2101, %v2885
    %v2887 = vpop.f32.mrb[0].mxu0
    %2888 = vmatprep.mubr.f32.mxu0 %v1350
    %2889 = vmatmul.mubr.f32.gmra.mrb[0].mxu0 %v1349
    %v2890 = vpop.f32.mrb[0].mxu0
    %v2891 = vadd.f32 %v2106, %v2890
    %v2892 = vpop.f32.mrb[0].mxu0
    %2893 = vmatprep.mubr.f32.mxu0 %v1354
    %2894 = vmatmul.mubr.f32.gmra.mrb[0].mxu0 %v1353
    %v2895 = vpop.f32.mrb[0].mxu0
    %v2896 = vadd.f32 %v2111, %v2895
    %v2897 = vpop.f32.mrb[0].mxu0
    %2898 = vmatprep.mubr.f32.mxu0 %v1358
    %2899 = vmatmul.mubr.f32.gmra.mrb[0].mxu0 %v1357
    %v2900 = vpop.f32.mrb[0].mxu0
    %v2901 = vadd.f32 %v2116, %v2900
    %v2902 = vpop.f32.mrb[0].mxu0
    %2903 = vmatprep.mubr.f32.mxu0 %v1362
    %2904 = vmatmul.mubr.f32.gmra.mrb[0].mxu0 %v1361
    %v2905 = vpop.f32.mrb[0].mxu0
    %v2906 = vadd.f32 %v2121, %v2905
    %v2907 = vpop.f32.mrb[0].mxu0
    %2908 = vmatprep.mubr.f32.mxu0 %v1366
    %2909 = vmatmul.mubr.f32.gmra.mrb[0].mxu0 %v1365
    %v2910 = vpop.f32.mrb[0].mxu0
    %v2911 = vadd.f32 %v2126, %v2910
    %v2912 = vpop.f32.mrb[0].mxu0
    %2913 = vmatprep.mubr.f32.mxu0 %v1370
    %2914 = vmatmul.mubr.f32.gmra.mrb[0].mxu0 %v1369
    %v2915 = vpop.f32.mrb[0].mxu0
    %v2916 = vadd.f32 %v2131, %v2915
    %v2917 = vpop.f32.mrb[0].mxu0
    %2918 = vmatprep.mubr.f32.mxu0 %v1374
    %2919 = vmatmul.mubr.f32.gmra.mrb[0].mxu0 %v1373
    %v2920 = vpop.f32.mrb[0].mxu0
    %v2921 = vadd.f32 %v2136, %v2920
    %v2922 = vpop.f32.mrb[0].mxu0
    %2923 = vmatprep.mubr.f32.mxu0 %v1378
    %2924 = vmatmul.mubr.f32.gmra.mrb[0].mxu0 %v1377
    %v2925 = vpop.f32.mrb[0].mxu0
    %v2926 = vadd.f32 %v2141, %v2925
    %v2927 = vpop.f32.mrb[0].mxu0
    %2928 = vmatprep.mubr.f32.mxu0 %v1382
    %2929 = vmatmul.mubr.f32.gmra.mrb[0].mxu0 %v1381
    %v2930 = vpop.f32.mrb[0].mxu0
    %v2931 = vadd.f32 %v2146, %v2930
    %v2932 = vpop.f32.mrb[0].mxu0
    %2933 = vmatprep.mubr.f32.mxu0 %v1386
    %2934 = vmatmul.mubr.f32.gmra.mrb[0].mxu0 %v1385
    %v2935 = vpop.f32.mrb[0].mxu0
    %v2936 = vadd.f32 %v2151, %v2935
    %v2937 = vpop.f32.mrb[0].mxu0
    %2938 = vmatprep.mubr.f32.mxu0 %v1390
    %2939 = vmatmul.mubr.f32.gmra.mrb[0].mxu0 %v1389
    %v2940 = vpop.f32.mrb[0].mxu0
    %v2941 = vadd.f32 %v2156, %v2940
    %v2942 = vpop.f32.mrb[0].mxu0
    %2943 = vmatprep.mubr.f32.mxu0 %v1394
    %2944 = vmatmul.mubr.f32.gmra.mrb[0].mxu0 %v1393
    %v2945 = vpop.f32.mrb[0].mxu0
    %v2946 = vadd.f32 %v2161, %v2945
    %v2947 = vpop.f32.mrb[0].mxu0
    %2948 = vmatprep.mubr.f32.mxu0 %v1398
    %2949 = vmatmul.mubr.f32.gmra.mrb[0].mxu0 %v1397
    %v2950 = vpop.f32.mrb[0].mxu0
    %v2951 = vadd.f32 %v2166, %v2950
    %v2952 = vpop.f32.mrb[0].mxu0
    %2953 = vmatprep.mubr.f32.mxu0 %v1402
    %2954 = vmatmul.mubr.f32.gmra.mrb[0].mxu0 %v1401
    %v2955 = vpop.f32.mrb[0].mxu0
    %v2956 = vadd.f32 %v2171, %v2955
    %v2957 = vpop.f32.mrb[0].mxu0
    %2958 = vmatprep.mubr.f32.mxu0 %v1406
    %2959 = vmatmul.mubr.f32.gmra.mrb[0].mxu0 %v1405
    %v2960 = vpop.f32.mrb[0].mxu0
    %v2961 = vadd.f32 %v2176, %v2960
    %v2962 = vpop.f32.mrb[0].mxu0
    %2963 = vmatprep.mubr.f32.mxu0 %v1410
    %2964 = vmatmul.mubr.f32.gmra.mrb[0].mxu0 %v1409
    %v2965 = vpop.f32.mrb[0].mxu0
    %v2966 = vadd.f32 %v2181, %v2965
    %v2967 = vpop.f32.mrb[0].mxu0
    %2968 = vmatprep.mubr.f32.mxu0 %v1414
    %2969 = vmatmul.mubr.f32.gmra.mrb[0].mxu0 %v1413
    %v2970 = vpop.f32.mrb[0].mxu0
    %v2971 = vadd.f32 %v2186, %v2970
    %v2972 = vpop.f32.mrb[0].mxu0
    %2973 = vmatprep.mubr.f32.mxu0 %v1418
    %2974 = vmatmul.mubr.f32.gmra.mrb[0].mxu0 %v1417
    %v2975 = vpop.f32.mrb[0].mxu0
    %v2976 = vadd.f32 %v2191, %v2975
    %v2977 = vpop.f32.mrb[0].mxu0
    %2978 = vmatprep.mubr.f32.mxu0 %v1422
    %2979 = vmatmul.mubr.f32.gmra.mrb[0].mxu0 %v1421
    %v2980 = vpop.f32.mrb[0].mxu0
    %v2981 = vadd.f32 %v2196, %v2980
    %v2982 = vpop.f32.mrb[0].mxu0
    %2983 = vmatprep.mubr.f32.mxu0 %v1426
    %2984 = vmatmul.mubr.f32.gmra.mrb[0].mxu0 %v1425
    %v2985 = vpop.f32.mrb[0].mxu0
    %v2986 = vadd.f32 %v2201, %v2985
    %v2987 = vpop.f32.mrb[0].mxu0
    %2988 = vmatprep.mubr.f32.mxu0 %v1430
    %2989 = vmatmul.mubr.f32.gmra.mrb[0].mxu0 %v1429
    %v2990 = vpop.f32.mrb[0].mxu0
    %v2991 = vadd.f32 %v2206, %v2990
    %v2992 = vpop.f32.mrb[0].mxu0
    %2993 = vmatprep.mubr.f32.mxu0 %v1434
    %2994 = vmatmul.mubr.f32.gmra.mrb[0].mxu0 %v1433
    %v2995 = vpop.f32.mrb[0].mxu0
    %v2996 = vadd.f32 %v2211, %v2995
    %v2997 = vpop.f32.mrb[0].mxu0
    %2998 = vmatprep.mubr.f32.mxu0 %v1438
    %2999 = vmatmul.mubr.f32.gmra.mrb[0].mxu0 %v1437
    %v3000 = vpop.f32.mrb[0].mxu0
    %v3001 = vadd.f32 %v2216, %v3000
    %v3002 = vpop.f32.mrb[0].mxu0
    %3003 = vmatprep.mubr.f32.mxu0 %v1442
    %3004 = vmatmul.mubr.f32.gmra.mrb[0].mxu0 %v1441
    %v3005 = vpop.f32.mrb[0].mxu0
    %v3006 = vadd.f32 %v2221, %v3005
    %v3007 = vpop.f32.mrb[0].mxu0
    %3008 = vmatprep.mubr.f32.mxu0 %v1446
    %3009 = vmatmul.mubr.f32.gmra.mrb[0].mxu0 %v1445
    %v3010 = vpop.f32.mrb[0].mxu0
    %v3011 = vadd.f32 %v2226, %v3010
    %v3012 = vpop.f32.mrb[0].mxu0
    %3013 = vmatprep.mubr.f32.mxu0 %v1450
    %3014 = vmatmul.mubr.f32.gmra.mrb[0].mxu0 %v1449
    %v3015 = vpop.f32.mrb[0].mxu0
    %v3016 = vadd.f32 %v2231, %v3015
    %v3017 = vpop.f32.mrb[0].mxu0
    %3018 = vmatprep.mubr.f32.mxu0 %v1454
    %3019 = vmatmul.mubr.f32.gmra.mrb[0].mxu0 %v1453
    %v3020 = vpop.f32.mrb[0].mxu0
    %v3021 = vadd.f32 %v2236, %v3020
    %v3022 = vpop.f32.mrb[0].mxu0
    %3023 = vmatprep.mubr.f32.mxu0 %v1458
    %3024 = vmatmul.mubr.f32.gmra.mrb[0].mxu0 %v1457
    %v3025 = vpop.f32.mrb[0].mxu0
    %v3026 = vadd.f32 %v2241, %v3025
    %v3027 = vpop.f32.mrb[0].mxu0
    %3028 = vdwg.mxu0
    %v3029 = vmax.f32 %v2311, %v2391
    %v3030 = vmax.f32 %v2316, %v2396
    %v3031 = vmax.f32 %v2321, %v2401
    %v3032 = vmax.f32 %v2326, %v2406
    %v3033 = vmax.f32 %v2331, %v2411
    %v3034 = vmax.f32 %v2336, %v2416
    %v3035 = vmax.f32 %v2341, %v2421
    %v3036 = vmax.f32 %v2346, %v2426
    %v3037 = vmax.f32 %v2351, %v2431
    %v3038 = vmax.f32 %v2356, %v2436
    %v3039 = vmax.f32 %v2361, %v2441
    %v3040 = vmax.f32 %v2366, %v2446
    %v3041 = vmax.f32 %v2371, %v2451
    %v3042 = vmax.f32 %v2376, %v2456
    %v3043 = vmax.f32 %v2381, %v2461
    %v3044 = vmax.f32 %v2386, %v2466
    %v3045 = vmax.f32 %v2471, %v2551
    %v3046 = vmax.f32 %v2476, %v2556
    %v3047 = vmax.f32 %v2481, %v2561
    %v3048 = vmax.f32 %v2486, %v2566
    %v3049 = vmax.f32 %v2491, %v2571
    %v3050 = vmax.f32 %v2496, %v2576
    %v3051 = vmax.f32 %v2501, %v2581
    %v3052 = vmax.f32 %v2506, %v2586
    %v3053 = vmax.f32 %v2511, %v2591
    %v3054 = vmax.f32 %v2516, %v2596
    %v3055 = vmax.f32 %v2521, %v2601
    %v3056 = vmax.f32 %v2526, %v2606
    %v3057 = vmax.f32 %v2531, %v2611
    %v3058 = vmax.f32 %v2536, %v2616
    %v3059 = vmax.f32 %v2541, %v2621
    %v3060 = vmax.f32 %v2546, %v2626
    %v3061 = vmax.f32 %v2631, %v2711
    %v3062 = vmax.f32 %v2636, %v2716
    %v3063 = vmax.f32 %v2641, %v2721
    %v3064 = vmax.f32 %v2646, %v2726
    %v3065 = vmax.f32 %v2651, %v2731
    %v3066 = vmax.f32 %v2656, %v2736
    %v3067 = vmax.f32 %v2661, %v2741
    %v3068 = vmax.f32 %v2666, %v2746
    %v3069 = vmax.f32 %v2671, %v2751
    %v3070 = vmax.f32 %v2676, %v2756
    %v3071 = vmax.f32 %v2681, %v2761
    %v3072 = vmax.f32 %v2686, %v2766
    %v3073 = vmax.f32 %v2691, %v2771
    %v3074 = vmax.f32 %v2696, %v2776
    %v3075 = vmax.f32 %v2701, %v2781
    %v3076 = vmax.f32 %v2706, %v2786
    %v3077 = vmax.f32 %v2791, %v2871
    %v3078 = vmax.f32 %v2796, %v2876
    %v3079 = vmax.f32 %v2801, %v2881
    %v3080 = vmax.f32 %v2806, %v2886
    %v3081 = vmax.f32 %v2811, %v2891
    %v3082 = vmax.f32 %v2816, %v2896
    %v3083 = vmax.f32 %v2821, %v2901
    %v3084 = vmax.f32 %v2826, %v2906
    %v3085 = vmax.f32 %v2831, %v2911
    %v3086 = vmax.f32 %v2836, %v2916
    %v3087 = vmax.f32 %v2841, %v2921
    %v3088 = vmax.f32 %v2846, %v2926
    %v3089 = vmax.f32 %v2851, %v2931
    %v3090 = vmax.f32 %v2856, %v2936
    %v3091 = vmax.f32 %v2861, %v2941
    %v3092 = vmax.f32 %v2866, %v2946
    %v3093 = vmax.f32 %v3029, %v3045
    %v3094 = vmax.f32 %v3030, %v3046
    %v3095 = vmax.f32 %v3031, %v3047
    %v3096 = vmax.f32 %v3032, %v3048
    %v3097 = vmax.f32 %v3033, %v3049
    %v3098 = vmax.f32 %v3034, %v3050
    %v3099 = vmax.f32 %v3035, %v3051
    %v3100 = vmax.f32 %v3036, %v3052
    %v3101 = vmax.f32 %v3037, %v3053
    %v3102 = vmax.f32 %v3038, %v3054
    %v3103 = vmax.f32 %v3039, %v3055
    %v3104 = vmax.f32 %v3040, %v3056
    %v3105 = vmax.f32 %v3041, %v3057
    %v3106 = vmax.f32 %v3042, %v3058
    %v3107 = vmax.f32 %v3043, %v3059
    %v3108 = vmax.f32 %v3044, %v3060
    %v3109 = vmax.f32 %v3061, %v3077
    %v3110 = vmax.f32 %v3062, %v3078
    %v3111 = vmax.f32 %v3063, %v3079
    %v3112 = vmax.f32 %v3064, %v3080
    %v3113 = vmax.f32 %v3065, %v3081
    %v3114 = vmax.f32 %v3066, %v3082
    %v3115 = vmax.f32 %v3067, %v3083
    %v3116 = vmax.f32 %v3068, %v3084
    %v3117 = vmax.f32 %v3069, %v3085
    %v3118 = vmax.f32 %v3070, %v3086
    %v3119 = vmax.f32 %v3071, %v3087
    %v3120 = vmax.f32 %v3072, %v3088
    %v3121 = vmax.f32 %v3073, %v3089
    %v3122 = vmax.f32 %v3074, %v3090
    %v3123 = vmax.f32 %v3075, %v3091
    %v3124 = vmax.f32 %v3076, %v3092
    %v3125 = vmax.f32 %v3093, %v3109
    %v3126 = vmax.f32 %v3094, %v3110
    %v3127 = vmax.f32 %v3095, %v3111
    %v3128 = vmax.f32 %v3096, %v3112
    %v3129 = vmax.f32 %v3097, %v3113
    %v3130 = vmax.f32 %v3098, %v3114
    %v3131 = vmax.f32 %v3099, %v3115
    %v3132 = vmax.f32 %v3100, %v3116
    %v3133 = vmax.f32 %v3101, %v3117
    %v3134 = vmax.f32 %v3102, %v3118
    %v3135 = vmax.f32 %v3103, %v3119
    %v3136 = vmax.f32 %v3104, %v3120
    %v3137 = vmax.f32 %v3105, %v3121
    %v3138 = vmax.f32 %v3106, %v3122
    %v3139 = vmax.f32 %v3107, %v3123
    %v3140 = vmax.f32 %v3108, %v3124
    %v3141 = vmax.f32 %v3125, %v2951
    %v3142 = vmax.f32 %v3126, %v2956
    %v3143 = vmax.f32 %v3127, %v2961
    %v3144 = vmax.f32 %v3128, %v2966
    %v3145 = vmax.f32 %v3129, %v2971
    %v3146 = vmax.f32 %v3130, %v2976
    %v3147 = vmax.f32 %v3131, %v2981
    %v3148 = vmax.f32 %v3132, %v2986
    %v3149 = vmax.f32 %v3133, %v2991
    %v3150 = vmax.f32 %v3134, %v2996
    %v3151 = vmax.f32 %v3135, %v3001
    %v3152 = vmax.f32 %v3136, %v3006
    %v3153 = vmax.f32 %v3137, %v3011
    %v3154 = vmax.f32 %v3138, %v3016
    %v3155 = vmax.f32 %v3139, %v3021
    %v3156 = vmax.f32 %v3140, %v3026
    %v3157 = vld [vmem:[%s4] sm:$0xff]
    %v3158 = vld [vmem:[%s4 + $0x8] sm:$0xff]
    %v3159 = vld [vmem:[%s4 + $0x10] sm:$0xff]
    %v3160 = vld [vmem:[%s4 + $0x18] sm:$0xff]
    %v3161 = vld [vmem:[%s4 + $0x20] sm:$0xff]
    %v3162 = vld [vmem:[%s4 + $0x28] sm:$0xff]
    %v3163 = vld [vmem:[%s4 + $0x30] sm:$0xff]
    %v3164 = vld [vmem:[%s4 + $0x38] sm:$0xff]
    %v3165 = vld [vmem:[%s5] sm:$0x1]
    %v3167 = vlaneseq
    %v3168 = vshrl.u32 %v3167, 7
    %v3169 = vsub.s32 0, %v3168
    %v3170 = vrot.slane %v3165, %v3169
    %vm3172 = vcmask 523264
    %v3174 = vsel %vm3172, %v3141, 0
    %v3177 = vsel %vm3172, %v3142, 0
    %v3180 = vsel %vm3172, %v3143, 0
    %v3183 = vsel %vm3172, %v3144, 0
    %v3186 = vsel %vm3172, %v3145, 0
    %v3189 = vsel %vm3172, %v3146, 0
    %v3192 = vsel %vm3172, %v3147, 0
    %v3195 = vsel %vm3172, %v3148, 0
    %v3198 = vsel %vm3172, %v3149, 0
    %v3201 = vsel %vm3172, %v3150, 0
    %v3204 = vsel %vm3172, %v3151, 0
    %v3207 = vsel %vm3172, %v3152, 0
    %v3210 = vsel %vm3172, %v3153, 0
    %v3213 = vsel %vm3172, %v3154, 0
    %v3216 = vsel %vm3172, %v3155, 0
    %v3219 = vsel %vm3172, %v3156, 0
    %3221 = vmatprep.subr.mxu0 0.0
    %3222 = vmatpush1.msra.mxu0 %v3157
    %3223 = vmatprep.subr.mxu0 0.0
    %3224 = vmatpush1.msra.mxu0 %v3158
    %3225 = vmatprep.subr.mxu0 0.0
    %3226 = vmatpush1.msra.mxu0 %v3159
    %3227 = vmatprep.subr.mxu0 0.0
    %3228 = vmatpush1.msra.mxu0 %v3160
    %3229 = vmatprep.subr.mxu0 0.0
    %3230 = vmatpush1.msra.mxu0 %v3161
    %3231 = vmatprep.subr.mxu0 0.0
    %3232 = vmatpush1.msra.mxu0 %v3162
    %3233 = vmatprep.subr.mxu0 0.0
    %3234 = vmatpush1.msra.mxu0 %v3163
    %3235 = vmatprep.subr.mxu0 0.0
    %3236 = vmatpush1.msra.mxu0 %v3164
    %3237 = vmatprep.subr.mxu0 0.0
    %3238 = vmatpush1.msra.mxu0 0.0
    %3239 = vmatprep.subr.mxu0 0.0
    %3240 = vmatpush1.msra.mxu0 0.0
    %3241 = vmatprep.subr.mxu0 0.0
    %3242 = vmatpush1.msra.mxu0 0.0
    %3243 = vmatprep.subr.mxu0 0.0
    %3244 = vmatpush1.msra.mxu0 0.0
    %3245 = vmatprep.subr.mxu0 0.0
    %3246 = vmatpush1.msra.mxu0 0.0
    %3247 = vmatprep.subr.mxu0 0.0
    %3248 = vmatpush1.msra.mxu0 0.0
    %3249 = vmatprep.subr.mxu0 0.0
    %3250 = vmatpush1.msra.mxu0 0.0
    %3251 = vmatprep.subr.mxu0 0.0
    %3252 = vmatpush1.msra.mxu0 0.0
    %3253 = vmatprep.subr.mxu0 0.0
    %3254 = vmatpush1.msra.mxu0 0.0
    %3255 = vmatprep.subr.mxu0 0.0
    %3256 = vmatpush1.msra.mxu0 0.0
    %3257 = vmatprep.subr.mxu0 0.0
    %3258 = vmatpush1.msra.mxu0 0.0
    %3259 = vmatprep.subr.mxu0 0.0
    %3260 = vmatpush1.msra.mxu0 0.0
    %3261 = vmatprep.subr.mxu0 0.0
    %3262 = vmatpush1.msra.mxu0 0.0
    %3263 = vmatprep.subr.mxu0 0.0
    %3264 = vmatpush1.msra.mxu0 0.0
    %3265 = vmatprep.subr.mxu0 0.0
    %3266 = vmatpush1.msra.mxu0 0.0
    %3267 = vmatprep.subr.mxu0 0.0
    %3268 = vmatpush1.msra.mxu0 0.0
    %3269 = vmatprep.subr.mxu0 0.0
    %3270 = vmatpush1.msra.mxu0 0.0
    %3271 = vmatprep.subr.mxu0 0.0
    %3272 = vmatpush1.msra.mxu0 0.0
    %3273 = vmatprep.subr.mxu0 0.0
    %3274 = vmatpush1.msra.mxu0 0.0
    %3275 = vmatprep.subr.mxu0 0.0
    %3276 = vmatpush1.msra.mxu0 0.0
    %3277 = vmatprep.subr.mxu0 0.0
    %3278 = vmatpush1.msra.mxu0 0.0
    %3279 = vmatprep.subr.mxu0 0.0
    %3280 = vmatpush1.msra.mxu0 0.0
    %3281 = vmatprep.subr.mxu0 0.0
    %3282 = vmatpush1.msra.mxu0 0.0
    %3283 = vmatprep.subr.mxu0 0.0
    %3284 = vmatpush1.msra.mxu0 0.0
    %3285 = vmatprep.mubr.f32.mxu0 0.0
    %3286 = vmatmul.mubr.f32.gmra.mrb[0].mxu0 %v3174
    %v3287 = vpop.f32.mrb[0].mxu0
    %v3288 = vadd.f32 %v3170, %v3287
    %v3289 = vpop.f32.mrb[0].mxu0
    %3290 = vmatprep.mubr.f32.mxu0 0.0
    %3291 = vmatmul.mubr.f32.gmra.mrb[0].mxu0 %v3177
    %v3292 = vpop.f32.mrb[0].mxu0
    %v3293 = vadd.f32 %v3170, %v3292
    %v3294 = vpop.f32.mrb[0].mxu0
    %3295 = vmatprep.mubr.f32.mxu0 0.0
    %3296 = vmatmul.mubr.f32.gmra.mrb[0].mxu0 %v3180
    %v3297 = vpop.f32.mrb[0].mxu0
    %v3298 = vadd.f32 %v3170, %v3297
    %v3299 = vpop.f32.mrb[0].mxu0
    %3300 = vmatprep.mubr.f32.mxu0 0.0
    %3301 = vmatmul.mubr.f32.gmra.mrb[0].mxu0 %v3183
    %v3302 = vpop.f32.mrb[0].mxu0
    %v3303 = vadd.f32 %v3170, %v3302
    %v3304 = vpop.f32.mrb[0].mxu0
    %3305 = vmatprep.mubr.f32.mxu0 0.0
    %3306 = vmatmul.mubr.f32.gmra.mrb[0].mxu0 %v3186
    %v3307 = vpop.f32.mrb[0].mxu0
    %v3308 = vadd.f32 %v3170, %v3307
    %v3309 = vpop.f32.mrb[0].mxu0
    %3310 = vmatprep.mubr.f32.mxu0 0.0
    %3311 = vmatmul.mubr.f32.gmra.mrb[0].mxu0 %v3189
    %v3312 = vpop.f32.mrb[0].mxu0
    %v3313 = vadd.f32 %v3170, %v3312
    %v3314 = vpop.f32.mrb[0].mxu0
    %3315 = vmatprep.mubr.f32.mxu0 0.0
    %3316 = vmatmul.mubr.f32.gmra.mrb[0].mxu0 %v3192
    %v3317 = vpop.f32.mrb[0].mxu0
    %v3318 = vadd.f32 %v3170, %v3317
    %v3319 = vpop.f32.mrb[0].mxu0
    %3320 = vmatprep.mubr.f32.mxu0 0.0
    %3321 = vmatmul.mubr.f32.gmra.mrb[0].mxu0 %v3195
    %v3322 = vpop.f32.mrb[0].mxu0
    %v3323 = vadd.f32 %v3170, %v3322
    %v3324 = vpop.f32.mrb[0].mxu0
    %3325 = vmatprep.mubr.f32.mxu0 0.0
    %3326 = vmatmul.mubr.f32.gmra.mrb[0].mxu0 %v3198
    %v3327 = vpop.f32.mrb[0].mxu0
    %v3328 = vadd.f32 %v3170, %v3327
    %v3329 = vpop.f32.mrb[0].mxu0
    %3330 = vmatprep.mubr.f32.mxu0 0.0
    %3331 = vmatmul.mubr.f32.gmra.mrb[0].mxu0 %v3201
    %v3332 = vpop.f32.mrb[0].mxu0
    %v3333 = vadd.f32 %v3170, %v3332
    %v3334 = vpop.f32.mrb[0].mxu0
    %3335 = vmatprep.mubr.f32.mxu0 0.0
    %3336 = vmatmul.mubr.f32.gmra.mrb[0].mxu0 %v3204
    %v3337 = vpop.f32.mrb[0].mxu0
    %v3338 = vadd.f32 %v3170, %v3337
    %v3339 = vpop.f32.mrb[0].mxu0
    %3340 = vmatprep.mubr.f32.mxu0 0.0
    %3341 = vmatmul.mubr.f32.gmra.mrb[0].mxu0 %v3207
    %v3342 = vpop.f32.mrb[0].mxu0
    %v3343 = vadd.f32 %v3170, %v3342
    %v3344 = vpop.f32.mrb[0].mxu0
    %3345 = vmatprep.mubr.f32.mxu0 0.0
    %3346 = vmatmul.mubr.f32.gmra.mrb[0].mxu0 %v3210
    %v3347 = vpop.f32.mrb[0].mxu0
    %v3348 = vadd.f32 %v3170, %v3347
    %v3349 = vpop.f32.mrb[0].mxu0
    %3350 = vmatprep.mubr.f32.mxu0 0.0
    %3351 = vmatmul.mubr.f32.gmra.mrb[0].mxu0 %v3213
    %v3352 = vpop.f32.mrb[0].mxu0
    %v3353 = vadd.f32 %v3170, %v3352
    %v3354 = vpop.f32.mrb[0].mxu0
    %3355 = vmatprep.mubr.f32.mxu0 0.0
    %3356 = vmatmul.mubr.f32.gmra.mrb[0].mxu0 %v3216
    %v3357 = vpop.f32.mrb[0].mxu0
    %v3358 = vadd.f32 %v3170, %v3357
    %v3359 = vpop.f32.mrb[0].mxu0
    %3360 = vmatprep.mubr.f32.mxu0 0.0
    %3361 = vmatmul.mubr.f32.gmra.mrb[0].mxu0 %v3219
    %v3362 = vpop.f32.mrb[0].mxu0
    %v3363 = vadd.f32 %v3170, %v3362
    %v3364 = vpop.f32.mrb[0].mxu0
    %3365 = vdwg.mxu0
    %v3366 = vmax.f32 %v3288, 0.0
    %v3367 = vmax.f32 %v3293, 0.0
    %v3368 = vmax.f32 %v3298, 0.0
    %v3369 = vmax.f32 %v3303, 0.0
    %v3370 = vmax.f32 %v3308, 0.0
    %v3371 = vmax.f32 %v3313, 0.0
    %v3372 = vmax.f32 %v3318, 0.0
    %v3373 = vmax.f32 %v3323, 0.0
    %v3374 = vmax.f32 %v3328, 0.0
    %v3375 = vmax.f32 %v3333, 0.0
    %v3376 = vmax.f32 %v3338, 0.0
    %v3377 = vmax.f32 %v3343, 0.0
    %v3378 = vmax.f32 %v3348, 0.0
    %v3379 = vmax.f32 %v3353, 0.0
    %v3380 = vmax.f32 %v3358, 0.0
    %v3381 = vmax.f32 %v3363, 0.0
    %v3382 = vld [vmem:[%s6] sm:$0xff]
    %v3383 = vld [vmem:[%s6 + $0x8] sm:$0xff]
    %v3384 = vld [vmem:[%s6 + $0x10] sm:$0xff]
    %v3385 = vld [vmem:[%s6 + $0x18] sm:$0xff]
    %v3386 = vld [vmem:[%s6 + $0x20] sm:$0xff]
    %v3387 = vld [vmem:[%s6 + $0x28] sm:$0xff]
    %v3388 = vld [vmem:[%s6 + $0x30] sm:$0xff]
    %v3389 = vld [vmem:[%s6 + $0x38] sm:$0xff]
    %v3390 = vld [vmem:[%s6 + $0x40] sm:$0xff]
    %v3391 = vld [vmem:[%s6 + $0x48] sm:$0xff]
    %v3392 = vld [vmem:[%s6 + $0x50] sm:$0xff]
    %v3393 = vld [vmem:[%s6 + $0x58] sm:$0xff]
    %v3394 = vld [vmem:[%s6 + $0x60] sm:$0xff]
    %v3395 = vld [vmem:[%s6 + $0x68] sm:$0xff]
    %v3396 = vld [vmem:[%s6 + $0x70] sm:$0xff]
    %v3397 = vld [vmem:[%s6 + $0x78] sm:$0xff]
    %v3398 = vld [vmem:[%s6 + $0x80] sm:$0xff]
    %v3399 = vld [vmem:[%s6 + $0x88] sm:$0xff]
    %v3400 = vld [vmem:[%s6 + $0x90] sm:$0xff]
    %v3401 = vld [vmem:[%s6 + $0x98] sm:$0xff]
    %v3402 = vld [vmem:[%s6 + $0xa0] sm:$0xff]
    %v3403 = vld [vmem:[%s6 + $0xa8] sm:$0xff]
    %v3404 = vld [vmem:[%s6 + $0xb0] sm:$0xff]
    %v3405 = vld [vmem:[%s6 + $0xb8] sm:$0xff]
    %v3406 = vld [vmem:[%s6 + $0xc0] sm:$0xff]
    %v3407 = vld [vmem:[%s6 + $0xc8] sm:$0xff]
    %v3408 = vld [vmem:[%s6 + $0xd0] sm:$0xff]
    %v3409 = vld [vmem:[%s6 + $0xd8] sm:$0xff]
    %v3410 = vld [vmem:[%s6 + $0xe0] sm:$0xff]
    %v3411 = vld [vmem:[%s6 + $0xe8] sm:$0xff]
    %v3412 = vld [vmem:[%s6 + $0xf0] sm:$0xff]
    %v3413 = vld [vmem:[%s6 + $0xf8] sm:$0xff]
    %v3414 = vld [vmem:[%s6 + $0x100] sm:$0xff]
    %v3415 = vld [vmem:[%s6 + $0x108] sm:$0xff]
    %v3416 = vld [vmem:[%s6 + $0x110] sm:$0xff]
    %v3417 = vld [vmem:[%s6 + $0x118] sm:$0xff]
    %v3418 = vld [vmem:[%s6 + $0x120] sm:$0xff]
    %v3419 = vld [vmem:[%s6 + $0x128] sm:$0xff]
    %v3420 = vld [vmem:[%s6 + $0x130] sm:$0xff]
    %v3421 = vld [vmem:[%s6 + $0x138] sm:$0xff]
    %v3422 = vld [vmem:[%s6 + $0x140] sm:$0xff]
    %v3423 = vld [vmem:[%s6 + $0x148] sm:$0xff]
    %v3424 = vld [vmem:[%s6 + $0x150] sm:$0xff]
    %v3425 = vld [vmem:[%s6 + $0x158] sm:$0xff]
    %v3426 = vld [vmem:[%s6 + $0x160] sm:$0xff]
    %v3427 = vld [vmem:[%s6 + $0x168] sm:$0xff]
    %v3428 = vld [vmem:[%s6 + $0x170] sm:$0xff]
    %v3429 = vld [vmem:[%s6 + $0x178] sm:$0xff]
    %v3430 = vld [vmem:[%s6 + $0x180] sm:$0xff]
    %v3431 = vld [vmem:[%s6 + $0x188] sm:$0xff]
    %v3432 = vld [vmem:[%s6 + $0x190] sm:$0xff]
    %v3433 = vld [vmem:[%s6 + $0x198] sm:$0xff]
    %v3434 = vld [vmem:[%s6 + $0x1a0] sm:$0xff]
    %v3435 = vld [vmem:[%s6 + $0x1a8] sm:$0xff]
    %v3436 = vld [vmem:[%s6 + $0x1b0] sm:$0xff]
    %v3437 = vld [vmem:[%s6 + $0x1b8] sm:$0xff]
    %v3438 = vld [vmem:[%s6 + $0x1c0] sm:$0xff]
    %v3439 = vld [vmem:[%s6 + $0x1c8] sm:$0xff]
    %v3440 = vld [vmem:[%s6 + $0x1d0] sm:$0xff]
    %v3441 = vld [vmem:[%s6 + $0x1d8] sm:$0xff]
    %v3442 = vld [vmem:[%s6 + $0x1e0] sm:$0xff]
    %v3443 = vld [vmem:[%s6 + $0x1e8] sm:$0xff]
    %v3444 = vld [vmem:[%s6 + $0x1f0] sm:$0xff]
    %v3445 = vld [vmem:[%s6 + $0x1f8] sm:$0xff]
    %v3446 = vld [vmem:[%s6 + $0x200] sm:$0xff]
    %v3447 = vld [vmem:[%s6 + $0x208] sm:$0xff]
    %v3448 = vld [vmem:[%s6 + $0x210] sm:$0xff]
    %v3449 = vld [vmem:[%s6 + $0x218] sm:$0xff]
    %v3450 = vld [vmem:[%s6 + $0x220] sm:$0xff]
    %v3451 = vld [vmem:[%s6 + $0x228] sm:$0xff]
    %v3452 = vld [vmem:[%s6 + $0x230] sm:$0xff]
    %v3453 = vld [vmem:[%s6 + $0x238] sm:$0xff]
    %v3454 = vld [vmem:[%s6 + $0x240] sm:$0xff]
    %v3455 = vld [vmem:[%s6 + $0x248] sm:$0xff]
    %v3456 = vld [vmem:[%s6 + $0x250] sm:$0xff]
    %v3457 = vld [vmem:[%s6 + $0x258] sm:$0xff]
    %v3458 = vld [vmem:[%s6 + $0x260] sm:$0xff]
    %v3459 = vld [vmem:[%s6 + $0x268] sm:$0xff]
    %v3460 = vld [vmem:[%s6 + $0x270] sm:$0xff]
    %v3461 = vld [vmem:[%s6 + $0x278] sm:$0xff]
    %v3462 = vld [vmem:[%s6 + $0x280] sm:$0xff]
    %v3463 = vld [vmem:[%s6 + $0x288] sm:$0xff]
    %v3464 = vld [vmem:[%s6 + $0x290] sm:$0xff]
    %v3465 = vld [vmem:[%s6 + $0x298] sm:$0xff]
    %v3466 = vld [vmem:[%s6 + $0x2a0] sm:$0xff]
    %v3467 = vld [vmem:[%s6 + $0x2a8] sm:$0xff]
    %v3468 = vld [vmem:[%s6 + $0x2b0] sm:$0xff]
    %v3469 = vld [vmem:[%s6 + $0x2b8] sm:$0xff]
    %v3470 = vld [vmem:[%s6 + $0x2c0] sm:$0xff]
    %v3471 = vld [vmem:[%s6 + $0x2c8] sm:$0xff]
    %v3472 = vld [vmem:[%s6 + $0x2d0] sm:$0xff]
    %v3473 = vld [vmem:[%s6 + $0x2d8] sm:$0xff]
    %v3474 = vld [vmem:[%s6 + $0x2e0] sm:$0xff]
    %v3475 = vld [vmem:[%s6 + $0x2e8] sm:$0xff]
    %v3476 = vld [vmem:[%s6 + $0x2f0] sm:$0xff]
    %v3477 = vld [vmem:[%s6 + $0x2f8] sm:$0xff]
    %v3478 = vld [vmem:[%s6 + $0x300] sm:$0xff]
    %v3479 = vld [vmem:[%s6 + $0x308] sm:$0xff]
    %v3480 = vld [vmem:[%s6 + $0x310] sm:$0xff]
    %v3481 = vld [vmem:[%s6 + $0x318] sm:$0xff]
    %v3482 = vld [vmem:[%s6 + $0x320] sm:$0xff]
    %v3483 = vld [vmem:[%s6 + $0x328] sm:$0xff]
    %v3484 = vld [vmem:[%s6 + $0x330] sm:$0xff]
    %v3485 = vld [vmem:[%s6 + $0x338] sm:$0xff]
    %v3486 = vld [vmem:[%s6 + $0x340] sm:$0xff]
    %v3487 = vld [vmem:[%s6 + $0x348] sm:$0xff]
    %v3488 = vld [vmem:[%s6 + $0x350] sm:$0xff]
    %v3489 = vld [vmem:[%s6 + $0x358] sm:$0xff]
    %v3490 = vld [vmem:[%s6 + $0x360] sm:$0xff]
    %v3491 = vld [vmem:[%s6 + $0x368] sm:$0xff]
    %v3492 = vld [vmem:[%s6 + $0x370] sm:$0xff]
    %v3493 = vld [vmem:[%s6 + $0x378] sm:$0xff]
    %v3494 = vld [vmem:[%s6 + $0x380] sm:$0xff]
    %v3495 = vld [vmem:[%s6 + $0x388] sm:$0xff]
    %v3496 = vld [vmem:[%s6 + $0x390] sm:$0xff]
    %v3497 = vld [vmem:[%s6 + $0x398] sm:$0xff]
    %v3498 = vld [vmem:[%s6 + $0x3a0] sm:$0xff]
    %v3499 = vld [vmem:[%s6 + $0x3a8] sm:$0xff]
    %v3500 = vld [vmem:[%s6 + $0x3b0] sm:$0xff]
    %v3501 = vld [vmem:[%s6 + $0x3b8] sm:$0xff]
    %v3502 = vld [vmem:[%s6 + $0x3c0] sm:$0xff]
    %v3503 = vld [vmem:[%s6 + $0x3c8] sm:$0xff]
    %v3504 = vld [vmem:[%s6 + $0x3d0] sm:$0xff]
    %v3505 = vld [vmem:[%s6 + $0x3d8] sm:$0xff]
    %v3506 = vld [vmem:[%s6 + $0x3e0] sm:$0xff]
    %v3507 = vld [vmem:[%s6 + $0x3e8] sm:$0xff]
    %v3508 = vld [vmem:[%s6 + $0x3f0] sm:$0xff]
    %v3509 = vld [vmem:[%s6 + $0x3f8] sm:$0xff]
    %v3510 = vld [vmem:[%s6 + $0x400] sm:$0xff]
    %v3511 = vld [vmem:[%s6 + $0x408] sm:$0xff]
    %v3512 = vld [vmem:[%s6 + $0x410] sm:$0xff]
    %v3513 = vld [vmem:[%s6 + $0x418] sm:$0xff]
    %v3514 = vld [vmem:[%s6 + $0x420] sm:$0xff]
    %v3515 = vld [vmem:[%s6 + $0x428] sm:$0xff]
    %v3516 = vld [vmem:[%s6 + $0x430] sm:$0xff]
    %v3517 = vld [vmem:[%s6 + $0x438] sm:$0xff]
    %v3518 = vld [vmem:[%s6 + $0x440] sm:$0xff]
    %v3519 = vld [vmem:[%s6 + $0x448] sm:$0xff]
    %v3520 = vld [vmem:[%s6 + $0x450] sm:$0xff]
    %v3521 = vld [vmem:[%s6 + $0x458] sm:$0xff]
    %v3522 = vld [vmem:[%s6 + $0x460] sm:$0xff]
    %v3523 = vld [vmem:[%s6 + $0x468] sm:$0xff]
    %v3524 = vld [vmem:[%s6 + $0x470] sm:$0xff]
    %v3525 = vld [vmem:[%s6 + $0x478] sm:$0xff]
    %3526 = vmatprep.subr.mxu0 0.0
    %3527 = vmatpush1.msra.mxu0 %v3366
    %3528 = vmatprep.subr.mxu0 0.0
    %3529 = vmatpush1.msra.mxu0 %v3367
    %3530 = vmatprep.subr.mxu0 0.0
    %3531 = vmatpush1.msra.mxu0 %v3368
    %3532 = vmatprep.subr.mxu0 0.0
    %3533 = vmatpush1.msra.mxu0 %v3369
    %3534 = vmatprep.subr.mxu0 0.0
    %3535 = vmatpush1.msra.mxu0 %v3370
    %3536 = vmatprep.subr.mxu0 0.0
    %3537 = vmatpush1.msra.mxu0 %v3371
    %3538 = vmatprep.subr.mxu0 0.0
    %3539 = vmatpush1.msra.mxu0 %v3372
    %3540 = vmatprep.subr.mxu0 0.0
    %3541 = vmatpush1.msra.mxu0 %v3373
    %3542 = vmatprep.subr.mxu0 0.0
    %3543 = vmatpush1.msra.mxu0 %v3374
    %3544 = vmatprep.subr.mxu0 0.0
    %3545 = vmatpush1.msra.mxu0 %v3375
    %3546 = vmatprep.subr.mxu0 0.0
    %3547 = vmatpush1.msra.mxu0 %v3376
    %3548 = vmatprep.subr.mxu0 0.0
    %3549 = vmatpush1.msra.mxu0 %v3377
    %3550 = vmatprep.subr.mxu0 0.0
    %3551 = vmatpush1.msra.mxu0 %v3378
    %3552 = vmatprep.subr.mxu0 0.0
    %3553 = vmatpush1.msra.mxu0 %v3379
    %3554 = vmatprep.subr.mxu0 0.0
    %3555 = vmatpush1.msra.mxu0 %v3380
    %3556 = vmatprep.subr.mxu0 0.0
    %3557 = vmatpush1.msra.mxu0 %v3381
    %3558 = vmatprep.subr.mxu0 0.0
    %3559 = vmatpush1.msra.mxu0 0.0
    %3560 = vmatprep.subr.mxu0 0.0
    %3561 = vmatpush1.msra.mxu0 0.0
    %3562 = vmatprep.subr.mxu0 0.0
    %3563 = vmatpush1.msra.mxu0 0.0
    %3564 = vmatprep.subr.mxu0 0.0
    %3565 = vmatpush1.msra.mxu0 0.0
    %3566 = vmatprep.subr.mxu0 0.0
    %3567 = vmatpush1.msra.mxu0 0.0
    %3568 = vmatprep.subr.mxu0 0.0
    %3569 = vmatpush1.msra.mxu0 0.0
    %3570 = vmatprep.subr.mxu0 0.0
    %3571 = vmatpush1.msra.mxu0 0.0
    %3572 = vmatprep.subr.mxu0 0.0
    %3573 = vmatpush1.msra.mxu0 0.0
    %3574 = vmatprep.subr.mxu0 0.0
    %3575 = vmatpush1.msra.mxu0 0.0
    %3576 = vmatprep.subr.mxu0 0.0
    %3577 = vmatpush1.msra.mxu0 0.0
    %3578 = vmatprep.subr.mxu0 0.0
    %3579 = vmatpush1.msra.mxu0 0.0
    %3580 = vmatprep.subr.mxu0 0.0
    %3581 = vmatpush1.msra.mxu0 0.0
    %3582 = vmatprep.subr.mxu0 0.0
    %3583 = vmatpush1.msra.mxu0 0.0
    %3584 = vmatprep.subr.mxu0 0.0
    %3585 = vmatpush1.msra.mxu0 0.0
    %3586 = vmatprep.subr.mxu0 0.0
    %3587 = vmatpush1.msra.mxu0 0.0
    %3588 = vmatprep.subr.mxu0 0.0
    %3589 = vmatpush1.msra.mxu0 0.0
    %3590 = vmatprep.mubr.f32.mxu0 0.0
    %3591 = vmatmul.mubr.f32.gmra.mrb[0].mxu0 %v3382
    %v3592 = vpop.f32.mrb[0].mxu0
    %v3593 = vadd.f32 0.0, %v3592
    %v3594 = vpop.f32.mrb[0].mxu0
    %3595 = vmatprep.mubr.f32.mxu0 0.0
    %3596 = vmatmul.mubr.f32.gmra.mrb[0].mxu0 %v3383
    %v3597 = vpop.f32.mrb[0].mxu0
    %v3598 = vadd.f32 0.0, %v3597
    %v3599 = vpop.f32.mrb[0].mxu0
    %3600 = vmatprep.mubr.f32.mxu0 0.0
    %3601 = vmatmul.mubr.f32.gmra.mrb[0].mxu0 %v3384
    %v3602 = vpop.f32.mrb[0].mxu0
    %v3603 = vadd.f32 0.0, %v3602
    %v3604 = vpop.f32.mrb[0].mxu0
    %3605 = vmatprep.mubr.f32.mxu0 0.0
    %3606 = vmatmul.mubr.f32.gmra.mrb[0].mxu0 %v3385
    %v3607 = vpop.f32.mrb[0].mxu0
    %v3608 = vadd.f32 0.0, %v3607
    %v3609 = vpop.f32.mrb[0].mxu0
    %3610 = vmatprep.mubr.f32.mxu0 0.0
    %3611 = vmatmul.mubr.f32.gmra.mrb[0].mxu0 %v3386
    %v3612 = vpop.f32.mrb[0].mxu0
    %v3613 = vadd.f32 0.0, %v3612
    %v3614 = vpop.f32.mrb[0].mxu0
    %3615 = vmatprep.mubr.f32.mxu0 0.0
    %3616 = vmatmul.mubr.f32.gmra.mrb[0].mxu0 %v3387
    %v3617 = vpop.f32.mrb[0].mxu0
    %v3618 = vadd.f32 0.0, %v3617
    %v3619 = vpop.f32.mrb[0].mxu0
    %3620 = vmatprep.mubr.f32.mxu0 0.0
    %3621 = vmatmul.mubr.f32.gmra.mrb[0].mxu0 %v3388
    %v3622 = vpop.f32.mrb[0].mxu0
    %v3623 = vadd.f32 0.0, %v3622
    %v3624 = vpop.f32.mrb[0].mxu0
    %3625 = vmatprep.mubr.f32.mxu0 0.0
    %3626 = vmatmul.mubr.f32.gmra.mrb[0].mxu0 %v3389
    %v3627 = vpop.f32.mrb[0].mxu0
    %v3628 = vadd.f32 0.0, %v3627
    %v3629 = vpop.f32.mrb[0].mxu0
    %3630 = vmatprep.mubr.f32.mxu0 0.0
    %3631 = vmatmul.mubr.f32.gmra.mrb[0].mxu0 %v3390
    %v3632 = vpop.f32.mrb[0].mxu0
    %v3633 = vadd.f32 0.0, %v3632
    %v3634 = vpop.f32.mrb[0].mxu0
    %3635 = vmatprep.mubr.f32.mxu0 0.0
    %3636 = vmatmul.mubr.f32.gmra.mrb[0].mxu0 %v3391
    %v3637 = vpop.f32.mrb[0].mxu0
    %v3638 = vadd.f32 0.0, %v3637
    %v3639 = vpop.f32.mrb[0].mxu0
    %3640 = vmatprep.mubr.f32.mxu0 0.0
    %3641 = vmatmul.mubr.f32.gmra.mrb[0].mxu0 %v3392
    %v3642 = vpop.f32.mrb[0].mxu0
    %v3643 = vadd.f32 0.0, %v3642
    %v3644 = vpop.f32.mrb[0].mxu0
    %3645 = vmatprep.mubr.f32.mxu0 0.0
    %3646 = vmatmul.mubr.f32.gmra.mrb[0].mxu0 %v3393
    %v3647 = vpop.f32.mrb[0].mxu0
    %v3648 = vadd.f32 0.0, %v3647
    %v3649 = vpop.f32.mrb[0].mxu0
    %3650 = vmatprep.mubr.f32.mxu0 0.0
    %3651 = vmatmul.mubr.f32.gmra.mrb[0].mxu0 %v3394
    %v3652 = vpop.f32.mrb[0].mxu0
    %v3653 = vadd.f32 0.0, %v3652
    %v3654 = vpop.f32.mrb[0].mxu0
    %3655 = vmatprep.mubr.f32.mxu0 0.0
    %3656 = vmatmul.mubr.f32.gmra.mrb[0].mxu0 %v3395
    %v3657 = vpop.f32.mrb[0].mxu0
    %v3658 = vadd.f32 0.0, %v3657
    %v3659 = vpop.f32.mrb[0].mxu0
    %3660 = vmatprep.mubr.f32.mxu0 0.0
    %3661 = vmatmul.mubr.f32.gmra.mrb[0].mxu0 %v3396
    %v3662 = vpop.f32.mrb[0].mxu0
    %v3663 = vadd.f32 0.0, %v3662
    %v3664 = vpop.f32.mrb[0].mxu0
    %3665 = vmatprep.mubr.f32.mxu0 0.0
    %3666 = vmatmul.mubr.f32.gmra.mrb[0].mxu0 %v3397
    %v3667 = vpop.f32.mrb[0].mxu0
    %v3668 = vadd.f32 0.0, %v3667
    %v3669 = vpop.f32.mrb[0].mxu0
    %3670 = vmatprep.mubr.f32.mxu0 0.0
    %3671 = vmatmul.mubr.f32.gmra.mrb[0].mxu0 %v3398
    %v3672 = vpop.f32.mrb[0].mxu0
    %v3673 = vadd.f32 0.0, %v3672
    %v3674 = vpop.f32.mrb[0].mxu0
    %3675 = vmatprep.mubr.f32.mxu0 0.0
    %3676 = vmatmul.mubr.f32.gmra.mrb[0].mxu0 %v3399
    %v3677 = vpop.f32.mrb[0].mxu0
    %v3678 = vadd.f32 0.0, %v3677
    %v3679 = vpop.f32.mrb[0].mxu0
    %3680 = vmatprep.mubr.f32.mxu0 0.0
    %3681 = vmatmul.mubr.f32.gmra.mrb[0].mxu0 %v3400
    %v3682 = vpop.f32.mrb[0].mxu0
    %v3683 = vadd.f32 0.0, %v3682
    %v3684 = vpop.f32.mrb[0].mxu0
    %3685 = vmatprep.mubr.f32.mxu0 0.0
    %3686 = vmatmul.mubr.f32.gmra.mrb[0].mxu0 %v3401
    %v3687 = vpop.f32.mrb[0].mxu0
    %v3688 = vadd.f32 0.0, %v3687
    %v3689 = vpop.f32.mrb[0].mxu0
    %3690 = vmatprep.mubr.f32.mxu0 0.0
    %3691 = vmatmul.mubr.f32.gmra.mrb[0].mxu0 %v3402
    %v3692 = vpop.f32.mrb[0].mxu0
    %v3693 = vadd.f32 0.0, %v3692
    %v3694 = vpop.f32.mrb[0].mxu0
    %3695 = vmatprep.mubr.f32.mxu0 0.0
    %3696 = vmatmul.mubr.f32.gmra.mrb[0].mxu0 %v3403
    %v3697 = vpop.f32.mrb[0].mxu0
    %v3698 = vadd.f32 0.0, %v3697
    %v3699 = vpop.f32.mrb[0].mxu0
    %3700 = vmatprep.mubr.f32.mxu0 0.0
    %3701 = vmatmul.mubr.f32.gmra.mrb[0].mxu0 %v3404
    %v3702 = vpop.f32.mrb[0].mxu0
    %v3703 = vadd.f32 0.0, %v3702
    %v3704 = vpop.f32.mrb[0].mxu0
    %3705 = vmatprep.mubr.f32.mxu0 0.0
    %3706 = vmatmul.mubr.f32.gmra.mrb[0].mxu0 %v3405
    %v3707 = vpop.f32.mrb[0].mxu0
    %v3708 = vadd.f32 0.0, %v3707
    %v3709 = vpop.f32.mrb[0].mxu0
    %3710 = vmatprep.mubr.f32.mxu0 0.0
    %3711 = vmatmul.mubr.f32.gmra.mrb[0].mxu0 %v3406
    %v3712 = vpop.f32.mrb[0].mxu0
    %v3713 = vadd.f32 0.0, %v3712
    %v3714 = vpop.f32.mrb[0].mxu0
    %3715 = vmatprep.mubr.f32.mxu0 0.0
    %3716 = vmatmul.mubr.f32.gmra.mrb[0].mxu0 %v3407
    %v3717 = vpop.f32.mrb[0].mxu0
    %v3718 = vadd.f32 0.0, %v3717
    %v3719 = vpop.f32.mrb[0].mxu0
    %3720 = vmatprep.mubr.f32.mxu0 0.0
    %3721 = vmatmul.mubr.f32.gmra.mrb[0].mxu0 %v3408
    %v3722 = vpop.f32.mrb[0].mxu0
    %v3723 = vadd.f32 0.0, %v3722
    %v3724 = vpop.f32.mrb[0].mxu0
    %3725 = vmatprep.mubr.f32.mxu0 0.0
    %3726 = vmatmul.mubr.f32.gmra.mrb[0].mxu0 %v3409
    %v3727 = vpop.f32.mrb[0].mxu0
    %v3728 = vadd.f32 0.0, %v3727
    %v3729 = vpop.f32.mrb[0].mxu0
    %3730 = vmatprep.mubr.f32.mxu0 0.0
    %3731 = vmatmul.mubr.f32.gmra.mrb[0].mxu0 %v3410
    %v3732 = vpop.f32.mrb[0].mxu0
    %v3733 = vadd.f32 0.0, %v3732
    %v3734 = vpop.f32.mrb[0].mxu0
    %3735 = vmatprep.mubr.f32.mxu0 0.0
    %3736 = vmatmul.mubr.f32.gmra.mrb[0].mxu0 %v3411
    %v3737 = vpop.f32.mrb[0].mxu0
    %v3738 = vadd.f32 0.0, %v3737
    %v3739 = vpop.f32.mrb[0].mxu0
    %3740 = vmatprep.mubr.f32.mxu0 0.0
    %3741 = vmatmul.mubr.f32.gmra.mrb[0].mxu0 %v3412
    %v3742 = vpop.f32.mrb[0].mxu0
    %v3743 = vadd.f32 0.0, %v3742
    %v3744 = vpop.f32.mrb[0].mxu0
    %3745 = vmatprep.mubr.f32.mxu0 0.0
    %3746 = vmatmul.mubr.f32.gmra.mrb[0].mxu0 %v3413
    %v3747 = vpop.f32.mrb[0].mxu0
    %v3748 = vadd.f32 0.0, %v3747
    %v3749 = vpop.f32.mrb[0].mxu0
    %3750 = vmatprep.mubr.f32.mxu0 0.0
    %3751 = vmatmul.mubr.f32.gmra.mrb[0].mxu0 %v3414
    %v3752 = vpop.f32.mrb[0].mxu0
    %v3753 = vadd.f32 0.0, %v3752
    %v3754 = vpop.f32.mrb[0].mxu0
    %3755 = vmatprep.mubr.f32.mxu0 0.0
    %3756 = vmatmul.mubr.f32.gmra.mrb[0].mxu0 %v3415
    %v3757 = vpop.f32.mrb[0].mxu0
    %v3758 = vadd.f32 0.0, %v3757
    %v3759 = vpop.f32.mrb[0].mxu0
    %3760 = vmatprep.mubr.f32.mxu0 0.0
    %3761 = vmatmul.mubr.f32.gmra.mrb[0].mxu0 %v3416
    %v3762 = vpop.f32.mrb[0].mxu0
    %v3763 = vadd.f32 0.0, %v3762
    %v3764 = vpop.f32.mrb[0].mxu0
    %3765 = vmatprep.mubr.f32.mxu0 0.0
    %3766 = vmatmul.mubr.f32.gmra.mrb[0].mxu0 %v3417
    %v3767 = vpop.f32.mrb[0].mxu0
    %v3768 = vadd.f32 0.0, %v3767
    %v3769 = vpop.f32.mrb[0].mxu0
    %3770 = vmatprep.mubr.f32.mxu0 0.0
    %3771 = vmatmul.mubr.f32.gmra.mrb[0].mxu0 %v3418
    %v3772 = vpop.f32.mrb[0].mxu0
    %v3773 = vadd.f32 0.0, %v3772
    %v3774 = vpop.f32.mrb[0].mxu0
    %3775 = vmatprep.mubr.f32.mxu0 0.0
    %3776 = vmatmul.mubr.f32.gmra.mrb[0].mxu0 %v3419
    %v3777 = vpop.f32.mrb[0].mxu0
    %v3778 = vadd.f32 0.0, %v3777
    %v3779 = vpop.f32.mrb[0].mxu0
    %3780 = vmatprep.mubr.f32.mxu0 0.0
    %3781 = vmatmul.mubr.f32.gmra.mrb[0].mxu0 %v3420
    %v3782 = vpop.f32.mrb[0].mxu0
    %v3783 = vadd.f32 0.0, %v3782
    %v3784 = vpop.f32.mrb[0].mxu0
    %3785 = vmatprep.mubr.f32.mxu0 0.0
    %3786 = vmatmul.mubr.f32.gmra.mrb[0].mxu0 %v3421
    %v3787 = vpop.f32.mrb[0].mxu0
    %v3788 = vadd.f32 0.0, %v3787
    %v3789 = vpop.f32.mrb[0].mxu0
    %3790 = vmatprep.mubr.f32.mxu0 0.0
    %3791 = vmatmul.mubr.f32.gmra.mrb[0].mxu0 %v3422
    %v3792 = vpop.f32.mrb[0].mxu0
    %v3793 = vadd.f32 0.0, %v3792
    %v3794 = vpop.f32.mrb[0].mxu0
    %3795 = vmatprep.mubr.f32.mxu0 0.0
    %3796 = vmatmul.mubr.f32.gmra.mrb[0].mxu0 %v3423
    %v3797 = vpop.f32.mrb[0].mxu0
    %v3798 = vadd.f32 0.0, %v3797
    %v3799 = vpop.f32.mrb[0].mxu0
    %3800 = vmatprep.mubr.f32.mxu0 0.0
    %3801 = vmatmul.mubr.f32.gmra.mrb[0].mxu0 %v3424
    %v3802 = vpop.f32.mrb[0].mxu0
    %v3803 = vadd.f32 0.0, %v3802
    %v3804 = vpop.f32.mrb[0].mxu0
    %3805 = vmatprep.mubr.f32.mxu0 0.0
    %3806 = vmatmul.mubr.f32.gmra.mrb[0].mxu0 %v3425
    %v3807 = vpop.f32.mrb[0].mxu0
    %v3808 = vadd.f32 0.0, %v3807
    %v3809 = vpop.f32.mrb[0].mxu0
    %3810 = vmatprep.mubr.f32.mxu0 0.0
    %3811 = vmatmul.mubr.f32.gmra.mrb[0].mxu0 %v3426
    %v3812 = vpop.f32.mrb[0].mxu0
    %v3813 = vadd.f32 0.0, %v3812
    %v3814 = vpop.f32.mrb[0].mxu0
    %3815 = vmatprep.mubr.f32.mxu0 0.0
    %3816 = vmatmul.mubr.f32.gmra.mrb[0].mxu0 %v3427
    %v3817 = vpop.f32.mrb[0].mxu0
    %v3818 = vadd.f32 0.0, %v3817
    %v3819 = vpop.f32.mrb[0].mxu0
    %3820 = vmatprep.mubr.f32.mxu0 0.0
    %3821 = vmatmul.mubr.f32.gmra.mrb[0].mxu0 %v3428
    %v3822 = vpop.f32.mrb[0].mxu0
    %v3823 = vadd.f32 0.0, %v3822
    %v3824 = vpop.f32.mrb[0].mxu0
    %3825 = vmatprep.mubr.f32.mxu0 0.0
    %3826 = vmatmul.mubr.f32.gmra.mrb[0].mxu0 %v3429
    %v3827 = vpop.f32.mrb[0].mxu0
    %v3828 = vadd.f32 0.0, %v3827
    %v3829 = vpop.f32.mrb[0].mxu0
    %3830 = vmatprep.mubr.f32.mxu0 0.0
    %3831 = vmatmul.mubr.f32.gmra.mrb[0].mxu0 %v3430
    %v3832 = vpop.f32.mrb[0].mxu0
    %v3833 = vadd.f32 0.0, %v3832
    %v3834 = vpop.f32.mrb[0].mxu0
    %3835 = vmatprep.mubr.f32.mxu0 0.0
    %3836 = vmatmul.mubr.f32.gmra.mrb[0].mxu0 %v3431
    %v3837 = vpop.f32.mrb[0].mxu0
    %v3838 = vadd.f32 0.0, %v3837
    %v3839 = vpop.f32.mrb[0].mxu0
    %3840 = vmatprep.mubr.f32.mxu0 0.0
    %3841 = vmatmul.mubr.f32.gmra.mrb[0].mxu0 %v3432
    %v3842 = vpop.f32.mrb[0].mxu0
    %v3843 = vadd.f32 0.0, %v3842
    %v3844 = vpop.f32.mrb[0].mxu0
    %3845 = vmatprep.mubr.f32.mxu0 0.0
    %3846 = vmatmul.mubr.f32.gmra.mrb[0].mxu0 %v3433
    %v3847 = vpop.f32.mrb[0].mxu0
    %v3848 = vadd.f32 0.0, %v3847
    %v3849 = vpop.f32.mrb[0].mxu0
    %3850 = vmatprep.mubr.f32.mxu0 0.0
    %3851 = vmatmul.mubr.f32.gmra.mrb[0].mxu0 %v3434
    %v3852 = vpop.f32.mrb[0].mxu0
    %v3853 = vadd.f32 0.0, %v3852
    %v3854 = vpop.f32.mrb[0].mxu0
    %3855 = vmatprep.mubr.f32.mxu0 0.0
    %3856 = vmatmul.mubr.f32.gmra.mrb[0].mxu0 %v3435
    %v3857 = vpop.f32.mrb[0].mxu0
    %v3858 = vadd.f32 0.0, %v3857
    %v3859 = vpop.f32.mrb[0].mxu0
    %3860 = vmatprep.mubr.f32.mxu0 0.0
    %3861 = vmatmul.mubr.f32.gmra.mrb[0].mxu0 %v3436
    %v3862 = vpop.f32.mrb[0].mxu0
    %v3863 = vadd.f32 0.0, %v3862
    %v3864 = vpop.f32.mrb[0].mxu0
    %3865 = vmatprep.mubr.f32.mxu0 0.0
    %3866 = vmatmul.mubr.f32.gmra.mrb[0].mxu0 %v3437
    %v3867 = vpop.f32.mrb[0].mxu0
    %v3868 = vadd.f32 0.0, %v3867
    %v3869 = vpop.f32.mrb[0].mxu0
    %3870 = vmatprep.mubr.f32.mxu0 0.0
    %3871 = vmatmul.mubr.f32.gmra.mrb[0].mxu0 %v3438
    %v3872 = vpop.f32.mrb[0].mxu0
    %v3873 = vadd.f32 0.0, %v3872
    %v3874 = vpop.f32.mrb[0].mxu0
    %3875 = vmatprep.mubr.f32.mxu0 0.0
    %3876 = vmatmul.mubr.f32.gmra.mrb[0].mxu0 %v3439
    %v3877 = vpop.f32.mrb[0].mxu0
    %v3878 = vadd.f32 0.0, %v3877
    %v3879 = vpop.f32.mrb[0].mxu0
    %3880 = vmatprep.mubr.f32.mxu0 0.0
    %3881 = vmatmul.mubr.f32.gmra.mrb[0].mxu0 %v3440
    %v3882 = vpop.f32.mrb[0].mxu0
    %v3883 = vadd.f32 0.0, %v3882
    %v3884 = vpop.f32.mrb[0].mxu0
    %3885 = vmatprep.mubr.f32.mxu0 0.0
    %3886 = vmatmul.mubr.f32.gmra.mrb[0].mxu0 %v3441
    %v3887 = vpop.f32.mrb[0].mxu0
    %v3888 = vadd.f32 0.0, %v3887
    %v3889 = vpop.f32.mrb[0].mxu0
    %3890 = vmatprep.mubr.f32.mxu0 0.0
    %3891 = vmatmul.mubr.f32.gmra.mrb[0].mxu0 %v3442
    %v3892 = vpop.f32.mrb[0].mxu0
    %v3893 = vadd.f32 0.0, %v3892
    %v3894 = vpop.f32.mrb[0].mxu0
    %3895 = vmatprep.mubr.f32.mxu0 0.0
    %3896 = vmatmul.mubr.f32.gmra.mrb[0].mxu0 %v3443
    %v3897 = vpop.f32.mrb[0].mxu0
    %v3898 = vadd.f32 0.0, %v3897
    %v3899 = vpop.f32.mrb[0].mxu0
    %3900 = vmatprep.mubr.f32.mxu0 0.0
    %3901 = vmatmul.mubr.f32.gmra.mrb[0].mxu0 %v3444
    %v3902 = vpop.f32.mrb[0].mxu0
    %v3903 = vadd.f32 0.0, %v3902
    %v3904 = vpop.f32.mrb[0].mxu0
    %3905 = vmatprep.mubr.f32.mxu0 0.0
    %3906 = vmatmul.mubr.f32.gmra.mrb[0].mxu0 %v3445
    %v3907 = vpop.f32.mrb[0].mxu0
    %v3908 = vadd.f32 0.0, %v3907
    %v3909 = vpop.f32.mrb[0].mxu0
    %3910 = vmatprep.mubr.f32.mxu0 0.0
    %3911 = vmatmul.mubr.f32.gmra.mrb[0].mxu0 %v3446
    %v3912 = vpop.f32.mrb[0].mxu0
    %v3913 = vadd.f32 0.0, %v3912
    %v3914 = vpop.f32.mrb[0].mxu0
    %3915 = vmatprep.mubr.f32.mxu0 0.0
    %3916 = vmatmul.mubr.f32.gmra.mrb[0].mxu0 %v3447
    %v3917 = vpop.f32.mrb[0].mxu0
    %v3918 = vadd.f32 0.0, %v3917
    %v3919 = vpop.f32.mrb[0].mxu0
    %3920 = vmatprep.mubr.f32.mxu0 0.0
    %3921 = vmatmul.mubr.f32.gmra.mrb[0].mxu0 %v3448
    %v3922 = vpop.f32.mrb[0].mxu0
    %v3923 = vadd.f32 0.0, %v3922
    %v3924 = vpop.f32.mrb[0].mxu0
    %3925 = vmatprep.mubr.f32.mxu0 0.0
    %3926 = vmatmul.mubr.f32.gmra.mrb[0].mxu0 %v3449
    %v3927 = vpop.f32.mrb[0].mxu0
    %v3928 = vadd.f32 0.0, %v3927
    %v3929 = vpop.f32.mrb[0].mxu0
    %3930 = vmatprep.mubr.f32.mxu0 0.0
    %3931 = vmatmul.mubr.f32.gmra.mrb[0].mxu0 %v3450
    %v3932 = vpop.f32.mrb[0].mxu0
    %v3933 = vadd.f32 0.0, %v3932
    %v3934 = vpop.f32.mrb[0].mxu0
    %3935 = vmatprep.mubr.f32.mxu0 0.0
    %3936 = vmatmul.mubr.f32.gmra.mrb[0].mxu0 %v3451
    %v3937 = vpop.f32.mrb[0].mxu0
    %v3938 = vadd.f32 0.0, %v3937
    %v3939 = vpop.f32.mrb[0].mxu0
    %3940 = vmatprep.mubr.f32.mxu0 0.0
    %3941 = vmatmul.mubr.f32.gmra.mrb[0].mxu0 %v3452
    %v3942 = vpop.f32.mrb[0].mxu0
    %v3943 = vadd.f32 0.0, %v3942
    %v3944 = vpop.f32.mrb[0].mxu0
    %3945 = vmatprep.mubr.f32.mxu0 0.0
    %3946 = vmatmul.mubr.f32.gmra.mrb[0].mxu0 %v3453
    %v3947 = vpop.f32.mrb[0].mxu0
    %v3948 = vadd.f32 0.0, %v3947
    %v3949 = vpop.f32.mrb[0].mxu0
    %3950 = vmatprep.mubr.f32.mxu0 0.0
    %3951 = vmatmul.mubr.f32.gmra.mrb[0].mxu0 %v3454
    %v3952 = vpop.f32.mrb[0].mxu0
    %v3953 = vadd.f32 0.0, %v3952
    %v3954 = vpop.f32.mrb[0].mxu0
    %3955 = vmatprep.mubr.f32.mxu0 0.0
    %3956 = vmatmul.mubr.f32.gmra.mrb[0].mxu0 %v3455
    %v3957 = vpop.f32.mrb[0].mxu0
    %v3958 = vadd.f32 0.0, %v3957
    %v3959 = vpop.f32.mrb[0].mxu0
    %3960 = vmatprep.mubr.f32.mxu0 0.0
    %3961 = vmatmul.mubr.f32.gmra.mrb[0].mxu0 %v3456
    %v3962 = vpop.f32.mrb[0].mxu0
    %v3963 = vadd.f32 0.0, %v3962
    %v3964 = vpop.f32.mrb[0].mxu0
    %3965 = vmatprep.mubr.f32.mxu0 0.0
    %3966 = vmatmul.mubr.f32.gmra.mrb[0].mxu0 %v3457
    %v3967 = vpop.f32.mrb[0].mxu0
    %v3968 = vadd.f32 0.0, %v3967
    %v3969 = vpop.f32.mrb[0].mxu0
    %3970 = vmatprep.mubr.f32.mxu0 0.0
    %3971 = vmatmul.mubr.f32.gmra.mrb[0].mxu0 %v3458
    %v3972 = vpop.f32.mrb[0].mxu0
    %v3973 = vadd.f32 0.0, %v3972
    %v3974 = vpop.f32.mrb[0].mxu0
    %3975 = vmatprep.mubr.f32.mxu0 0.0
    %3976 = vmatmul.mubr.f32.gmra.mrb[0].mxu0 %v3459
    %v3977 = vpop.f32.mrb[0].mxu0
    %v3978 = vadd.f32 0.0, %v3977
    %v3979 = vpop.f32.mrb[0].mxu0
    %3980 = vmatprep.mubr.f32.mxu0 0.0
    %3981 = vmatmul.mubr.f32.gmra.mrb[0].mxu0 %v3460
    %v3982 = vpop.f32.mrb[0].mxu0
    %v3983 = vadd.f32 0.0, %v3982
    %v3984 = vpop.f32.mrb[0].mxu0
    %3985 = vmatprep.mubr.f32.mxu0 0.0
    %3986 = vmatmul.mubr.f32.gmra.mrb[0].mxu0 %v3461
    %v3987 = vpop.f32.mrb[0].mxu0
    %v3988 = vadd.f32 0.0, %v3987
    %v3989 = vpop.f32.mrb[0].mxu0
    %3990 = vmatprep.mubr.f32.mxu0 0.0
    %3991 = vmatmul.mubr.f32.gmra.mrb[0].mxu0 %v3462
    %v3992 = vpop.f32.mrb[0].mxu0
    %v3993 = vadd.f32 0.0, %v3992
    %v3994 = vpop.f32.mrb[0].mxu0
    %3995 = vmatprep.mubr.f32.mxu0 0.0
    %3996 = vmatmul.mubr.f32.gmra.mrb[0].mxu0 %v3463
    %v3997 = vpop.f32.mrb[0].mxu0
    %v3998 = vadd.f32 0.0, %v3997
    %v3999 = vpop.f32.mrb[0].mxu0
    %4000 = vmatprep.mubr.f32.mxu0 0.0
    %4001 = vmatmul.mubr.f32.gmra.mrb[0].mxu0 %v3464
    %v4002 = vpop.f32.mrb[0].mxu0
    %v4003 = vadd.f32 0.0, %v4002
    %v4004 = vpop.f32.mrb[0].mxu0
    %4005 = vmatprep.mubr.f32.mxu0 0.0
    %4006 = vmatmul.mubr.f32.gmra.mrb[0].mxu0 %v3465
    %v4007 = vpop.f32.mrb[0].mxu0
    %v4008 = vadd.f32 0.0, %v4007
    %v4009 = vpop.f32.mrb[0].mxu0
    %4010 = vmatprep.mubr.f32.mxu0 0.0
    %4011 = vmatmul.mubr.f32.gmra.mrb[0].mxu0 %v3466
    %v4012 = vpop.f32.mrb[0].mxu0
    %v4013 = vadd.f32 0.0, %v4012
    %v4014 = vpop.f32.mrb[0].mxu0
    %4015 = vmatprep.mubr.f32.mxu0 0.0
    %4016 = vmatmul.mubr.f32.gmra.mrb[0].mxu0 %v3467
    %v4017 = vpop.f32.mrb[0].mxu0
    %v4018 = vadd.f32 0.0, %v4017
    %v4019 = vpop.f32.mrb[0].mxu0
    %4020 = vmatprep.mubr.f32.mxu0 0.0
    %4021 = vmatmul.mubr.f32.gmra.mrb[0].mxu0 %v3468
    %v4022 = vpop.f32.mrb[0].mxu0
    %v4023 = vadd.f32 0.0, %v4022
    %v4024 = vpop.f32.mrb[0].mxu0
    %4025 = vmatprep.mubr.f32.mxu0 0.0
    %4026 = vmatmul.mubr.f32.gmra.mrb[0].mxu0 %v3469
    %v4027 = vpop.f32.mrb[0].mxu0
    %v4028 = vadd.f32 0.0, %v4027
    %v4029 = vpop.f32.mrb[0].mxu0
    %4030 = vmatprep.mubr.f32.mxu0 0.0
    %4031 = vmatmul.mubr.f32.gmra.mrb[0].mxu0 %v3470
    %v4032 = vpop.f32.mrb[0].mxu0
    %v4033 = vadd.f32 0.0, %v4032
    %v4034 = vpop.f32.mrb[0].mxu0
    %4035 = vmatprep.mubr.f32.mxu0 0.0
    %4036 = vmatmul.mubr.f32.gmra.mrb[0].mxu0 %v3471
    %v4037 = vpop.f32.mrb[0].mxu0
    %v4038 = vadd.f32 0.0, %v4037
    %v4039 = vpop.f32.mrb[0].mxu0
    %4040 = vmatprep.mubr.f32.mxu0 0.0
    %4041 = vmatmul.mubr.f32.gmra.mrb[0].mxu0 %v3472
    %v4042 = vpop.f32.mrb[0].mxu0
    %v4043 = vadd.f32 0.0, %v4042
    %v4044 = vpop.f32.mrb[0].mxu0
    %4045 = vmatprep.mubr.f32.mxu0 0.0
    %4046 = vmatmul.mubr.f32.gmra.mrb[0].mxu0 %v3473
    %v4047 = vpop.f32.mrb[0].mxu0
    %v4048 = vadd.f32 0.0, %v4047
    %v4049 = vpop.f32.mrb[0].mxu0
    %4050 = vmatprep.mubr.f32.mxu0 0.0
    %4051 = vmatmul.mubr.f32.gmra.mrb[0].mxu0 %v3474
    %v4052 = vpop.f32.mrb[0].mxu0
    %v4053 = vadd.f32 0.0, %v4052
    %v4054 = vpop.f32.mrb[0].mxu0
    %4055 = vmatprep.mubr.f32.mxu0 0.0
    %4056 = vmatmul.mubr.f32.gmra.mrb[0].mxu0 %v3475
    %v4057 = vpop.f32.mrb[0].mxu0
    %v4058 = vadd.f32 0.0, %v4057
    %v4059 = vpop.f32.mrb[0].mxu0
    %4060 = vmatprep.mubr.f32.mxu0 0.0
    %4061 = vmatmul.mubr.f32.gmra.mrb[0].mxu0 %v3476
    %v4062 = vpop.f32.mrb[0].mxu0
    %v4063 = vadd.f32 0.0, %v4062
    %v4064 = vpop.f32.mrb[0].mxu0
    %4065 = vmatprep.mubr.f32.mxu0 0.0
    %4066 = vmatmul.mubr.f32.gmra.mrb[0].mxu0 %v3477
    %v4067 = vpop.f32.mrb[0].mxu0
    %v4068 = vadd.f32 0.0, %v4067
    %v4069 = vpop.f32.mrb[0].mxu0
    %4070 = vmatprep.mubr.f32.mxu0 0.0
    %4071 = vmatmul.mubr.f32.gmra.mrb[0].mxu0 %v3478
    %v4072 = vpop.f32.mrb[0].mxu0
    %v4073 = vadd.f32 0.0, %v4072
    %v4074 = vpop.f32.mrb[0].mxu0
    %4075 = vmatprep.mubr.f32.mxu0 0.0
    %4076 = vmatmul.mubr.f32.gmra.mrb[0].mxu0 %v3479
    %v4077 = vpop.f32.mrb[0].mxu0
    %v4078 = vadd.f32 0.0, %v4077
    %v4079 = vpop.f32.mrb[0].mxu0
    %4080 = vmatprep.mubr.f32.mxu0 0.0
    %4081 = vmatmul.mubr.f32.gmra.mrb[0].mxu0 %v3480
    %v4082 = vpop.f32.mrb[0].mxu0
    %v4083 = vadd.f32 0.0, %v4082
    %v4084 = vpop.f32.mrb[0].mxu0
    %4085 = vmatprep.mubr.f32.mxu0 0.0
    %4086 = vmatmul.mubr.f32.gmra.mrb[0].mxu0 %v3481
    %v4087 = vpop.f32.mrb[0].mxu0
    %v4088 = vadd.f32 0.0, %v4087
    %v4089 = vpop.f32.mrb[0].mxu0
    %4090 = vmatprep.mubr.f32.mxu0 0.0
    %4091 = vmatmul.mubr.f32.gmra.mrb[0].mxu0 %v3482
    %v4092 = vpop.f32.mrb[0].mxu0
    %v4093 = vadd.f32 0.0, %v4092
    %v4094 = vpop.f32.mrb[0].mxu0
    %4095 = vmatprep.mubr.f32.mxu0 0.0
    %4096 = vmatmul.mubr.f32.gmra.mrb[0].mxu0 %v3483
    %v4097 = vpop.f32.mrb[0].mxu0
    %v4098 = vadd.f32 0.0, %v4097
    %v4099 = vpop.f32.mrb[0].mxu0
    %4100 = vmatprep.mubr.f32.mxu0 0.0
    %4101 = vmatmul.mubr.f32.gmra.mrb[0].mxu0 %v3484
    %v4102 = vpop.f32.mrb[0].mxu0
    %v4103 = vadd.f32 0.0, %v4102
    %v4104 = vpop.f32.mrb[0].mxu0
    %4105 = vmatprep.mubr.f32.mxu0 0.0
    %4106 = vmatmul.mubr.f32.gmra.mrb[0].mxu0 %v3485
    %v4107 = vpop.f32.mrb[0].mxu0
    %v4108 = vadd.f32 0.0, %v4107
    %v4109 = vpop.f32.mrb[0].mxu0
    %4110 = vmatprep.mubr.f32.mxu0 0.0
    %4111 = vmatmul.mubr.f32.gmra.mrb[0].mxu0 %v3486
    %v4112 = vpop.f32.mrb[0].mxu0
    %v4113 = vadd.f32 0.0, %v4112
    %v4114 = vpop.f32.mrb[0].mxu0
    %4115 = vmatprep.mubr.f32.mxu0 0.0
    %4116 = vmatmul.mubr.f32.gmra.mrb[0].mxu0 %v3487
    %v4117 = vpop.f32.mrb[0].mxu0
    %v4118 = vadd.f32 0.0, %v4117
    %v4119 = vpop.f32.mrb[0].mxu0
    %4120 = vmatprep.mubr.f32.mxu0 0.0
    %4121 = vmatmul.mubr.f32.gmra.mrb[0].mxu0 %v3488
    %v4122 = vpop.f32.mrb[0].mxu0
    %v4123 = vadd.f32 0.0, %v4122
    %v4124 = vpop.f32.mrb[0].mxu0
    %4125 = vmatprep.mubr.f32.mxu0 0.0
    %4126 = vmatmul.mubr.f32.gmra.mrb[0].mxu0 %v3489
    %v4127 = vpop.f32.mrb[0].mxu0
    %v4128 = vadd.f32 0.0, %v4127
    %v4129 = vpop.f32.mrb[0].mxu0
    %4130 = vmatprep.mubr.f32.mxu0 0.0
    %4131 = vmatmul.mubr.f32.gmra.mrb[0].mxu0 %v3490
    %v4132 = vpop.f32.mrb[0].mxu0
    %v4133 = vadd.f32 0.0, %v4132
    %v4134 = vpop.f32.mrb[0].mxu0
    %4135 = vmatprep.mubr.f32.mxu0 0.0
    %4136 = vmatmul.mubr.f32.gmra.mrb[0].mxu0 %v3491
    %v4137 = vpop.f32.mrb[0].mxu0
    %v4138 = vadd.f32 0.0, %v4137
    %v4139 = vpop.f32.mrb[0].mxu0
    %4140 = vmatprep.mubr.f32.mxu0 0.0
    %4141 = vmatmul.mubr.f32.gmra.mrb[0].mxu0 %v3492
    %v4142 = vpop.f32.mrb[0].mxu0
    %v4143 = vadd.f32 0.0, %v4142
    %v4144 = vpop.f32.mrb[0].mxu0
    %4145 = vmatprep.mubr.f32.mxu0 0.0
    %4146 = vmatmul.mubr.f32.gmra.mrb[0].mxu0 %v3493
    %v4147 = vpop.f32.mrb[0].mxu0
    %v4148 = vadd.f32 0.0, %v4147
    %v4149 = vpop.f32.mrb[0].mxu0
    %4150 = vmatprep.mubr.f32.mxu0 0.0
    %4151 = vmatmul.mubr.f32.gmra.mrb[0].mxu0 %v3494
    %v4152 = vpop.f32.mrb[0].mxu0
    %v4153 = vadd.f32 0.0, %v4152
    %v4154 = vpop.f32.mrb[0].mxu0
    %4155 = vmatprep.mubr.f32.mxu0 0.0
    %4156 = vmatmul.mubr.f32.gmra.mrb[0].mxu0 %v3495
    %v4157 = vpop.f32.mrb[0].mxu0
    %v4158 = vadd.f32 0.0, %v4157
    %v4159 = vpop.f32.mrb[0].mxu0
    %4160 = vmatprep.mubr.f32.mxu0 0.0
    %4161 = vmatmul.mubr.f32.gmra.mrb[0].mxu0 %v3496
    %v4162 = vpop.f32.mrb[0].mxu0
    %v4163 = vadd.f32 0.0, %v4162
    %v4164 = vpop.f32.mrb[0].mxu0
    %4165 = vmatprep.mubr.f32.mxu0 0.0
    %4166 = vmatmul.mubr.f32.gmra.mrb[0].mxu0 %v3497
    %v4167 = vpop.f32.mrb[0].mxu0
    %v4168 = vadd.f32 0.0, %v4167
    %v4169 = vpop.f32.mrb[0].mxu0
    %4170 = vmatprep.mubr.f32.mxu0 0.0
    %4171 = vmatmul.mubr.f32.gmra.mrb[0].mxu0 %v3498
    %v4172 = vpop.f32.mrb[0].mxu0
    %v4173 = vadd.f32 0.0, %v4172
    %v4174 = vpop.f32.mrb[0].mxu0
    %4175 = vmatprep.mubr.f32.mxu0 0.0
    %4176 = vmatmul.mubr.f32.gmra.mrb[0].mxu0 %v3499
    %v4177 = vpop.f32.mrb[0].mxu0
    %v4178 = vadd.f32 0.0, %v4177
    %v4179 = vpop.f32.mrb[0].mxu0
    %4180 = vmatprep.mubr.f32.mxu0 0.0
    %4181 = vmatmul.mubr.f32.gmra.mrb[0].mxu0 %v3500
    %v4182 = vpop.f32.mrb[0].mxu0
    %v4183 = vadd.f32 0.0, %v4182
    %v4184 = vpop.f32.mrb[0].mxu0
    %4185 = vmatprep.mubr.f32.mxu0 0.0
    %4186 = vmatmul.mubr.f32.gmra.mrb[0].mxu0 %v3501
    %v4187 = vpop.f32.mrb[0].mxu0
    %v4188 = vadd.f32 0.0, %v4187
    %v4189 = vpop.f32.mrb[0].mxu0
    %4190 = vmatprep.mubr.f32.mxu0 0.0
    %4191 = vmatmul.mubr.f32.gmra.mrb[0].mxu0 %v3502
    %v4192 = vpop.f32.mrb[0].mxu0
    %v4193 = vadd.f32 0.0, %v4192
    %v4194 = vpop.f32.mrb[0].mxu0
    %4195 = vmatprep.mubr.f32.mxu0 0.0
    %4196 = vmatmul.mubr.f32.gmra.mrb[0].mxu0 %v3503
    %v4197 = vpop.f32.mrb[0].mxu0
    %v4198 = vadd.f32 0.0, %v4197
    %v4199 = vpop.f32.mrb[0].mxu0
    %4200 = vmatprep.mubr.f32.mxu0 0.0
    %4201 = vmatmul.mubr.f32.gmra.mrb[0].mxu0 %v3504
    %v4202 = vpop.f32.mrb[0].mxu0
    %v4203 = vadd.f32 0.0, %v4202
    %v4204 = vpop.f32.mrb[0].mxu0
    %4205 = vmatprep.mubr.f32.mxu0 0.0
    %4206 = vmatmul.mubr.f32.gmra.mrb[0].mxu0 %v3505
    %v4207 = vpop.f32.mrb[0].mxu0
    %v4208 = vadd.f32 0.0, %v4207
    %v4209 = vpop.f32.mrb[0].mxu0
    %4210 = vmatprep.mubr.f32.mxu0 0.0
    %4211 = vmatmul.mubr.f32.gmra.mrb[0].mxu0 %v3506
    %v4212 = vpop.f32.mrb[0].mxu0
    %v4213 = vadd.f32 0.0, %v4212
    %v4214 = vpop.f32.mrb[0].mxu0
    %4215 = vmatprep.mubr.f32.mxu0 0.0
    %4216 = vmatmul.mubr.f32.gmra.mrb[0].mxu0 %v3507
    %v4217 = vpop.f32.mrb[0].mxu0
    %v4218 = vadd.f32 0.0, %v4217
    %v4219 = vpop.f32.mrb[0].mxu0
    %4220 = vmatprep.mubr.f32.mxu0 0.0
    %4221 = vmatmul.mubr.f32.gmra.mrb[0].mxu0 %v3508
    %v4222 = vpop.f32.mrb[0].mxu0
    %v4223 = vadd.f32 0.0, %v4222
    %v4224 = vpop.f32.mrb[0].mxu0
    %4225 = vmatprep.mubr.f32.mxu0 0.0
    %4226 = vmatmul.mubr.f32.gmra.mrb[0].mxu0 %v3509
    %v4227 = vpop.f32.mrb[0].mxu0
    %v4228 = vadd.f32 0.0, %v4227
    %v4229 = vpop.f32.mrb[0].mxu0
    %4230 = vmatprep.mubr.f32.mxu0 0.0
    %4231 = vmatmul.mubr.f32.gmra.mrb[0].mxu0 %v3510
    %v4232 = vpop.f32.mrb[0].mxu0
    %v4233 = vadd.f32 0.0, %v4232
    %v4234 = vpop.f32.mrb[0].mxu0
    %4235 = vmatprep.mubr.f32.mxu0 0.0
    %4236 = vmatmul.mubr.f32.gmra.mrb[0].mxu0 %v3511
    %v4237 = vpop.f32.mrb[0].mxu0
    %v4238 = vadd.f32 0.0, %v4237
    %v4239 = vpop.f32.mrb[0].mxu0
    %4240 = vmatprep.mubr.f32.mxu0 0.0
    %4241 = vmatmul.mubr.f32.gmra.mrb[0].mxu0 %v3512
    %v4242 = vpop.f32.mrb[0].mxu0
    %v4243 = vadd.f32 0.0, %v4242
    %v4244 = vpop.f32.mrb[0].mxu0
    %4245 = vmatprep.mubr.f32.mxu0 0.0
    %4246 = vmatmul.mubr.f32.gmra.mrb[0].mxu0 %v3513
    %v4247 = vpop.f32.mrb[0].mxu0
    %v4248 = vadd.f32 0.0, %v4247
    %v4249 = vpop.f32.mrb[0].mxu0
    %4250 = vmatprep.mubr.f32.mxu0 0.0
    %4251 = vmatmul.mubr.f32.gmra.mrb[0].mxu0 %v3514
    %v4252 = vpop.f32.mrb[0].mxu0
    %v4253 = vadd.f32 0.0, %v4252
    %v4254 = vpop.f32.mrb[0].mxu0
    %4255 = vmatprep.mubr.f32.mxu0 0.0
    %4256 = vmatmul.mubr.f32.gmra.mrb[0].mxu0 %v3515
    %v4257 = vpop.f32.mrb[0].mxu0
    %v4258 = vadd.f32 0.0, %v4257
    %v4259 = vpop.f32.mrb[0].mxu0
    %4260 = vmatprep.mubr.f32.mxu0 0.0
    %4261 = vmatmul.mubr.f32.gmra.mrb[0].mxu0 %v3516
    %v4262 = vpop.f32.mrb[0].mxu0
    %v4263 = vadd.f32 0.0, %v4262
    %v4264 = vpop.f32.mrb[0].mxu0
    %4265 = vmatprep.mubr.f32.mxu0 0.0
    %4266 = vmatmul.mubr.f32.gmra.mrb[0].mxu0 %v3517
    %v4267 = vpop.f32.mrb[0].mxu0
    %v4268 = vadd.f32 0.0, %v4267
    %v4269 = vpop.f32.mrb[0].mxu0
    %4270 = vmatprep.mubr.f32.mxu0 0.0
    %4271 = vmatmul.mubr.f32.gmra.mrb[0].mxu0 %v3518
    %v4272 = vpop.f32.mrb[0].mxu0
    %v4273 = vadd.f32 0.0, %v4272
    %v4274 = vpop.f32.mrb[0].mxu0
    %4275 = vmatprep.mubr.f32.mxu0 0.0
    %4276 = vmatmul.mubr.f32.gmra.mrb[0].mxu0 %v3519
    %v4277 = vpop.f32.mrb[0].mxu0
    %v4278 = vadd.f32 0.0, %v4277
    %v4279 = vpop.f32.mrb[0].mxu0
    %4280 = vmatprep.mubr.f32.mxu0 0.0
    %4281 = vmatmul.mubr.f32.gmra.mrb[0].mxu0 %v3520
    %v4282 = vpop.f32.mrb[0].mxu0
    %v4283 = vadd.f32 0.0, %v4282
    %v4284 = vpop.f32.mrb[0].mxu0
    %4285 = vmatprep.mubr.f32.mxu0 0.0
    %4286 = vmatmul.mubr.f32.gmra.mrb[0].mxu0 %v3521
    %v4287 = vpop.f32.mrb[0].mxu0
    %v4288 = vadd.f32 0.0, %v4287
    %v4289 = vpop.f32.mrb[0].mxu0
    %4290 = vmatprep.mubr.f32.mxu0 0.0
    %4291 = vmatmul.mubr.f32.gmra.mrb[0].mxu0 %v3522
    %v4292 = vpop.f32.mrb[0].mxu0
    %v4293 = vadd.f32 0.0, %v4292
    %v4294 = vpop.f32.mrb[0].mxu0
    %4295 = vmatprep.mubr.f32.mxu0 0.0
    %4296 = vmatmul.mubr.f32.gmra.mrb[0].mxu0 %v3523
    %v4297 = vpop.f32.mrb[0].mxu0
    %v4298 = vadd.f32 0.0, %v4297
    %v4299 = vpop.f32.mrb[0].mxu0
    %4300 = vmatprep.mubr.f32.mxu0 0.0
    %4301 = vmatmul.mubr.f32.gmra.mrb[0].mxu0 %v3524
    %v4302 = vpop.f32.mrb[0].mxu0
    %v4303 = vadd.f32 0.0, %v4302
    %v4304 = vpop.f32.mrb[0].mxu0
    %4305 = vmatprep.mubr.f32.mxu0 0.0
    %4306 = vmatmul.mubr.f32.gmra.mrb[0].mxu0 %v3525
    %v4307 = vpop.f32.mrb[0].mxu0
    %v4308 = vadd.f32 0.0, %v4307
    %v4309 = vpop.f32.mrb[0].mxu0
    %4310 = vdwg.mxu0
    %v4311 = vld [vmem:[%s7] sm:$0xff]
    %v4312 = vld [vmem:[%s7 + $0x8] sm:$0xff]
    %v4313 = vld [vmem:[%s7 + $0x10] sm:$0xff]
    %v4314 = vld [vmem:[%s7 + $0x18] sm:$0xff]
    %v4315 = vld [vmem:[%s7 + $0x20] sm:$0xff]
    %v4316 = vld [vmem:[%s7 + $0x28] sm:$0xff]
    %v4317 = vld [vmem:[%s7 + $0x30] sm:$0xff]
    %v4318 = vld [vmem:[%s7 + $0x38] sm:$0xff]
    %s4319 = scalar_lea.vmem %s7, 64
    %v4320 = vld [vmem:[%s4319] sm:$0xff]
    %v4321 = vld [vmem:[%s4319 + $0x8] sm:$0xff]
    %v4322 = vld [vmem:[%s4319 + $0x10] sm:$0xff]
    %v4323 = vld [vmem:[%s4319 + $0x18] sm:$0xff]
    %v4324 = vld [vmem:[%s4319 + $0x20] sm:$0xff]
    %v4325 = vld [vmem:[%s4319 + $0x28] sm:$0xff]
    %v4326 = vld [vmem:[%s4319 + $0x30] sm:$0xff]
    %v4327 = vld [vmem:[%s4319 + $0x38] sm:$0xff]
    %v4329 = vsel %vm3172, %v3673, 0
    %v4332 = vsel %vm3172, %v3678, 0
    %v4335 = vsel %vm3172, %v3683, 0
    %v4338 = vsel %vm3172, %v3688, 0
    %v4341 = vsel %vm3172, %v3693, 0
    %v4344 = vsel %vm3172, %v3698, 0
    %v4347 = vsel %vm3172, %v3703, 0
    %v4350 = vsel %vm3172, %v3708, 0
    %v4353 = vsel %vm3172, %v3713, 0
    %v4356 = vsel %vm3172, %v3718, 0
    %v4359 = vsel %vm3172, %v3723, 0
    %v4362 = vsel %vm3172, %v3728, 0
    %v4365 = vsel %vm3172, %v3733, 0
    %v4368 = vsel %vm3172, %v3738, 0
    %v4371 = vsel %vm3172, %v3743, 0
    %v4374 = vsel %vm3172, %v3748, 0
    %4376 = vmatprep.subr.mxu0 0.0
    %4377 = vmatpush1.msra.mxu0 %v4320
    %4378 = vmatprep.subr.mxu0 0.0
    %4379 = vmatpush1.msra.mxu0 %v4321
    %4380 = vmatprep.subr.mxu0 0.0
    %4381 = vmatpush1.msra.mxu0 %v4322
    %4382 = vmatprep.subr.mxu0 0.0
    %4383 = vmatpush1.msra.mxu0 %v4323
    %4384 = vmatprep.subr.mxu0 0.0
    %4385 = vmatpush1.msra.mxu0 %v4324
    %4386 = vmatprep.subr.mxu0 0.0
    %4387 = vmatpush1.msra.mxu0 %v4325
    %4388 = vmatprep.subr.mxu0 0.0
    %4389 = vmatpush1.msra.mxu0 %v4326
    %4390 = vmatprep.subr.mxu0 0.0
    %4391 = vmatpush1.msra.mxu0 %v4327
    %4392 = vmatprep.subr.mxu0 0.0
    %4393 = vmatpush1.msra.mxu0 0.0
    %4394 = vmatprep.subr.mxu0 0.0
    %4395 = vmatpush1.msra.mxu0 0.0
    %4396 = vmatprep.subr.mxu0 0.0
    %4397 = vmatpush1.msra.mxu0 0.0
    %4398 = vmatprep.subr.mxu0 0.0
    %4399 = vmatpush1.msra.mxu0 0.0
    %4400 = vmatprep.subr.mxu0 0.0
    %4401 = vmatpush1.msra.mxu0 0.0
    %4402 = vmatprep.subr.mxu0 0.0
    %4403 = vmatpush1.msra.mxu0 0.0
    %4404 = vmatprep.subr.mxu0 0.0
    %4405 = vmatpush1.msra.mxu0 0.0
    %4406 = vmatprep.subr.mxu0 0.0
    %4407 = vmatpush1.msra.mxu0 0.0
    %4408 = vmatprep.subr.mxu0 0.0
    %4409 = vmatpush1.msra.mxu0 0.0
    %4410 = vmatprep.subr.mxu0 0.0
    %4411 = vmatpush1.msra.mxu0 0.0
    %4412 = vmatprep.subr.mxu0 0.0
    %4413 = vmatpush1.msra.mxu0 0.0
    %4414 = vmatprep.subr.mxu0 0.0
    %4415 = vmatpush1.msra.mxu0 0.0
    %4416 = vmatprep.subr.mxu0 0.0
    %4417 = vmatpush1.msra.mxu0 0.0
    %4418 = vmatprep.subr.mxu0 0.0
    %4419 = vmatpush1.msra.mxu0 0.0
    %4420 = vmatprep.subr.mxu0 0.0
    %4421 = vmatpush1.msra.mxu0 0.0
    %4422 = vmatprep.subr.mxu0 0.0
    %4423 = vmatpush1.msra.mxu0 0.0
    %4424 = vmatprep.subr.mxu0 0.0
    %4425 = vmatpush1.msra.mxu0 0.0
    %4426 = vmatprep.subr.mxu0 0.0
    %4427 = vmatpush1.msra.mxu0 0.0
    %4428 = vmatprep.subr.mxu0 0.0
    %4429 = vmatpush1.msra.mxu0 0.0
    %4430 = vmatprep.subr.mxu0 0.0
    %4431 = vmatpush1.msra.mxu0 0.0
    %4432 = vmatprep.subr.mxu0 0.0
    %4433 = vmatpush1.msra.mxu0 0.0
    %4434 = vmatprep.subr.mxu0 0.0
    %4435 = vmatpush1.msra.mxu0 0.0
    %4436 = vmatprep.subr.mxu0 0.0
    %4437 = vmatpush1.msra.mxu0 0.0
    %4438 = vmatprep.subr.mxu0 0.0
    %4439 = vmatpush1.msra.mxu0 0.0
    %4440 = vmatprep.mubr.f32.mxu0 0.0
    %4441 = vmatmul.mubr.f32.gmra.mrb[0].mxu0 %v4329
    %v4442 = vpop.f32.mrb[0].mxu0
    %v4443 = vadd.f32 0.0, %v4442
    %v4444 = vpop.f32.mrb[0].mxu0
    %4445 = vmatprep.mubr.f32.mxu0 0.0
    %4446 = vmatmul.mubr.f32.gmra.mrb[0].mxu0 %v4332
    %v4447 = vpop.f32.mrb[0].mxu0
    %v4448 = vadd.f32 0.0, %v4447
    %v4449 = vpop.f32.mrb[0].mxu0
    %4450 = vmatprep.mubr.f32.mxu0 0.0
    %4451 = vmatmul.mubr.f32.gmra.mrb[0].mxu0 %v4335
    %v4452 = vpop.f32.mrb[0].mxu0
    %v4453 = vadd.f32 0.0, %v4452
    %v4454 = vpop.f32.mrb[0].mxu0
    %4455 = vmatprep.mubr.f32.mxu0 0.0
    %4456 = vmatmul.mubr.f32.gmra.mrb[0].mxu0 %v4338
    %v4457 = vpop.f32.mrb[0].mxu0
    %v4458 = vadd.f32 0.0, %v4457
    %v4459 = vpop.f32.mrb[0].mxu0
    %4460 = vmatprep.mubr.f32.mxu0 0.0
    %4461 = vmatmul.mubr.f32.gmra.mrb[0].mxu0 %v4341
    %v4462 = vpop.f32.mrb[0].mxu0
    %v4463 = vadd.f32 0.0, %v4462
    %v4464 = vpop.f32.mrb[0].mxu0
    %4465 = vmatprep.mubr.f32.mxu0 0.0
    %4466 = vmatmul.mubr.f32.gmra.mrb[0].mxu0 %v4344
    %v4467 = vpop.f32.mrb[0].mxu0
    %v4468 = vadd.f32 0.0, %v4467
    %v4469 = vpop.f32.mrb[0].mxu0
    %4470 = vmatprep.mubr.f32.mxu0 0.0
    %4471 = vmatmul.mubr.f32.gmra.mrb[0].mxu0 %v4347
    %v4472 = vpop.f32.mrb[0].mxu0
    %v4473 = vadd.f32 0.0, %v4472
    %v4474 = vpop.f32.mrb[0].mxu0
    %4475 = vmatprep.mubr.f32.mxu0 0.0
    %4476 = vmatmul.mubr.f32.gmra.mrb[0].mxu0 %v4350
    %v4477 = vpop.f32.mrb[0].mxu0
    %v4478 = vadd.f32 0.0, %v4477
    %v4479 = vpop.f32.mrb[0].mxu0
    %4480 = vmatprep.mubr.f32.mxu0 0.0
    %4481 = vmatmul.mubr.f32.gmra.mrb[0].mxu0 %v4353
    %v4482 = vpop.f32.mrb[0].mxu0
    %v4483 = vadd.f32 0.0, %v4482
    %v4484 = vpop.f32.mrb[0].mxu0
    %4485 = vmatprep.mubr.f32.mxu0 0.0
    %4486 = vmatmul.mubr.f32.gmra.mrb[0].mxu0 %v4356
    %v4487 = vpop.f32.mrb[0].mxu0
    %v4488 = vadd.f32 0.0, %v4487
    %v4489 = vpop.f32.mrb[0].mxu0
    %4490 = vmatprep.mubr.f32.mxu0 0.0
    %4491 = vmatmul.mubr.f32.gmra.mrb[0].mxu0 %v4359
    %v4492 = vpop.f32.mrb[0].mxu0
    %v4493 = vadd.f32 0.0, %v4492
    %v4494 = vpop.f32.mrb[0].mxu0
    %4495 = vmatprep.mubr.f32.mxu0 0.0
    %4496 = vmatmul.mubr.f32.gmra.mrb[0].mxu0 %v4362
    %v4497 = vpop.f32.mrb[0].mxu0
    %v4498 = vadd.f32 0.0, %v4497
    %v4499 = vpop.f32.mrb[0].mxu0
    %4500 = vmatprep.mubr.f32.mxu0 0.0
    %4501 = vmatmul.mubr.f32.gmra.mrb[0].mxu0 %v4365
    %v4502 = vpop.f32.mrb[0].mxu0
    %v4503 = vadd.f32 0.0, %v4502
    %v4504 = vpop.f32.mrb[0].mxu0
    %4505 = vmatprep.mubr.f32.mxu0 0.0
    %4506 = vmatmul.mubr.f32.gmra.mrb[0].mxu0 %v4368
    %v4507 = vpop.f32.mrb[0].mxu0
    %v4508 = vadd.f32 0.0, %v4507
    %v4509 = vpop.f32.mrb[0].mxu0
    %4510 = vmatprep.mubr.f32.mxu0 0.0
    %4511 = vmatmul.mubr.f32.gmra.mrb[0].mxu0 %v4371
    %v4512 = vpop.f32.mrb[0].mxu0
    %v4513 = vadd.f32 0.0, %v4512
    %v4514 = vpop.f32.mrb[0].mxu0
    %4515 = vmatprep.mubr.f32.mxu0 0.0
    %4516 = vmatmul.mubr.f32.gmra.mrb[0].mxu0 %v4374
    %v4517 = vpop.f32.mrb[0].mxu0
    %v4518 = vadd.f32 0.0, %v4517
    %v4519 = vpop.f32.mrb[0].mxu0
    %4520 = vdwg.mxu0
    %v4522 = vsel %vm3172, %v3593, 0
    %v4525 = vsel %vm3172, %v3598, 0
    %v4528 = vsel %vm3172, %v3603, 0
    %v4531 = vsel %vm3172, %v3608, 0
    %v4534 = vsel %vm3172, %v3613, 0
    %v4537 = vsel %vm3172, %v3618, 0
    %v4540 = vsel %vm3172, %v3623, 0
    %v4543 = vsel %vm3172, %v3628, 0
    %v4546 = vsel %vm3172, %v3633, 0
    %v4549 = vsel %vm3172, %v3638, 0
    %v4552 = vsel %vm3172, %v3643, 0
    %v4555 = vsel %vm3172, %v3648, 0
    %v4558 = vsel %vm3172, %v3653, 0
    %v4561 = vsel %vm3172, %v3658, 0
    %v4564 = vsel %vm3172, %v3663, 0
    %v4567 = vsel %vm3172, %v3668, 0
    %4569 = vmatprep.subr.mxu0 0.0
    %4570 = vmatpush1.msra.mxu0 %v4311
    %4571 = vmatprep.subr.mxu0 0.0
    %4572 = vmatpush1.msra.mxu0 %v4312
    %4573 = vmatprep.subr.mxu0 0.0
    %4574 = vmatpush1.msra.mxu0 %v4313
    %4575 = vmatprep.subr.mxu0 0.0
    %4576 = vmatpush1.msra.mxu0 %v4314
    %4577 = vmatprep.subr.mxu0 0.0
    %4578 = vmatpush1.msra.mxu0 %v4315
    %4579 = vmatprep.subr.mxu0 0.0
    %4580 = vmatpush1.msra.mxu0 %v4316
    %4581 = vmatprep.subr.mxu0 0.0
    %4582 = vmatpush1.msra.mxu0 %v4317
    %4583 = vmatprep.subr.mxu0 0.0
    %4584 = vmatpush1.msra.mxu0 %v4318
    %4585 = vmatprep.subr.mxu0 0.0
    %4586 = vmatpush1.msra.mxu0 0.0
    %4587 = vmatprep.subr.mxu0 0.0
    %4588 = vmatpush1.msra.mxu0 0.0
    %4589 = vmatprep.subr.mxu0 0.0
    %4590 = vmatpush1.msra.mxu0 0.0
    %4591 = vmatprep.subr.mxu0 0.0
    %4592 = vmatpush1.msra.mxu0 0.0
    %4593 = vmatprep.subr.mxu0 0.0
    %4594 = vmatpush1.msra.mxu0 0.0
    %4595 = vmatprep.subr.mxu0 0.0
    %4596 = vmatpush1.msra.mxu0 0.0
    %4597 = vmatprep.subr.mxu0 0.0
    %4598 = vmatpush1.msra.mxu0 0.0
    %4599 = vmatprep.subr.mxu0 0.0
    %4600 = vmatpush1.msra.mxu0 0.0
    %4601 = vmatprep.subr.mxu0 0.0
    %4602 = vmatpush1.msra.mxu0 0.0
    %4603 = vmatprep.subr.mxu0 0.0
    %4604 = vmatpush1.msra.mxu0 0.0
    %4605 = vmatprep.subr.mxu0 0.0
    %4606 = vmatpush1.msra.mxu0 0.0
    %4607 = vmatprep.subr.mxu0 0.0
    %4608 = vmatpush1.msra.mxu0 0.0
    %4609 = vmatprep.subr.mxu0 0.0
    %4610 = vmatpush1.msra.mxu0 0.0
    %4611 = vmatprep.subr.mxu0 0.0
    %4612 = vmatpush1.msra.mxu0 0.0
    %4613 = vmatprep.subr.mxu0 0.0
    %4614 = vmatpush1.msra.mxu0 0.0
    %4615 = vmatprep.subr.mxu0 0.0
    %4616 = vmatpush1.msra.mxu0 0.0
    %4617 = vmatprep.subr.mxu0 0.0
    %4618 = vmatpush1.msra.mxu0 0.0
    %4619 = vmatprep.subr.mxu0 0.0
    %4620 = vmatpush1.msra.mxu0 0.0
    %4621 = vmatprep.subr.mxu0 0.0
    %4622 = vmatpush1.msra.mxu0 0.0
    %4623 = vmatprep.subr.mxu0 0.0
    %4624 = vmatpush1.msra.mxu0 0.0
    %4625 = vmatprep.subr.mxu0 0.0
    %4626 = vmatpush1.msra.mxu0 0.0
    %4627 = vmatprep.subr.mxu0 0.0
    %4628 = vmatpush1.msra.mxu0 0.0
    %4629 = vmatprep.subr.mxu0 0.0
    %4630 = vmatpush1.msra.mxu0 0.0
    %4631 = vmatprep.subr.mxu0 0.0
    %4632 = vmatpush1.msra.mxu0 0.0
    %4633 = vmatprep.mubr.f32.mxu0 0.0
    %4634 = vmatmul.mubr.f32.gmra.mrb[0].mxu0 %v4522
    %v4635 = vpop.f32.mrb[0].mxu0
    %v4636 = vadd.f32 %v4443, %v4635
    %v4637 = vpop.f32.mrb[0].mxu0
    %4638 = vmatprep.mubr.f32.mxu0 0.0
    %4639 = vmatmul.mubr.f32.gmra.mrb[0].mxu0 %v4525
    %v4640 = vpop.f32.mrb[0].mxu0
    %v4641 = vadd.f32 %v4448, %v4640
    %v4642 = vpop.f32.mrb[0].mxu0
    %4643 = vmatprep.mubr.f32.mxu0 0.0
    %4644 = vmatmul.mubr.f32.gmra.mrb[0].mxu0 %v4528
    %v4645 = vpop.f32.mrb[0].mxu0
    %v4646 = vadd.f32 %v4453, %v4645
    %v4647 = vpop.f32.mrb[0].mxu0
    %4648 = vmatprep.mubr.f32.mxu0 0.0
    %4649 = vmatmul.mubr.f32.gmra.mrb[0].mxu0 %v4531
    %v4650 = vpop.f32.mrb[0].mxu0
    %v4651 = vadd.f32 %v4458, %v4650
    %v4652 = vpop.f32.mrb[0].mxu0
    %4653 = vmatprep.mubr.f32.mxu0 0.0
    %4654 = vmatmul.mubr.f32.gmra.mrb[0].mxu0 %v4534
    %v4655 = vpop.f32.mrb[0].mxu0
    %v4656 = vadd.f32 %v4463, %v4655
    %v4657 = vpop.f32.mrb[0].mxu0
    %4658 = vmatprep.mubr.f32.mxu0 0.0
    %4659 = vmatmul.mubr.f32.gmra.mrb[0].mxu0 %v4537
    %v4660 = vpop.f32.mrb[0].mxu0
    %v4661 = vadd.f32 %v4468, %v4660
    %v4662 = vpop.f32.mrb[0].mxu0
    %4663 = vmatprep.mubr.f32.mxu0 0.0
    %4664 = vmatmul.mubr.f32.gmra.mrb[0].mxu0 %v4540
    %v4665 = vpop.f32.mrb[0].mxu0
    %v4666 = vadd.f32 %v4473, %v4665
    %v4667 = vpop.f32.mrb[0].mxu0
    %4668 = vmatprep.mubr.f32.mxu0 0.0
    %4669 = vmatmul.mubr.f32.gmra.mrb[0].mxu0 %v4543
    %v4670 = vpop.f32.mrb[0].mxu0
    %v4671 = vadd.f32 %v4478, %v4670
    %v4672 = vpop.f32.mrb[0].mxu0
    %4673 = vmatprep.mubr.f32.mxu0 0.0
    %4674 = vmatmul.mubr.f32.gmra.mrb[0].mxu0 %v4546
    %v4675 = vpop.f32.mrb[0].mxu0
    %v4676 = vadd.f32 %v4483, %v4675
    %v4677 = vpop.f32.mrb[0].mxu0
    %4678 = vmatprep.mubr.f32.mxu0 0.0
    %4679 = vmatmul.mubr.f32.gmra.mrb[0].mxu0 %v4549
    %v4680 = vpop.f32.mrb[0].mxu0
    %v4681 = vadd.f32 %v4488, %v4680
    %v4682 = vpop.f32.mrb[0].mxu0
    %4683 = vmatprep.mubr.f32.mxu0 0.0
    %4684 = vmatmul.mubr.f32.gmra.mrb[0].mxu0 %v4552
    %v4685 = vpop.f32.mrb[0].mxu0
    %v4686 = vadd.f32 %v4493, %v4685
    %v4687 = vpop.f32.mrb[0].mxu0
    %4688 = vmatprep.mubr.f32.mxu0 0.0
    %4689 = vmatmul.mubr.f32.gmra.mrb[0].mxu0 %v4555
    %v4690 = vpop.f32.mrb[0].mxu0
    %v4691 = vadd.f32 %v4498, %v4690
    %v4692 = vpop.f32.mrb[0].mxu0
    %4693 = vmatprep.mubr.f32.mxu0 0.0
    %4694 = vmatmul.mubr.f32.gmra.mrb[0].mxu0 %v4558
    %v4695 = vpop.f32.mrb[0].mxu0
    %v4696 = vadd.f32 %v4503, %v4695
    %v4697 = vpop.f32.mrb[0].mxu0
    %4698 = vmatprep.mubr.f32.mxu0 0.0
    %4699 = vmatmul.mubr.f32.gmra.mrb[0].mxu0 %v4561
    %v4700 = vpop.f32.mrb[0].mxu0
    %v4701 = vadd.f32 %v4508, %v4700
    %v4702 = vpop.f32.mrb[0].mxu0
    %4703 = vmatprep.mubr.f32.mxu0 0.0
    %4704 = vmatmul.mubr.f32.gmra.mrb[0].mxu0 %v4564
    %v4705 = vpop.f32.mrb[0].mxu0
    %v4706 = vadd.f32 %v4513, %v4705
    %v4707 = vpop.f32.mrb[0].mxu0
    %4708 = vmatprep.mubr.f32.mxu0 0.0
    %4709 = vmatmul.mubr.f32.gmra.mrb[0].mxu0 %v4567
    %v4710 = vpop.f32.mrb[0].mxu0
    %v4711 = vadd.f32 %v4518, %v4710
    %v4712 = vpop.f32.mrb[0].mxu0
    %4713 = vdwg.mxu0
    %s4714 = scalar_lea.vmem %s7, 128
    %v4715 = vld [vmem:[%s4714] sm:$0xff]
    %v4716 = vld [vmem:[%s4714 + $0x8] sm:$0xff]
    %v4717 = vld [vmem:[%s4714 + $0x10] sm:$0xff]
    %v4718 = vld [vmem:[%s4714 + $0x18] sm:$0xff]
    %v4719 = vld [vmem:[%s4714 + $0x20] sm:$0xff]
    %v4720 = vld [vmem:[%s4714 + $0x28] sm:$0xff]
    %v4721 = vld [vmem:[%s4714 + $0x30] sm:$0xff]
    %v4722 = vld [vmem:[%s4714 + $0x38] sm:$0xff]
    %v4724 = vsel %vm3172, %v3753, 0
    %v4727 = vsel %vm3172, %v3758, 0
    %v4730 = vsel %vm3172, %v3763, 0
    %v4733 = vsel %vm3172, %v3768, 0
    %v4736 = vsel %vm3172, %v3773, 0
    %v4739 = vsel %vm3172, %v3778, 0
    %v4742 = vsel %vm3172, %v3783, 0
    %v4745 = vsel %vm3172, %v3788, 0
    %v4748 = vsel %vm3172, %v3793, 0
    %v4751 = vsel %vm3172, %v3798, 0
    %v4754 = vsel %vm3172, %v3803, 0
    %v4757 = vsel %vm3172, %v3808, 0
    %v4760 = vsel %vm3172, %v3813, 0
    %v4763 = vsel %vm3172, %v3818, 0
    %v4766 = vsel %vm3172, %v3823, 0
    %v4769 = vsel %vm3172, %v3828, 0
    %4771 = vmatprep.subr.mxu0 0.0
    %4772 = vmatpush1.msra.mxu0 %v4715
    %4773 = vmatprep.subr.mxu0 0.0
    %4774 = vmatpush1.msra.mxu0 %v4716
    %4775 = vmatprep.subr.mxu0 0.0
    %4776 = vmatpush1.msra.mxu0 %v4717
    %4777 = vmatprep.subr.mxu0 0.0
    %4778 = vmatpush1.msra.mxu0 %v4718
    %4779 = vmatprep.subr.mxu0 0.0
    %4780 = vmatpush1.msra.mxu0 %v4719
    %4781 = vmatprep.subr.mxu0 0.0
    %4782 = vmatpush1.msra.mxu0 %v4720
    %4783 = vmatprep.subr.mxu0 0.0
    %4784 = vmatpush1.msra.mxu0 %v4721
    %4785 = vmatprep.subr.mxu0 0.0
    %4786 = vmatpush1.msra.mxu0 %v4722
    %4787 = vmatprep.subr.mxu0 0.0
    %4788 = vmatpush1.msra.mxu0 0.0
    %4789 = vmatprep.subr.mxu0 0.0
    %4790 = vmatpush1.msra.mxu0 0.0
    %4791 = vmatprep.subr.mxu0 0.0
    %4792 = vmatpush1.msra.mxu0 0.0
    %4793 = vmatprep.subr.mxu0 0.0
    %4794 = vmatpush1.msra.mxu0 0.0
    %4795 = vmatprep.subr.mxu0 0.0
    %4796 = vmatpush1.msra.mxu0 0.0
    %4797 = vmatprep.subr.mxu0 0.0
    %4798 = vmatpush1.msra.mxu0 0.0
    %4799 = vmatprep.subr.mxu0 0.0
    %4800 = vmatpush1.msra.mxu0 0.0
    %4801 = vmatprep.subr.mxu0 0.0
    %4802 = vmatpush1.msra.mxu0 0.0
    %4803 = vmatprep.subr.mxu0 0.0
    %4804 = vmatpush1.msra.mxu0 0.0
    %4805 = vmatprep.subr.mxu0 0.0
    %4806 = vmatpush1.msra.mxu0 0.0
    %4807 = vmatprep.subr.mxu0 0.0
    %4808 = vmatpush1.msra.mxu0 0.0
    %4809 = vmatprep.subr.mxu0 0.0
    %4810 = vmatpush1.msra.mxu0 0.0
    %4811 = vmatprep.subr.mxu0 0.0
    %4812 = vmatpush1.msra.mxu0 0.0
    %4813 = vmatprep.subr.mxu0 0.0
    %4814 = vmatpush1.msra.mxu0 0.0
    %4815 = vmatprep.subr.mxu0 0.0
    %4816 = vmatpush1.msra.mxu0 0.0
    %4817 = vmatprep.subr.mxu0 0.0
    %4818 = vmatpush1.msra.mxu0 0.0
    %4819 = vmatprep.subr.mxu0 0.0
    %4820 = vmatpush1.msra.mxu0 0.0
    %4821 = vmatprep.subr.mxu0 0.0
    %4822 = vmatpush1.msra.mxu0 0.0
    %4823 = vmatprep.subr.mxu0 0.0
    %4824 = vmatpush1.msra.mxu0 0.0
    %4825 = vmatprep.subr.mxu0 0.0
    %4826 = vmatpush1.msra.mxu0 0.0
    %4827 = vmatprep.subr.mxu0 0.0
    %4828 = vmatpush1.msra.mxu0 0.0
    %4829 = vmatprep.subr.mxu0 0.0
    %4830 = vmatpush1.msra.mxu0 0.0
    %4831 = vmatprep.subr.mxu0 0.0
    %4832 = vmatpush1.msra.mxu0 0.0
    %4833 = vmatprep.subr.mxu0 0.0
    %4834 = vmatpush1.msra.mxu0 0.0
    %4835 = vmatprep.mubr.f32.mxu0 0.0
    %4836 = vmatmul.mubr.f32.gmra.mrb[0].mxu0 %v4724
    %v4837 = vpop.f32.mrb[0].mxu0
    %v4838 = vadd.f32 0.0, %v4837
    %v4839 = vpop.f32.mrb[0].mxu0
    %4840 = vmatprep.mubr.f32.mxu0 0.0
    %4841 = vmatmul.mubr.f32.gmra.mrb[0].mxu0 %v4727
    %v4842 = vpop.f32.mrb[0].mxu0
    %v4843 = vadd.f32 0.0, %v4842
    %v4844 = vpop.f32.mrb[0].mxu0
    %4845 = vmatprep.mubr.f32.mxu0 0.0
    %4846 = vmatmul.mubr.f32.gmra.mrb[0].mxu0 %v4730
    %v4847 = vpop.f32.mrb[0].mxu0
    %v4848 = vadd.f32 0.0, %v4847
    %v4849 = vpop.f32.mrb[0].mxu0
    %4850 = vmatprep.mubr.f32.mxu0 0.0
    %4851 = vmatmul.mubr.f32.gmra.mrb[0].mxu0 %v4733
    %v4852 = vpop.f32.mrb[0].mxu0
    %v4853 = vadd.f32 0.0, %v4852
    %v4854 = vpop.f32.mrb[0].mxu0
    %4855 = vmatprep.mubr.f32.mxu0 0.0
    %4856 = vmatmul.mubr.f32.gmra.mrb[0].mxu0 %v4736
    %v4857 = vpop.f32.mrb[0].mxu0
    %v4858 = vadd.f32 0.0, %v4857
    %v4859 = vpop.f32.mrb[0].mxu0
    %4860 = vmatprep.mubr.f32.mxu0 0.0
    %4861 = vmatmul.mubr.f32.gmra.mrb[0].mxu0 %v4739
    %v4862 = vpop.f32.mrb[0].mxu0
    %v4863 = vadd.f32 0.0, %v4862
    %v4864 = vpop.f32.mrb[0].mxu0
    %4865 = vmatprep.mubr.f32.mxu0 0.0
    %4866 = vmatmul.mubr.f32.gmra.mrb[0].mxu0 %v4742
    %v4867 = vpop.f32.mrb[0].mxu0
    %v4868 = vadd.f32 0.0, %v4867
    %v4869 = vpop.f32.mrb[0].mxu0
    %4870 = vmatprep.mubr.f32.mxu0 0.0
    %4871 = vmatmul.mubr.f32.gmra.mrb[0].mxu0 %v4745
    %v4872 = vpop.f32.mrb[0].mxu0
    %v4873 = vadd.f32 0.0, %v4872
    %v4874 = vpop.f32.mrb[0].mxu0
    %4875 = vmatprep.mubr.f32.mxu0 0.0
    %4876 = vmatmul.mubr.f32.gmra.mrb[0].mxu0 %v4748
    %v4877 = vpop.f32.mrb[0].mxu0
    %v4878 = vadd.f32 0.0, %v4877
    %v4879 = vpop.f32.mrb[0].mxu0
    %4880 = vmatprep.mubr.f32.mxu0 0.0
    %4881 = vmatmul.mubr.f32.gmra.mrb[0].mxu0 %v4751
    %v4882 = vpop.f32.mrb[0].mxu0
    %v4883 = vadd.f32 0.0, %v4882
    %v4884 = vpop.f32.mrb[0].mxu0
    %4885 = vmatprep.mubr.f32.mxu0 0.0
    %4886 = vmatmul.mubr.f32.gmra.mrb[0].mxu0 %v4754
    %v4887 = vpop.f32.mrb[0].mxu0
    %v4888 = vadd.f32 0.0, %v4887
    %v4889 = vpop.f32.mrb[0].mxu0
    %4890 = vmatprep.mubr.f32.mxu0 0.0
    %4891 = vmatmul.mubr.f32.gmra.mrb[0].mxu0 %v4757
    %v4892 = vpop.f32.mrb[0].mxu0
    %v4893 = vadd.f32 0.0, %v4892
    %v4894 = vpop.f32.mrb[0].mxu0
    %4895 = vmatprep.mubr.f32.mxu0 0.0
    %4896 = vmatmul.mubr.f32.gmra.mrb[0].mxu0 %v4760
    %v4897 = vpop.f32.mrb[0].mxu0
    %v4898 = vadd.f32 0.0, %v4897
    %v4899 = vpop.f32.mrb[0].mxu0
    %4900 = vmatprep.mubr.f32.mxu0 0.0
    %4901 = vmatmul.mubr.f32.gmra.mrb[0].mxu0 %v4763
    %v4902 = vpop.f32.mrb[0].mxu0
    %v4903 = vadd.f32 0.0, %v4902
    %v4904 = vpop.f32.mrb[0].mxu0
    %4905 = vmatprep.mubr.f32.mxu0 0.0
    %4906 = vmatmul.mubr.f32.gmra.mrb[0].mxu0 %v4766
    %v4907 = vpop.f32.mrb[0].mxu0
    %v4908 = vadd.f32 0.0, %v4907
    %v4909 = vpop.f32.mrb[0].mxu0
    %4910 = vmatprep.mubr.f32.mxu0 0.0
    %4911 = vmatmul.mubr.f32.gmra.mrb[0].mxu0 %v4769
    %v4912 = vpop.f32.mrb[0].mxu0
    %v4913 = vadd.f32 0.0, %v4912
    %v4914 = vpop.f32.mrb[0].mxu0
    %4915 = vdwg.mxu0
    %v4916 = vadd.f32 %v4636, %v4838
    %v4917 = vadd.f32 %v4641, %v4843
    %v4918 = vadd.f32 %v4646, %v4848
    %v4919 = vadd.f32 %v4651, %v4853
    %v4920 = vadd.f32 %v4656, %v4858
    %v4921 = vadd.f32 %v4661, %v4863
    %v4922 = vadd.f32 %v4666, %v4868
    %v4923 = vadd.f32 %v4671, %v4873
    %v4924 = vadd.f32 %v4676, %v4878
    %v4925 = vadd.f32 %v4681, %v4883
    %v4926 = vadd.f32 %v4686, %v4888
    %v4927 = vadd.f32 %v4691, %v4893
    %v4928 = vadd.f32 %v4696, %v4898
    %v4929 = vadd.f32 %v4701, %v4903
    %v4930 = vadd.f32 %v4706, %v4908
    %v4931 = vadd.f32 %v4711, %v4913
    %s4932 = scalar_lea.vmem %s7, 192
    %v4933 = vld [vmem:[%s4932] sm:$0xff]
    %v4934 = vld [vmem:[%s4932 + $0x8] sm:$0xff]
    %v4935 = vld [vmem:[%s4932 + $0x10] sm:$0xff]
    %v4936 = vld [vmem:[%s4932 + $0x18] sm:$0xff]
    %v4937 = vld [vmem:[%s4932 + $0x20] sm:$0xff]
    %v4938 = vld [vmem:[%s4932 + $0x28] sm:$0xff]
    %v4939 = vld [vmem:[%s4932 + $0x30] sm:$0xff]
    %v4940 = vld [vmem:[%s4932 + $0x38] sm:$0xff]
    %v4942 = vsel %vm3172, %v3833, 0
    %v4945 = vsel %vm3172, %v3838, 0
    %v4948 = vsel %vm3172, %v3843, 0
    %v4951 = vsel %vm3172, %v3848, 0
    %v4954 = vsel %vm3172, %v3853, 0
    %v4957 = vsel %vm3172, %v3858, 0
    %v4960 = vsel %vm3172, %v3863, 0
    %v4963 = vsel %vm3172, %v3868, 0
    %v4966 = vsel %vm3172, %v3873, 0
    %v4969 = vsel %vm3172, %v3878, 0
    %v4972 = vsel %vm3172, %v3883, 0
    %v4975 = vsel %vm3172, %v3888, 0
    %v4978 = vsel %vm3172, %v3893, 0
    %v4981 = vsel %vm3172, %v3898, 0
    %v4984 = vsel %vm3172, %v3903, 0
    %v4987 = vsel %vm3172, %v3908, 0
    %4989 = vmatprep.subr.mxu0 0.0
    %4990 = vmatpush1.msra.mxu0 %v4933
    %4991 = vmatprep.subr.mxu0 0.0
    %4992 = vmatpush1.msra.mxu0 %v4934
    %4993 = vmatprep.subr.mxu0 0.0
    %4994 = vmatpush1.msra.mxu0 %v4935
    %4995 = vmatprep.subr.mxu0 0.0
    %4996 = vmatpush1.msra.mxu0 %v4936
    %4997 = vmatprep.subr.mxu0 0.0
    %4998 = vmatpush1.msra.mxu0 %v4937
    %4999 = vmatprep.subr.mxu0 0.0
    %5000 = vmatpush1.msra.mxu0 %v4938
    %5001 = vmatprep.subr.mxu0 0.0
    %5002 = vmatpush1.msra.mxu0 %v4939
    %5003 = vmatprep.subr.mxu0 0.0
    %5004 = vmatpush1.msra.mxu0 %v4940
    %5005 = vmatprep.subr.mxu0 0.0
    %5006 = vmatpush1.msra.mxu0 0.0
    %5007 = vmatprep.subr.mxu0 0.0
    %5008 = vmatpush1.msra.mxu0 0.0
    %5009 = vmatprep.subr.mxu0 0.0
    %5010 = vmatpush1.msra.mxu0 0.0
    %5011 = vmatprep.subr.mxu0 0.0
    %5012 = vmatpush1.msra.mxu0 0.0
    %5013 = vmatprep.subr.mxu0 0.0
    %5014 = vmatpush1.msra.mxu0 0.0
    %5015 = vmatprep.subr.mxu0 0.0
    %5016 = vmatpush1.msra.mxu0 0.0
    %5017 = vmatprep.subr.mxu0 0.0
    %5018 = vmatpush1.msra.mxu0 0.0
    %5019 = vmatprep.subr.mxu0 0.0
    %5020 = vmatpush1.msra.mxu0 0.0
    %5021 = vmatprep.subr.mxu0 0.0
    %5022 = vmatpush1.msra.mxu0 0.0
    %5023 = vmatprep.subr.mxu0 0.0
    %5024 = vmatpush1.msra.mxu0 0.0
    %5025 = vmatprep.subr.mxu0 0.0
    %5026 = vmatpush1.msra.mxu0 0.0
    %5027 = vmatprep.subr.mxu0 0.0
    %5028 = vmatpush1.msra.mxu0 0.0
    %5029 = vmatprep.subr.mxu0 0.0
    %5030 = vmatpush1.msra.mxu0 0.0
    %5031 = vmatprep.subr.mxu0 0.0
    %5032 = vmatpush1.msra.mxu0 0.0
    %5033 = vmatprep.subr.mxu0 0.0
    %5034 = vmatpush1.msra.mxu0 0.0
    %5035 = vmatprep.subr.mxu0 0.0
    %5036 = vmatpush1.msra.mxu0 0.0
    %5037 = vmatprep.subr.mxu0 0.0
    %5038 = vmatpush1.msra.mxu0 0.0
    %5039 = vmatprep.subr.mxu0 0.0
    %5040 = vmatpush1.msra.mxu0 0.0
    %5041 = vmatprep.subr.mxu0 0.0
    %5042 = vmatpush1.msra.mxu0 0.0
    %5043 = vmatprep.subr.mxu0 0.0
    %5044 = vmatpush1.msra.mxu0 0.0
    %5045 = vmatprep.subr.mxu0 0.0
    %5046 = vmatpush1.msra.mxu0 0.0
    %5047 = vmatprep.subr.mxu0 0.0
    %5048 = vmatpush1.msra.mxu0 0.0
    %5049 = vmatprep.subr.mxu0 0.0
    %5050 = vmatpush1.msra.mxu0 0.0
    %5051 = vmatprep.subr.mxu0 0.0
    %5052 = vmatpush1.msra.mxu0 0.0
    %5053 = vmatprep.mubr.f32.mxu0 0.0
    %5054 = vmatmul.mubr.f32.gmra.mrb[0].mxu0 %v4942
    %v5055 = vpop.f32.mrb[0].mxu0
    %v5056 = vadd.f32 0.0, %v5055
    %v5057 = vpop.f32.mrb[0].mxu0
    %5058 = vmatprep.mubr.f32.mxu0 0.0
    %5059 = vmatmul.mubr.f32.gmra.mrb[0].mxu0 %v4945
    %v5060 = vpop.f32.mrb[0].mxu0
    %v5061 = vadd.f32 0.0, %v5060
    %v5062 = vpop.f32.mrb[0].mxu0
    %5063 = vmatprep.mubr.f32.mxu0 0.0
    %5064 = vmatmul.mubr.f32.gmra.mrb[0].mxu0 %v4948
    %v5065 = vpop.f32.mrb[0].mxu0
    %v5066 = vadd.f32 0.0, %v5065
    %v5067 = vpop.f32.mrb[0].mxu0
    %5068 = vmatprep.mubr.f32.mxu0 0.0
    %5069 = vmatmul.mubr.f32.gmra.mrb[0].mxu0 %v4951
    %v5070 = vpop.f32.mrb[0].mxu0
    %v5071 = vadd.f32 0.0, %v5070
    %v5072 = vpop.f32.mrb[0].mxu0
    %5073 = vmatprep.mubr.f32.mxu0 0.0
    %5074 = vmatmul.mubr.f32.gmra.mrb[0].mxu0 %v4954
    %v5075 = vpop.f32.mrb[0].mxu0
    %v5076 = vadd.f32 0.0, %v5075
    %v5077 = vpop.f32.mrb[0].mxu0
    %5078 = vmatprep.mubr.f32.mxu0 0.0
    %5079 = vmatmul.mubr.f32.gmra.mrb[0].mxu0 %v4957
    %v5080 = vpop.f32.mrb[0].mxu0
    %v5081 = vadd.f32 0.0, %v5080
    %v5082 = vpop.f32.mrb[0].mxu0
    %5083 = vmatprep.mubr.f32.mxu0 0.0
    %5084 = vmatmul.mubr.f32.gmra.mrb[0].mxu0 %v4960
    %v5085 = vpop.f32.mrb[0].mxu0
    %v5086 = vadd.f32 0.0, %v5085
    %v5087 = vpop.f32.mrb[0].mxu0
    %5088 = vmatprep.mubr.f32.mxu0 0.0
    %5089 = vmatmul.mubr.f32.gmra.mrb[0].mxu0 %v4963
    %v5090 = vpop.f32.mrb[0].mxu0
    %v5091 = vadd.f32 0.0, %v5090
    %v5092 = vpop.f32.mrb[0].mxu0
    %5093 = vmatprep.mubr.f32.mxu0 0.0
    %5094 = vmatmul.mubr.f32.gmra.mrb[0].mxu0 %v4966
    %v5095 = vpop.f32.mrb[0].mxu0
    %v5096 = vadd.f32 0.0, %v5095
    %v5097 = vpop.f32.mrb[0].mxu0
    %5098 = vmatprep.mubr.f32.mxu0 0.0
    %5099 = vmatmul.mubr.f32.gmra.mrb[0].mxu0 %v4969
    %v5100 = vpop.f32.mrb[0].mxu0
    %v5101 = vadd.f32 0.0, %v5100
    %v5102 = vpop.f32.mrb[0].mxu0
    %5103 = vmatprep.mubr.f32.mxu0 0.0
    %5104 = vmatmul.mubr.f32.gmra.mrb[0].mxu0 %v4972
    %v5105 = vpop.f32.mrb[0].mxu0
    %v5106 = vadd.f32 0.0, %v5105
    %v5107 = vpop.f32.mrb[0].mxu0
    %5108 = vmatprep.mubr.f32.mxu0 0.0
    %5109 = vmatmul.mubr.f32.gmra.mrb[0].mxu0 %v4975
    %v5110 = vpop.f32.mrb[0].mxu0
    %v5111 = vadd.f32 0.0, %v5110
    %v5112 = vpop.f32.mrb[0].mxu0
    %5113 = vmatprep.mubr.f32.mxu0 0.0
    %5114 = vmatmul.mubr.f32.gmra.mrb[0].mxu0 %v4978
    %v5115 = vpop.f32.mrb[0].mxu0
    %v5116 = vadd.f32 0.0, %v5115
    %v5117 = vpop.f32.mrb[0].mxu0
    %5118 = vmatprep.mubr.f32.mxu0 0.0
    %5119 = vmatmul.mubr.f32.gmra.mrb[0].mxu0 %v4981
    %v5120 = vpop.f32.mrb[0].mxu0
    %v5121 = vadd.f32 0.0, %v5120
    %v5122 = vpop.f32.mrb[0].mxu0
    %5123 = vmatprep.mubr.f32.mxu0 0.0
    %5124 = vmatmul.mubr.f32.gmra.mrb[0].mxu0 %v4984
    %v5125 = vpop.f32.mrb[0].mxu0
    %v5126 = vadd.f32 0.0, %v5125
    %v5127 = vpop.f32.mrb[0].mxu0
    %5128 = vmatprep.mubr.f32.mxu0 0.0
    %5129 = vmatmul.mubr.f32.gmra.mrb[0].mxu0 %v4987
    %v5130 = vpop.f32.mrb[0].mxu0
    %v5131 = vadd.f32 0.0, %v5130
    %v5132 = vpop.f32.mrb[0].mxu0
    %5133 = vdwg.mxu0
    %v5134 = vadd.f32 %v4916, %v5056
    %v5135 = vadd.f32 %v4917, %v5061
    %v5136 = vadd.f32 %v4918, %v5066
    %v5137 = vadd.f32 %v4919, %v5071
    %v5138 = vadd.f32 %v4920, %v5076
    %v5139 = vadd.f32 %v4921, %v5081
    %v5140 = vadd.f32 %v4922, %v5086
    %v5141 = vadd.f32 %v4923, %v5091
    %v5142 = vadd.f32 %v4924, %v5096
    %v5143 = vadd.f32 %v4925, %v5101
    %v5144 = vadd.f32 %v4926, %v5106
    %v5145 = vadd.f32 %v4927, %v5111
    %v5146 = vadd.f32 %v4928, %v5116
    %v5147 = vadd.f32 %v4929, %v5121
    %v5148 = vadd.f32 %v4930, %v5126
    %v5149 = vadd.f32 %v4931, %v5131
    %s5150 = scalar_lea.vmem %s7, 256
    %v5151 = vld [vmem:[%s5150] sm:$0xff]
    %v5152 = vld [vmem:[%s5150 + $0x8] sm:$0xff]
    %v5153 = vld [vmem:[%s5150 + $0x10] sm:$0xff]
    %v5154 = vld [vmem:[%s5150 + $0x18] sm:$0xff]
    %v5155 = vld [vmem:[%s5150 + $0x20] sm:$0xff]
    %v5156 = vld [vmem:[%s5150 + $0x28] sm:$0xff]
    %v5157 = vld [vmem:[%s5150 + $0x30] sm:$0xff]
    %v5158 = vld [vmem:[%s5150 + $0x38] sm:$0xff]
    %v5160 = vsel %vm3172, %v3913, 0
    %v5163 = vsel %vm3172, %v3918, 0
    %v5166 = vsel %vm3172, %v3923, 0
    %v5169 = vsel %vm3172, %v3928, 0
    %v5172 = vsel %vm3172, %v3933, 0
    %v5175 = vsel %vm3172, %v3938, 0
    %v5178 = vsel %vm3172, %v3943, 0
    %v5181 = vsel %vm3172, %v3948, 0
    %v5184 = vsel %vm3172, %v3953, 0
    %v5187 = vsel %vm3172, %v3958, 0
    %v5190 = vsel %vm3172, %v3963, 0
    %v5193 = vsel %vm3172, %v3968, 0
    %v5196 = vsel %vm3172, %v3973, 0
    %v5199 = vsel %vm3172, %v3978, 0
    %v5202 = vsel %vm3172, %v3983, 0
    %v5205 = vsel %vm3172, %v3988, 0
    %5207 = vmatprep.subr.mxu0 0.0
    %5208 = vmatpush1.msra.mxu0 %v5151
    %5209 = vmatprep.subr.mxu0 0.0
    %5210 = vmatpush1.msra.mxu0 %v5152
    %5211 = vmatprep.subr.mxu0 0.0
    %5212 = vmatpush1.msra.mxu0 %v5153
    %5213 = vmatprep.subr.mxu0 0.0
    %5214 = vmatpush1.msra.mxu0 %v5154
    %5215 = vmatprep.subr.mxu0 0.0
    %5216 = vmatpush1.msra.mxu0 %v5155
    %5217 = vmatprep.subr.mxu0 0.0
    %5218 = vmatpush1.msra.mxu0 %v5156
    %5219 = vmatprep.subr.mxu0 0.0
    %5220 = vmatpush1.msra.mxu0 %v5157
    %5221 = vmatprep.subr.mxu0 0.0
    %5222 = vmatpush1.msra.mxu0 %v5158
    %5223 = vmatprep.subr.mxu0 0.0
    %5224 = vmatpush1.msra.mxu0 0.0
    %5225 = vmatprep.subr.mxu0 0.0
    %5226 = vmatpush1.msra.mxu0 0.0
    %5227 = vmatprep.subr.mxu0 0.0
    %5228 = vmatpush1.msra.mxu0 0.0
    %5229 = vmatprep.subr.mxu0 0.0
    %5230 = vmatpush1.msra.mxu0 0.0
    %5231 = vmatprep.subr.mxu0 0.0
    %5232 = vmatpush1.msra.mxu0 0.0
    %5233 = vmatprep.subr.mxu0 0.0
    %5234 = vmatpush1.msra.mxu0 0.0
    %5235 = vmatprep.subr.mxu0 0.0
    %5236 = vmatpush1.msra.mxu0 0.0
    %5237 = vmatprep.subr.mxu0 0.0
    %5238 = vmatpush1.msra.mxu0 0.0
    %5239 = vmatprep.subr.mxu0 0.0
    %5240 = vmatpush1.msra.mxu0 0.0
    %5241 = vmatprep.subr.mxu0 0.0
    %5242 = vmatpush1.msra.mxu0 0.0
    %5243 = vmatprep.subr.mxu0 0.0
    %5244 = vmatpush1.msra.mxu0 0.0
    %5245 = vmatprep.subr.mxu0 0.0
    %5246 = vmatpush1.msra.mxu0 0.0
    %5247 = vmatprep.subr.mxu0 0.0
    %5248 = vmatpush1.msra.mxu0 0.0
    %5249 = vmatprep.subr.mxu0 0.0
    %5250 = vmatpush1.msra.mxu0 0.0
    %5251 = vmatprep.subr.mxu0 0.0
    %5252 = vmatpush1.msra.mxu0 0.0
    %5253 = vmatprep.subr.mxu0 0.0
    %5254 = vmatpush1.msra.mxu0 0.0
    %5255 = vmatprep.subr.mxu0 0.0
    %5256 = vmatpush1.msra.mxu0 0.0
    %5257 = vmatprep.subr.mxu0 0.0
    %5258 = vmatpush1.msra.mxu0 0.0
    %5259 = vmatprep.subr.mxu0 0.0
    %5260 = vmatpush1.msra.mxu0 0.0
    %5261 = vmatprep.subr.mxu0 0.0
    %5262 = vmatpush1.msra.mxu0 0.0
    %5263 = vmatprep.subr.mxu0 0.0
    %5264 = vmatpush1.msra.mxu0 0.0
    %5265 = vmatprep.subr.mxu0 0.0
    %5266 = vmatpush1.msra.mxu0 0.0
    %5267 = vmatprep.subr.mxu0 0.0
    %5268 = vmatpush1.msra.mxu0 0.0
    %5269 = vmatprep.subr.mxu0 0.0
    %5270 = vmatpush1.msra.mxu0 0.0
    %5271 = vmatprep.mubr.f32.mxu0 0.0
    %5272 = vmatmul.mubr.f32.gmra.mrb[0].mxu0 %v5160
    %v5273 = vpop.f32.mrb[0].mxu0
    %v5274 = vadd.f32 0.0, %v5273
    %v5275 = vpop.f32.mrb[0].mxu0
    %5276 = vmatprep.mubr.f32.mxu0 0.0
    %5277 = vmatmul.mubr.f32.gmra.mrb[0].mxu0 %v5163
    %v5278 = vpop.f32.mrb[0].mxu0
    %v5279 = vadd.f32 0.0, %v5278
    %v5280 = vpop.f32.mrb[0].mxu0
    %5281 = vmatprep.mubr.f32.mxu0 0.0
    %5282 = vmatmul.mubr.f32.gmra.mrb[0].mxu0 %v5166
    %v5283 = vpop.f32.mrb[0].mxu0
    %v5284 = vadd.f32 0.0, %v5283
    %v5285 = vpop.f32.mrb[0].mxu0
    %5286 = vmatprep.mubr.f32.mxu0 0.0
    %5287 = vmatmul.mubr.f32.gmra.mrb[0].mxu0 %v5169
    %v5288 = vpop.f32.mrb[0].mxu0
    %v5289 = vadd.f32 0.0, %v5288
    %v5290 = vpop.f32.mrb[0].mxu0
    %5291 = vmatprep.mubr.f32.mxu0 0.0
    %5292 = vmatmul.mubr.f32.gmra.mrb[0].mxu0 %v5172
    %v5293 = vpop.f32.mrb[0].mxu0
    %v5294 = vadd.f32 0.0, %v5293
    %v5295 = vpop.f32.mrb[0].mxu0
    %5296 = vmatprep.mubr.f32.mxu0 0.0
    %5297 = vmatmul.mubr.f32.gmra.mrb[0].mxu0 %v5175
    %v5298 = vpop.f32.mrb[0].mxu0
    %v5299 = vadd.f32 0.0, %v5298
    %v5300 = vpop.f32.mrb[0].mxu0
    %5301 = vmatprep.mubr.f32.mxu0 0.0
    %5302 = vmatmul.mubr.f32.gmra.mrb[0].mxu0 %v5178
    %v5303 = vpop.f32.mrb[0].mxu0
    %v5304 = vadd.f32 0.0, %v5303
    %v5305 = vpop.f32.mrb[0].mxu0
    %5306 = vmatprep.mubr.f32.mxu0 0.0
    %5307 = vmatmul.mubr.f32.gmra.mrb[0].mxu0 %v5181
    %v5308 = vpop.f32.mrb[0].mxu0
    %v5309 = vadd.f32 0.0, %v5308
    %v5310 = vpop.f32.mrb[0].mxu0
    %5311 = vmatprep.mubr.f32.mxu0 0.0
    %5312 = vmatmul.mubr.f32.gmra.mrb[0].mxu0 %v5184
    %v5313 = vpop.f32.mrb[0].mxu0
    %v5314 = vadd.f32 0.0, %v5313
    %v5315 = vpop.f32.mrb[0].mxu0
    %5316 = vmatprep.mubr.f32.mxu0 0.0
    %5317 = vmatmul.mubr.f32.gmra.mrb[0].mxu0 %v5187
    %v5318 = vpop.f32.mrb[0].mxu0
    %v5319 = vadd.f32 0.0, %v5318
    %v5320 = vpop.f32.mrb[0].mxu0
    %5321 = vmatprep.mubr.f32.mxu0 0.0
    %5322 = vmatmul.mubr.f32.gmra.mrb[0].mxu0 %v5190
    %v5323 = vpop.f32.mrb[0].mxu0
    %v5324 = vadd.f32 0.0, %v5323
    %v5325 = vpop.f32.mrb[0].mxu0
    %5326 = vmatprep.mubr.f32.mxu0 0.0
    %5327 = vmatmul.mubr.f32.gmra.mrb[0].mxu0 %v5193
    %v5328 = vpop.f32.mrb[0].mxu0
    %v5329 = vadd.f32 0.0, %v5328
    %v5330 = vpop.f32.mrb[0].mxu0
    %5331 = vmatprep.mubr.f32.mxu0 0.0
    %5332 = vmatmul.mubr.f32.gmra.mrb[0].mxu0 %v5196
    %v5333 = vpop.f32.mrb[0].mxu0
    %v5334 = vadd.f32 0.0, %v5333
    %v5335 = vpop.f32.mrb[0].mxu0
    %5336 = vmatprep.mubr.f32.mxu0 0.0
    %5337 = vmatmul.mubr.f32.gmra.mrb[0].mxu0 %v5199
    %v5338 = vpop.f32.mrb[0].mxu0
    %v5339 = vadd.f32 0.0, %v5338
    %v5340 = vpop.f32.mrb[0].mxu0
    %5341 = vmatprep.mubr.f32.mxu0 0.0
    %5342 = vmatmul.mubr.f32.gmra.mrb[0].mxu0 %v5202
    %v5343 = vpop.f32.mrb[0].mxu0
    %v5344 = vadd.f32 0.0, %v5343
    %v5345 = vpop.f32.mrb[0].mxu0
    %5346 = vmatprep.mubr.f32.mxu0 0.0
    %5347 = vmatmul.mubr.f32.gmra.mrb[0].mxu0 %v5205
    %v5348 = vpop.f32.mrb[0].mxu0
    %v5349 = vadd.f32 0.0, %v5348
    %v5350 = vpop.f32.mrb[0].mxu0
    %5351 = vdwg.mxu0
    %v5352 = vadd.f32 %v5134, %v5274
    %v5353 = vadd.f32 %v5135, %v5279
    %v5354 = vadd.f32 %v5136, %v5284
    %v5355 = vadd.f32 %v5137, %v5289
    %v5356 = vadd.f32 %v5138, %v5294
    %v5357 = vadd.f32 %v5139, %v5299
    %v5358 = vadd.f32 %v5140, %v5304
    %v5359 = vadd.f32 %v5141, %v5309
    %v5360 = vadd.f32 %v5142, %v5314
    %v5361 = vadd.f32 %v5143, %v5319
    %v5362 = vadd.f32 %v5144, %v5324
    %v5363 = vadd.f32 %v5145, %v5329
    %v5364 = vadd.f32 %v5146, %v5334
    %v5365 = vadd.f32 %v5147, %v5339
    %v5366 = vadd.f32 %v5148, %v5344
    %v5367 = vadd.f32 %v5149, %v5349
    %s5368 = scalar_lea.vmem %s7, 320
    %v5369 = vld [vmem:[%s5368] sm:$0xff]
    %v5370 = vld [vmem:[%s5368 + $0x8] sm:$0xff]
    %v5371 = vld [vmem:[%s5368 + $0x10] sm:$0xff]
    %v5372 = vld [vmem:[%s5368 + $0x18] sm:$0xff]
    %v5373 = vld [vmem:[%s5368 + $0x20] sm:$0xff]
    %v5374 = vld [vmem:[%s5368 + $0x28] sm:$0xff]
    %v5375 = vld [vmem:[%s5368 + $0x30] sm:$0xff]
    %v5376 = vld [vmem:[%s5368 + $0x38] sm:$0xff]
    %v5378 = vsel %vm3172, %v3993, 0
    %v5381 = vsel %vm3172, %v3998, 0
    %v5384 = vsel %vm3172, %v4003, 0
    %v5387 = vsel %vm3172, %v4008, 0
    %v5390 = vsel %vm3172, %v4013, 0
    %v5393 = vsel %vm3172, %v4018, 0
    %v5396 = vsel %vm3172, %v4023, 0
    %v5399 = vsel %vm3172, %v4028, 0
    %v5402 = vsel %vm3172, %v4033, 0
    %v5405 = vsel %vm3172, %v4038, 0
    %v5408 = vsel %vm3172, %v4043, 0
    %v5411 = vsel %vm3172, %v4048, 0
    %v5414 = vsel %vm3172, %v4053, 0
    %v5417 = vsel %vm3172, %v4058, 0
    %v5420 = vsel %vm3172, %v4063, 0
    %v5423 = vsel %vm3172, %v4068, 0
    %5425 = vmatprep.subr.mxu0 0.0
    %5426 = vmatpush1.msra.mxu0 %v5369
    %5427 = vmatprep.subr.mxu0 0.0
    %5428 = vmatpush1.msra.mxu0 %v5370
    %5429 = vmatprep.subr.mxu0 0.0
    %5430 = vmatpush1.msra.mxu0 %v5371
    %5431 = vmatprep.subr.mxu0 0.0
    %5432 = vmatpush1.msra.mxu0 %v5372
    %5433 = vmatprep.subr.mxu0 0.0
    %5434 = vmatpush1.msra.mxu0 %v5373
    %5435 = vmatprep.subr.mxu0 0.0
    %5436 = vmatpush1.msra.mxu0 %v5374
    %5437 = vmatprep.subr.mxu0 0.0
    %5438 = vmatpush1.msra.mxu0 %v5375
    %5439 = vmatprep.subr.mxu0 0.0
    %5440 = vmatpush1.msra.mxu0 %v5376
    %5441 = vmatprep.subr.mxu0 0.0
    %5442 = vmatpush1.msra.mxu0 0.0
    %5443 = vmatprep.subr.mxu0 0.0
    %5444 = vmatpush1.msra.mxu0 0.0
    %5445 = vmatprep.subr.mxu0 0.0
    %5446 = vmatpush1.msra.mxu0 0.0
    %5447 = vmatprep.subr.mxu0 0.0
    %5448 = vmatpush1.msra.mxu0 0.0
    %5449 = vmatprep.subr.mxu0 0.0
    %5450 = vmatpush1.msra.mxu0 0.0
    %5451 = vmatprep.subr.mxu0 0.0
    %5452 = vmatpush1.msra.mxu0 0.0
    %5453 = vmatprep.subr.mxu0 0.0
    %5454 = vmatpush1.msra.mxu0 0.0
    %5455 = vmatprep.subr.mxu0 0.0
    %5456 = vmatpush1.msra.mxu0 0.0
    %5457 = vmatprep.subr.mxu0 0.0
    %5458 = vmatpush1.msra.mxu0 0.0
    %5459 = vmatprep.subr.mxu0 0.0
    %5460 = vmatpush1.msra.mxu0 0.0
    %5461 = vmatprep.subr.mxu0 0.0
    %5462 = vmatpush1.msra.mxu0 0.0
    %5463 = vmatprep.subr.mxu0 0.0
    %5464 = vmatpush1.msra.mxu0 0.0
    %5465 = vmatprep.subr.mxu0 0.0
    %5466 = vmatpush1.msra.mxu0 0.0
    %5467 = vmatprep.subr.mxu0 0.0
    %5468 = vmatpush1.msra.mxu0 0.0
    %5469 = vmatprep.subr.mxu0 0.0
    %5470 = vmatpush1.msra.mxu0 0.0
    %5471 = vmatprep.subr.mxu0 0.0
    %5472 = vmatpush1.msra.mxu0 0.0
    %5473 = vmatprep.subr.mxu0 0.0
    %5474 = vmatpush1.msra.mxu0 0.0
    %5475 = vmatprep.subr.mxu0 0.0
    %5476 = vmatpush1.msra.mxu0 0.0
    %5477 = vmatprep.subr.mxu0 0.0
    %5478 = vmatpush1.msra.mxu0 0.0
    %5479 = vmatprep.subr.mxu0 0.0
    %5480 = vmatpush1.msra.mxu0 0.0
    %5481 = vmatprep.subr.mxu0 0.0
    %5482 = vmatpush1.msra.mxu0 0.0
    %5483 = vmatprep.subr.mxu0 0.0
    %5484 = vmatpush1.msra.mxu0 0.0
    %5485 = vmatprep.subr.mxu0 0.0
    %5486 = vmatpush1.msra.mxu0 0.0
    %5487 = vmatprep.subr.mxu0 0.0
    %5488 = vmatpush1.msra.mxu0 0.0
    %5489 = vmatprep.mubr.f32.mxu0 0.0
    %5490 = vmatmul.mubr.f32.gmra.mrb[0].mxu0 %v5378
    %v5491 = vpop.f32.mrb[0].mxu0
    %v5492 = vadd.f32 0.0, %v5491
    %v5493 = vpop.f32.mrb[0].mxu0
    %5494 = vmatprep.mubr.f32.mxu0 0.0
    %5495 = vmatmul.mubr.f32.gmra.mrb[0].mxu0 %v5381
    %v5496 = vpop.f32.mrb[0].mxu0
    %v5497 = vadd.f32 0.0, %v5496
    %v5498 = vpop.f32.mrb[0].mxu0
    %5499 = vmatprep.mubr.f32.mxu0 0.0
    %5500 = vmatmul.mubr.f32.gmra.mrb[0].mxu0 %v5384
    %v5501 = vpop.f32.mrb[0].mxu0
    %v5502 = vadd.f32 0.0, %v5501
    %v5503 = vpop.f32.mrb[0].mxu0
    %5504 = vmatprep.mubr.f32.mxu0 0.0
    %5505 = vmatmul.mubr.f32.gmra.mrb[0].mxu0 %v5387
    %v5506 = vpop.f32.mrb[0].mxu0
    %v5507 = vadd.f32 0.0, %v5506
    %v5508 = vpop.f32.mrb[0].mxu0
    %5509 = vmatprep.mubr.f32.mxu0 0.0
    %5510 = vmatmul.mubr.f32.gmra.mrb[0].mxu0 %v5390
    %v5511 = vpop.f32.mrb[0].mxu0
    %v5512 = vadd.f32 0.0, %v5511
    %v5513 = vpop.f32.mrb[0].mxu0
    %5514 = vmatprep.mubr.f32.mxu0 0.0
    %5515 = vmatmul.mubr.f32.gmra.mrb[0].mxu0 %v5393
    %v5516 = vpop.f32.mrb[0].mxu0
    %v5517 = vadd.f32 0.0, %v5516
    %v5518 = vpop.f32.mrb[0].mxu0
    %5519 = vmatprep.mubr.f32.mxu0 0.0
    %5520 = vmatmul.mubr.f32.gmra.mrb[0].mxu0 %v5396
    %v5521 = vpop.f32.mrb[0].mxu0
    %v5522 = vadd.f32 0.0, %v5521
    %v5523 = vpop.f32.mrb[0].mxu0
    %5524 = vmatprep.mubr.f32.mxu0 0.0
    %5525 = vmatmul.mubr.f32.gmra.mrb[0].mxu0 %v5399
    %v5526 = vpop.f32.mrb[0].mxu0
    %v5527 = vadd.f32 0.0, %v5526
    %v5528 = vpop.f32.mrb[0].mxu0
    %5529 = vmatprep.mubr.f32.mxu0 0.0
    %5530 = vmatmul.mubr.f32.gmra.mrb[0].mxu0 %v5402
    %v5531 = vpop.f32.mrb[0].mxu0
    %v5532 = vadd.f32 0.0, %v5531
    %v5533 = vpop.f32.mrb[0].mxu0
    %5534 = vmatprep.mubr.f32.mxu0 0.0
    %5535 = vmatmul.mubr.f32.gmra.mrb[0].mxu0 %v5405
    %v5536 = vpop.f32.mrb[0].mxu0
    %v5537 = vadd.f32 0.0, %v5536
    %v5538 = vpop.f32.mrb[0].mxu0
    %5539 = vmatprep.mubr.f32.mxu0 0.0
    %5540 = vmatmul.mubr.f32.gmra.mrb[0].mxu0 %v5408
    %v5541 = vpop.f32.mrb[0].mxu0
    %v5542 = vadd.f32 0.0, %v5541
    %v5543 = vpop.f32.mrb[0].mxu0
    %5544 = vmatprep.mubr.f32.mxu0 0.0
    %5545 = vmatmul.mubr.f32.gmra.mrb[0].mxu0 %v5411
    %v5546 = vpop.f32.mrb[0].mxu0
    %v5547 = vadd.f32 0.0, %v5546
    %v5548 = vpop.f32.mrb[0].mxu0
    %5549 = vmatprep.mubr.f32.mxu0 0.0
    %5550 = vmatmul.mubr.f32.gmra.mrb[0].mxu0 %v5414
    %v5551 = vpop.f32.mrb[0].mxu0
    %v5552 = vadd.f32 0.0, %v5551
    %v5553 = vpop.f32.mrb[0].mxu0
    %5554 = vmatprep.mubr.f32.mxu0 0.0
    %5555 = vmatmul.mubr.f32.gmra.mrb[0].mxu0 %v5417
    %v5556 = vpop.f32.mrb[0].mxu0
    %v5557 = vadd.f32 0.0, %v5556
    %v5558 = vpop.f32.mrb[0].mxu0
    %5559 = vmatprep.mubr.f32.mxu0 0.0
    %5560 = vmatmul.mubr.f32.gmra.mrb[0].mxu0 %v5420
    %v5561 = vpop.f32.mrb[0].mxu0
    %v5562 = vadd.f32 0.0, %v5561
    %v5563 = vpop.f32.mrb[0].mxu0
    %5564 = vmatprep.mubr.f32.mxu0 0.0
    %5565 = vmatmul.mubr.f32.gmra.mrb[0].mxu0 %v5423
    %v5566 = vpop.f32.mrb[0].mxu0
    %v5567 = vadd.f32 0.0, %v5566
    %v5568 = vpop.f32.mrb[0].mxu0
    %5569 = vdwg.mxu0
    %v5570 = vadd.f32 %v5352, %v5492
    %v5571 = vadd.f32 %v5353, %v5497
    %v5572 = vadd.f32 %v5354, %v5502
    %v5573 = vadd.f32 %v5355, %v5507
    %v5574 = vadd.f32 %v5356, %v5512
    %v5575 = vadd.f32 %v5357, %v5517
    %v5576 = vadd.f32 %v5358, %v5522
    %v5577 = vadd.f32 %v5359, %v5527
    %v5578 = vadd.f32 %v5360, %v5532
    %v5579 = vadd.f32 %v5361, %v5537
    %v5580 = vadd.f32 %v5362, %v5542
    %v5581 = vadd.f32 %v5363, %v5547
    %v5582 = vadd.f32 %v5364, %v5552
    %v5583 = vadd.f32 %v5365, %v5557
    %v5584 = vadd.f32 %v5366, %v5562
    %v5585 = vadd.f32 %v5367, %v5567
    %s5586 = scalar_lea.vmem %s7, 384
    %v5587 = vld [vmem:[%s5586] sm:$0xff]
    %v5588 = vld [vmem:[%s5586 + $0x8] sm:$0xff]
    %v5589 = vld [vmem:[%s5586 + $0x10] sm:$0xff]
    %v5590 = vld [vmem:[%s5586 + $0x18] sm:$0xff]
    %v5591 = vld [vmem:[%s5586 + $0x20] sm:$0xff]
    %v5592 = vld [vmem:[%s5586 + $0x28] sm:$0xff]
    %v5593 = vld [vmem:[%s5586 + $0x30] sm:$0xff]
    %v5594 = vld [vmem:[%s5586 + $0x38] sm:$0xff]
    %v5596 = vsel %vm3172, %v4073, 0
    %v5599 = vsel %vm3172, %v4078, 0
    %v5602 = vsel %vm3172, %v4083, 0
    %v5605 = vsel %vm3172, %v4088, 0
    %v5608 = vsel %vm3172, %v4093, 0
    %v5611 = vsel %vm3172, %v4098, 0
    %v5614 = vsel %vm3172, %v4103, 0
    %v5617 = vsel %vm3172, %v4108, 0
    %v5620 = vsel %vm3172, %v4113, 0
    %v5623 = vsel %vm3172, %v4118, 0
    %v5626 = vsel %vm3172, %v4123, 0
    %v5629 = vsel %vm3172, %v4128, 0
    %v5632 = vsel %vm3172, %v4133, 0
    %v5635 = vsel %vm3172, %v4138, 0
    %v5638 = vsel %vm3172, %v4143, 0
    %v5641 = vsel %vm3172, %v4148, 0
    %5643 = vmatprep.subr.mxu0 0.0
    %5644 = vmatpush1.msra.mxu0 %v5587
    %5645 = vmatprep.subr.mxu0 0.0
    %5646 = vmatpush1.msra.mxu0 %v5588
    %5647 = vmatprep.subr.mxu0 0.0
    %5648 = vmatpush1.msra.mxu0 %v5589
    %5649 = vmatprep.subr.mxu0 0.0
    %5650 = vmatpush1.msra.mxu0 %v5590
    %5651 = vmatprep.subr.mxu0 0.0
    %5652 = vmatpush1.msra.mxu0 %v5591
    %5653 = vmatprep.subr.mxu0 0.0
    %5654 = vmatpush1.msra.mxu0 %v5592
    %5655 = vmatprep.subr.mxu0 0.0
    %5656 = vmatpush1.msra.mxu0 %v5593
    %5657 = vmatprep.subr.mxu0 0.0
    %5658 = vmatpush1.msra.mxu0 %v5594
    %5659 = vmatprep.subr.mxu0 0.0
    %5660 = vmatpush1.msra.mxu0 0.0
    %5661 = vmatprep.subr.mxu0 0.0
    %5662 = vmatpush1.msra.mxu0 0.0
    %5663 = vmatprep.subr.mxu0 0.0
    %5664 = vmatpush1.msra.mxu0 0.0
    %5665 = vmatprep.subr.mxu0 0.0
    %5666 = vmatpush1.msra.mxu0 0.0
    %5667 = vmatprep.subr.mxu0 0.0
    %5668 = vmatpush1.msra.mxu0 0.0
    %5669 = vmatprep.subr.mxu0 0.0
    %5670 = vmatpush1.msra.mxu0 0.0
    %5671 = vmatprep.subr.mxu0 0.0
    %5672 = vmatpush1.msra.mxu0 0.0
    %5673 = vmatprep.subr.mxu0 0.0
    %5674 = vmatpush1.msra.mxu0 0.0
    %5675 = vmatprep.subr.mxu0 0.0
    %5676 = vmatpush1.msra.mxu0 0.0
    %5677 = vmatprep.subr.mxu0 0.0
    %5678 = vmatpush1.msra.mxu0 0.0
    %5679 = vmatprep.subr.mxu0 0.0
    %5680 = vmatpush1.msra.mxu0 0.0
    %5681 = vmatprep.subr.mxu0 0.0
    %5682 = vmatpush1.msra.mxu0 0.0
    %5683 = vmatprep.subr.mxu0 0.0
    %5684 = vmatpush1.msra.mxu0 0.0
    %5685 = vmatprep.subr.mxu0 0.0
    %5686 = vmatpush1.msra.mxu0 0.0
    %5687 = vmatprep.subr.mxu0 0.0
    %5688 = vmatpush1.msra.mxu0 0.0
    %5689 = vmatprep.subr.mxu0 0.0
    %5690 = vmatpush1.msra.mxu0 0.0
    %5691 = vmatprep.subr.mxu0 0.0
    %5692 = vmatpush1.msra.mxu0 0.0
    %5693 = vmatprep.subr.mxu0 0.0
    %5694 = vmatpush1.msra.mxu0 0.0
    %5695 = vmatprep.subr.mxu0 0.0
    %5696 = vmatpush1.msra.mxu0 0.0
    %5697 = vmatprep.subr.mxu0 0.0
    %5698 = vmatpush1.msra.mxu0 0.0
    %5699 = vmatprep.subr.mxu0 0.0
    %5700 = vmatpush1.msra.mxu0 0.0
    %5701 = vmatprep.subr.mxu0 0.0
    %5702 = vmatpush1.msra.mxu0 0.0
    %5703 = vmatprep.subr.mxu0 0.0
    %5704 = vmatpush1.msra.mxu0 0.0
    %5705 = vmatprep.subr.mxu0 0.0
    %5706 = vmatpush1.msra.mxu0 0.0
    %5707 = vmatprep.mubr.f32.mxu0 0.0
    %5708 = vmatmul.mubr.f32.gmra.mrb[0].mxu0 %v5596
    %v5709 = vpop.f32.mrb[0].mxu0
    %v5710 = vadd.f32 0.0, %v5709
    %v5711 = vpop.f32.mrb[0].mxu0
    %5712 = vmatprep.mubr.f32.mxu0 0.0
    %5713 = vmatmul.mubr.f32.gmra.mrb[0].mxu0 %v5599
    %v5714 = vpop.f32.mrb[0].mxu0
    %v5715 = vadd.f32 0.0, %v5714
    %v5716 = vpop.f32.mrb[0].mxu0
    %5717 = vmatprep.mubr.f32.mxu0 0.0
    %5718 = vmatmul.mubr.f32.gmra.mrb[0].mxu0 %v5602
    %v5719 = vpop.f32.mrb[0].mxu0
    %v5720 = vadd.f32 0.0, %v5719
    %v5721 = vpop.f32.mrb[0].mxu0
    %5722 = vmatprep.mubr.f32.mxu0 0.0
    %5723 = vmatmul.mubr.f32.gmra.mrb[0].mxu0 %v5605
    %v5724 = vpop.f32.mrb[0].mxu0
    %v5725 = vadd.f32 0.0, %v5724
    %v5726 = vpop.f32.mrb[0].mxu0
    %5727 = vmatprep.mubr.f32.mxu0 0.0
    %5728 = vmatmul.mubr.f32.gmra.mrb[0].mxu0 %v5608
    %v5729 = vpop.f32.mrb[0].mxu0
    %v5730 = vadd.f32 0.0, %v5729
    %v5731 = vpop.f32.mrb[0].mxu0
    %5732 = vmatprep.mubr.f32.mxu0 0.0
    %5733 = vmatmul.mubr.f32.gmra.mrb[0].mxu0 %v5611
    %v5734 = vpop.f32.mrb[0].mxu0
    %v5735 = vadd.f32 0.0, %v5734
    %v5736 = vpop.f32.mrb[0].mxu0
    %5737 = vmatprep.mubr.f32.mxu0 0.0
    %5738 = vmatmul.mubr.f32.gmra.mrb[0].mxu0 %v5614
    %v5739 = vpop.f32.mrb[0].mxu0
    %v5740 = vadd.f32 0.0, %v5739
    %v5741 = vpop.f32.mrb[0].mxu0
    %5742 = vmatprep.mubr.f32.mxu0 0.0
    %5743 = vmatmul.mubr.f32.gmra.mrb[0].mxu0 %v5617
    %v5744 = vpop.f32.mrb[0].mxu0
    %v5745 = vadd.f32 0.0, %v5744
    %v5746 = vpop.f32.mrb[0].mxu0
    %5747 = vmatprep.mubr.f32.mxu0 0.0
    %5748 = vmatmul.mubr.f32.gmra.mrb[0].mxu0 %v5620
    %v5749 = vpop.f32.mrb[0].mxu0
    %v5750 = vadd.f32 0.0, %v5749
    %v5751 = vpop.f32.mrb[0].mxu0
    %5752 = vmatprep.mubr.f32.mxu0 0.0
    %5753 = vmatmul.mubr.f32.gmra.mrb[0].mxu0 %v5623
    %v5754 = vpop.f32.mrb[0].mxu0
    %v5755 = vadd.f32 0.0, %v5754
    %v5756 = vpop.f32.mrb[0].mxu0
    %5757 = vmatprep.mubr.f32.mxu0 0.0
    %5758 = vmatmul.mubr.f32.gmra.mrb[0].mxu0 %v5626
    %v5759 = vpop.f32.mrb[0].mxu0
    %v5760 = vadd.f32 0.0, %v5759
    %v5761 = vpop.f32.mrb[0].mxu0
    %5762 = vmatprep.mubr.f32.mxu0 0.0
    %5763 = vmatmul.mubr.f32.gmra.mrb[0].mxu0 %v5629
    %v5764 = vpop.f32.mrb[0].mxu0
    %v5765 = vadd.f32 0.0, %v5764
    %v5766 = vpop.f32.mrb[0].mxu0
    %5767 = vmatprep.mubr.f32.mxu0 0.0
    %5768 = vmatmul.mubr.f32.gmra.mrb[0].mxu0 %v5632
    %v5769 = vpop.f32.mrb[0].mxu0
    %v5770 = vadd.f32 0.0, %v5769
    %v5771 = vpop.f32.mrb[0].mxu0
    %5772 = vmatprep.mubr.f32.mxu0 0.0
    %5773 = vmatmul.mubr.f32.gmra.mrb[0].mxu0 %v5635
    %v5774 = vpop.f32.mrb[0].mxu0
    %v5775 = vadd.f32 0.0, %v5774
    %v5776 = vpop.f32.mrb[0].mxu0
    %5777 = vmatprep.mubr.f32.mxu0 0.0
    %5778 = vmatmul.mubr.f32.gmra.mrb[0].mxu0 %v5638
    %v5779 = vpop.f32.mrb[0].mxu0
    %v5780 = vadd.f32 0.0, %v5779
    %v5781 = vpop.f32.mrb[0].mxu0
    %5782 = vmatprep.mubr.f32.mxu0 0.0
    %5783 = vmatmul.mubr.f32.gmra.mrb[0].mxu0 %v5641
    %v5784 = vpop.f32.mrb[0].mxu0
    %v5785 = vadd.f32 0.0, %v5784
    %v5786 = vpop.f32.mrb[0].mxu0
    %5787 = vdwg.mxu0
    %v5788 = vadd.f32 %v5570, %v5710
    %v5789 = vadd.f32 %v5571, %v5715
    %v5790 = vadd.f32 %v5572, %v5720
    %v5791 = vadd.f32 %v5573, %v5725
    %v5792 = vadd.f32 %v5574, %v5730
    %v5793 = vadd.f32 %v5575, %v5735
    %v5794 = vadd.f32 %v5576, %v5740
    %v5795 = vadd.f32 %v5577, %v5745
    %v5796 = vadd.f32 %v5578, %v5750
    %v5797 = vadd.f32 %v5579, %v5755
    %v5798 = vadd.f32 %v5580, %v5760
    %v5799 = vadd.f32 %v5581, %v5765
    %v5800 = vadd.f32 %v5582, %v5770
    %v5801 = vadd.f32 %v5583, %v5775
    %v5802 = vadd.f32 %v5584, %v5780
    %v5803 = vadd.f32 %v5585, %v5785
    %s5804 = scalar_lea.vmem %s7, 448
    %v5805 = vld [vmem:[%s5804] sm:$0xff]
    %v5806 = vld [vmem:[%s5804 + $0x8] sm:$0xff]
    %v5807 = vld [vmem:[%s5804 + $0x10] sm:$0xff]
    %v5808 = vld [vmem:[%s5804 + $0x18] sm:$0xff]
    %v5809 = vld [vmem:[%s5804 + $0x20] sm:$0xff]
    %v5810 = vld [vmem:[%s5804 + $0x28] sm:$0xff]
    %v5811 = vld [vmem:[%s5804 + $0x30] sm:$0xff]
    %v5812 = vld [vmem:[%s5804 + $0x38] sm:$0xff]
    %v5814 = vsel %vm3172, %v4153, 0
    %v5817 = vsel %vm3172, %v4158, 0
    %v5820 = vsel %vm3172, %v4163, 0
    %v5823 = vsel %vm3172, %v4168, 0
    %v5826 = vsel %vm3172, %v4173, 0
    %v5829 = vsel %vm3172, %v4178, 0
    %v5832 = vsel %vm3172, %v4183, 0
    %v5835 = vsel %vm3172, %v4188, 0
    %v5838 = vsel %vm3172, %v4193, 0
    %v5841 = vsel %vm3172, %v4198, 0
    %v5844 = vsel %vm3172, %v4203, 0
    %v5847 = vsel %vm3172, %v4208, 0
    %v5850 = vsel %vm3172, %v4213, 0
    %v5853 = vsel %vm3172, %v4218, 0
    %v5856 = vsel %vm3172, %v4223, 0
    %v5859 = vsel %vm3172, %v4228, 0
    %5861 = vmatprep.subr.mxu0 0.0
    %5862 = vmatpush1.msra.mxu0 %v5805
    %5863 = vmatprep.subr.mxu0 0.0
    %5864 = vmatpush1.msra.mxu0 %v5806
    %5865 = vmatprep.subr.mxu0 0.0
    %5866 = vmatpush1.msra.mxu0 %v5807
    %5867 = vmatprep.subr.mxu0 0.0
    %5868 = vmatpush1.msra.mxu0 %v5808
    %5869 = vmatprep.subr.mxu0 0.0
    %5870 = vmatpush1.msra.mxu0 %v5809
    %5871 = vmatprep.subr.mxu0 0.0
    %5872 = vmatpush1.msra.mxu0 %v5810
    %5873 = vmatprep.subr.mxu0 0.0
    %5874 = vmatpush1.msra.mxu0 %v5811
    %5875 = vmatprep.subr.mxu0 0.0
    %5876 = vmatpush1.msra.mxu0 %v5812
    %5877 = vmatprep.subr.mxu0 0.0
    %5878 = vmatpush1.msra.mxu0 0.0
    %5879 = vmatprep.subr.mxu0 0.0
    %5880 = vmatpush1.msra.mxu0 0.0
    %5881 = vmatprep.subr.mxu0 0.0
    %5882 = vmatpush1.msra.mxu0 0.0
    %5883 = vmatprep.subr.mxu0 0.0
    %5884 = vmatpush1.msra.mxu0 0.0
    %5885 = vmatprep.subr.mxu0 0.0
    %5886 = vmatpush1.msra.mxu0 0.0
    %5887 = vmatprep.subr.mxu0 0.0
    %5888 = vmatpush1.msra.mxu0 0.0
    %5889 = vmatprep.subr.mxu0 0.0
    %5890 = vmatpush1.msra.mxu0 0.0
    %5891 = vmatprep.subr.mxu0 0.0
    %5892 = vmatpush1.msra.mxu0 0.0
    %5893 = vmatprep.subr.mxu0 0.0
    %5894 = vmatpush1.msra.mxu0 0.0
    %5895 = vmatprep.subr.mxu0 0.0
    %5896 = vmatpush1.msra.mxu0 0.0
    %5897 = vmatprep.subr.mxu0 0.0
    %5898 = vmatpush1.msra.mxu0 0.0
    %5899 = vmatprep.subr.mxu0 0.0
    %5900 = vmatpush1.msra.mxu0 0.0
    %5901 = vmatprep.subr.mxu0 0.0
    %5902 = vmatpush1.msra.mxu0 0.0
    %5903 = vmatprep.subr.mxu0 0.0
    %5904 = vmatpush1.msra.mxu0 0.0
    %5905 = vmatprep.subr.mxu0 0.0
    %5906 = vmatpush1.msra.mxu0 0.0
    %5907 = vmatprep.subr.mxu0 0.0
    %5908 = vmatpush1.msra.mxu0 0.0
    %5909 = vmatprep.subr.mxu0 0.0
    %5910 = vmatpush1.msra.mxu0 0.0
    %5911 = vmatprep.subr.mxu0 0.0
    %5912 = vmatpush1.msra.mxu0 0.0
    %5913 = vmatprep.subr.mxu0 0.0
    %5914 = vmatpush1.msra.mxu0 0.0
    %5915 = vmatprep.subr.mxu0 0.0
    %5916 = vmatpush1.msra.mxu0 0.0
    %5917 = vmatprep.subr.mxu0 0.0
    %5918 = vmatpush1.msra.mxu0 0.0
    %5919 = vmatprep.subr.mxu0 0.0
    %5920 = vmatpush1.msra.mxu0 0.0
    %5921 = vmatprep.subr.mxu0 0.0
    %5922 = vmatpush1.msra.mxu0 0.0
    %5923 = vmatprep.subr.mxu0 0.0
    %5924 = vmatpush1.msra.mxu0 0.0
    %5925 = vmatprep.mubr.f32.mxu0 0.0
    %5926 = vmatmul.mubr.f32.gmra.mrb[0].mxu0 %v5814
    %v5927 = vpop.f32.mrb[0].mxu0
    %v5928 = vadd.f32 0.0, %v5927
    %v5929 = vpop.f32.mrb[0].mxu0
    %5930 = vmatprep.mubr.f32.mxu0 0.0
    %5931 = vmatmul.mubr.f32.gmra.mrb[0].mxu0 %v5817
    %v5932 = vpop.f32.mrb[0].mxu0
    %v5933 = vadd.f32 0.0, %v5932
    %v5934 = vpop.f32.mrb[0].mxu0
    %5935 = vmatprep.mubr.f32.mxu0 0.0
    %5936 = vmatmul.mubr.f32.gmra.mrb[0].mxu0 %v5820
    %v5937 = vpop.f32.mrb[0].mxu0
    %v5938 = vadd.f32 0.0, %v5937
    %v5939 = vpop.f32.mrb[0].mxu0
    %5940 = vmatprep.mubr.f32.mxu0 0.0
    %5941 = vmatmul.mubr.f32.gmra.mrb[0].mxu0 %v5823
    %v5942 = vpop.f32.mrb[0].mxu0
    %v5943 = vadd.f32 0.0, %v5942
    %v5944 = vpop.f32.mrb[0].mxu0
    %5945 = vmatprep.mubr.f32.mxu0 0.0
    %5946 = vmatmul.mubr.f32.gmra.mrb[0].mxu0 %v5826
    %v5947 = vpop.f32.mrb[0].mxu0
    %v5948 = vadd.f32 0.0, %v5947
    %v5949 = vpop.f32.mrb[0].mxu0
    %5950 = vmatprep.mubr.f32.mxu0 0.0
    %5951 = vmatmul.mubr.f32.gmra.mrb[0].mxu0 %v5829
    %v5952 = vpop.f32.mrb[0].mxu0
    %v5953 = vadd.f32 0.0, %v5952
    %v5954 = vpop.f32.mrb[0].mxu0
    %5955 = vmatprep.mubr.f32.mxu0 0.0
    %5956 = vmatmul.mubr.f32.gmra.mrb[0].mxu0 %v5832
    %v5957 = vpop.f32.mrb[0].mxu0
    %v5958 = vadd.f32 0.0, %v5957
    %v5959 = vpop.f32.mrb[0].mxu0
    %5960 = vmatprep.mubr.f32.mxu0 0.0
    %5961 = vmatmul.mubr.f32.gmra.mrb[0].mxu0 %v5835
    %v5962 = vpop.f32.mrb[0].mxu0
    %v5963 = vadd.f32 0.0, %v5962
    %v5964 = vpop.f32.mrb[0].mxu0
    %5965 = vmatprep.mubr.f32.mxu0 0.0
    %5966 = vmatmul.mubr.f32.gmra.mrb[0].mxu0 %v5838
    %v5967 = vpop.f32.mrb[0].mxu0
    %v5968 = vadd.f32 0.0, %v5967
    %v5969 = vpop.f32.mrb[0].mxu0
    %5970 = vmatprep.mubr.f32.mxu0 0.0
    %5971 = vmatmul.mubr.f32.gmra.mrb[0].mxu0 %v5841
    %v5972 = vpop.f32.mrb[0].mxu0
    %v5973 = vadd.f32 0.0, %v5972
    %v5974 = vpop.f32.mrb[0].mxu0
    %5975 = vmatprep.mubr.f32.mxu0 0.0
    %5976 = vmatmul.mubr.f32.gmra.mrb[0].mxu0 %v5844
    %v5977 = vpop.f32.mrb[0].mxu0
    %v5978 = vadd.f32 0.0, %v5977
    %v5979 = vpop.f32.mrb[0].mxu0
    %5980 = vmatprep.mubr.f32.mxu0 0.0
    %5981 = vmatmul.mubr.f32.gmra.mrb[0].mxu0 %v5847
    %v5982 = vpop.f32.mrb[0].mxu0
    %v5983 = vadd.f32 0.0, %v5982
    %v5984 = vpop.f32.mrb[0].mxu0
    %5985 = vmatprep.mubr.f32.mxu0 0.0
    %5986 = vmatmul.mubr.f32.gmra.mrb[0].mxu0 %v5850
    %v5987 = vpop.f32.mrb[0].mxu0
    %v5988 = vadd.f32 0.0, %v5987
    %v5989 = vpop.f32.mrb[0].mxu0
    %5990 = vmatprep.mubr.f32.mxu0 0.0
    %5991 = vmatmul.mubr.f32.gmra.mrb[0].mxu0 %v5853
    %v5992 = vpop.f32.mrb[0].mxu0
    %v5993 = vadd.f32 0.0, %v5992
    %v5994 = vpop.f32.mrb[0].mxu0
    %5995 = vmatprep.mubr.f32.mxu0 0.0
    %5996 = vmatmul.mubr.f32.gmra.mrb[0].mxu0 %v5856
    %v5997 = vpop.f32.mrb[0].mxu0
    %v5998 = vadd.f32 0.0, %v5997
    %v5999 = vpop.f32.mrb[0].mxu0
    %6000 = vmatprep.mubr.f32.mxu0 0.0
    %6001 = vmatmul.mubr.f32.gmra.mrb[0].mxu0 %v5859
    %v6002 = vpop.f32.mrb[0].mxu0
    %v6003 = vadd.f32 0.0, %v6002
    %v6004 = vpop.f32.mrb[0].mxu0
    %6005 = vdwg.mxu0
    %v6006 = vadd.f32 %v5788, %v5928
    %v6007 = vadd.f32 %v5789, %v5933
    %v6008 = vadd.f32 %v5790, %v5938
    %v6009 = vadd.f32 %v5791, %v5943
    %v6010 = vadd.f32 %v5792, %v5948
    %v6011 = vadd.f32 %v5793, %v5953
    %v6012 = vadd.f32 %v5794, %v5958
    %v6013 = vadd.f32 %v5795, %v5963
    %v6014 = vadd.f32 %v5796, %v5968
    %v6015 = vadd.f32 %v5797, %v5973
    %v6016 = vadd.f32 %v5798, %v5978
    %v6017 = vadd.f32 %v5799, %v5983
    %v6018 = vadd.f32 %v5800, %v5988
    %v6019 = vadd.f32 %v5801, %v5993
    %v6020 = vadd.f32 %v5802, %v5998
    %v6021 = vadd.f32 %v5803, %v6003
    %s6022 = scalar_lea.vmem %s7, 512
    %v6023 = vld [vmem:[%s6022] sm:$0xff]
    %v6024 = vld [vmem:[%s6022 + $0x8] sm:$0xff]
    %v6025 = vld [vmem:[%s6022 + $0x10] sm:$0xff]
    %v6026 = vld [vmem:[%s6022 + $0x18] sm:$0xff]
    %v6027 = vld [vmem:[%s6022 + $0x20] sm:$0xff]
    %v6028 = vld [vmem:[%s6022 + $0x28] sm:$0xff]
    %v6029 = vld [vmem:[%s6022 + $0x30] sm:$0xff]
    %v6030 = vld [vmem:[%s6022 + $0x38] sm:$0xff]
    %v6032 = vsel %vm3172, %v4233, 0
    %v6035 = vsel %vm3172, %v4238, 0
    %v6038 = vsel %vm3172, %v4243, 0
    %v6041 = vsel %vm3172, %v4248, 0
    %v6044 = vsel %vm3172, %v4253, 0
    %v6047 = vsel %vm3172, %v4258, 0
    %v6050 = vsel %vm3172, %v4263, 0
    %v6053 = vsel %vm3172, %v4268, 0
    %v6056 = vsel %vm3172, %v4273, 0
    %v6059 = vsel %vm3172, %v4278, 0
    %v6062 = vsel %vm3172, %v4283, 0
    %v6065 = vsel %vm3172, %v4288, 0
    %v6068 = vsel %vm3172, %v4293, 0
    %v6071 = vsel %vm3172, %v4298, 0
    %v6074 = vsel %vm3172, %v4303, 0
    %v6077 = vsel %vm3172, %v4308, 0
    %6079 = vmatprep.subr.mxu0 0.0
    %6080 = vmatpush1.msra.mxu0 %v6023
    %6081 = vmatprep.subr.mxu0 0.0
    %6082 = vmatpush1.msra.mxu0 %v6024
    %6083 = vmatprep.subr.mxu0 0.0
    %6084 = vmatpush1.msra.mxu0 %v6025
    %6085 = vmatprep.subr.mxu0 0.0
    %6086 = vmatpush1.msra.mxu0 %v6026
    %6087 = vmatprep.subr.mxu0 0.0
    %6088 = vmatpush1.msra.mxu0 %v6027
    %6089 = vmatprep.subr.mxu0 0.0
    %6090 = vmatpush1.msra.mxu0 %v6028
    %6091 = vmatprep.subr.mxu0 0.0
    %6092 = vmatpush1.msra.mxu0 %v6029
    %6093 = vmatprep.subr.mxu0 0.0
    %6094 = vmatpush1.msra.mxu0 %v6030
    %6095 = vmatprep.subr.mxu0 0.0
    %6096 = vmatpush1.msra.mxu0 0.0
    %6097 = vmatprep.subr.mxu0 0.0
    %6098 = vmatpush1.msra.mxu0 0.0
    %6099 = vmatprep.subr.mxu0 0.0
    %6100 = vmatpush1.msra.mxu0 0.0
    %6101 = vmatprep.subr.mxu0 0.0
    %6102 = vmatpush1.msra.mxu0 0.0
    %6103 = vmatprep.subr.mxu0 0.0
    %6104 = vmatpush1.msra.mxu0 0.0
    %6105 = vmatprep.subr.mxu0 0.0
    %6106 = vmatpush1.msra.mxu0 0.0
    %6107 = vmatprep.subr.mxu0 0.0
    %6108 = vmatpush1.msra.mxu0 0.0
    %6109 = vmatprep.subr.mxu0 0.0
    %6110 = vmatpush1.msra.mxu0 0.0
    %6111 = vmatprep.subr.mxu0 0.0
    %6112 = vmatpush1.msra.mxu0 0.0
    %6113 = vmatprep.subr.mxu0 0.0
    %6114 = vmatpush1.msra.mxu0 0.0
    %6115 = vmatprep.subr.mxu0 0.0
    %6116 = vmatpush1.msra.mxu0 0.0
    %6117 = vmatprep.subr.mxu0 0.0
    %6118 = vmatpush1.msra.mxu0 0.0
    %6119 = vmatprep.subr.mxu0 0.0
    %6120 = vmatpush1.msra.mxu0 0.0
    %6121 = vmatprep.subr.mxu0 0.0
    %6122 = vmatpush1.msra.mxu0 0.0
    %6123 = vmatprep.subr.mxu0 0.0
    %6124 = vmatpush1.msra.mxu0 0.0
    %6125 = vmatprep.subr.mxu0 0.0
    %6126 = vmatpush1.msra.mxu0 0.0
    %6127 = vmatprep.subr.mxu0 0.0
    %6128 = vmatpush1.msra.mxu0 0.0
    %6129 = vmatprep.subr.mxu0 0.0
    %6130 = vmatpush1.msra.mxu0 0.0
    %6131 = vmatprep.subr.mxu0 0.0
    %6132 = vmatpush1.msra.mxu0 0.0
    %6133 = vmatprep.subr.mxu0 0.0
    %6134 = vmatpush1.msra.mxu0 0.0
    %6135 = vmatprep.subr.mxu0 0.0
    %6136 = vmatpush1.msra.mxu0 0.0
    %6137 = vmatprep.subr.mxu0 0.0
    %6138 = vmatpush1.msra.mxu0 0.0
    %6139 = vmatprep.subr.mxu0 0.0
    %6140 = vmatpush1.msra.mxu0 0.0
    %6141 = vmatprep.subr.mxu0 0.0
    %6142 = vmatpush1.msra.mxu0 0.0
    %6143 = vmatprep.mubr.f32.mxu0 0.0
    %6144 = vmatmul.mubr.f32.gmra.mrb[0].mxu0 %v6032
    %v6145 = vpop.f32.mrb[0].mxu0
    %v6146 = vadd.f32 0.0, %v6145
    %v6147 = vpop.f32.mrb[0].mxu0
    %6148 = vmatprep.mubr.f32.mxu0 0.0
    %6149 = vmatmul.mubr.f32.gmra.mrb[0].mxu0 %v6035
    %v6150 = vpop.f32.mrb[0].mxu0
    %v6151 = vadd.f32 0.0, %v6150
    %v6152 = vpop.f32.mrb[0].mxu0
    %6153 = vmatprep.mubr.f32.mxu0 0.0
    %6154 = vmatmul.mubr.f32.gmra.mrb[0].mxu0 %v6038
    %v6155 = vpop.f32.mrb[0].mxu0
    %v6156 = vadd.f32 0.0, %v6155
    %v6157 = vpop.f32.mrb[0].mxu0
    %6158 = vmatprep.mubr.f32.mxu0 0.0
    %6159 = vmatmul.mubr.f32.gmra.mrb[0].mxu0 %v6041
    %v6160 = vpop.f32.mrb[0].mxu0
    %v6161 = vadd.f32 0.0, %v6160
    %v6162 = vpop.f32.mrb[0].mxu0
    %6163 = vmatprep.mubr.f32.mxu0 0.0
    %6164 = vmatmul.mubr.f32.gmra.mrb[0].mxu0 %v6044
    %v6165 = vpop.f32.mrb[0].mxu0
    %v6166 = vadd.f32 0.0, %v6165
    %v6167 = vpop.f32.mrb[0].mxu0
    %6168 = vmatprep.mubr.f32.mxu0 0.0
    %6169 = vmatmul.mubr.f32.gmra.mrb[0].mxu0 %v6047
    %v6170 = vpop.f32.mrb[0].mxu0
    %v6171 = vadd.f32 0.0, %v6170
    %v6172 = vpop.f32.mrb[0].mxu0
    %6173 = vmatprep.mubr.f32.mxu0 0.0
    %6174 = vmatmul.mubr.f32.gmra.mrb[0].mxu0 %v6050
    %v6175 = vpop.f32.mrb[0].mxu0
    %v6176 = vadd.f32 0.0, %v6175
    %v6177 = vpop.f32.mrb[0].mxu0
    %6178 = vmatprep.mubr.f32.mxu0 0.0
    %6179 = vmatmul.mubr.f32.gmra.mrb[0].mxu0 %v6053
    %v6180 = vpop.f32.mrb[0].mxu0
    %v6181 = vadd.f32 0.0, %v6180
    %v6182 = vpop.f32.mrb[0].mxu0
    %6183 = vmatprep.mubr.f32.mxu0 0.0
    %6184 = vmatmul.mubr.f32.gmra.mrb[0].mxu0 %v6056
    %v6185 = vpop.f32.mrb[0].mxu0
    %v6186 = vadd.f32 0.0, %v6185
    %v6187 = vpop.f32.mrb[0].mxu0
    %6188 = vmatprep.mubr.f32.mxu0 0.0
    %6189 = vmatmul.mubr.f32.gmra.mrb[0].mxu0 %v6059
    %v6190 = vpop.f32.mrb[0].mxu0
    %v6191 = vadd.f32 0.0, %v6190
    %v6192 = vpop.f32.mrb[0].mxu0
    %6193 = vmatprep.mubr.f32.mxu0 0.0
    %6194 = vmatmul.mubr.f32.gmra.mrb[0].mxu0 %v6062
    %v6195 = vpop.f32.mrb[0].mxu0
    %v6196 = vadd.f32 0.0, %v6195
    %v6197 = vpop.f32.mrb[0].mxu0
    %6198 = vmatprep.mubr.f32.mxu0 0.0
    %6199 = vmatmul.mubr.f32.gmra.mrb[0].mxu0 %v6065
    %v6200 = vpop.f32.mrb[0].mxu0
    %v6201 = vadd.f32 0.0, %v6200
    %v6202 = vpop.f32.mrb[0].mxu0
    %6203 = vmatprep.mubr.f32.mxu0 0.0
    %6204 = vmatmul.mubr.f32.gmra.mrb[0].mxu0 %v6068
    %v6205 = vpop.f32.mrb[0].mxu0
    %v6206 = vadd.f32 0.0, %v6205
    %v6207 = vpop.f32.mrb[0].mxu0
    %6208 = vmatprep.mubr.f32.mxu0 0.0
    %6209 = vmatmul.mubr.f32.gmra.mrb[0].mxu0 %v6071
    %v6210 = vpop.f32.mrb[0].mxu0
    %v6211 = vadd.f32 0.0, %v6210
    %v6212 = vpop.f32.mrb[0].mxu0
    %6213 = vmatprep.mubr.f32.mxu0 0.0
    %6214 = vmatmul.mubr.f32.gmra.mrb[0].mxu0 %v6074
    %v6215 = vpop.f32.mrb[0].mxu0
    %v6216 = vadd.f32 0.0, %v6215
    %v6217 = vpop.f32.mrb[0].mxu0
    %6218 = vmatprep.mubr.f32.mxu0 0.0
    %6219 = vmatmul.mubr.f32.gmra.mrb[0].mxu0 %v6077
    %v6220 = vpop.f32.mrb[0].mxu0
    %v6221 = vadd.f32 0.0, %v6220
    %v6222 = vpop.f32.mrb[0].mxu0
    %6223 = vdwg.mxu0
    %v6224 = vadd.f32 %v6006, %v6146
    %v6225 = vadd.f32 %v6007, %v6151
    %v6226 = vadd.f32 %v6008, %v6156
    %v6227 = vadd.f32 %v6009, %v6161
    %v6228 = vadd.f32 %v6010, %v6166
    %v6229 = vadd.f32 %v6011, %v6171
    %v6230 = vadd.f32 %v6012, %v6176
    %v6231 = vadd.f32 %v6013, %v6181
    %v6232 = vadd.f32 %v6014, %v6186
    %v6233 = vadd.f32 %v6015, %v6191
    %v6234 = vadd.f32 %v6016, %v6196
    %v6235 = vadd.f32 %v6017, %v6201
    %v6236 = vadd.f32 %v6018, %v6206
    %v6237 = vadd.f32 %v6019, %v6211
    %v6238 = vadd.f32 %v6020, %v6216
    %v6239 = vadd.f32 %v6021, %v6221
    %v6240 = vld [vmem:[%s8] sm:$0x1]
    %v6242 = vlaneseq
    %v6243 = vshrl.u32 %v6242, 7
    %v6244 = vsub.s32 0, %v6243
    %v6245 = vrot.slane %v6240, %v6244
    %v6247 = vadd.f32 %v6224, %v6245
    %v6248 = vadd.f32 %v6225, %v6245
    %v6249 = vadd.f32 %v6226, %v6245
    %v6250 = vadd.f32 %v6227, %v6245
    %v6251 = vadd.f32 %v6228, %v6245
    %v6252 = vadd.f32 %v6229, %v6245
    %v6253 = vadd.f32 %v6230, %v6245
    %v6254 = vadd.f32 %v6231, %v6245
    %v6255 = vadd.f32 %v6232, %v6245
    %v6256 = vadd.f32 %v6233, %v6245
    %v6257 = vadd.f32 %v6234, %v6245
    %v6258 = vadd.f32 %v6235, %v6245
    %v6259 = vadd.f32 %v6236, %v6245
    %v6260 = vadd.f32 %v6237, %v6245
    %v6261 = vadd.f32 %v6238, %v6245
    %v6262 = vadd.f32 %v6239, %v6245
    %v6263 = vmax.f32 %v6247, 0.0
    %v6264 = vmax.f32 %v6248, 0.0
    %v6265 = vmax.f32 %v6249, 0.0
    %v6266 = vmax.f32 %v6250, 0.0
    %v6267 = vmax.f32 %v6251, 0.0
    %v6268 = vmax.f32 %v6252, 0.0
    %v6269 = vmax.f32 %v6253, 0.0
    %v6270 = vmax.f32 %v6254, 0.0
    %v6271 = vmax.f32 %v6255, 0.0
    %v6272 = vmax.f32 %v6256, 0.0
    %v6273 = vmax.f32 %v6257, 0.0
    %v6274 = vmax.f32 %v6258, 0.0
    %v6275 = vmax.f32 %v6259, 0.0
    %v6276 = vmax.f32 %v6260, 0.0
    %v6277 = vmax.f32 %v6261, 0.0
    %v6278 = vmax.f32 %v6262, 0.0
    %v6279 = vld [vmem:[%s9] sm:$0xff]
    %v6280 = vld [vmem:[%s9 + $0x8] sm:$0xff]
    %v6281 = vld [vmem:[%s9 + $0x10] sm:$0xff]
    %v6282 = vld [vmem:[%s9 + $0x18] sm:$0xff]
    %v6283 = vld [vmem:[%s9 + $0x20] sm:$0xff]
    %v6284 = vld [vmem:[%s9 + $0x28] sm:$0xff]
    %v6285 = vld [vmem:[%s9 + $0x30] sm:$0xff]
    %v6286 = vld [vmem:[%s9 + $0x38] sm:$0xff]
    %v6287 = vld [vmem:[%s9 + $0x40] sm:$0xff]
    %v6288 = vld [vmem:[%s9 + $0x48] sm:$0xff]
    %v6289 = vld [vmem:[%s9 + $0x50] sm:$0xff]
    %v6290 = vld [vmem:[%s9 + $0x58] sm:$0xff]
    %v6291 = vld [vmem:[%s9 + $0x60] sm:$0xff]
    %v6292 = vld [vmem:[%s9 + $0x68] sm:$0xff]
    %v6293 = vld [vmem:[%s9 + $0x70] sm:$0xff]
    %v6294 = vld [vmem:[%s9 + $0x78] sm:$0xff]
    %v6295 = vld [vmem:[%s10] sm:$0x3]
    %v6297 = vlaneseq
    %v6298 = vshrl.u32 %v6297, 7
    %v6299 = vsub.s32 0, %v6298
    %v6300 = vrot.slane %v6295, %v6299
    %v6301 = vlaneseq
    %v6302 = vshrl.u32 %v6301, 7
    %v6303 = vsub.s32 1, %v6302
    %v6304 = vrot.slane %v6295, %v6303
    %v6308 = vsel %vm3172, %v6263, 0
    %v6311 = vsel %vm3172, %v6264, 0
    %v6314 = vsel %vm3172, %v6265, 0
    %v6317 = vsel %vm3172, %v6266, 0
    %v6320 = vsel %vm3172, %v6267, 0
    %v6323 = vsel %vm3172, %v6268, 0
    %v6326 = vsel %vm3172, %v6269, 0
    %v6329 = vsel %vm3172, %v6270, 0
    %v6332 = vsel %vm3172, %v6271, 0
    %v6335 = vsel %vm3172, %v6272, 0
    %v6338 = vsel %vm3172, %v6273, 0
    %v6341 = vsel %vm3172, %v6274, 0
    %v6344 = vsel %vm3172, %v6275, 0
    %v6347 = vsel %vm3172, %v6276, 0
    %v6350 = vsel %vm3172, %v6277, 0
    %v6353 = vsel %vm3172, %v6278, 0
    %6355 = vmatprep.subr.mxu0 %v6280
    %6356 = vmatpush1.msra.mxu0 %v6279
    %6357 = vmatprep.subr.mxu0 %v6282
    %6358 = vmatpush1.msra.mxu0 %v6281
    %6359 = vmatprep.subr.mxu0 %v6284
    %6360 = vmatpush1.msra.mxu0 %v6283
    %6361 = vmatprep.subr.mxu0 %v6286
    %6362 = vmatpush1.msra.mxu0 %v6285
    %6363 = vmatprep.subr.mxu0 %v6288
    %6364 = vmatpush1.msra.mxu0 %v6287
    %6365 = vmatprep.subr.mxu0 %v6290
    %6366 = vmatpush1.msra.mxu0 %v6289
    %6367 = vmatprep.subr.mxu0 %v6292
    %6368 = vmatpush1.msra.mxu0 %v6291
    %6369 = vmatprep.subr.mxu0 %v6294
    %6370 = vmatpush1.msra.mxu0 %v6293
    %6371 = vmatprep.subr.mxu0 0.0
    %6372 = vmatpush1.msra.mxu0 0.0
    %6373 = vmatprep.subr.mxu0 0.0
    %6374 = vmatpush1.msra.mxu0 0.0
    %6375 = vmatprep.subr.mxu0 0.0
    %6376 = vmatpush1.msra.mxu0 0.0
    %6377 = vmatprep.subr.mxu0 0.0
    %6378 = vmatpush1.msra.mxu0 0.0
    %6379 = vmatprep.subr.mxu0 0.0
    %6380 = vmatpush1.msra.mxu0 0.0
    %6381 = vmatprep.subr.mxu0 0.0
    %6382 = vmatpush1.msra.mxu0 0.0
    %6383 = vmatprep.subr.mxu0 0.0
    %6384 = vmatpush1.msra.mxu0 0.0
    %6385 = vmatprep.subr.mxu0 0.0
    %6386 = vmatpush1.msra.mxu0 0.0
    %6387 = vmatprep.subr.mxu0 0.0
    %6388 = vmatpush1.msra.mxu0 0.0
    %6389 = vmatprep.subr.mxu0 0.0
    %6390 = vmatpush1.msra.mxu0 0.0
    %6391 = vmatprep.subr.mxu0 0.0
    %6392 = vmatpush1.msra.mxu0 0.0
    %6393 = vmatprep.subr.mxu0 0.0
    %6394 = vmatpush1.msra.mxu0 0.0
    %6395 = vmatprep.subr.mxu0 0.0
    %6396 = vmatpush1.msra.mxu0 0.0
    %6397 = vmatprep.subr.mxu0 0.0
    %6398 = vmatpush1.msra.mxu0 0.0
    %6399 = vmatprep.subr.mxu0 0.0
    %6400 = vmatpush1.msra.mxu0 0.0
    %6401 = vmatprep.subr.mxu0 0.0
    %6402 = vmatpush1.msra.mxu0 0.0
    %6403 = vmatprep.subr.mxu0 0.0
    %6404 = vmatpush1.msra.mxu0 0.0
    %6405 = vmatprep.subr.mxu0 0.0
    %6406 = vmatpush1.msra.mxu0 0.0
    %6407 = vmatprep.subr.mxu0 0.0
    %6408 = vmatpush1.msra.mxu0 0.0
    %6409 = vmatprep.subr.mxu0 0.0
    %6410 = vmatpush1.msra.mxu0 0.0
    %6411 = vmatprep.subr.mxu0 0.0
    %6412 = vmatpush1.msra.mxu0 0.0
    %6413 = vmatprep.subr.mxu0 0.0
    %6414 = vmatpush1.msra.mxu0 0.0
    %6415 = vmatprep.subr.mxu0 0.0
    %6416 = vmatpush1.msra.mxu0 0.0
    %6417 = vmatprep.subr.mxu0 0.0
    %6418 = vmatpush1.msra.mxu0 0.0
    %6419 = vmatprep.mubr.f32.mxu0 0.0
    %6420 = vmatmul.mubr.f32.gmra.mrb[0].mxu0 %v6308
    %v6421 = vpop.f32.mrb[0].mxu0
    %v6422 = vadd.f32 %v6300, %v6421
    %v6423 = vpop.f32.mrb[0].mxu0
    %v6424 = vadd.f32 %v6304, %v6423
    %6425 = vmatprep.mubr.f32.mxu0 0.0
    %6426 = vmatmul.mubr.f32.gmra.mrb[0].mxu0 %v6311
    %v6427 = vpop.f32.mrb[0].mxu0
    %v6428 = vadd.f32 %v6300, %v6427
    %v6429 = vpop.f32.mrb[0].mxu0
    %v6430 = vadd.f32 %v6304, %v6429
    %6431 = vmatprep.mubr.f32.mxu0 0.0
    %6432 = vmatmul.mubr.f32.gmra.mrb[0].mxu0 %v6314
    %v6433 = vpop.f32.mrb[0].mxu0
    %v6434 = vadd.f32 %v6300, %v6433
    %v6435 = vpop.f32.mrb[0].mxu0
    %v6436 = vadd.f32 %v6304, %v6435
    %6437 = vmatprep.mubr.f32.mxu0 0.0
    %6438 = vmatmul.mubr.f32.gmra.mrb[0].mxu0 %v6317
    %v6439 = vpop.f32.mrb[0].mxu0
    %v6440 = vadd.f32 %v6300, %v6439
    %v6441 = vpop.f32.mrb[0].mxu0
    %v6442 = vadd.f32 %v6304, %v6441
    %6443 = vmatprep.mubr.f32.mxu0 0.0
    %6444 = vmatmul.mubr.f32.gmra.mrb[0].mxu0 %v6320
    %v6445 = vpop.f32.mrb[0].mxu0
    %v6446 = vadd.f32 %v6300, %v6445
    %v6447 = vpop.f32.mrb[0].mxu0
    %v6448 = vadd.f32 %v6304, %v6447
    %6449 = vmatprep.mubr.f32.mxu0 0.0
    %6450 = vmatmul.mubr.f32.gmra.mrb[0].mxu0 %v6323
    %v6451 = vpop.f32.mrb[0].mxu0
    %v6452 = vadd.f32 %v6300, %v6451
    %v6453 = vpop.f32.mrb[0].mxu0
    %v6454 = vadd.f32 %v6304, %v6453
    %6455 = vmatprep.mubr.f32.mxu0 0.0
    %6456 = vmatmul.mubr.f32.gmra.mrb[0].mxu0 %v6326
    %v6457 = vpop.f32.mrb[0].mxu0
    %v6458 = vadd.f32 %v6300, %v6457
    %v6459 = vpop.f32.mrb[0].mxu0
    %v6460 = vadd.f32 %v6304, %v6459
    %6461 = vmatprep.mubr.f32.mxu0 0.0
    %6462 = vmatmul.mubr.f32.gmra.mrb[0].mxu0 %v6329
    %v6463 = vpop.f32.mrb[0].mxu0
    %v6464 = vadd.f32 %v6300, %v6463
    %v6465 = vpop.f32.mrb[0].mxu0
    %v6466 = vadd.f32 %v6304, %v6465
    %6467 = vmatprep.mubr.f32.mxu0 0.0
    %6468 = vmatmul.mubr.f32.gmra.mrb[0].mxu0 %v6332
    %v6469 = vpop.f32.mrb[0].mxu0
    %v6470 = vadd.f32 %v6300, %v6469
    %v6471 = vpop.f32.mrb[0].mxu0
    %v6472 = vadd.f32 %v6304, %v6471
    %6473 = vmatprep.mubr.f32.mxu0 0.0
    %6474 = vmatmul.mubr.f32.gmra.mrb[0].mxu0 %v6335
    %v6475 = vpop.f32.mrb[0].mxu0
    %v6476 = vadd.f32 %v6300, %v6475
    %v6477 = vpop.f32.mrb[0].mxu0
    %v6478 = vadd.f32 %v6304, %v6477
    %6479 = vmatprep.mubr.f32.mxu0 0.0
    %6480 = vmatmul.mubr.f32.gmra.mrb[0].mxu0 %v6338
    %v6481 = vpop.f32.mrb[0].mxu0
    %v6482 = vadd.f32 %v6300, %v6481
    %v6483 = vpop.f32.mrb[0].mxu0
    %v6484 = vadd.f32 %v6304, %v6483
    %6485 = vmatprep.mubr.f32.mxu0 0.0
    %6486 = vmatmul.mubr.f32.gmra.mrb[0].mxu0 %v6341
    %v6487 = vpop.f32.mrb[0].mxu0
    %v6488 = vadd.f32 %v6300, %v6487
    %v6489 = vpop.f32.mrb[0].mxu0
    %v6490 = vadd.f32 %v6304, %v6489
    %6491 = vmatprep.mubr.f32.mxu0 0.0
    %6492 = vmatmul.mubr.f32.gmra.mrb[0].mxu0 %v6344
    %v6493 = vpop.f32.mrb[0].mxu0
    %v6494 = vadd.f32 %v6300, %v6493
    %v6495 = vpop.f32.mrb[0].mxu0
    %v6496 = vadd.f32 %v6304, %v6495
    %6497 = vmatprep.mubr.f32.mxu0 0.0
    %6498 = vmatmul.mubr.f32.gmra.mrb[0].mxu0 %v6347
    %v6499 = vpop.f32.mrb[0].mxu0
    %v6500 = vadd.f32 %v6300, %v6499
    %v6501 = vpop.f32.mrb[0].mxu0
    %v6502 = vadd.f32 %v6304, %v6501
    %6503 = vmatprep.mubr.f32.mxu0 0.0
    %6504 = vmatmul.mubr.f32.gmra.mrb[0].mxu0 %v6350
    %v6505 = vpop.f32.mrb[0].mxu0
    %v6506 = vadd.f32 %v6300, %v6505
    %v6507 = vpop.f32.mrb[0].mxu0
    %v6508 = vadd.f32 %v6304, %v6507
    %6509 = vmatprep.mubr.f32.mxu0 0.0
    %6510 = vmatmul.mubr.f32.gmra.mrb[0].mxu0 %v6353
    %v6511 = vpop.f32.mrb[0].mxu0
    %v6512 = vadd.f32 %v6300, %v6511
    %v6513 = vpop.f32.mrb[0].mxu0
    %v6514 = vadd.f32 %v6304, %v6513
    %6515 = vdwg.mxu0
    %v6516 = vmax.f32 %v6422, 0.0
    %v6517 = vmax.f32 %v6424, 0.0
    %v6518 = vmax.f32 %v6428, 0.0
    %v6519 = vmax.f32 %v6430, 0.0
    %v6520 = vmax.f32 %v6434, 0.0
    %v6521 = vmax.f32 %v6436, 0.0
    %v6522 = vmax.f32 %v6440, 0.0
    %v6523 = vmax.f32 %v6442, 0.0
    %v6524 = vmax.f32 %v6446, 0.0
    %v6525 = vmax.f32 %v6448, 0.0
    %v6526 = vmax.f32 %v6452, 0.0
    %v6527 = vmax.f32 %v6454, 0.0
    %v6528 = vmax.f32 %v6458, 0.0
    %v6529 = vmax.f32 %v6460, 0.0
    %v6530 = vmax.f32 %v6464, 0.0
    %v6531 = vmax.f32 %v6466, 0.0
    %v6532 = vmax.f32 %v6470, 0.0
    %v6533 = vmax.f32 %v6472, 0.0
    %v6534 = vmax.f32 %v6476, 0.0
    %v6535 = vmax.f32 %v6478, 0.0
    %v6536 = vmax.f32 %v6482, 0.0
    %v6537 = vmax.f32 %v6484, 0.0
    %v6538 = vmax.f32 %v6488, 0.0
    %v6539 = vmax.f32 %v6490, 0.0
    %v6540 = vmax.f32 %v6494, 0.0
    %v6541 = vmax.f32 %v6496, 0.0
    %v6542 = vmax.f32 %v6500, 0.0
    %v6543 = vmax.f32 %v6502, 0.0
    %v6544 = vmax.f32 %v6506, 0.0
    %v6545 = vmax.f32 %v6508, 0.0
    %v6546 = vmax.f32 %v6512, 0.0
    %v6547 = vmax.f32 %v6514, 0.0
    %v6548 = vld [vmem:[%s11] sm:$0xff]
    %v6549 = vld [vmem:[%s11 + $0x8] sm:$0xff]
    %v6550 = vld [vmem:[%s11 + $0x10] sm:$0xff]
    %v6551 = vld [vmem:[%s11 + $0x18] sm:$0xff]
    %v6552 = vld [vmem:[%s11 + $0x20] sm:$0xff]
    %v6553 = vld [vmem:[%s11 + $0x28] sm:$0xff]
    %v6554 = vld [vmem:[%s11 + $0x30] sm:$0xff]
    %v6555 = vld [vmem:[%s11 + $0x38] sm:$0xff]
    %v6556 = vld [vmem:[%s11 + $0x40] sm:$0xff]
    %v6557 = vld [vmem:[%s11 + $0x48] sm:$0xff]
    %v6558 = vld [vmem:[%s11 + $0x50] sm:$0xff]
    %v6559 = vld [vmem:[%s11 + $0x58] sm:$0xff]
    %v6560 = vld [vmem:[%s11 + $0x60] sm:$0xff]
    %v6561 = vld [vmem:[%s11 + $0x68] sm:$0xff]
    %v6562 = vld [vmem:[%s11 + $0x70] sm:$0xff]
    %v6563 = vld [vmem:[%s11 + $0x78] sm:$0xff]
    %v6564 = vld [vmem:[%s11 + $0x80] sm:$0xff]
    %v6565 = vld [vmem:[%s11 + $0x88] sm:$0xff]
    %v6566 = vld [vmem:[%s11 + $0x90] sm:$0xff]
    %v6567 = vld [vmem:[%s11 + $0x98] sm:$0xff]
    %v6568 = vld [vmem:[%s11 + $0xa0] sm:$0xff]
    %v6569 = vld [vmem:[%s11 + $0xa8] sm:$0xff]
    %v6570 = vld [vmem:[%s11 + $0xb0] sm:$0xff]
    %v6571 = vld [vmem:[%s11 + $0xb8] sm:$0xff]
    %v6572 = vld [vmem:[%s11 + $0xc0] sm:$0xff]
    %v6573 = vld [vmem:[%s11 + $0xc8] sm:$0xff]
    %v6574 = vld [vmem:[%s11 + $0xd0] sm:$0xff]
    %v6575 = vld [vmem:[%s11 + $0xd8] sm:$0xff]
    %v6576 = vld [vmem:[%s11 + $0xe0] sm:$0xff]
    %v6577 = vld [vmem:[%s11 + $0xe8] sm:$0xff]
    %v6578 = vld [vmem:[%s11 + $0xf0] sm:$0xff]
    %v6579 = vld [vmem:[%s11 + $0xf8] sm:$0xff]
    %v6580 = vld [vmem:[%s11 + $0x100] sm:$0xff]
    %v6581 = vld [vmem:[%s11 + $0x108] sm:$0xff]
    %v6582 = vld [vmem:[%s11 + $0x110] sm:$0xff]
    %v6583 = vld [vmem:[%s11 + $0x118] sm:$0xff]
    %6584 = vmatprep.subr.mxu0 %v6517
    %6585 = vmatpush1.msra.mxu0 %v6516
    %6586 = vmatprep.subr.mxu0 %v6519
    %6587 = vmatpush1.msra.mxu0 %v6518
    %6588 = vmatprep.subr.mxu0 %v6521
    %6589 = vmatpush1.msra.mxu0 %v6520
    %6590 = vmatprep.subr.mxu0 %v6523
    %6591 = vmatpush1.msra.mxu0 %v6522
    %6592 = vmatprep.subr.mxu0 %v6525
    %6593 = vmatpush1.msra.mxu0 %v6524
    %6594 = vmatprep.subr.mxu0 %v6527
    %6595 = vmatpush1.msra.mxu0 %v6526
    %6596 = vmatprep.subr.mxu0 %v6529
    %6597 = vmatpush1.msra.mxu0 %v6528
    %6598 = vmatprep.subr.mxu0 %v6531
    %6599 = vmatpush1.msra.mxu0 %v6530
    %6600 = vmatprep.subr.mxu0 %v6533
    %6601 = vmatpush1.msra.mxu0 %v6532
    %6602 = vmatprep.subr.mxu0 %v6535
    %6603 = vmatpush1.msra.mxu0 %v6534
    %6604 = vmatprep.subr.mxu0 %v6537
    %6605 = vmatpush1.msra.mxu0 %v6536
    %6606 = vmatprep.subr.mxu0 %v6539
    %6607 = vmatpush1.msra.mxu0 %v6538
    %6608 = vmatprep.subr.mxu0 %v6541
    %6609 = vmatpush1.msra.mxu0 %v6540
    %6610 = vmatprep.subr.mxu0 %v6543
    %6611 = vmatpush1.msra.mxu0 %v6542
    %6612 = vmatprep.subr.mxu0 %v6545
    %6613 = vmatpush1.msra.mxu0 %v6544
    %6614 = vmatprep.subr.mxu0 %v6547
    %6615 = vmatpush1.msra.mxu0 %v6546
    %6616 = vmatprep.subr.mxu0 0.0
    %6617 = vmatpush1.msra.mxu0 0.0
    %6618 = vmatprep.subr.mxu0 0.0
    %6619 = vmatpush1.msra.mxu0 0.0
    %6620 = vmatprep.subr.mxu0 0.0
    %6621 = vmatpush1.msra.mxu0 0.0
    %6622 = vmatprep.subr.mxu0 0.0
    %6623 = vmatpush1.msra.mxu0 0.0
    %6624 = vmatprep.subr.mxu0 0.0
    %6625 = vmatpush1.msra.mxu0 0.0
    %6626 = vmatprep.subr.mxu0 0.0
    %6627 = vmatpush1.msra.mxu0 0.0
    %6628 = vmatprep.subr.mxu0 0.0
    %6629 = vmatpush1.msra.mxu0 0.0
    %6630 = vmatprep.subr.mxu0 0.0
    %6631 = vmatpush1.msra.mxu0 0.0
    %6632 = vmatprep.subr.mxu0 0.0
    %6633 = vmatpush1.msra.mxu0 0.0
    %6634 = vmatprep.subr.mxu0 0.0
    %6635 = vmatpush1.msra.mxu0 0.0
    %6636 = vmatprep.subr.mxu0 0.0
    %6637 = vmatpush1.msra.mxu0 0.0
    %6638 = vmatprep.subr.mxu0 0.0
    %6639 = vmatpush1.msra.mxu0 0.0
    %6640 = vmatprep.subr.mxu0 0.0
    %6641 = vmatpush1.msra.mxu0 0.0
    %6642 = vmatprep.subr.mxu0 0.0
    %6643 = vmatpush1.msra.mxu0 0.0
    %6644 = vmatprep.subr.mxu0 0.0
    %6645 = vmatpush1.msra.mxu0 0.0
    %6646 = vmatprep.subr.mxu0 0.0
    %6647 = vmatpush1.msra.mxu0 0.0
    %6648 = vmatprep.mubr.f32.mxu0 0.0
    %6649 = vmatmul.mubr.f32.gmra.mrb[0].mxu0 %v6548
    %v6650 = vpop.f32.mrb[0].mxu0
    %v6651 = vadd.f32 0.0, %v6650
    %v6652 = vpop.f32.mrb[0].mxu0
    %v6653 = vadd.f32 0.0, %v6652
    %6654 = vmatprep.mubr.f32.mxu0 0.0
    %6655 = vmatmul.mubr.f32.gmra.mrb[0].mxu0 %v6549
    %v6656 = vpop.f32.mrb[0].mxu0
    %v6657 = vadd.f32 0.0, %v6656
    %v6658 = vpop.f32.mrb[0].mxu0
    %v6659 = vadd.f32 0.0, %v6658
    %6660 = vmatprep.mubr.f32.mxu0 0.0
    %6661 = vmatmul.mubr.f32.gmra.mrb[0].mxu0 %v6550
    %v6662 = vpop.f32.mrb[0].mxu0
    %v6663 = vadd.f32 0.0, %v6662
    %v6664 = vpop.f32.mrb[0].mxu0
    %v6665 = vadd.f32 0.0, %v6664
    %6666 = vmatprep.mubr.f32.mxu0 0.0
    %6667 = vmatmul.mubr.f32.gmra.mrb[0].mxu0 %v6551
    %v6668 = vpop.f32.mrb[0].mxu0
    %v6669 = vadd.f32 0.0, %v6668
    %v6670 = vpop.f32.mrb[0].mxu0
    %v6671 = vadd.f32 0.0, %v6670
    %6672 = vmatprep.mubr.f32.mxu0 0.0
    %6673 = vmatmul.mubr.f32.gmra.mrb[0].mxu0 %v6552
    %v6674 = vpop.f32.mrb[0].mxu0
    %v6675 = vadd.f32 0.0, %v6674
    %v6676 = vpop.f32.mrb[0].mxu0
    %v6677 = vadd.f32 0.0, %v6676
    %6678 = vmatprep.mubr.f32.mxu0 0.0
    %6679 = vmatmul.mubr.f32.gmra.mrb[0].mxu0 %v6553
    %v6680 = vpop.f32.mrb[0].mxu0
    %v6681 = vadd.f32 0.0, %v6680
    %v6682 = vpop.f32.mrb[0].mxu0
    %v6683 = vadd.f32 0.0, %v6682
    %6684 = vmatprep.mubr.f32.mxu0 0.0
    %6685 = vmatmul.mubr.f32.gmra.mrb[0].mxu0 %v6554
    %v6686 = vpop.f32.mrb[0].mxu0
    %v6687 = vadd.f32 0.0, %v6686
    %v6688 = vpop.f32.mrb[0].mxu0
    %v6689 = vadd.f32 0.0, %v6688
    %6690 = vmatprep.mubr.f32.mxu0 0.0
    %6691 = vmatmul.mubr.f32.gmra.mrb[0].mxu0 %v6555
    %v6692 = vpop.f32.mrb[0].mxu0
    %v6693 = vadd.f32 0.0, %v6692
    %v6694 = vpop.f32.mrb[0].mxu0
    %v6695 = vadd.f32 0.0, %v6694
    %6696 = vmatprep.mubr.f32.mxu0 0.0
    %6697 = vmatmul.mubr.f32.gmra.mrb[0].mxu0 %v6556
    %v6698 = vpop.f32.mrb[0].mxu0
    %v6699 = vadd.f32 0.0, %v6698
    %v6700 = vpop.f32.mrb[0].mxu0
    %v6701 = vadd.f32 0.0, %v6700
    %6702 = vmatprep.mubr.f32.mxu0 0.0
    %6703 = vmatmul.mubr.f32.gmra.mrb[0].mxu0 %v6557
    %v6704 = vpop.f32.mrb[0].mxu0
    %v6705 = vadd.f32 0.0, %v6704
    %v6706 = vpop.f32.mrb[0].mxu0
    %v6707 = vadd.f32 0.0, %v6706
    %6708 = vmatprep.mubr.f32.mxu0 0.0
    %6709 = vmatmul.mubr.f32.gmra.mrb[0].mxu0 %v6558
    %v6710 = vpop.f32.mrb[0].mxu0
    %v6711 = vadd.f32 0.0, %v6710
    %v6712 = vpop.f32.mrb[0].mxu0
    %v6713 = vadd.f32 0.0, %v6712
    %6714 = vmatprep.mubr.f32.mxu0 0.0
    %6715 = vmatmul.mubr.f32.gmra.mrb[0].mxu0 %v6559
    %v6716 = vpop.f32.mrb[0].mxu0
    %v6717 = vadd.f32 0.0, %v6716
    %v6718 = vpop.f32.mrb[0].mxu0
    %v6719 = vadd.f32 0.0, %v6718
    %6720 = vmatprep.mubr.f32.mxu0 0.0
    %6721 = vmatmul.mubr.f32.gmra.mrb[0].mxu0 %v6560
    %v6722 = vpop.f32.mrb[0].mxu0
    %v6723 = vadd.f32 0.0, %v6722
    %v6724 = vpop.f32.mrb[0].mxu0
    %v6725 = vadd.f32 0.0, %v6724
    %6726 = vmatprep.mubr.f32.mxu0 0.0
    %6727 = vmatmul.mubr.f32.gmra.mrb[0].mxu0 %v6561
    %v6728 = vpop.f32.mrb[0].mxu0
    %v6729 = vadd.f32 0.0, %v6728
    %v6730 = vpop.f32.mrb[0].mxu0
    %v6731 = vadd.f32 0.0, %v6730
    %6732 = vmatprep.mubr.f32.mxu0 0.0
    %6733 = vmatmul.mubr.f32.gmra.mrb[0].mxu0 %v6562
    %v6734 = vpop.f32.mrb[0].mxu0
    %v6735 = vadd.f32 0.0, %v6734
    %v6736 = vpop.f32.mrb[0].mxu0
    %v6737 = vadd.f32 0.0, %v6736
    %6738 = vmatprep.mubr.f32.mxu0 0.0
    %6739 = vmatmul.mubr.f32.gmra.mrb[0].mxu0 %v6563
    %v6740 = vpop.f32.mrb[0].mxu0
    %v6741 = vadd.f32 0.0, %v6740
    %v6742 = vpop.f32.mrb[0].mxu0
    %v6743 = vadd.f32 0.0, %v6742
    %6744 = vmatprep.mubr.f32.mxu0 0.0
    %6745 = vmatmul.mubr.f32.gmra.mrb[0].mxu0 %v6564
    %v6746 = vpop.f32.mrb[0].mxu0
    %v6747 = vadd.f32 0.0, %v6746
    %v6748 = vpop.f32.mrb[0].mxu0
    %v6749 = vadd.f32 0.0, %v6748
    %6750 = vmatprep.mubr.f32.mxu0 0.0
    %6751 = vmatmul.mubr.f32.gmra.mrb[0].mxu0 %v6565
    %v6752 = vpop.f32.mrb[0].mxu0
    %v6753 = vadd.f32 0.0, %v6752
    %v6754 = vpop.f32.mrb[0].mxu0
    %v6755 = vadd.f32 0.0, %v6754
    %6756 = vmatprep.mubr.f32.mxu0 0.0
    %6757 = vmatmul.mubr.f32.gmra.mrb[0].mxu0 %v6566
    %v6758 = vpop.f32.mrb[0].mxu0
    %v6759 = vadd.f32 0.0, %v6758
    %v6760 = vpop.f32.mrb[0].mxu0
    %v6761 = vadd.f32 0.0, %v6760
    %6762 = vmatprep.mubr.f32.mxu0 0.0
    %6763 = vmatmul.mubr.f32.gmra.mrb[0].mxu0 %v6567
    %v6764 = vpop.f32.mrb[0].mxu0
    %v6765 = vadd.f32 0.0, %v6764
    %v6766 = vpop.f32.mrb[0].mxu0
    %v6767 = vadd.f32 0.0, %v6766
    %6768 = vmatprep.mubr.f32.mxu0 0.0
    %6769 = vmatmul.mubr.f32.gmra.mrb[0].mxu0 %v6568
    %v6770 = vpop.f32.mrb[0].mxu0
    %v6771 = vadd.f32 0.0, %v6770
    %v6772 = vpop.f32.mrb[0].mxu0
    %v6773 = vadd.f32 0.0, %v6772
    %6774 = vmatprep.mubr.f32.mxu0 0.0
    %6775 = vmatmul.mubr.f32.gmra.mrb[0].mxu0 %v6569
    %v6776 = vpop.f32.mrb[0].mxu0
    %v6777 = vadd.f32 0.0, %v6776
    %v6778 = vpop.f32.mrb[0].mxu0
    %v6779 = vadd.f32 0.0, %v6778
    %6780 = vmatprep.mubr.f32.mxu0 0.0
    %6781 = vmatmul.mubr.f32.gmra.mrb[0].mxu0 %v6570
    %v6782 = vpop.f32.mrb[0].mxu0
    %v6783 = vadd.f32 0.0, %v6782
    %v6784 = vpop.f32.mrb[0].mxu0
    %v6785 = vadd.f32 0.0, %v6784
    %6786 = vmatprep.mubr.f32.mxu0 0.0
    %6787 = vmatmul.mubr.f32.gmra.mrb[0].mxu0 %v6571
    %v6788 = vpop.f32.mrb[0].mxu0
    %v6789 = vadd.f32 0.0, %v6788
    %v6790 = vpop.f32.mrb[0].mxu0
    %v6791 = vadd.f32 0.0, %v6790
    %6792 = vmatprep.mubr.f32.mxu0 0.0
    %6793 = vmatmul.mubr.f32.gmra.mrb[0].mxu0 %v6572
    %v6794 = vpop.f32.mrb[0].mxu0
    %v6795 = vadd.f32 0.0, %v6794
    %v6796 = vpop.f32.mrb[0].mxu0
    %v6797 = vadd.f32 0.0, %v6796
    %6798 = vmatprep.mubr.f32.mxu0 0.0
    %6799 = vmatmul.mubr.f32.gmra.mrb[0].mxu0 %v6573
    %v6800 = vpop.f32.mrb[0].mxu0
    %v6801 = vadd.f32 0.0, %v6800
    %v6802 = vpop.f32.mrb[0].mxu0
    %v6803 = vadd.f32 0.0, %v6802
    %6804 = vmatprep.mubr.f32.mxu0 0.0
    %6805 = vmatmul.mubr.f32.gmra.mrb[0].mxu0 %v6574
    %v6806 = vpop.f32.mrb[0].mxu0
    %v6807 = vadd.f32 0.0, %v6806
    %v6808 = vpop.f32.mrb[0].mxu0
    %v6809 = vadd.f32 0.0, %v6808
    %6810 = vmatprep.mubr.f32.mxu0 0.0
    %6811 = vmatmul.mubr.f32.gmra.mrb[0].mxu0 %v6575
    %v6812 = vpop.f32.mrb[0].mxu0
    %v6813 = vadd.f32 0.0, %v6812
    %v6814 = vpop.f32.mrb[0].mxu0
    %v6815 = vadd.f32 0.0, %v6814
    %6816 = vmatprep.mubr.f32.mxu0 0.0
    %6817 = vmatmul.mubr.f32.gmra.mrb[0].mxu0 %v6576
    %v6818 = vpop.f32.mrb[0].mxu0
    %v6819 = vadd.f32 0.0, %v6818
    %v6820 = vpop.f32.mrb[0].mxu0
    %v6821 = vadd.f32 0.0, %v6820
    %6822 = vmatprep.mubr.f32.mxu0 0.0
    %6823 = vmatmul.mubr.f32.gmra.mrb[0].mxu0 %v6577
    %v6824 = vpop.f32.mrb[0].mxu0
    %v6825 = vadd.f32 0.0, %v6824
    %v6826 = vpop.f32.mrb[0].mxu0
    %v6827 = vadd.f32 0.0, %v6826
    %6828 = vmatprep.mubr.f32.mxu0 0.0
    %6829 = vmatmul.mubr.f32.gmra.mrb[0].mxu0 %v6578
    %v6830 = vpop.f32.mrb[0].mxu0
    %v6831 = vadd.f32 0.0, %v6830
    %v6832 = vpop.f32.mrb[0].mxu0
    %v6833 = vadd.f32 0.0, %v6832
    %6834 = vmatprep.mubr.f32.mxu0 0.0
    %6835 = vmatmul.mubr.f32.gmra.mrb[0].mxu0 %v6579
    %v6836 = vpop.f32.mrb[0].mxu0
    %v6837 = vadd.f32 0.0, %v6836
    %v6838 = vpop.f32.mrb[0].mxu0
    %v6839 = vadd.f32 0.0, %v6838
    %6840 = vmatprep.mubr.f32.mxu0 0.0
    %6841 = vmatmul.mubr.f32.gmra.mrb[0].mxu0 %v6580
    %v6842 = vpop.f32.mrb[0].mxu0
    %v6843 = vadd.f32 0.0, %v6842
    %v6844 = vpop.f32.mrb[0].mxu0
    %v6845 = vadd.f32 0.0, %v6844
    %6846 = vmatprep.mubr.f32.mxu0 0.0
    %6847 = vmatmul.mubr.f32.gmra.mrb[0].mxu0 %v6581
    %v6848 = vpop.f32.mrb[0].mxu0
    %v6849 = vadd.f32 0.0, %v6848
    %v6850 = vpop.f32.mrb[0].mxu0
    %v6851 = vadd.f32 0.0, %v6850
    %6852 = vmatprep.mubr.f32.mxu0 0.0
    %6853 = vmatmul.mubr.f32.gmra.mrb[0].mxu0 %v6582
    %v6854 = vpop.f32.mrb[0].mxu0
    %v6855 = vadd.f32 0.0, %v6854
    %v6856 = vpop.f32.mrb[0].mxu0
    %v6857 = vadd.f32 0.0, %v6856
    %6858 = vmatprep.mubr.f32.mxu0 0.0
    %6859 = vmatmul.mubr.f32.gmra.mrb[0].mxu0 %v6583
    %v6860 = vpop.f32.mrb[0].mxu0
    %v6861 = vadd.f32 0.0, %v6860
    %v6862 = vpop.f32.mrb[0].mxu0
    %v6863 = vadd.f32 0.0, %v6862
    %6864 = vdwg.mxu0
    %v6865 = vmax.f32 %v6651, %v6675
    %v6866 = vmax.f32 %v6653, %v6677
    %v6867 = vmax.f32 %v6657, %v6681
    %v6868 = vmax.f32 %v6659, %v6683
    %v6869 = vmax.f32 %v6663, %v6687
    %v6870 = vmax.f32 %v6665, %v6689
    %v6871 = vmax.f32 %v6669, %v6693
    %v6872 = vmax.f32 %v6671, %v6695
    %v6873 = vmax.f32 %v6699, %v6723
    %v6874 = vmax.f32 %v6701, %v6725
    %v6875 = vmax.f32 %v6705, %v6729
    %v6876 = vmax.f32 %v6707, %v6731
    %v6877 = vmax.f32 %v6711, %v6735
    %v6878 = vmax.f32 %v6713, %v6737
    %v6879 = vmax.f32 %v6717, %v6741
    %v6880 = vmax.f32 %v6719, %v6743
    %v6881 = vmax.f32 %v6747, %v6771
    %v6882 = vmax.f32 %v6749, %v6773
    %v6883 = vmax.f32 %v6753, %v6777
    %v6884 = vmax.f32 %v6755, %v6779
    %v6885 = vmax.f32 %v6759, %v6783
    %v6886 = vmax.f32 %v6761, %v6785
    %v6887 = vmax.f32 %v6765, %v6789
    %v6888 = vmax.f32 %v6767, %v6791
    %v6889 = vmax.f32 %v6795, %v6819
    %v6890 = vmax.f32 %v6797, %v6821
    %v6891 = vmax.f32 %v6801, %v6825
    %v6892 = vmax.f32 %v6803, %v6827
    %v6893 = vmax.f32 %v6807, %v6831
    %v6894 = vmax.f32 %v6809, %v6833
    %v6895 = vmax.f32 %v6813, %v6837
    %v6896 = vmax.f32 %v6815, %v6839
    %v6897 = vmax.f32 %v6865, %v6873
    %v6898 = vmax.f32 %v6866, %v6874
    %v6899 = vmax.f32 %v6867, %v6875
    %v6900 = vmax.f32 %v6868, %v6876
    %v6901 = vmax.f32 %v6869, %v6877
    %v6902 = vmax.f32 %v6870, %v6878
    %v6903 = vmax.f32 %v6871, %v6879
    %v6904 = vmax.f32 %v6872, %v6880
    %v6905 = vmax.f32 %v6881, %v6889
    %v6906 = vmax.f32 %v6882, %v6890
    %v6907 = vmax.f32 %v6883, %v6891
    %v6908 = vmax.f32 %v6884, %v6892
    %v6909 = vmax.f32 %v6885, %v6893
    %v6910 = vmax.f32 %v6886, %v6894
    %v6911 = vmax.f32 %v6887, %v6895
    %v6912 = vmax.f32 %v6888, %v6896
    %v6913 = vmax.f32 %v6897, %v6905
    %v6914 = vmax.f32 %v6898, %v6906
    %v6915 = vmax.f32 %v6899, %v6907
    %v6916 = vmax.f32 %v6900, %v6908
    %v6917 = vmax.f32 %v6901, %v6909
    %v6918 = vmax.f32 %v6902, %v6910
    %v6919 = vmax.f32 %v6903, %v6911
    %v6920 = vmax.f32 %v6904, %v6912
    %v6921 = vmax.f32 %v6913, %v6843
    %v6922 = vmax.f32 %v6914, %v6845
    %v6923 = vmax.f32 %v6915, %v6849
    %v6924 = vmax.f32 %v6916, %v6851
    %v6925 = vmax.f32 %v6917, %v6855
    %v6926 = vmax.f32 %v6918, %v6857
    %v6927 = vmax.f32 %v6919, %v6861
    %v6928 = vmax.f32 %v6920, %v6863
    %v6929 = vld [vmem:[#allocation2] sm:$0xff]
    %v6930 = vld [vmem:[#allocation2 + $0x8] sm:$0xff]
    %v6931 = vld [vmem:[#allocation2 + $0x10] sm:$0xff]
    %v6932 = vld [vmem:[#allocation2 + $0x18] sm:$0xff]
    %v6933 = vld [vmem:[#allocation2 + $0x20] sm:$0xff]
    %v6934 = vld [vmem:[#allocation2 + $0x28] sm:$0xff]
    %v6935 = vld [vmem:[#allocation2 + $0x30] sm:$0xff]
    %v6936 = vld [vmem:[#allocation2 + $0x38] sm:$0xff]
    %v6937 = vld [vmem:[#allocation2 + $0x40] sm:$0xff]
    %v6938 = vld [vmem:[#allocation2 + $0x48] sm:$0xff]
    %v6939 = vld [vmem:[#allocation2 + $0x50] sm:$0xff]
    %v6940 = vld [vmem:[#allocation2 + $0x58] sm:$0xff]
    %v6941 = vld [vmem:[#allocation2 + $0x60] sm:$0xff]
    %v6942 = vld [vmem:[#allocation2 + $0x68] sm:$0xff]
    %v6943 = vld [vmem:[#allocation2 + $0x70] sm:$0xff]
    %v6944 = vld [vmem:[#allocation2 + $0x78] sm:$0xff]
    %v6945 = vld [vmem:[#allocation2 + $0x80] sm:$0xff]
    %v6946 = vld [vmem:[#allocation2 + $0x88] sm:$0xff]
    %v6947 = vld [vmem:[#allocation2 + $0x90] sm:$0xff]
    %v6948 = vld [vmem:[#allocation2 + $0x98] sm:$0xff]
    %v6949 = vld [vmem:[#allocation2 + $0xa0] sm:$0xff]
    %v6950 = vld [vmem:[#allocation2 + $0xa8] sm:$0xff]
    %v6951 = vld [vmem:[#allocation2 + $0xb0] sm:$0xff]
    %v6952 = vld [vmem:[#allocation2 + $0xb8] sm:$0xff]
    %v6953 = vld [vmem:[#allocation2 + $0xc0] sm:$0xff]
    %v6954 = vld [vmem:[#allocation2 + $0xc8] sm:$0xff]
    %v6955 = vld [vmem:[#allocation2 + $0xd0] sm:$0xff]
    %v6956 = vld [vmem:[#allocation2 + $0xd8] sm:$0xff]
    %v6957 = vld [vmem:[#allocation2 + $0xe0] sm:$0xff]
    %v6958 = vld [vmem:[#allocation2 + $0xe8] sm:$0xff]
    %v6959 = vld [vmem:[#allocation2 + $0xf0] sm:$0xff]
    %v6960 = vld [vmem:[#allocation2 + $0xf8] sm:$0xff]
    %v6961 = vld [vmem:[%s13] sm:$0x1]
    %v6963 = vlaneseq
    %v6964 = vshrl.u32 %v6963, 7
    %v6965 = vsub.s32 0, %v6964
    %v6966 = vrot.slane %v6961, %v6965
    %6968 = vmatprep.subr.mxu0 0.0
    %6969 = vmatpush1.msra.mxu0 %v6929
    %6970 = vmatprep.subr.mxu0 0.0
    %6971 = vmatpush1.msra.mxu0 %v6930
    %6972 = vmatprep.subr.mxu0 0.0
    %6973 = vmatpush1.msra.mxu0 %v6931
    %6974 = vmatprep.subr.mxu0 0.0
    %6975 = vmatpush1.msra.mxu0 %v6932
    %6976 = vmatprep.subr.mxu0 0.0
    %6977 = vmatpush1.msra.mxu0 %v6933
    %6978 = vmatprep.subr.mxu0 0.0
    %6979 = vmatpush1.msra.mxu0 %v6934
    %6980 = vmatprep.subr.mxu0 0.0
    %6981 = vmatpush1.msra.mxu0 %v6935
    %6982 = vmatprep.subr.mxu0 0.0
    %6983 = vmatpush1.msra.mxu0 %v6936
    %6984 = vmatprep.subr.mxu0 0.0
    %6985 = vmatpush1.msra.mxu0 %v6937
    %6986 = vmatprep.subr.mxu0 0.0
    %6987 = vmatpush1.msra.mxu0 %v6938
    %6988 = vmatprep.subr.mxu0 0.0
    %6989 = vmatpush1.msra.mxu0 %v6939
    %6990 = vmatprep.subr.mxu0 0.0
    %6991 = vmatpush1.msra.mxu0 %v6940
    %6992 = vmatprep.subr.mxu0 0.0
    %6993 = vmatpush1.msra.mxu0 %v6941
    %6994 = vmatprep.subr.mxu0 0.0
    %6995 = vmatpush1.msra.mxu0 %v6942
    %6996 = vmatprep.subr.mxu0 0.0
    %6997 = vmatpush1.msra.mxu0 %v6943
    %6998 = vmatprep.subr.mxu0 0.0
    %6999 = vmatpush1.msra.mxu0 %v6944
    %7000 = vmatprep.subr.mxu0 0.0
    %7001 = vmatpush1.msra.mxu0 %v6945
    %7002 = vmatprep.subr.mxu0 0.0
    %7003 = vmatpush1.msra.mxu0 %v6946
    %7004 = vmatprep.subr.mxu0 0.0
    %7005 = vmatpush1.msra.mxu0 %v6947
    %7006 = vmatprep.subr.mxu0 0.0
    %7007 = vmatpush1.msra.mxu0 %v6948
    %7008 = vmatprep.subr.mxu0 0.0
    %7009 = vmatpush1.msra.mxu0 %v6949
    %7010 = vmatprep.subr.mxu0 0.0
    %7011 = vmatpush1.msra.mxu0 %v6950
    %7012 = vmatprep.subr.mxu0 0.0
    %7013 = vmatpush1.msra.mxu0 %v6951
    %7014 = vmatprep.subr.mxu0 0.0
    %7015 = vmatpush1.msra.mxu0 %v6952
    %7016 = vmatprep.subr.mxu0 0.0
    %7017 = vmatpush1.msra.mxu0 %v6953
    %7018 = vmatprep.subr.mxu0 0.0
    %7019 = vmatpush1.msra.mxu0 %v6954
    %7020 = vmatprep.subr.mxu0 0.0
    %7021 = vmatpush1.msra.mxu0 %v6955
    %7022 = vmatprep.subr.mxu0 0.0
    %7023 = vmatpush1.msra.mxu0 %v6956
    %7024 = vmatprep.subr.mxu0 0.0
    %7025 = vmatpush1.msra.mxu0 %v6957
    %7026 = vmatprep.subr.mxu0 0.0
    %7027 = vmatpush1.msra.mxu0 %v6958
    %7028 = vmatprep.subr.mxu0 0.0
    %7029 = vmatpush1.msra.mxu0 %v6959
    %7030 = vmatprep.subr.mxu0 0.0
    %7031 = vmatpush1.msra.mxu0 %v6960
    %7032 = vmatprep.mubr.f32.mxu0 %v6922
    %7033 = vmatmul.mubr.f32.gmra.mrb[0].mxu0 %v6921
    %v7034 = vpop.f32.mrb[0].mxu0
    %v7035 = vadd.f32 %v6966, %v7034
    %v7036 = vpop.f32.mrb[0].mxu0
    %7037 = vmatprep.mubr.f32.mxu0 %v6924
    %7038 = vmatmul.mubr.f32.gmra.mrb[0].mxu0 %v6923
    %v7039 = vpop.f32.mrb[0].mxu0
    %v7040 = vadd.f32 %v6966, %v7039
    %v7041 = vpop.f32.mrb[0].mxu0
    %7042 = vmatprep.mubr.f32.mxu0 %v6926
    %7043 = vmatmul.mubr.f32.gmra.mrb[0].mxu0 %v6925
    %v7044 = vpop.f32.mrb[0].mxu0
    %v7045 = vadd.f32 %v6966, %v7044
    %v7046 = vpop.f32.mrb[0].mxu0
    %7047 = vmatprep.mubr.f32.mxu0 %v6928
    %7048 = vmatmul.mubr.f32.gmra.mrb[0].mxu0 %v6927
    %v7049 = vpop.f32.mrb[0].mxu0
    %v7050 = vadd.f32 %v6966, %v7049
    %v7051 = vpop.f32.mrb[0].mxu0
    %7052 = vdwg.mxu0
    %v7053 = vmax.f32 %v7035, 0.0
    %v7054 = vmax.f32 %v7040, 0.0
    %v7055 = vmax.f32 %v7045, 0.0
    %v7056 = vmax.f32 %v7050, 0.0
    %v7057 = vld [vmem:[%s14] sm:$0xff]
    %v7058 = vld [vmem:[%s14 + $0x8] sm:$0xff]
    %v7059 = vld [vmem:[%s14 + $0x10] sm:$0xff]
    %v7060 = vld [vmem:[%s14 + $0x18] sm:$0xff]
    %v7061 = vld [vmem:[%s14 + $0x20] sm:$0xff]
    %v7062 = vld [vmem:[%s14 + $0x28] sm:$0xff]
    %v7063 = vld [vmem:[%s14 + $0x30] sm:$0xff]
    %v7064 = vld [vmem:[%s14 + $0x38] sm:$0xff]
    %v7065 = vld [vmem:[%s14 + $0x40] sm:$0xff]
    %v7066 = vld [vmem:[%s14 + $0x48] sm:$0xff]
    %v7067 = vld [vmem:[%s14 + $0x50] sm:$0xff]
    %v7068 = vld [vmem:[%s14 + $0x58] sm:$0xff]
    %v7069 = vld [vmem:[%s14 + $0x60] sm:$0xff]
    %v7070 = vld [vmem:[%s14 + $0x68] sm:$0xff]
    %v7071 = vld [vmem:[%s14 + $0x70] sm:$0xff]
    %v7072 = vld [vmem:[%s14 + $0x78] sm:$0xff]
    %v7073 = vld [vmem:[%s14 + $0x80] sm:$0xff]
    %v7074 = vld [vmem:[%s14 + $0x88] sm:$0xff]
    %v7075 = vld [vmem:[%s14 + $0x90] sm:$0xff]
    %v7076 = vld [vmem:[%s14 + $0x98] sm:$0xff]
    %v7077 = vld [vmem:[%s14 + $0xa0] sm:$0xff]
    %v7078 = vld [vmem:[%s14 + $0xa8] sm:$0xff]
    %v7079 = vld [vmem:[%s14 + $0xb0] sm:$0xff]
    %v7080 = vld [vmem:[%s14 + $0xb8] sm:$0xff]
    %v7081 = vld [vmem:[%s14 + $0xc0] sm:$0xff]
    %v7082 = vld [vmem:[%s14 + $0xc8] sm:$0xff]
    %v7083 = vld [vmem:[%s14 + $0xd0] sm:$0xff]
    %v7084 = vld [vmem:[%s14 + $0xd8] sm:$0xff]
    %v7085 = vld [vmem:[%s14 + $0xe0] sm:$0xff]
    %v7086 = vld [vmem:[%s14 + $0xe8] sm:$0xff]
    %v7087 = vld [vmem:[%s14 + $0xf0] sm:$0xff]
    %v7088 = vld [vmem:[%s14 + $0xf8] sm:$0xff]
    %v7089 = vld [vmem:[%s14 + $0x100] sm:$0xff]
    %v7090 = vld [vmem:[%s14 + $0x108] sm:$0xff]
    %v7091 = vld [vmem:[%s14 + $0x110] sm:$0xff]
    %v7092 = vld [vmem:[%s14 + $0x118] sm:$0xff]
    %vm7093 = vcmask 261120
    %v7095 = vsel %vm7093, %v7057, 0
    %v7098 = vsel %vm7093, %v7058, 0
    %v7101 = vsel %vm7093, %v7059, 0
    %v7104 = vsel %vm7093, %v7060, 0
    %v7107 = vsel %vm7093, %v7061, 0
    %v7110 = vsel %vm7093, %v7062, 0
    %v7113 = vsel %vm7093, %v7063, 0
    %v7116 = vsel %vm7093, %v7064, 0
    %v7119 = vsel %vm7093, %v7065, 0
    %v7122 = vsel %vm7093, %v7066, 0
    %v7125 = vsel %vm7093, %v7067, 0
    %v7128 = vsel %vm7093, %v7068, 0
    %v7131 = vsel %vm7093, %v7069, 0
    %v7134 = vsel %vm7093, %v7070, 0
    %v7137 = vsel %vm7093, %v7071, 0
    %v7140 = vsel %vm7093, %v7072, 0
    %v7143 = vsel %vm7093, %v7073, 0
    %v7146 = vsel %vm7093, %v7074, 0
    %v7149 = vsel %vm7093, %v7075, 0
    %v7152 = vsel %vm7093, %v7076, 0
    %v7155 = vsel %vm7093, %v7077, 0
    %v7158 = vsel %vm7093, %v7078, 0
    %v7161 = vsel %vm7093, %v7079, 0
    %v7164 = vsel %vm7093, %v7080, 0
    %v7167 = vsel %vm7093, %v7081, 0
    %v7170 = vsel %vm7093, %v7082, 0
    %v7173 = vsel %vm7093, %v7083, 0
    %v7176 = vsel %vm7093, %v7084, 0
    %v7179 = vsel %vm7093, %v7085, 0
    %v7182 = vsel %vm7093, %v7086, 0
    %v7185 = vsel %vm7093, %v7087, 0
    %v7188 = vsel %vm7093, %v7088, 0
    %v7191 = vsel %vm7093, %v7089, 0
    %v7194 = vsel %vm7093, %v7090, 0
    %v7197 = vsel %vm7093, %v7091, 0
    %v7200 = vsel %vm7093, %v7092, 0
    %7202 = vmatprep.subr.mxu0 0.0
    %7203 = vmatpush1.msra.mxu0 %v7053
    %7204 = vmatprep.subr.mxu0 0.0
    %7205 = vmatpush1.msra.mxu0 %v7054
    %7206 = vmatprep.subr.mxu0 0.0
    %7207 = vmatpush1.msra.mxu0 %v7055
    %7208 = vmatprep.subr.mxu0 0.0
    %7209 = vmatpush1.msra.mxu0 %v7056
    %7210 = vmatprep.subr.mxu0 0.0
    %7211 = vmatpush1.msra.mxu0 0.0
    %7212 = vmatprep.subr.mxu0 0.0
    %7213 = vmatpush1.msra.mxu0 0.0
    %7214 = vmatprep.subr.mxu0 0.0
    %7215 = vmatpush1.msra.mxu0 0.0
    %7216 = vmatprep.subr.mxu0 0.0
    %7217 = vmatpush1.msra.mxu0 0.0
    %7218 = vmatprep.subr.mxu0 0.0
    %7219 = vmatpush1.msra.mxu0 0.0
    %7220 = vmatprep.subr.mxu0 0.0
    %7221 = vmatpush1.msra.mxu0 0.0
    %7222 = vmatprep.subr.mxu0 0.0
    %7223 = vmatpush1.msra.mxu0 0.0
    %7224 = vmatprep.subr.mxu0 0.0
    %7225 = vmatpush1.msra.mxu0 0.0
    %7226 = vmatprep.subr.mxu0 0.0
    %7227 = vmatpush1.msra.mxu0 0.0
    %7228 = vmatprep.subr.mxu0 0.0
    %7229 = vmatpush1.msra.mxu0 0.0
    %7230 = vmatprep.subr.mxu0 0.0
    %7231 = vmatpush1.msra.mxu0 0.0
    %7232 = vmatprep.subr.mxu0 0.0
    %7233 = vmatpush1.msra.mxu0 0.0
    %7234 = vmatprep.subr.mxu0 0.0
    %7235 = vmatpush1.msra.mxu0 0.0
    %7236 = vmatprep.subr.mxu0 0.0
    %7237 = vmatpush1.msra.mxu0 0.0
    %7238 = vmatprep.subr.mxu0 0.0
    %7239 = vmatpush1.msra.mxu0 0.0
    %7240 = vmatprep.subr.mxu0 0.0
    %7241 = vmatpush1.msra.mxu0 0.0
    %7242 = vmatprep.subr.mxu0 0.0
    %7243 = vmatpush1.msra.mxu0 0.0
    %7244 = vmatprep.subr.mxu0 0.0
    %7245 = vmatpush1.msra.mxu0 0.0
    %7246 = vmatprep.subr.mxu0 0.0
    %7247 = vmatpush1.msra.mxu0 0.0
    %7248 = vmatprep.subr.mxu0 0.0
    %7249 = vmatpush1.msra.mxu0 0.0
    %7250 = vmatprep.subr.mxu0 0.0
    %7251 = vmatpush1.msra.mxu0 0.0
    %7252 = vmatprep.subr.mxu0 0.0
    %7253 = vmatpush1.msra.mxu0 0.0
    %7254 = vmatprep.subr.mxu0 0.0
    %7255 = vmatpush1.msra.mxu0 0.0
    %7256 = vmatprep.subr.mxu0 0.0
    %7257 = vmatpush1.msra.mxu0 0.0
    %7258 = vmatprep.subr.mxu0 0.0
    %7259 = vmatpush1.msra.mxu0 0.0
    %7260 = vmatprep.subr.mxu0 0.0
    %7261 = vmatpush1.msra.mxu0 0.0
    %7262 = vmatprep.subr.mxu0 0.0
    %7263 = vmatpush1.msra.mxu0 0.0
    %7264 = vmatprep.subr.mxu0 0.0
    %7265 = vmatpush1.msra.mxu0 0.0
    %7266 = vmatprep.mubr.f32.mxu0 0.0
    %7267 = vmatmul.mubr.f32.gmra.mrb[0].mxu0 %v7095
    %v7268 = vpop.f32.mrb[0].mxu0
    %v7269 = vadd.f32 0.0, %v7268
    %v7270 = vpop.f32.mrb[0].mxu0
    %7271 = vmatprep.mubr.f32.mxu0 0.0
    %7272 = vmatmul.mubr.f32.gmra.mrb[0].mxu0 %v7098
    %v7273 = vpop.f32.mrb[0].mxu0
    %v7274 = vadd.f32 0.0, %v7273
    %v7275 = vpop.f32.mrb[0].mxu0
    %7276 = vmatprep.mubr.f32.mxu0 0.0
    %7277 = vmatmul.mubr.f32.gmra.mrb[0].mxu0 %v7101
    %v7278 = vpop.f32.mrb[0].mxu0
    %v7279 = vadd.f32 0.0, %v7278
    %v7280 = vpop.f32.mrb[0].mxu0
    %7281 = vmatprep.mubr.f32.mxu0 0.0
    %7282 = vmatmul.mubr.f32.gmra.mrb[0].mxu0 %v7104
    %v7283 = vpop.f32.mrb[0].mxu0
    %v7284 = vadd.f32 0.0, %v7283
    %v7285 = vpop.f32.mrb[0].mxu0
    %7286 = vmatprep.mubr.f32.mxu0 0.0
    %7287 = vmatmul.mubr.f32.gmra.mrb[0].mxu0 %v7107
    %v7288 = vpop.f32.mrb[0].mxu0
    %v7289 = vadd.f32 0.0, %v7288
    %v7290 = vpop.f32.mrb[0].mxu0
    %7291 = vmatprep.mubr.f32.mxu0 0.0
    %7292 = vmatmul.mubr.f32.gmra.mrb[0].mxu0 %v7110
    %v7293 = vpop.f32.mrb[0].mxu0
    %v7294 = vadd.f32 0.0, %v7293
    %v7295 = vpop.f32.mrb[0].mxu0
    %7296 = vmatprep.mubr.f32.mxu0 0.0
    %7297 = vmatmul.mubr.f32.gmra.mrb[0].mxu0 %v7113
    %v7298 = vpop.f32.mrb[0].mxu0
    %v7299 = vadd.f32 0.0, %v7298
    %v7300 = vpop.f32.mrb[0].mxu0
    %7301 = vmatprep.mubr.f32.mxu0 0.0
    %7302 = vmatmul.mubr.f32.gmra.mrb[0].mxu0 %v7116
    %v7303 = vpop.f32.mrb[0].mxu0
    %v7304 = vadd.f32 0.0, %v7303
    %v7305 = vpop.f32.mrb[0].mxu0
    %7306 = vmatprep.mubr.f32.mxu0 0.0
    %7307 = vmatmul.mubr.f32.gmra.mrb[0].mxu0 %v7119
    %v7308 = vpop.f32.mrb[0].mxu0
    %v7309 = vadd.f32 0.0, %v7308
    %v7310 = vpop.f32.mrb[0].mxu0
    %7311 = vmatprep.mubr.f32.mxu0 0.0
    %7312 = vmatmul.mubr.f32.gmra.mrb[0].mxu0 %v7122
    %v7313 = vpop.f32.mrb[0].mxu0
    %v7314 = vadd.f32 0.0, %v7313
    %v7315 = vpop.f32.mrb[0].mxu0
    %7316 = vmatprep.mubr.f32.mxu0 0.0
    %7317 = vmatmul.mubr.f32.gmra.mrb[0].mxu0 %v7125
    %v7318 = vpop.f32.mrb[0].mxu0
    %v7319 = vadd.f32 0.0, %v7318
    %v7320 = vpop.f32.mrb[0].mxu0
    %7321 = vmatprep.mubr.f32.mxu0 0.0
    %7322 = vmatmul.mubr.f32.gmra.mrb[0].mxu0 %v7128
    %v7323 = vpop.f32.mrb[0].mxu0
    %v7324 = vadd.f32 0.0, %v7323
    %v7325 = vpop.f32.mrb[0].mxu0
    %7326 = vmatprep.mubr.f32.mxu0 0.0
    %7327 = vmatmul.mubr.f32.gmra.mrb[0].mxu0 %v7131
    %v7328 = vpop.f32.mrb[0].mxu0
    %v7329 = vadd.f32 0.0, %v7328
    %v7330 = vpop.f32.mrb[0].mxu0
    %7331 = vmatprep.mubr.f32.mxu0 0.0
    %7332 = vmatmul.mubr.f32.gmra.mrb[0].mxu0 %v7134
    %v7333 = vpop.f32.mrb[0].mxu0
    %v7334 = vadd.f32 0.0, %v7333
    %v7335 = vpop.f32.mrb[0].mxu0
    %7336 = vmatprep.mubr.f32.mxu0 0.0
    %7337 = vmatmul.mubr.f32.gmra.mrb[0].mxu0 %v7137
    %v7338 = vpop.f32.mrb[0].mxu0
    %v7339 = vadd.f32 0.0, %v7338
    %v7340 = vpop.f32.mrb[0].mxu0
    %7341 = vmatprep.mubr.f32.mxu0 0.0
    %7342 = vmatmul.mubr.f32.gmra.mrb[0].mxu0 %v7140
    %v7343 = vpop.f32.mrb[0].mxu0
    %v7344 = vadd.f32 0.0, %v7343
    %v7345 = vpop.f32.mrb[0].mxu0
    %7346 = vmatprep.mubr.f32.mxu0 0.0
    %7347 = vmatmul.mubr.f32.gmra.mrb[0].mxu0 %v7143
    %v7348 = vpop.f32.mrb[0].mxu0
    %v7349 = vadd.f32 0.0, %v7348
    %v7350 = vpop.f32.mrb[0].mxu0
    %7351 = vmatprep.mubr.f32.mxu0 0.0
    %7352 = vmatmul.mubr.f32.gmra.mrb[0].mxu0 %v7146
    %v7353 = vpop.f32.mrb[0].mxu0
    %v7354 = vadd.f32 0.0, %v7353
    %v7355 = vpop.f32.mrb[0].mxu0
    %7356 = vmatprep.mubr.f32.mxu0 0.0
    %7357 = vmatmul.mubr.f32.gmra.mrb[0].mxu0 %v7149
    %v7358 = vpop.f32.mrb[0].mxu0
    %v7359 = vadd.f32 0.0, %v7358
    %v7360 = vpop.f32.mrb[0].mxu0
    %7361 = vmatprep.mubr.f32.mxu0 0.0
    %7362 = vmatmul.mubr.f32.gmra.mrb[0].mxu0 %v7152
    %v7363 = vpop.f32.mrb[0].mxu0
    %v7364 = vadd.f32 0.0, %v7363
    %v7365 = vpop.f32.mrb[0].mxu0
    %7366 = vmatprep.mubr.f32.mxu0 0.0
    %7367 = vmatmul.mubr.f32.gmra.mrb[0].mxu0 %v7155
    %v7368 = vpop.f32.mrb[0].mxu0
    %v7369 = vadd.f32 0.0, %v7368
    %v7370 = vpop.f32.mrb[0].mxu0
    %7371 = vmatprep.mubr.f32.mxu0 0.0
    %7372 = vmatmul.mubr.f32.gmra.mrb[0].mxu0 %v7158
    %v7373 = vpop.f32.mrb[0].mxu0
    %v7374 = vadd.f32 0.0, %v7373
    %v7375 = vpop.f32.mrb[0].mxu0
    %7376 = vmatprep.mubr.f32.mxu0 0.0
    %7377 = vmatmul.mubr.f32.gmra.mrb[0].mxu0 %v7161
    %v7378 = vpop.f32.mrb[0].mxu0
    %v7379 = vadd.f32 0.0, %v7378
    %v7380 = vpop.f32.mrb[0].mxu0
    %7381 = vmatprep.mubr.f32.mxu0 0.0
    %7382 = vmatmul.mubr.f32.gmra.mrb[0].mxu0 %v7164
    %v7383 = vpop.f32.mrb[0].mxu0
    %v7384 = vadd.f32 0.0, %v7383
    %v7385 = vpop.f32.mrb[0].mxu0
    %7386 = vmatprep.mubr.f32.mxu0 0.0
    %7387 = vmatmul.mubr.f32.gmra.mrb[0].mxu0 %v7167
    %v7388 = vpop.f32.mrb[0].mxu0
    %v7389 = vadd.f32 0.0, %v7388
    %v7390 = vpop.f32.mrb[0].mxu0
    %7391 = vmatprep.mubr.f32.mxu0 0.0
    %7392 = vmatmul.mubr.f32.gmra.mrb[0].mxu0 %v7170
    %v7393 = vpop.f32.mrb[0].mxu0
    %v7394 = vadd.f32 0.0, %v7393
    %v7395 = vpop.f32.mrb[0].mxu0
    %7396 = vmatprep.mubr.f32.mxu0 0.0
    %7397 = vmatmul.mubr.f32.gmra.mrb[0].mxu0 %v7173
    %v7398 = vpop.f32.mrb[0].mxu0
    %v7399 = vadd.f32 0.0, %v7398
    %v7400 = vpop.f32.mrb[0].mxu0
    %7401 = vmatprep.mubr.f32.mxu0 0.0
    %7402 = vmatmul.mubr.f32.gmra.mrb[0].mxu0 %v7176
    %v7403 = vpop.f32.mrb[0].mxu0
    %v7404 = vadd.f32 0.0, %v7403
    %v7405 = vpop.f32.mrb[0].mxu0
    %7406 = vmatprep.mubr.f32.mxu0 0.0
    %7407 = vmatmul.mubr.f32.gmra.mrb[0].mxu0 %v7179
    %v7408 = vpop.f32.mrb[0].mxu0
    %v7409 = vadd.f32 0.0, %v7408
    %v7410 = vpop.f32.mrb[0].mxu0
    %7411 = vmatprep.mubr.f32.mxu0 0.0
    %7412 = vmatmul.mubr.f32.gmra.mrb[0].mxu0 %v7182
    %v7413 = vpop.f32.mrb[0].mxu0
    %v7414 = vadd.f32 0.0, %v7413
    %v7415 = vpop.f32.mrb[0].mxu0
    %7416 = vmatprep.mubr.f32.mxu0 0.0
    %7417 = vmatmul.mubr.f32.gmra.mrb[0].mxu0 %v7185
    %v7418 = vpop.f32.mrb[0].mxu0
    %v7419 = vadd.f32 0.0, %v7418
    %v7420 = vpop.f32.mrb[0].mxu0
    %7421 = vmatprep.mubr.f32.mxu0 0.0
    %7422 = vmatmul.mubr.f32.gmra.mrb[0].mxu0 %v7188
    %v7423 = vpop.f32.mrb[0].mxu0
    %v7424 = vadd.f32 0.0, %v7423
    %v7425 = vpop.f32.mrb[0].mxu0
    %7426 = vmatprep.mubr.f32.mxu0 0.0
    %7427 = vmatmul.mubr.f32.gmra.mrb[0].mxu0 %v7191
    %v7428 = vpop.f32.mrb[0].mxu0
    %v7429 = vadd.f32 0.0, %v7428
    %v7430 = vpop.f32.mrb[0].mxu0
    %7431 = vmatprep.mubr.f32.mxu0 0.0
    %7432 = vmatmul.mubr.f32.gmra.mrb[0].mxu0 %v7194
    %v7433 = vpop.f32.mrb[0].mxu0
    %v7434 = vadd.f32 0.0, %v7433
    %v7435 = vpop.f32.mrb[0].mxu0
    %7436 = vmatprep.mubr.f32.mxu0 0.0
    %7437 = vmatmul.mubr.f32.gmra.mrb[0].mxu0 %v7197
    %v7438 = vpop.f32.mrb[0].mxu0
    %v7439 = vadd.f32 0.0, %v7438
    %v7440 = vpop.f32.mrb[0].mxu0
    %7441 = vmatprep.mubr.f32.mxu0 0.0
    %7442 = vmatmul.mubr.f32.gmra.mrb[0].mxu0 %v7200
    %v7443 = vpop.f32.mrb[0].mxu0
    %v7444 = vadd.f32 0.0, %v7443
    %v7445 = vpop.f32.mrb[0].mxu0
    %7446 = vdwg.mxu0
    %v7447 = vld [vmem:[%s15] sm:$0xff]
    %v7448 = vld [vmem:[%s15 + $0x8] sm:$0xff]
    %v7449 = vld [vmem:[%s15 + $0x10] sm:$0xff]
    %v7450 = vld [vmem:[%s15 + $0x18] sm:$0xff]
    %v7451 = vld [vmem:[%s15 + $0x20] sm:$0xff]
    %v7452 = vld [vmem:[%s15 + $0x28] sm:$0xff]
    %v7453 = vld [vmem:[%s15 + $0x30] sm:$0xff]
    %v7454 = vld [vmem:[%s15 + $0x38] sm:$0xff]
    %v7455 = vld [vmem:[%s15 + $0x40] sm:$0xff]
    %v7456 = vld [vmem:[%s15 + $0x48] sm:$0xff]
    %v7457 = vld [vmem:[%s15 + $0x50] sm:$0xff]
    %v7458 = vld [vmem:[%s15 + $0x58] sm:$0xff]
    %v7459 = vld [vmem:[%s15 + $0x60] sm:$0xff]
    %v7460 = vld [vmem:[%s15 + $0x68] sm:$0xff]
    %v7461 = vld [vmem:[%s15 + $0x70] sm:$0xff]
    %v7462 = vld [vmem:[%s15 + $0x78] sm:$0xff]
    %s7463 = scalar_lea.vmem %s15, 128
    %v7464 = vld [vmem:[%s7463] sm:$0xff]
    %v7465 = vld [vmem:[%s7463 + $0x8] sm:$0xff]
    %v7466 = vld [vmem:[%s7463 + $0x10] sm:$0xff]
    %v7467 = vld [vmem:[%s7463 + $0x18] sm:$0xff]
    %v7468 = vld [vmem:[%s7463 + $0x20] sm:$0xff]
    %v7469 = vld [vmem:[%s7463 + $0x28] sm:$0xff]
    %v7470 = vld [vmem:[%s7463 + $0x30] sm:$0xff]
    %v7471 = vld [vmem:[%s7463 + $0x38] sm:$0xff]
    %v7472 = vld [vmem:[%s7463 + $0x40] sm:$0xff]
    %v7473 = vld [vmem:[%s7463 + $0x48] sm:$0xff]
    %v7474 = vld [vmem:[%s7463 + $0x50] sm:$0xff]
    %v7475 = vld [vmem:[%s7463 + $0x58] sm:$0xff]
    %v7476 = vld [vmem:[%s7463 + $0x60] sm:$0xff]
    %v7477 = vld [vmem:[%s7463 + $0x68] sm:$0xff]
    %v7478 = vld [vmem:[%s7463 + $0x70] sm:$0xff]
    %v7479 = vld [vmem:[%s7463 + $0x78] sm:$0xff]
    %7480 = vmatprep.subr.mxu0 0.0
    %7481 = vmatpush1.msra.mxu0 %v7464
    %7482 = vmatprep.subr.mxu0 0.0
    %7483 = vmatpush1.msra.mxu0 %v7465
    %7484 = vmatprep.subr.mxu0 0.0
    %7485 = vmatpush1.msra.mxu0 %v7466
    %7486 = vmatprep.subr.mxu0 0.0
    %7487 = vmatpush1.msra.mxu0 %v7467
    %7488 = vmatprep.subr.mxu0 0.0
    %7489 = vmatpush1.msra.mxu0 %v7468
    %7490 = vmatprep.subr.mxu0 0.0
    %7491 = vmatpush1.msra.mxu0 %v7469
    %7492 = vmatprep.subr.mxu0 0.0
    %7493 = vmatpush1.msra.mxu0 %v7470
    %7494 = vmatprep.subr.mxu0 0.0
    %7495 = vmatpush1.msra.mxu0 %v7471
    %7496 = vmatprep.subr.mxu0 0.0
    %7497 = vmatpush1.msra.mxu0 %v7472
    %7498 = vmatprep.subr.mxu0 0.0
    %7499 = vmatpush1.msra.mxu0 %v7473
    %7500 = vmatprep.subr.mxu0 0.0
    %7501 = vmatpush1.msra.mxu0 %v7474
    %7502 = vmatprep.subr.mxu0 0.0
    %7503 = vmatpush1.msra.mxu0 %v7475
    %7504 = vmatprep.subr.mxu0 0.0
    %7505 = vmatpush1.msra.mxu0 %v7476
    %7506 = vmatprep.subr.mxu0 0.0
    %7507 = vmatpush1.msra.mxu0 %v7477
    %7508 = vmatprep.subr.mxu0 0.0
    %7509 = vmatpush1.msra.mxu0 %v7478
    %7510 = vmatprep.subr.mxu0 0.0
    %7511 = vmatpush1.msra.mxu0 %v7479
    %7512 = vmatprep.subr.mxu0 0.0
    %7513 = vmatpush1.msra.mxu0 0.0
    %7514 = vmatprep.subr.mxu0 0.0
    %7515 = vmatpush1.msra.mxu0 0.0
    %7516 = vmatprep.subr.mxu0 0.0
    %7517 = vmatpush1.msra.mxu0 0.0
    %7518 = vmatprep.subr.mxu0 0.0
    %7519 = vmatpush1.msra.mxu0 0.0
    %7520 = vmatprep.subr.mxu0 0.0
    %7521 = vmatpush1.msra.mxu0 0.0
    %7522 = vmatprep.subr.mxu0 0.0
    %7523 = vmatpush1.msra.mxu0 0.0
    %7524 = vmatprep.subr.mxu0 0.0
    %7525 = vmatpush1.msra.mxu0 0.0
    %7526 = vmatprep.subr.mxu0 0.0
    %7527 = vmatpush1.msra.mxu0 0.0
    %7528 = vmatprep.subr.mxu0 0.0
    %7529 = vmatpush1.msra.mxu0 0.0
    %7530 = vmatprep.subr.mxu0 0.0
    %7531 = vmatpush1.msra.mxu0 0.0
    %7532 = vmatprep.subr.mxu0 0.0
    %7533 = vmatpush1.msra.mxu0 0.0
    %7534 = vmatprep.subr.mxu0 0.0
    %7535 = vmatpush1.msra.mxu0 0.0
    %7536 = vmatprep.subr.mxu0 0.0
    %7537 = vmatpush1.msra.mxu0 0.0
    %7538 = vmatprep.subr.mxu0 0.0
    %7539 = vmatpush1.msra.mxu0 0.0
    %7540 = vmatprep.subr.mxu0 0.0
    %7541 = vmatpush1.msra.mxu0 0.0
    %7542 = vmatprep.subr.mxu0 0.0
    %7543 = vmatpush1.msra.mxu0 0.0
    %7544 = vmatprep.mubr.f32.mxu0 0.0
    %7545 = vmatmul.mubr.f32.gmra.mrb[0].mxu0 %v7289
    %v7546 = vpop.f32.mrb[0].mxu0
    %v7547 = vadd.f32 0.0, %v7546
    %v7548 = vpop.f32.mrb[0].mxu0
    %7549 = vmatprep.mubr.f32.mxu0 0.0
    %7550 = vmatmul.mubr.f32.gmra.mrb[0].mxu0 %v7294
    %v7551 = vpop.f32.mrb[0].mxu0
    %v7552 = vadd.f32 0.0, %v7551
    %v7553 = vpop.f32.mrb[0].mxu0
    %7554 = vmatprep.mubr.f32.mxu0 0.0
    %7555 = vmatmul.mubr.f32.gmra.mrb[0].mxu0 %v7299
    %v7556 = vpop.f32.mrb[0].mxu0
    %v7557 = vadd.f32 0.0, %v7556
    %v7558 = vpop.f32.mrb[0].mxu0
    %7559 = vmatprep.mubr.f32.mxu0 0.0
    %7560 = vmatmul.mubr.f32.gmra.mrb[0].mxu0 %v7304
    %v7561 = vpop.f32.mrb[0].mxu0
    %v7562 = vadd.f32 0.0, %v7561
    %v7563 = vpop.f32.mrb[0].mxu0
    %7564 = vdwg.mxu0
    %7565 = vmatprep.subr.mxu0 0.0
    %7566 = vmatpush1.msra.mxu0 %v7447
    %7567 = vmatprep.subr.mxu0 0.0
    %7568 = vmatpush1.msra.mxu0 %v7448
    %7569 = vmatprep.subr.mxu0 0.0
    %7570 = vmatpush1.msra.mxu0 %v7449
    %7571 = vmatprep.subr.mxu0 0.0
    %7572 = vmatpush1.msra.mxu0 %v7450
    %7573 = vmatprep.subr.mxu0 0.0
    %7574 = vmatpush1.msra.mxu0 %v7451
    %7575 = vmatprep.subr.mxu0 0.0
    %7576 = vmatpush1.msra.mxu0 %v7452
    %7577 = vmatprep.subr.mxu0 0.0
    %7578 = vmatpush1.msra.mxu0 %v7453
    %7579 = vmatprep.subr.mxu0 0.0
    %7580 = vmatpush1.msra.mxu0 %v7454
    %7581 = vmatprep.subr.mxu0 0.0
    %7582 = vmatpush1.msra.mxu0 %v7455
    %7583 = vmatprep.subr.mxu0 0.0
    %7584 = vmatpush1.msra.mxu0 %v7456
    %7585 = vmatprep.subr.mxu0 0.0
    %7586 = vmatpush1.msra.mxu0 %v7457
    %7587 = vmatprep.subr.mxu0 0.0
    %7588 = vmatpush1.msra.mxu0 %v7458
    %7589 = vmatprep.subr.mxu0 0.0
    %7590 = vmatpush1.msra.mxu0 %v7459
    %7591 = vmatprep.subr.mxu0 0.0
    %7592 = vmatpush1.msra.mxu0 %v7460
    %7593 = vmatprep.subr.mxu0 0.0
    %7594 = vmatpush1.msra.mxu0 %v7461
    %7595 = vmatprep.subr.mxu0 0.0
    %7596 = vmatpush1.msra.mxu0 %v7462
    %7597 = vmatprep.subr.mxu0 0.0
    %7598 = vmatpush1.msra.mxu0 0.0
    %7599 = vmatprep.subr.mxu0 0.0
    %7600 = vmatpush1.msra.mxu0 0.0
    %7601 = vmatprep.subr.mxu0 0.0
    %7602 = vmatpush1.msra.mxu0 0.0
    %7603 = vmatprep.subr.mxu0 0.0
    %7604 = vmatpush1.msra.mxu0 0.0
    %7605 = vmatprep.subr.mxu0 0.0
    %7606 = vmatpush1.msra.mxu0 0.0
    %7607 = vmatprep.subr.mxu0 0.0
    %7608 = vmatpush1.msra.mxu0 0.0
    %7609 = vmatprep.subr.mxu0 0.0
    %7610 = vmatpush1.msra.mxu0 0.0
    %7611 = vmatprep.subr.mxu0 0.0
    %7612 = vmatpush1.msra.mxu0 0.0
    %7613 = vmatprep.subr.mxu0 0.0
    %7614 = vmatpush1.msra.mxu0 0.0
    %7615 = vmatprep.subr.mxu0 0.0
    %7616 = vmatpush1.msra.mxu0 0.0
    %7617 = vmatprep.subr.mxu0 0.0
    %7618 = vmatpush1.msra.mxu0 0.0
    %7619 = vmatprep.subr.mxu0 0.0
    %7620 = vmatpush1.msra.mxu0 0.0
    %7621 = vmatprep.subr.mxu0 0.0
    %7622 = vmatpush1.msra.mxu0 0.0
    %7623 = vmatprep.subr.mxu0 0.0
    %7624 = vmatpush1.msra.mxu0 0.0
    %7625 = vmatprep.subr.mxu0 0.0
    %7626 = vmatpush1.msra.mxu0 0.0
    %7627 = vmatprep.subr.mxu0 0.0
    %7628 = vmatpush1.msra.mxu0 0.0
    %7629 = vmatprep.mubr.f32.mxu0 0.0
    %7630 = vmatmul.mubr.f32.gmra.mrb[0].mxu0 %v7269
    %v7631 = vpop.f32.mrb[0].mxu0
    %v7632 = vadd.f32 %v7547, %v7631
    %v7633 = vpop.f32.mrb[0].mxu0
    %7634 = vmatprep.mubr.f32.mxu0 0.0
    %7635 = vmatmul.mubr.f32.gmra.mrb[0].mxu0 %v7274
    %v7636 = vpop.f32.mrb[0].mxu0
    %v7637 = vadd.f32 %v7552, %v7636
    %v7638 = vpop.f32.mrb[0].mxu0
    %7639 = vmatprep.mubr.f32.mxu0 0.0
    %7640 = vmatmul.mubr.f32.gmra.mrb[0].mxu0 %v7279
    %v7641 = vpop.f32.mrb[0].mxu0
    %v7642 = vadd.f32 %v7557, %v7641
    %v7643 = vpop.f32.mrb[0].mxu0
    %7644 = vmatprep.mubr.f32.mxu0 0.0
    %7645 = vmatmul.mubr.f32.gmra.mrb[0].mxu0 %v7284
    %v7646 = vpop.f32.mrb[0].mxu0
    %v7647 = vadd.f32 %v7562, %v7646
    %v7648 = vpop.f32.mrb[0].mxu0
    %7649 = vdwg.mxu0
    %s7650 = scalar_lea.vmem %s15, 256
    %v7651 = vld [vmem:[%s7650] sm:$0xff]
    %v7652 = vld [vmem:[%s7650 + $0x8] sm:$0xff]
    %v7653 = vld [vmem:[%s7650 + $0x10] sm:$0xff]
    %v7654 = vld [vmem:[%s7650 + $0x18] sm:$0xff]
    %v7655 = vld [vmem:[%s7650 + $0x20] sm:$0xff]
    %v7656 = vld [vmem:[%s7650 + $0x28] sm:$0xff]
    %v7657 = vld [vmem:[%s7650 + $0x30] sm:$0xff]
    %v7658 = vld [vmem:[%s7650 + $0x38] sm:$0xff]
    %v7659 = vld [vmem:[%s7650 + $0x40] sm:$0xff]
    %v7660 = vld [vmem:[%s7650 + $0x48] sm:$0xff]
    %v7661 = vld [vmem:[%s7650 + $0x50] sm:$0xff]
    %v7662 = vld [vmem:[%s7650 + $0x58] sm:$0xff]
    %v7663 = vld [vmem:[%s7650 + $0x60] sm:$0xff]
    %v7664 = vld [vmem:[%s7650 + $0x68] sm:$0xff]
    %v7665 = vld [vmem:[%s7650 + $0x70] sm:$0xff]
    %v7666 = vld [vmem:[%s7650 + $0x78] sm:$0xff]
    %7667 = vmatprep.subr.mxu0 0.0
    %7668 = vmatpush1.msra.mxu0 %v7651
    %7669 = vmatprep.subr.mxu0 0.0
    %7670 = vmatpush1.msra.mxu0 %v7652
    %7671 = vmatprep.subr.mxu0 0.0
    %7672 = vmatpush1.msra.mxu0 %v7653
    %7673 = vmatprep.subr.mxu0 0.0
    %7674 = vmatpush1.msra.mxu0 %v7654
    %7675 = vmatprep.subr.mxu0 0.0
    %7676 = vmatpush1.msra.mxu0 %v7655
    %7677 = vmatprep.subr.mxu0 0.0
    %7678 = vmatpush1.msra.mxu0 %v7656
    %7679 = vmatprep.subr.mxu0 0.0
    %7680 = vmatpush1.msra.mxu0 %v7657
    %7681 = vmatprep.subr.mxu0 0.0
    %7682 = vmatpush1.msra.mxu0 %v7658
    %7683 = vmatprep.subr.mxu0 0.0
    %7684 = vmatpush1.msra.mxu0 %v7659
    %7685 = vmatprep.subr.mxu0 0.0
    %7686 = vmatpush1.msra.mxu0 %v7660
    %7687 = vmatprep.subr.mxu0 0.0
    %7688 = vmatpush1.msra.mxu0 %v7661
    %7689 = vmatprep.subr.mxu0 0.0
    %7690 = vmatpush1.msra.mxu0 %v7662
    %7691 = vmatprep.subr.mxu0 0.0
    %7692 = vmatpush1.msra.mxu0 %v7663
    %7693 = vmatprep.subr.mxu0 0.0
    %7694 = vmatpush1.msra.mxu0 %v7664
    %7695 = vmatprep.subr.mxu0 0.0
    %7696 = vmatpush1.msra.mxu0 %v7665
    %7697 = vmatprep.subr.mxu0 0.0
    %7698 = vmatpush1.msra.mxu0 %v7666
    %7699 = vmatprep.subr.mxu0 0.0
    %7700 = vmatpush1.msra.mxu0 0.0
    %7701 = vmatprep.subr.mxu0 0.0
    %7702 = vmatpush1.msra.mxu0 0.0
    %7703 = vmatprep.subr.mxu0 0.0
    %7704 = vmatpush1.msra.mxu0 0.0
    %7705 = vmatprep.subr.mxu0 0.0
    %7706 = vmatpush1.msra.mxu0 0.0
    %7707 = vmatprep.subr.mxu0 0.0
    %7708 = vmatpush1.msra.mxu0 0.0
    %7709 = vmatprep.subr.mxu0 0.0
    %7710 = vmatpush1.msra.mxu0 0.0
    %7711 = vmatprep.subr.mxu0 0.0
    %7712 = vmatpush1.msra.mxu0 0.0
    %7713 = vmatprep.subr.mxu0 0.0
    %7714 = vmatpush1.msra.mxu0 0.0
    %7715 = vmatprep.subr.mxu0 0.0
    %7716 = vmatpush1.msra.mxu0 0.0
    %7717 = vmatprep.subr.mxu0 0.0
    %7718 = vmatpush1.msra.mxu0 0.0
    %7719 = vmatprep.subr.mxu0 0.0
    %7720 = vmatpush1.msra.mxu0 0.0
    %7721 = vmatprep.subr.mxu0 0.0
    %7722 = vmatpush1.msra.mxu0 0.0
    %7723 = vmatprep.subr.mxu0 0.0
    %7724 = vmatpush1.msra.mxu0 0.0
    %7725 = vmatprep.subr.mxu0 0.0
    %7726 = vmatpush1.msra.mxu0 0.0
    %7727 = vmatprep.subr.mxu0 0.0
    %7728 = vmatpush1.msra.mxu0 0.0
    %7729 = vmatprep.subr.mxu0 0.0
    %7730 = vmatpush1.msra.mxu0 0.0
    %7731 = vmatprep.mubr.f32.mxu0 0.0
    %7732 = vmatmul.mubr.f32.gmra.mrb[0].mxu0 %v7309
    %v7733 = vpop.f32.mrb[0].mxu0
    %v7734 = vadd.f32 0.0, %v7733
    %v7735 = vpop.f32.mrb[0].mxu0
    %7736 = vmatprep.mubr.f32.mxu0 0.0
    %7737 = vmatmul.mubr.f32.gmra.mrb[0].mxu0 %v7314
    %v7738 = vpop.f32.mrb[0].mxu0
    %v7739 = vadd.f32 0.0, %v7738
    %v7740 = vpop.f32.mrb[0].mxu0
    %7741 = vmatprep.mubr.f32.mxu0 0.0
    %7742 = vmatmul.mubr.f32.gmra.mrb[0].mxu0 %v7319
    %v7743 = vpop.f32.mrb[0].mxu0
    %v7744 = vadd.f32 0.0, %v7743
    %v7745 = vpop.f32.mrb[0].mxu0
    %7746 = vmatprep.mubr.f32.mxu0 0.0
    %7747 = vmatmul.mubr.f32.gmra.mrb[0].mxu0 %v7324
    %v7748 = vpop.f32.mrb[0].mxu0
    %v7749 = vadd.f32 0.0, %v7748
    %v7750 = vpop.f32.mrb[0].mxu0
    %7751 = vdwg.mxu0
    %v7752 = vadd.f32 %v7632, %v7734
    %v7753 = vadd.f32 %v7637, %v7739
    %v7754 = vadd.f32 %v7642, %v7744
    %v7755 = vadd.f32 %v7647, %v7749
    %s7756 = scalar_lea.vmem %s15, 384
    %v7757 = vld [vmem:[%s7756] sm:$0xff]
    %v7758 = vld [vmem:[%s7756 + $0x8] sm:$0xff]
    %v7759 = vld [vmem:[%s7756 + $0x10] sm:$0xff]
    %v7760 = vld [vmem:[%s7756 + $0x18] sm:$0xff]
    %v7761 = vld [vmem:[%s7756 + $0x20] sm:$0xff]
    %v7762 = vld [vmem:[%s7756 + $0x28] sm:$0xff]
    %v7763 = vld [vmem:[%s7756 + $0x30] sm:$0xff]
    %v7764 = vld [vmem:[%s7756 + $0x38] sm:$0xff]
    %v7765 = vld [vmem:[%s7756 + $0x40] sm:$0xff]
    %v7766 = vld [vmem:[%s7756 + $0x48] sm:$0xff]
    %v7767 = vld [vmem:[%s7756 + $0x50] sm:$0xff]
    %v7768 = vld [vmem:[%s7756 + $0x58] sm:$0xff]
    %v7769 = vld [vmem:[%s7756 + $0x60] sm:$0xff]
    %v7770 = vld [vmem:[%s7756 + $0x68] sm:$0xff]
    %v7771 = vld [vmem:[%s7756 + $0x70] sm:$0xff]
    %v7772 = vld [vmem:[%s7756 + $0x78] sm:$0xff]
    %7773 = vmatprep.subr.mxu0 0.0
    %7774 = vmatpush1.msra.mxu0 %v7757
    %7775 = vmatprep.subr.mxu0 0.0
    %7776 = vmatpush1.msra.mxu0 %v7758
    %7777 = vmatprep.subr.mxu0 0.0
    %7778 = vmatpush1.msra.mxu0 %v7759
    %7779 = vmatprep.subr.mxu0 0.0
    %7780 = vmatpush1.msra.mxu0 %v7760
    %7781 = vmatprep.subr.mxu0 0.0
    %7782 = vmatpush1.msra.mxu0 %v7761
    %7783 = vmatprep.subr.mxu0 0.0
    %7784 = vmatpush1.msra.mxu0 %v7762
    %7785 = vmatprep.subr.mxu0 0.0
    %7786 = vmatpush1.msra.mxu0 %v7763
    %7787 = vmatprep.subr.mxu0 0.0
    %7788 = vmatpush1.msra.mxu0 %v7764
    %7789 = vmatprep.subr.mxu0 0.0
    %7790 = vmatpush1.msra.mxu0 %v7765
    %7791 = vmatprep.subr.mxu0 0.0
    %7792 = vmatpush1.msra.mxu0 %v7766
    %7793 = vmatprep.subr.mxu0 0.0
    %7794 = vmatpush1.msra.mxu0 %v7767
    %7795 = vmatprep.subr.mxu0 0.0
    %7796 = vmatpush1.msra.mxu0 %v7768
    %7797 = vmatprep.subr.mxu0 0.0
    %7798 = vmatpush1.msra.mxu0 %v7769
    %7799 = vmatprep.subr.mxu0 0.0
    %7800 = vmatpush1.msra.mxu0 %v7770
    %7801 = vmatprep.subr.mxu0 0.0
    %7802 = vmatpush1.msra.mxu0 %v7771
    %7803 = vmatprep.subr.mxu0 0.0
    %7804 = vmatpush1.msra.mxu0 %v7772
    %7805 = vmatprep.subr.mxu0 0.0
    %7806 = vmatpush1.msra.mxu0 0.0
    %7807 = vmatprep.subr.mxu0 0.0
    %7808 = vmatpush1.msra.mxu0 0.0
    %7809 = vmatprep.subr.mxu0 0.0
    %7810 = vmatpush1.msra.mxu0 0.0
    %7811 = vmatprep.subr.mxu0 0.0
    %7812 = vmatpush1.msra.mxu0 0.0
    %7813 = vmatprep.subr.mxu0 0.0
    %7814 = vmatpush1.msra.mxu0 0.0
    %7815 = vmatprep.subr.mxu0 0.0
    %7816 = vmatpush1.msra.mxu0 0.0
    %7817 = vmatprep.subr.mxu0 0.0
    %7818 = vmatpush1.msra.mxu0 0.0
    %7819 = vmatprep.subr.mxu0 0.0
    %7820 = vmatpush1.msra.mxu0 0.0
    %7821 = vmatprep.subr.mxu0 0.0
    %7822 = vmatpush1.msra.mxu0 0.0
    %7823 = vmatprep.subr.mxu0 0.0
    %7824 = vmatpush1.msra.mxu0 0.0
    %7825 = vmatprep.subr.mxu0 0.0
    %7826 = vmatpush1.msra.mxu0 0.0
    %7827 = vmatprep.subr.mxu0 0.0
    %7828 = vmatpush1.msra.mxu0 0.0
    %7829 = vmatprep.subr.mxu0 0.0
    %7830 = vmatpush1.msra.mxu0 0.0
    %7831 = vmatprep.subr.mxu0 0.0
    %7832 = vmatpush1.msra.mxu0 0.0
    %7833 = vmatprep.subr.mxu0 0.0
    %7834 = vmatpush1.msra.mxu0 0.0
    %7835 = vmatprep.subr.mxu0 0.0
    %7836 = vmatpush1.msra.mxu0 0.0
    %7837 = vmatprep.mubr.f32.mxu0 0.0
    %7838 = vmatmul.mubr.f32.gmra.mrb[0].mxu0 %v7329
    %v7839 = vpop.f32.mrb[0].mxu0
    %v7840 = vadd.f32 0.0, %v7839
    %v7841 = vpop.f32.mrb[0].mxu0
    %7842 = vmatprep.mubr.f32.mxu0 0.0
    %7843 = vmatmul.mubr.f32.gmra.mrb[0].mxu0 %v7334
    %v7844 = vpop.f32.mrb[0].mxu0
    %v7845 = vadd.f32 0.0, %v7844
    %v7846 = vpop.f32.mrb[0].mxu0
    %7847 = vmatprep.mubr.f32.mxu0 0.0
    %7848 = vmatmul.mubr.f32.gmra.mrb[0].mxu0 %v7339
    %v7849 = vpop.f32.mrb[0].mxu0
    %v7850 = vadd.f32 0.0, %v7849
    %v7851 = vpop.f32.mrb[0].mxu0
    %7852 = vmatprep.mubr.f32.mxu0 0.0
    %7853 = vmatmul.mubr.f32.gmra.mrb[0].mxu0 %v7344
    %v7854 = vpop.f32.mrb[0].mxu0
    %v7855 = vadd.f32 0.0, %v7854
    %v7856 = vpop.f32.mrb[0].mxu0
    %7857 = vdwg.mxu0
    %v7858 = vadd.f32 %v7752, %v7840
    %v7859 = vadd.f32 %v7753, %v7845
    %v7860 = vadd.f32 %v7754, %v7850
    %v7861 = vadd.f32 %v7755, %v7855
    %s7862 = scalar_lea.vmem %s15, 512
    %v7863 = vld [vmem:[%s7862] sm:$0xff]
    %v7864 = vld [vmem:[%s7862 + $0x8] sm:$0xff]
    %v7865 = vld [vmem:[%s7862 + $0x10] sm:$0xff]
    %v7866 = vld [vmem:[%s7862 + $0x18] sm:$0xff]
    %v7867 = vld [vmem:[%s7862 + $0x20] sm:$0xff]
    %v7868 = vld [vmem:[%s7862 + $0x28] sm:$0xff]
    %v7869 = vld [vmem:[%s7862 + $0x30] sm:$0xff]
    %v7870 = vld [vmem:[%s7862 + $0x38] sm:$0xff]
    %v7871 = vld [vmem:[%s7862 + $0x40] sm:$0xff]
    %v7872 = vld [vmem:[%s7862 + $0x48] sm:$0xff]
    %v7873 = vld [vmem:[%s7862 + $0x50] sm:$0xff]
    %v7874 = vld [vmem:[%s7862 + $0x58] sm:$0xff]
    %v7875 = vld [vmem:[%s7862 + $0x60] sm:$0xff]
    %v7876 = vld [vmem:[%s7862 + $0x68] sm:$0xff]
    %v7877 = vld [vmem:[%s7862 + $0x70] sm:$0xff]
    %v7878 = vld [vmem:[%s7862 + $0x78] sm:$0xff]
    %7879 = vmatprep.subr.mxu0 0.0
    %7880 = vmatpush1.msra.mxu0 %v7863
    %7881 = vmatprep.subr.mxu0 0.0
    %7882 = vmatpush1.msra.mxu0 %v7864
    %7883 = vmatprep.subr.mxu0 0.0
    %7884 = vmatpush1.msra.mxu0 %v7865
    %7885 = vmatprep.subr.mxu0 0.0
    %7886 = vmatpush1.msra.mxu0 %v7866
    %7887 = vmatprep.subr.mxu0 0.0
    %7888 = vmatpush1.msra.mxu0 %v7867
    %7889 = vmatprep.subr.mxu0 0.0
    %7890 = vmatpush1.msra.mxu0 %v7868
    %7891 = vmatprep.subr.mxu0 0.0
    %7892 = vmatpush1.msra.mxu0 %v7869
    %7893 = vmatprep.subr.mxu0 0.0
    %7894 = vmatpush1.msra.mxu0 %v7870
    %7895 = vmatprep.subr.mxu0 0.0
    %7896 = vmatpush1.msra.mxu0 %v7871
    %7897 = vmatprep.subr.mxu0 0.0
    %7898 = vmatpush1.msra.mxu0 %v7872
    %7899 = vmatprep.subr.mxu0 0.0
    %7900 = vmatpush1.msra.mxu0 %v7873
    %7901 = vmatprep.subr.mxu0 0.0
    %7902 = vmatpush1.msra.mxu0 %v7874
    %7903 = vmatprep.subr.mxu0 0.0
    %7904 = vmatpush1.msra.mxu0 %v7875
    %7905 = vmatprep.subr.mxu0 0.0
    %7906 = vmatpush1.msra.mxu0 %v7876
    %7907 = vmatprep.subr.mxu0 0.0
    %7908 = vmatpush1.msra.mxu0 %v7877
    %7909 = vmatprep.subr.mxu0 0.0
    %7910 = vmatpush1.msra.mxu0 %v7878
    %7911 = vmatprep.subr.mxu0 0.0
    %7912 = vmatpush1.msra.mxu0 0.0
    %7913 = vmatprep.subr.mxu0 0.0
    %7914 = vmatpush1.msra.mxu0 0.0
    %7915 = vmatprep.subr.mxu0 0.0
    %7916 = vmatpush1.msra.mxu0 0.0
    %7917 = vmatprep.subr.mxu0 0.0
    %7918 = vmatpush1.msra.mxu0 0.0
    %7919 = vmatprep.subr.mxu0 0.0
    %7920 = vmatpush1.msra.mxu0 0.0
    %7921 = vmatprep.subr.mxu0 0.0
    %7922 = vmatpush1.msra.mxu0 0.0
    %7923 = vmatprep.subr.mxu0 0.0
    %7924 = vmatpush1.msra.mxu0 0.0
    %7925 = vmatprep.subr.mxu0 0.0
    %7926 = vmatpush1.msra.mxu0 0.0
    %7927 = vmatprep.subr.mxu0 0.0
    %7928 = vmatpush1.msra.mxu0 0.0
    %7929 = vmatprep.subr.mxu0 0.0
    %7930 = vmatpush1.msra.mxu0 0.0
    %7931 = vmatprep.subr.mxu0 0.0
    %7932 = vmatpush1.msra.mxu0 0.0
    %7933 = vmatprep.subr.mxu0 0.0
    %7934 = vmatpush1.msra.mxu0 0.0
    %7935 = vmatprep.subr.mxu0 0.0
    %7936 = vmatpush1.msra.mxu0 0.0
    %7937 = vmatprep.subr.mxu0 0.0
    %7938 = vmatpush1.msra.mxu0 0.0
    %7939 = vmatprep.subr.mxu0 0.0
    %7940 = vmatpush1.msra.mxu0 0.0
    %7941 = vmatprep.subr.mxu0 0.0
    %7942 = vmatpush1.msra.mxu0 0.0
    %7943 = vmatprep.mubr.f32.mxu0 0.0
    %7944 = vmatmul.mubr.f32.gmra.mrb[0].mxu0 %v7349
    %v7945 = vpop.f32.mrb[0].mxu0
    %v7946 = vadd.f32 0.0, %v7945
    %v7947 = vpop.f32.mrb[0].mxu0
    %7948 = vmatprep.mubr.f32.mxu0 0.0
    %7949 = vmatmul.mubr.f32.gmra.mrb[0].mxu0 %v7354
    %v7950 = vpop.f32.mrb[0].mxu0
    %v7951 = vadd.f32 0.0, %v7950
    %v7952 = vpop.f32.mrb[0].mxu0
    %7953 = vmatprep.mubr.f32.mxu0 0.0
    %7954 = vmatmul.mubr.f32.gmra.mrb[0].mxu0 %v7359
    %v7955 = vpop.f32.mrb[0].mxu0
    %v7956 = vadd.f32 0.0, %v7955
    %v7957 = vpop.f32.mrb[0].mxu0
    %7958 = vmatprep.mubr.f32.mxu0 0.0
    %7959 = vmatmul.mubr.f32.gmra.mrb[0].mxu0 %v7364
    %v7960 = vpop.f32.mrb[0].mxu0
    %v7961 = vadd.f32 0.0, %v7960
    %v7962 = vpop.f32.mrb[0].mxu0
    %7963 = vdwg.mxu0
    %v7964 = vadd.f32 %v7858, %v7946
    %v7965 = vadd.f32 %v7859, %v7951
    %v7966 = vadd.f32 %v7860, %v7956
    %v7967 = vadd.f32 %v7861, %v7961
    %s7968 = scalar_lea.vmem %s15, 640
    %v7969 = vld [vmem:[%s7968] sm:$0xff]
    %v7970 = vld [vmem:[%s7968 + $0x8] sm:$0xff]
    %v7971 = vld [vmem:[%s7968 + $0x10] sm:$0xff]
    %v7972 = vld [vmem:[%s7968 + $0x18] sm:$0xff]
    %v7973 = vld [vmem:[%s7968 + $0x20] sm:$0xff]
    %v7974 = vld [vmem:[%s7968 + $0x28] sm:$0xff]
    %v7975 = vld [vmem:[%s7968 + $0x30] sm:$0xff]
    %v7976 = vld [vmem:[%s7968 + $0x38] sm:$0xff]
    %v7977 = vld [vmem:[%s7968 + $0x40] sm:$0xff]
    %v7978 = vld [vmem:[%s7968 + $0x48] sm:$0xff]
    %v7979 = vld [vmem:[%s7968 + $0x50] sm:$0xff]
    %v7980 = vld [vmem:[%s7968 + $0x58] sm:$0xff]
    %v7981 = vld [vmem:[%s7968 + $0x60] sm:$0xff]
    %v7982 = vld [vmem:[%s7968 + $0x68] sm:$0xff]
    %v7983 = vld [vmem:[%s7968 + $0x70] sm:$0xff]
    %v7984 = vld [vmem:[%s7968 + $0x78] sm:$0xff]
    %7985 = vmatprep.subr.mxu0 0.0
    %7986 = vmatpush1.msra.mxu0 %v7969
    %7987 = vmatprep.subr.mxu0 0.0
    %7988 = vmatpush1.msra.mxu0 %v7970
    %7989 = vmatprep.subr.mxu0 0.0
    %7990 = vmatpush1.msra.mxu0 %v7971
    %7991 = vmatprep.subr.mxu0 0.0
    %7992 = vmatpush1.msra.mxu0 %v7972
    %7993 = vmatprep.subr.mxu0 0.0
    %7994 = vmatpush1.msra.mxu0 %v7973
    %7995 = vmatprep.subr.mxu0 0.0
    %7996 = vmatpush1.msra.mxu0 %v7974
    %7997 = vmatprep.subr.mxu0 0.0
    %7998 = vmatpush1.msra.mxu0 %v7975
    %7999 = vmatprep.subr.mxu0 0.0
    %8000 = vmatpush1.msra.mxu0 %v7976
    %8001 = vmatprep.subr.mxu0 0.0
    %8002 = vmatpush1.msra.mxu0 %v7977
    %8003 = vmatprep.subr.mxu0 0.0
    %8004 = vmatpush1.msra.mxu0 %v7978
    %8005 = vmatprep.subr.mxu0 0.0
    %8006 = vmatpush1.msra.mxu0 %v7979
    %8007 = vmatprep.subr.mxu0 0.0
    %8008 = vmatpush1.msra.mxu0 %v7980
    %8009 = vmatprep.subr.mxu0 0.0
    %8010 = vmatpush1.msra.mxu0 %v7981
    %8011 = vmatprep.subr.mxu0 0.0
    %8012 = vmatpush1.msra.mxu0 %v7982
    %8013 = vmatprep.subr.mxu0 0.0
    %8014 = vmatpush1.msra.mxu0 %v7983
    %8015 = vmatprep.subr.mxu0 0.0
    %8016 = vmatpush1.msra.mxu0 %v7984
    %8017 = vmatprep.subr.mxu0 0.0
    %8018 = vmatpush1.msra.mxu0 0.0
    %8019 = vmatprep.subr.mxu0 0.0
    %8020 = vmatpush1.msra.mxu0 0.0
    %8021 = vmatprep.subr.mxu0 0.0
    %8022 = vmatpush1.msra.mxu0 0.0
    %8023 = vmatprep.subr.mxu0 0.0
    %8024 = vmatpush1.msra.mxu0 0.0
    %8025 = vmatprep.subr.mxu0 0.0
    %8026 = vmatpush1.msra.mxu0 0.0
    %8027 = vmatprep.subr.mxu0 0.0
    %8028 = vmatpush1.msra.mxu0 0.0
    %8029 = vmatprep.subr.mxu0 0.0
    %8030 = vmatpush1.msra.mxu0 0.0
    %8031 = vmatprep.subr.mxu0 0.0
    %8032 = vmatpush1.msra.mxu0 0.0
    %8033 = vmatprep.subr.mxu0 0.0
    %8034 = vmatpush1.msra.mxu0 0.0
    %8035 = vmatprep.subr.mxu0 0.0
    %8036 = vmatpush1.msra.mxu0 0.0
    %8037 = vmatprep.subr.mxu0 0.0
    %8038 = vmatpush1.msra.mxu0 0.0
    %8039 = vmatprep.subr.mxu0 0.0
    %8040 = vmatpush1.msra.mxu0 0.0
    %8041 = vmatprep.subr.mxu0 0.0
    %8042 = vmatpush1.msra.mxu0 0.0
    %8043 = vmatprep.subr.mxu0 0.0
    %8044 = vmatpush1.msra.mxu0 0.0
    %8045 = vmatprep.subr.mxu0 0.0
    %8046 = vmatpush1.msra.mxu0 0.0
    %8047 = vmatprep.subr.mxu0 0.0
    %8048 = vmatpush1.msra.mxu0 0.0
    %8049 = vmatprep.mubr.f32.mxu0 0.0
    %8050 = vmatmul.mubr.f32.gmra.mrb[0].mxu0 %v7369
    %v8051 = vpop.f32.mrb[0].mxu0
    %v8052 = vadd.f32 0.0, %v8051
    %v8053 = vpop.f32.mrb[0].mxu0
    %8054 = vmatprep.mubr.f32.mxu0 0.0
    %8055 = vmatmul.mubr.f32.gmra.mrb[0].mxu0 %v7374
    %v8056 = vpop.f32.mrb[0].mxu0
    %v8057 = vadd.f32 0.0, %v8056
    %v8058 = vpop.f32.mrb[0].mxu0
    %8059 = vmatprep.mubr.f32.mxu0 0.0
    %8060 = vmatmul.mubr.f32.gmra.mrb[0].mxu0 %v7379
    %v8061 = vpop.f32.mrb[0].mxu0
    %v8062 = vadd.f32 0.0, %v8061
    %v8063 = vpop.f32.mrb[0].mxu0
    %8064 = vmatprep.mubr.f32.mxu0 0.0
    %8065 = vmatmul.mubr.f32.gmra.mrb[0].mxu0 %v7384
    %v8066 = vpop.f32.mrb[0].mxu0
    %v8067 = vadd.f32 0.0, %v8066
    %v8068 = vpop.f32.mrb[0].mxu0
    %8069 = vdwg.mxu0
    %v8070 = vadd.f32 %v7964, %v8052
    %v8071 = vadd.f32 %v7965, %v8057
    %v8072 = vadd.f32 %v7966, %v8062
    %v8073 = vadd.f32 %v7967, %v8067
    %s8074 = scalar_lea.vmem %s15, 768
    %v8075 = vld [vmem:[%s8074] sm:$0xff]
    %v8076 = vld [vmem:[%s8074 + $0x8] sm:$0xff]
    %v8077 = vld [vmem:[%s8074 + $0x10] sm:$0xff]
    %v8078 = vld [vmem:[%s8074 + $0x18] sm:$0xff]
    %v8079 = vld [vmem:[%s8074 + $0x20] sm:$0xff]
    %v8080 = vld [vmem:[%s8074 + $0x28] sm:$0xff]
    %v8081 = vld [vmem:[%s8074 + $0x30] sm:$0xff]
    %v8082 = vld [vmem:[%s8074 + $0x38] sm:$0xff]
    %v8083 = vld [vmem:[%s8074 + $0x40] sm:$0xff]
    %v8084 = vld [vmem:[%s8074 + $0x48] sm:$0xff]
    %v8085 = vld [vmem:[%s8074 + $0x50] sm:$0xff]
    %v8086 = vld [vmem:[%s8074 + $0x58] sm:$0xff]
    %v8087 = vld [vmem:[%s8074 + $0x60] sm:$0xff]
    %v8088 = vld [vmem:[%s8074 + $0x68] sm:$0xff]
    %v8089 = vld [vmem:[%s8074 + $0x70] sm:$0xff]
    %v8090 = vld [vmem:[%s8074 + $0x78] sm:$0xff]
    %8091 = vmatprep.subr.mxu0 0.0
    %8092 = vmatpush1.msra.mxu0 %v8075
    %8093 = vmatprep.subr.mxu0 0.0
    %8094 = vmatpush1.msra.mxu0 %v8076
    %8095 = vmatprep.subr.mxu0 0.0
    %8096 = vmatpush1.msra.mxu0 %v8077
    %8097 = vmatprep.subr.mxu0 0.0
    %8098 = vmatpush1.msra.mxu0 %v8078
    %8099 = vmatprep.subr.mxu0 0.0
    %8100 = vmatpush1.msra.mxu0 %v8079
    %8101 = vmatprep.subr.mxu0 0.0
    %8102 = vmatpush1.msra.mxu0 %v8080
    %8103 = vmatprep.subr.mxu0 0.0
    %8104 = vmatpush1.msra.mxu0 %v8081
    %8105 = vmatprep.subr.mxu0 0.0
    %8106 = vmatpush1.msra.mxu0 %v8082
    %8107 = vmatprep.subr.mxu0 0.0
    %8108 = vmatpush1.msra.mxu0 %v8083
    %8109 = vmatprep.subr.mxu0 0.0
    %8110 = vmatpush1.msra.mxu0 %v8084
    %8111 = vmatprep.subr.mxu0 0.0
    %8112 = vmatpush1.msra.mxu0 %v8085
    %8113 = vmatprep.subr.mxu0 0.0
    %8114 = vmatpush1.msra.mxu0 %v8086
    %8115 = vmatprep.subr.mxu0 0.0
    %8116 = vmatpush1.msra.mxu0 %v8087
    %8117 = vmatprep.subr.mxu0 0.0
    %8118 = vmatpush1.msra.mxu0 %v8088
    %8119 = vmatprep.subr.mxu0 0.0
    %8120 = vmatpush1.msra.mxu0 %v8089
    %8121 = vmatprep.subr.mxu0 0.0
    %8122 = vmatpush1.msra.mxu0 %v8090
    %8123 = vmatprep.subr.mxu0 0.0
    %8124 = vmatpush1.msra.mxu0 0.0
    %8125 = vmatprep.subr.mxu0 0.0
    %8126 = vmatpush1.msra.mxu0 0.0
    %8127 = vmatprep.subr.mxu0 0.0
    %8128 = vmatpush1.msra.mxu0 0.0
    %8129 = vmatprep.subr.mxu0 0.0
    %8130 = vmatpush1.msra.mxu0 0.0
    %8131 = vmatprep.subr.mxu0 0.0
    %8132 = vmatpush1.msra.mxu0 0.0
    %8133 = vmatprep.subr.mxu0 0.0
    %8134 = vmatpush1.msra.mxu0 0.0
    %8135 = vmatprep.subr.mxu0 0.0
    %8136 = vmatpush1.msra.mxu0 0.0
    %8137 = vmatprep.subr.mxu0 0.0
    %8138 = vmatpush1.msra.mxu0 0.0
    %8139 = vmatprep.subr.mxu0 0.0
    %8140 = vmatpush1.msra.mxu0 0.0
    %8141 = vmatprep.subr.mxu0 0.0
    %8142 = vmatpush1.msra.mxu0 0.0
    %8143 = vmatprep.subr.mxu0 0.0
    %8144 = vmatpush1.msra.mxu0 0.0
    %8145 = vmatprep.subr.mxu0 0.0
    %8146 = vmatpush1.msra.mxu0 0.0
    %8147 = vmatprep.subr.mxu0 0.0
    %8148 = vmatpush1.msra.mxu0 0.0
    %8149 = vmatprep.subr.mxu0 0.0
    %8150 = vmatpush1.msra.mxu0 0.0
    %8151 = vmatprep.subr.mxu0 0.0
    %8152 = vmatpush1.msra.mxu0 0.0
    %8153 = vmatprep.subr.mxu0 0.0
    %8154 = vmatpush1.msra.mxu0 0.0
    %8155 = vmatprep.mubr.f32.mxu0 0.0
    %8156 = vmatmul.mubr.f32.gmra.mrb[0].mxu0 %v7389
    %v8157 = vpop.f32.mrb[0].mxu0
    %v8158 = vadd.f32 0.0, %v8157
    %v8159 = vpop.f32.mrb[0].mxu0
    %8160 = vmatprep.mubr.f32.mxu0 0.0
    %8161 = vmatmul.mubr.f32.gmra.mrb[0].mxu0 %v7394
    %v8162 = vpop.f32.mrb[0].mxu0
    %v8163 = vadd.f32 0.0, %v8162
    %v8164 = vpop.f32.mrb[0].mxu0
    %8165 = vmatprep.mubr.f32.mxu0 0.0
    %8166 = vmatmul.mubr.f32.gmra.mrb[0].mxu0 %v7399
    %v8167 = vpop.f32.mrb[0].mxu0
    %v8168 = vadd.f32 0.0, %v8167
    %v8169 = vpop.f32.mrb[0].mxu0
    %8170 = vmatprep.mubr.f32.mxu0 0.0
    %8171 = vmatmul.mubr.f32.gmra.mrb[0].mxu0 %v7404
    %v8172 = vpop.f32.mrb[0].mxu0
    %v8173 = vadd.f32 0.0, %v8172
    %v8174 = vpop.f32.mrb[0].mxu0
    %8175 = vdwg.mxu0
    %v8176 = vadd.f32 %v8070, %v8158
    %v8177 = vadd.f32 %v8071, %v8163
    %v8178 = vadd.f32 %v8072, %v8168
    %v8179 = vadd.f32 %v8073, %v8173
    %s8180 = scalar_lea.vmem %s15, 896
    %v8181 = vld [vmem:[%s8180] sm:$0xff]
    %v8182 = vld [vmem:[%s8180 + $0x8] sm:$0xff]
    %v8183 = vld [vmem:[%s8180 + $0x10] sm:$0xff]
    %v8184 = vld [vmem:[%s8180 + $0x18] sm:$0xff]
    %v8185 = vld [vmem:[%s8180 + $0x20] sm:$0xff]
    %v8186 = vld [vmem:[%s8180 + $0x28] sm:$0xff]
    %v8187 = vld [vmem:[%s8180 + $0x30] sm:$0xff]
    %v8188 = vld [vmem:[%s8180 + $0x38] sm:$0xff]
    %v8189 = vld [vmem:[%s8180 + $0x40] sm:$0xff]
    %v8190 = vld [vmem:[%s8180 + $0x48] sm:$0xff]
    %v8191 = vld [vmem:[%s8180 + $0x50] sm:$0xff]
    %v8192 = vld [vmem:[%s8180 + $0x58] sm:$0xff]
    %v8193 = vld [vmem:[%s8180 + $0x60] sm:$0xff]
    %v8194 = vld [vmem:[%s8180 + $0x68] sm:$0xff]
    %v8195 = vld [vmem:[%s8180 + $0x70] sm:$0xff]
    %v8196 = vld [vmem:[%s8180 + $0x78] sm:$0xff]
    %8197 = vmatprep.subr.mxu0 0.0
    %8198 = vmatpush1.msra.mxu0 %v8181
    %8199 = vmatprep.subr.mxu0 0.0
    %8200 = vmatpush1.msra.mxu0 %v8182
    %8201 = vmatprep.subr.mxu0 0.0
    %8202 = vmatpush1.msra.mxu0 %v8183
    %8203 = vmatprep.subr.mxu0 0.0
    %8204 = vmatpush1.msra.mxu0 %v8184
    %8205 = vmatprep.subr.mxu0 0.0
    %8206 = vmatpush1.msra.mxu0 %v8185
    %8207 = vmatprep.subr.mxu0 0.0
    %8208 = vmatpush1.msra.mxu0 %v8186
    %8209 = vmatprep.subr.mxu0 0.0
    %8210 = vmatpush1.msra.mxu0 %v8187
    %8211 = vmatprep.subr.mxu0 0.0
    %8212 = vmatpush1.msra.mxu0 %v8188
    %8213 = vmatprep.subr.mxu0 0.0
    %8214 = vmatpush1.msra.mxu0 %v8189
    %8215 = vmatprep.subr.mxu0 0.0
    %8216 = vmatpush1.msra.mxu0 %v8190
    %8217 = vmatprep.subr.mxu0 0.0
    %8218 = vmatpush1.msra.mxu0 %v8191
    %8219 = vmatprep.subr.mxu0 0.0
    %8220 = vmatpush1.msra.mxu0 %v8192
    %8221 = vmatprep.subr.mxu0 0.0
    %8222 = vmatpush1.msra.mxu0 %v8193
    %8223 = vmatprep.subr.mxu0 0.0
    %8224 = vmatpush1.msra.mxu0 %v8194
    %8225 = vmatprep.subr.mxu0 0.0
    %8226 = vmatpush1.msra.mxu0 %v8195
    %8227 = vmatprep.subr.mxu0 0.0
    %8228 = vmatpush1.msra.mxu0 %v8196
    %8229 = vmatprep.subr.mxu0 0.0
    %8230 = vmatpush1.msra.mxu0 0.0
    %8231 = vmatprep.subr.mxu0 0.0
    %8232 = vmatpush1.msra.mxu0 0.0
    %8233 = vmatprep.subr.mxu0 0.0
    %8234 = vmatpush1.msra.mxu0 0.0
    %8235 = vmatprep.subr.mxu0 0.0
    %8236 = vmatpush1.msra.mxu0 0.0
    %8237 = vmatprep.subr.mxu0 0.0
    %8238 = vmatpush1.msra.mxu0 0.0
    %8239 = vmatprep.subr.mxu0 0.0
    %8240 = vmatpush1.msra.mxu0 0.0
    %8241 = vmatprep.subr.mxu0 0.0
    %8242 = vmatpush1.msra.mxu0 0.0
    %8243 = vmatprep.subr.mxu0 0.0
    %8244 = vmatpush1.msra.mxu0 0.0
    %8245 = vmatprep.subr.mxu0 0.0
    %8246 = vmatpush1.msra.mxu0 0.0
    %8247 = vmatprep.subr.mxu0 0.0
    %8248 = vmatpush1.msra.mxu0 0.0
    %8249 = vmatprep.subr.mxu0 0.0
    %8250 = vmatpush1.msra.mxu0 0.0
    %8251 = vmatprep.subr.mxu0 0.0
    %8252 = vmatpush1.msra.mxu0 0.0
    %8253 = vmatprep.subr.mxu0 0.0
    %8254 = vmatpush1.msra.mxu0 0.0
    %8255 = vmatprep.subr.mxu0 0.0
    %8256 = vmatpush1.msra.mxu0 0.0
    %8257 = vmatprep.subr.mxu0 0.0
    %8258 = vmatpush1.msra.mxu0 0.0
    %8259 = vmatprep.subr.mxu0 0.0
    %8260 = vmatpush1.msra.mxu0 0.0
    %8261 = vmatprep.mubr.f32.mxu0 0.0
    %8262 = vmatmul.mubr.f32.gmra.mrb[0].mxu0 %v7409
    %v8263 = vpop.f32.mrb[0].mxu0
    %v8264 = vadd.f32 0.0, %v8263
    %v8265 = vpop.f32.mrb[0].mxu0
    %8266 = vmatprep.mubr.f32.mxu0 0.0
    %8267 = vmatmul.mubr.f32.gmra.mrb[0].mxu0 %v7414
    %v8268 = vpop.f32.mrb[0].mxu0
    %v8269 = vadd.f32 0.0, %v8268
    %v8270 = vpop.f32.mrb[0].mxu0
    %8271 = vmatprep.mubr.f32.mxu0 0.0
    %8272 = vmatmul.mubr.f32.gmra.mrb[0].mxu0 %v7419
    %v8273 = vpop.f32.mrb[0].mxu0
    %v8274 = vadd.f32 0.0, %v8273
    %v8275 = vpop.f32.mrb[0].mxu0
    %8276 = vmatprep.mubr.f32.mxu0 0.0
    %8277 = vmatmul.mubr.f32.gmra.mrb[0].mxu0 %v7424
    %v8278 = vpop.f32.mrb[0].mxu0
    %v8279 = vadd.f32 0.0, %v8278
    %v8280 = vpop.f32.mrb[0].mxu0
    %8281 = vdwg.mxu0
    %v8282 = vadd.f32 %v8176, %v8264
    %v8283 = vadd.f32 %v8177, %v8269
    %v8284 = vadd.f32 %v8178, %v8274
    %v8285 = vadd.f32 %v8179, %v8279
    %s8286 = scalar_lea.vmem %s15, 1024
    %v8287 = vld [vmem:[%s8286] sm:$0xff]
    %v8288 = vld [vmem:[%s8286 + $0x8] sm:$0xff]
    %v8289 = vld [vmem:[%s8286 + $0x10] sm:$0xff]
    %v8290 = vld [vmem:[%s8286 + $0x18] sm:$0xff]
    %v8291 = vld [vmem:[%s8286 + $0x20] sm:$0xff]
    %v8292 = vld [vmem:[%s8286 + $0x28] sm:$0xff]
    %v8293 = vld [vmem:[%s8286 + $0x30] sm:$0xff]
    %v8294 = vld [vmem:[%s8286 + $0x38] sm:$0xff]
    %v8295 = vld [vmem:[%s8286 + $0x40] sm:$0xff]
    %v8296 = vld [vmem:[%s8286 + $0x48] sm:$0xff]
    %v8297 = vld [vmem:[%s8286 + $0x50] sm:$0xff]
    %v8298 = vld [vmem:[%s8286 + $0x58] sm:$0xff]
    %v8299 = vld [vmem:[%s8286 + $0x60] sm:$0xff]
    %v8300 = vld [vmem:[%s8286 + $0x68] sm:$0xff]
    %v8301 = vld [vmem:[%s8286 + $0x70] sm:$0xff]
    %v8302 = vld [vmem:[%s8286 + $0x78] sm:$0xff]
    %8303 = vmatprep.subr.mxu0 0.0
    %8304 = vmatpush1.msra.mxu0 %v8287
    %8305 = vmatprep.subr.mxu0 0.0
    %8306 = vmatpush1.msra.mxu0 %v8288
    %8307 = vmatprep.subr.mxu0 0.0
    %8308 = vmatpush1.msra.mxu0 %v8289
    %8309 = vmatprep.subr.mxu0 0.0
    %8310 = vmatpush1.msra.mxu0 %v8290
    %8311 = vmatprep.subr.mxu0 0.0
    %8312 = vmatpush1.msra.mxu0 %v8291
    %8313 = vmatprep.subr.mxu0 0.0
    %8314 = vmatpush1.msra.mxu0 %v8292
    %8315 = vmatprep.subr.mxu0 0.0
    %8316 = vmatpush1.msra.mxu0 %v8293
    %8317 = vmatprep.subr.mxu0 0.0
    %8318 = vmatpush1.msra.mxu0 %v8294
    %8319 = vmatprep.subr.mxu0 0.0
    %8320 = vmatpush1.msra.mxu0 %v8295
    %8321 = vmatprep.subr.mxu0 0.0
    %8322 = vmatpush1.msra.mxu0 %v8296
    %8323 = vmatprep.subr.mxu0 0.0
    %8324 = vmatpush1.msra.mxu0 %v8297
    %8325 = vmatprep.subr.mxu0 0.0
    %8326 = vmatpush1.msra.mxu0 %v8298
    %8327 = vmatprep.subr.mxu0 0.0
    %8328 = vmatpush1.msra.mxu0 %v8299
    %8329 = vmatprep.subr.mxu0 0.0
    %8330 = vmatpush1.msra.mxu0 %v8300
    %8331 = vmatprep.subr.mxu0 0.0
    %8332 = vmatpush1.msra.mxu0 %v8301
    %8333 = vmatprep.subr.mxu0 0.0
    %8334 = vmatpush1.msra.mxu0 %v8302
    %8335 = vmatprep.subr.mxu0 0.0
    %8336 = vmatpush1.msra.mxu0 0.0
    %8337 = vmatprep.subr.mxu0 0.0
    %8338 = vmatpush1.msra.mxu0 0.0
    %8339 = vmatprep.subr.mxu0 0.0
    %8340 = vmatpush1.msra.mxu0 0.0
    %8341 = vmatprep.subr.mxu0 0.0
    %8342 = vmatpush1.msra.mxu0 0.0
    %8343 = vmatprep.subr.mxu0 0.0
    %8344 = vmatpush1.msra.mxu0 0.0
    %8345 = vmatprep.subr.mxu0 0.0
    %8346 = vmatpush1.msra.mxu0 0.0
    %8347 = vmatprep.subr.mxu0 0.0
    %8348 = vmatpush1.msra.mxu0 0.0
    %8349 = vmatprep.subr.mxu0 0.0
    %8350 = vmatpush1.msra.mxu0 0.0
    %8351 = vmatprep.subr.mxu0 0.0
    %8352 = vmatpush1.msra.mxu0 0.0
    %8353 = vmatprep.subr.mxu0 0.0
    %8354 = vmatpush1.msra.mxu0 0.0
    %8355 = vmatprep.subr.mxu0 0.0
    %8356 = vmatpush1.msra.mxu0 0.0
    %8357 = vmatprep.subr.mxu0 0.0
    %8358 = vmatpush1.msra.mxu0 0.0
    %8359 = vmatprep.subr.mxu0 0.0
    %8360 = vmatpush1.msra.mxu0 0.0
    %8361 = vmatprep.subr.mxu0 0.0
    %8362 = vmatpush1.msra.mxu0 0.0
    %8363 = vmatprep.subr.mxu0 0.0
    %8364 = vmatpush1.msra.mxu0 0.0
    %8365 = vmatprep.subr.mxu0 0.0
    %8366 = vmatpush1.msra.mxu0 0.0
    %8367 = vmatprep.mubr.f32.mxu0 0.0
    %8368 = vmatmul.mubr.f32.gmra.mrb[0].mxu0 %v7429
    %v8369 = vpop.f32.mrb[0].mxu0
    %v8370 = vadd.f32 0.0, %v8369
    %v8371 = vpop.f32.mrb[0].mxu0
    %8372 = vmatprep.mubr.f32.mxu0 0.0
    %8373 = vmatmul.mubr.f32.gmra.mrb[0].mxu0 %v7434
    %v8374 = vpop.f32.mrb[0].mxu0
    %v8375 = vadd.f32 0.0, %v8374
    %v8376 = vpop.f32.mrb[0].mxu0
    %8377 = vmatprep.mubr.f32.mxu0 0.0
    %8378 = vmatmul.mubr.f32.gmra.mrb[0].mxu0 %v7439
    %v8379 = vpop.f32.mrb[0].mxu0
    %v8380 = vadd.f32 0.0, %v8379
    %v8381 = vpop.f32.mrb[0].mxu0
    %8382 = vmatprep.mubr.f32.mxu0 0.0
    %8383 = vmatmul.mubr.f32.gmra.mrb[0].mxu0 %v7444
    %v8384 = vpop.f32.mrb[0].mxu0
    %v8385 = vadd.f32 0.0, %v8384
    %v8386 = vpop.f32.mrb[0].mxu0
    %8387 = vdwg.mxu0
    %v8388 = vadd.f32 %v8282, %v8370
    %v8389 = vadd.f32 %v8283, %v8375
    %v8390 = vadd.f32 %v8284, %v8380
    %v8391 = vadd.f32 %v8285, %v8385
    %v8392 = vld [vmem:[%s16] sm:$0x1]
    %v8394 = vlaneseq
    %v8395 = vshrl.u32 %v8394, 7
    %v8396 = vsub.s32 0, %v8395
    %v8397 = vrot.slane %v8392, %v8396
    %v8399 = vadd.f32 %v8388, %v8397
    %v8400 = vadd.f32 %v8389, %v8397
    %v8401 = vadd.f32 %v8390, %v8397
    %v8402 = vadd.f32 %v8391, %v8397
    %v8403 = vmax.f32 %v8399, 0.0
    %v8404 = vmax.f32 %v8400, 0.0
    %v8405 = vmax.f32 %v8401, 0.0
    %v8406 = vmax.f32 %v8402, 0.0
    %v8407 = vld [vmem:[%s17] sm:$0xff]
    %v8408 = vld [vmem:[%s17 + $0x8] sm:$0xff]
    %v8409 = vld [vmem:[%s17 + $0x10] sm:$0xff]
    %v8410 = vld [vmem:[%s17 + $0x18] sm:$0xff]
    %v8411 = vld [vmem:[%s17 + $0x20] sm:$0xff]
    %v8412 = vld [vmem:[%s17 + $0x28] sm:$0xff]
    %v8413 = vld [vmem:[%s17 + $0x30] sm:$0xff]
    %v8414 = vld [vmem:[%s17 + $0x38] sm:$0xff]
    %v8415 = vld [vmem:[%s17 + $0x40] sm:$0xff]
    %v8416 = vld [vmem:[%s17 + $0x48] sm:$0xff]
    %v8417 = vld [vmem:[%s17 + $0x50] sm:$0xff]
    %v8418 = vld [vmem:[%s17 + $0x58] sm:$0xff]
    %v8419 = vld [vmem:[%s17 + $0x60] sm:$0xff]
    %v8420 = vld [vmem:[%s17 + $0x68] sm:$0xff]
    %v8421 = vld [vmem:[%s17 + $0x70] sm:$0xff]
    %v8422 = vld [vmem:[%s17 + $0x78] sm:$0xff]
    %v8423 = vld [vmem:[%s17 + $0x80] sm:$0xff]
    %v8424 = vld [vmem:[%s17 + $0x88] sm:$0xff]
    %v8425 = vld [vmem:[%s17 + $0x90] sm:$0xff]
    %v8426 = vld [vmem:[%s17 + $0x98] sm:$0xff]
    %v8427 = vld [vmem:[%s17 + $0xa0] sm:$0xff]
    %v8428 = vld [vmem:[%s17 + $0xa8] sm:$0xff]
    %v8429 = vld [vmem:[%s17 + $0xb0] sm:$0xff]
    %v8430 = vld [vmem:[%s17 + $0xb8] sm:$0xff]
    %v8431 = vld [vmem:[%s17 + $0xc0] sm:$0xff]
    %v8432 = vld [vmem:[%s17 + $0xc8] sm:$0xff]
    %v8433 = vld [vmem:[%s17 + $0xd0] sm:$0xff]
    %v8434 = vld [vmem:[%s17 + $0xd8] sm:$0xff]
    %v8435 = vld [vmem:[%s17 + $0xe0] sm:$0xff]
    %v8436 = vld [vmem:[%s17 + $0xe8] sm:$0xff]
    %v8437 = vld [vmem:[%s17 + $0xf0] sm:$0xff]
    %v8438 = vld [vmem:[%s17 + $0xf8] sm:$0xff]
    %v8439 = vld [vmem:[%s17 + $0x100] sm:$0xff]
    %v8440 = vld [vmem:[%s17 + $0x108] sm:$0xff]
    %v8441 = vld [vmem:[%s17 + $0x110] sm:$0xff]
    %v8442 = vld [vmem:[%s17 + $0x118] sm:$0xff]
    %v8443 = vld [vmem:[%s17 + $0x120] sm:$0xff]
    %v8444 = vld [vmem:[%s17 + $0x128] sm:$0xff]
    %v8445 = vld [vmem:[%s17 + $0x130] sm:$0xff]
    %v8446 = vld [vmem:[%s17 + $0x138] sm:$0xff]
    %v8447 = vld [vmem:[%s17 + $0x140] sm:$0xff]
    %v8448 = vld [vmem:[%s17 + $0x148] sm:$0xff]
    %v8449 = vld [vmem:[%s17 + $0x150] sm:$0xff]
    %v8450 = vld [vmem:[%s17 + $0x158] sm:$0xff]
    %v8451 = vld [vmem:[%s17 + $0x160] sm:$0xff]
    %v8452 = vld [vmem:[%s17 + $0x168] sm:$0xff]
    %v8453 = vld [vmem:[%s17 + $0x170] sm:$0xff]
    %v8454 = vld [vmem:[%s17 + $0x178] sm:$0xff]
    %v8455 = vld [vmem:[%s17 + $0x180] sm:$0xff]
    %v8456 = vld [vmem:[%s17 + $0x188] sm:$0xff]
    %v8457 = vld [vmem:[%s17 + $0x190] sm:$0xff]
    %v8458 = vld [vmem:[%s17 + $0x198] sm:$0xff]
    %v8459 = vld [vmem:[%s17 + $0x1a0] sm:$0xff]
    %v8460 = vld [vmem:[%s17 + $0x1a8] sm:$0xff]
    %v8461 = vld [vmem:[%s17 + $0x1b0] sm:$0xff]
    %v8462 = vld [vmem:[%s17 + $0x1b8] sm:$0xff]
    %v8463 = vld [vmem:[%s17 + $0x1c0] sm:$0xff]
    %v8464 = vld [vmem:[%s17 + $0x1c8] sm:$0xff]
    %v8465 = vld [vmem:[%s17 + $0x1d0] sm:$0xff]
    %v8466 = vld [vmem:[%s17 + $0x1d8] sm:$0xff]
    %v8467 = vld [vmem:[%s17 + $0x1e0] sm:$0xff]
    %v8468 = vld [vmem:[%s17 + $0x1e8] sm:$0xff]
    %v8469 = vld [vmem:[%s17 + $0x1f0] sm:$0xff]
    %v8470 = vld [vmem:[%s17 + $0x1f8] sm:$0xff]
    %v8471 = vld [vmem:[%s18] sm:$0xf]
    %v8473 = vlaneseq
    %v8474 = vshrl.u32 %v8473, 7
    %v8475 = vsub.s32 0, %v8474
    %v8476 = vrot.slane %v8471, %v8475
    %v8477 = vlaneseq
    %v8478 = vshrl.u32 %v8477, 7
    %v8479 = vsub.s32 1, %v8478
    %v8480 = vrot.slane %v8471, %v8479
    %v8481 = vlaneseq
    %v8482 = vshrl.u32 %v8481, 7
    %v8483 = vsub.s32 2, %v8482
    %v8484 = vrot.slane %v8471, %v8483
    %v8485 = vlaneseq
    %v8486 = vshrl.u32 %v8485, 7
    %v8487 = vsub.s32 3, %v8486
    %v8488 = vrot.slane %v8471, %v8487
    %8493 = vmatprep.subr.mxu0 %v8408
    %8494 = vmatpush1.msra.mxu0 %v8407
    %8495 = vmatprep.subr.mxu0 %v8412
    %8496 = vmatpush1.msra.mxu0 %v8411
    %8497 = vmatprep.subr.mxu0 %v8416
    %8498 = vmatpush1.msra.mxu0 %v8415
    %8499 = vmatprep.subr.mxu0 %v8420
    %8500 = vmatpush1.msra.mxu0 %v8419
    %8501 = vmatprep.subr.mxu0 %v8424
    %8502 = vmatpush1.msra.mxu0 %v8423
    %8503 = vmatprep.subr.mxu0 %v8428
    %8504 = vmatpush1.msra.mxu0 %v8427
    %8505 = vmatprep.subr.mxu0 %v8432
    %8506 = vmatpush1.msra.mxu0 %v8431
    %8507 = vmatprep.subr.mxu0 %v8436
    %8508 = vmatpush1.msra.mxu0 %v8435
    %8509 = vmatprep.subr.mxu0 %v8440
    %8510 = vmatpush1.msra.mxu0 %v8439
    %8511 = vmatprep.subr.mxu0 %v8444
    %8512 = vmatpush1.msra.mxu0 %v8443
    %8513 = vmatprep.subr.mxu0 %v8448
    %8514 = vmatpush1.msra.mxu0 %v8447
    %8515 = vmatprep.subr.mxu0 %v8452
    %8516 = vmatpush1.msra.mxu0 %v8451
    %8517 = vmatprep.subr.mxu0 %v8456
    %8518 = vmatpush1.msra.mxu0 %v8455
    %8519 = vmatprep.subr.mxu0 %v8460
    %8520 = vmatpush1.msra.mxu0 %v8459
    %8521 = vmatprep.subr.mxu0 %v8464
    %8522 = vmatpush1.msra.mxu0 %v8463
    %8523 = vmatprep.subr.mxu0 %v8468
    %8524 = vmatpush1.msra.mxu0 %v8467
    %8525 = vmatprep.subr.mxu0 0.0
    %8526 = vmatpush1.msra.mxu0 0.0
    %8527 = vmatprep.subr.mxu0 0.0
    %8528 = vmatpush1.msra.mxu0 0.0
    %8529 = vmatprep.subr.mxu0 0.0
    %8530 = vmatpush1.msra.mxu0 0.0
    %8531 = vmatprep.subr.mxu0 0.0
    %8532 = vmatpush1.msra.mxu0 0.0
    %8533 = vmatprep.subr.mxu0 0.0
    %8534 = vmatpush1.msra.mxu0 0.0
    %8535 = vmatprep.subr.mxu0 0.0
    %8536 = vmatpush1.msra.mxu0 0.0
    %8537 = vmatprep.subr.mxu0 0.0
    %8538 = vmatpush1.msra.mxu0 0.0
    %8539 = vmatprep.subr.mxu0 0.0
    %8540 = vmatpush1.msra.mxu0 0.0
    %8541 = vmatprep.subr.mxu0 0.0
    %8542 = vmatpush1.msra.mxu0 0.0
    %8543 = vmatprep.subr.mxu0 0.0
    %8544 = vmatpush1.msra.mxu0 0.0
    %8545 = vmatprep.subr.mxu0 0.0
    %8546 = vmatpush1.msra.mxu0 0.0
    %8547 = vmatprep.subr.mxu0 0.0
    %8548 = vmatpush1.msra.mxu0 0.0
    %8549 = vmatprep.subr.mxu0 0.0
    %8550 = vmatpush1.msra.mxu0 0.0
    %8551 = vmatprep.subr.mxu0 0.0
    %8552 = vmatpush1.msra.mxu0 0.0
    %8553 = vmatprep.subr.mxu0 0.0
    %8554 = vmatpush1.msra.mxu0 0.0
    %8555 = vmatprep.subr.mxu0 0.0
    %8556 = vmatpush1.msra.mxu0 0.0
    %8557 = vmatprep.mubr.f32.mxu0 0.0
    %8558 = vmatmul.mubr.f32.gmra.mrb[0].mxu0 %v8403
    %v8559 = vpop.f32.mrb[0].mxu0
    %v8560 = vadd.f32 %v8476, %v8559
    %v8561 = vpop.f32.mrb[0].mxu0
    %v8562 = vadd.f32 %v8480, %v8561
    %8563 = vmatprep.mubr.f32.mxu0 0.0
    %8564 = vmatmul.mubr.f32.gmra.mrb[0].mxu0 %v8404
    %v8565 = vpop.f32.mrb[0].mxu0
    %v8566 = vadd.f32 %v8476, %v8565
    %v8567 = vpop.f32.mrb[0].mxu0
    %v8568 = vadd.f32 %v8480, %v8567
    %8569 = vmatprep.mubr.f32.mxu0 0.0
    %8570 = vmatmul.mubr.f32.gmra.mrb[0].mxu0 %v8405
    %v8571 = vpop.f32.mrb[0].mxu0
    %v8572 = vadd.f32 %v8476, %v8571
    %v8573 = vpop.f32.mrb[0].mxu0
    %v8574 = vadd.f32 %v8480, %v8573
    %8575 = vmatprep.mubr.f32.mxu0 0.0
    %8576 = vmatmul.mubr.f32.gmra.mrb[0].mxu0 %v8406
    %v8577 = vpop.f32.mrb[0].mxu0
    %v8578 = vadd.f32 %v8476, %v8577
    %v8579 = vpop.f32.mrb[0].mxu0
    %v8580 = vadd.f32 %v8480, %v8579
    %8581 = vdwg.mxu0
    %8582 = vmatprep.subr.mxu0 %v8410
    %8583 = vmatpush1.msra.mxu0 %v8409
    %8584 = vmatprep.subr.mxu0 %v8414
    %8585 = vmatpush1.msra.mxu0 %v8413
    %8586 = vmatprep.subr.mxu0 %v8418
    %8587 = vmatpush1.msra.mxu0 %v8417
    %8588 = vmatprep.subr.mxu0 %v8422
    %8589 = vmatpush1.msra.mxu0 %v8421
    %8590 = vmatprep.subr.mxu0 %v8426
    %8591 = vmatpush1.msra.mxu0 %v8425
    %8592 = vmatprep.subr.mxu0 %v8430
    %8593 = vmatpush1.msra.mxu0 %v8429
    %8594 = vmatprep.subr.mxu0 %v8434
    %8595 = vmatpush1.msra.mxu0 %v8433
    %8596 = vmatprep.subr.mxu0 %v8438
    %8597 = vmatpush1.msra.mxu0 %v8437
    %8598 = vmatprep.subr.mxu0 %v8442
    %8599 = vmatpush1.msra.mxu0 %v8441
    %8600 = vmatprep.subr.mxu0 %v8446
    %8601 = vmatpush1.msra.mxu0 %v8445
    %8602 = vmatprep.subr.mxu0 %v8450
    %8603 = vmatpush1.msra.mxu0 %v8449
    %8604 = vmatprep.subr.mxu0 %v8454
    %8605 = vmatpush1.msra.mxu0 %v8453
    %8606 = vmatprep.subr.mxu0 %v8458
    %8607 = vmatpush1.msra.mxu0 %v8457
    %8608 = vmatprep.subr.mxu0 %v8462
    %8609 = vmatpush1.msra.mxu0 %v8461
    %8610 = vmatprep.subr.mxu0 %v8466
    %8611 = vmatpush1.msra.mxu0 %v8465
    %8612 = vmatprep.subr.mxu0 %v8470
    %8613 = vmatpush1.msra.mxu0 %v8469
    %8614 = vmatprep.subr.mxu0 0.0
    %8615 = vmatpush1.msra.mxu0 0.0
    %8616 = vmatprep.subr.mxu0 0.0
    %8617 = vmatpush1.msra.mxu0 0.0
    %8618 = vmatprep.subr.mxu0 0.0
    %8619 = vmatpush1.msra.mxu0 0.0
    %8620 = vmatprep.subr.mxu0 0.0
    %8621 = vmatpush1.msra.mxu0 0.0
    %8622 = vmatprep.subr.mxu0 0.0
    %8623 = vmatpush1.msra.mxu0 0.0
    %8624 = vmatprep.subr.mxu0 0.0
    %8625 = vmatpush1.msra.mxu0 0.0
    %8626 = vmatprep.subr.mxu0 0.0
    %8627 = vmatpush1.msra.mxu0 0.0
    %8628 = vmatprep.subr.mxu0 0.0
    %8629 = vmatpush1.msra.mxu0 0.0
    %8630 = vmatprep.subr.mxu0 0.0
    %8631 = vmatpush1.msra.mxu0 0.0
    %8632 = vmatprep.subr.mxu0 0.0
    %8633 = vmatpush1.msra.mxu0 0.0
    %8634 = vmatprep.subr.mxu0 0.0
    %8635 = vmatpush1.msra.mxu0 0.0
    %8636 = vmatprep.subr.mxu0 0.0
    %8637 = vmatpush1.msra.mxu0 0.0
    %8638 = vmatprep.subr.mxu0 0.0
    %8639 = vmatpush1.msra.mxu0 0.0
    %8640 = vmatprep.subr.mxu0 0.0
    %8641 = vmatpush1.msra.mxu0 0.0
    %8642 = vmatprep.subr.mxu0 0.0
    %8643 = vmatpush1.msra.mxu0 0.0
    %8644 = vmatprep.subr.mxu0 0.0
    %8645 = vmatpush1.msra.mxu0 0.0
    %8646 = vmatprep.mubr.f32.mxu0 0.0
    %8647 = vmatmul.mubr.f32.gmra.mrb[0].mxu0 %v8403
    %v8648 = vpop.f32.mrb[0].mxu0
    %v8649 = vadd.f32 %v8484, %v8648
    %v8650 = vpop.f32.mrb[0].mxu0
    %v8651 = vadd.f32 %v8488, %v8650
    %8652 = vmatprep.mubr.f32.mxu0 0.0
    %8653 = vmatmul.mubr.f32.gmra.mrb[0].mxu0 %v8404
    %v8654 = vpop.f32.mrb[0].mxu0
    %v8655 = vadd.f32 %v8484, %v8654
    %v8656 = vpop.f32.mrb[0].mxu0
    %v8657 = vadd.f32 %v8488, %v8656
    %8658 = vmatprep.mubr.f32.mxu0 0.0
    %8659 = vmatmul.mubr.f32.gmra.mrb[0].mxu0 %v8405
    %v8660 = vpop.f32.mrb[0].mxu0
    %v8661 = vadd.f32 %v8484, %v8660
    %v8662 = vpop.f32.mrb[0].mxu0
    %v8663 = vadd.f32 %v8488, %v8662
    %8664 = vmatprep.mubr.f32.mxu0 0.0
    %8665 = vmatmul.mubr.f32.gmra.mrb[0].mxu0 %v8406
    %v8666 = vpop.f32.mrb[0].mxu0
    %v8667 = vadd.f32 %v8484, %v8666
    %v8668 = vpop.f32.mrb[0].mxu0
    %v8669 = vadd.f32 %v8488, %v8668
    %8670 = vdwg.mxu0
    %v8671 = vmax.f32 %v8560, 0.0
    %v8672 = vmax.f32 %v8562, 0.0
    %v8673 = vmax.f32 %v8649, 0.0
    %v8674 = vmax.f32 %v8651, 0.0
    %v8675 = vmax.f32 %v8566, 0.0
    %v8676 = vmax.f32 %v8568, 0.0
    %v8677 = vmax.f32 %v8655, 0.0
    %v8678 = vmax.f32 %v8657, 0.0
    %v8679 = vmax.f32 %v8572, 0.0
    %v8680 = vmax.f32 %v8574, 0.0
    %v8681 = vmax.f32 %v8661, 0.0
    %v8682 = vmax.f32 %v8663, 0.0
    %v8683 = vmax.f32 %v8578, 0.0
    %v8684 = vmax.f32 %v8580, 0.0
    %v8685 = vmax.f32 %v8667, 0.0
    %v8686 = vmax.f32 %v8669, 0.0
    %v8687 = vadd.f32 %v8671, %v8675
    %v8688 = vrot.slane %v8687, 4
    %v8689 = vadd.f32 %v8687, %v8688
    %v8690 = vrot.slane %v8689, 2
    %v8691 = vadd.f32 %v8689, %v8690
    %v8692 = vrot.slane %v8691, 1
    %v8693 = vadd.f32 %v8691, %v8692
    %v8694 = vadd.f32 %v8672, %v8676
    %v8695 = vrot.slane %v8694, 4
    %v8696 = vadd.f32 %v8694, %v8695
    %v8697 = vrot.slane %v8696, 2
    %v8698 = vadd.f32 %v8696, %v8697
    %v8699 = vrot.slane %v8698, 1
    %v8700 = vadd.f32 %v8698, %v8699
    %v8701 = vadd.f32 %v8673, %v8677
    %v8702 = vrot.slane %v8701, 4
    %v8703 = vadd.f32 %v8701, %v8702
    %v8704 = vrot.slane %v8703, 2
    %v8705 = vadd.f32 %v8703, %v8704
    %v8706 = vrot.slane %v8705, 1
    %v8707 = vadd.f32 %v8705, %v8706
    %v8708 = vadd.f32 %v8674, %v8678
    %v8709 = vrot.slane %v8708, 4
    %v8710 = vadd.f32 %v8708, %v8709
    %v8711 = vrot.slane %v8710, 2
    %v8712 = vadd.f32 %v8710, %v8711
    %v8713 = vrot.slane %v8712, 1
    %v8714 = vadd.f32 %v8712, %v8713
    %v8715 = vadd.f32 %v8679, %v8683
    %v8716 = vrot.slane %v8715, 4
    %v8717 = vadd.f32 %v8715, %v8716
    %v8718 = vrot.slane %v8717, 2
    %v8719 = vadd.f32 %v8717, %v8718
    %v8720 = vrot.slane %v8719, 1
    %v8721 = vadd.f32 %v8719, %v8720
    %v8722 = vadd.f32 %v8680, %v8684
    %v8723 = vrot.slane %v8722, 4
    %v8724 = vadd.f32 %v8722, %v8723
    %v8725 = vrot.slane %v8724, 2
    %v8726 = vadd.f32 %v8724, %v8725
    %v8727 = vrot.slane %v8726, 1
    %v8728 = vadd.f32 %v8726, %v8727
    %v8729 = vadd.f32 %v8681, %v8685
    %v8730 = vrot.slane %v8729, 4
    %v8731 = vadd.f32 %v8729, %v8730
    %v8732 = vrot.slane %v8731, 2
    %v8733 = vadd.f32 %v8731, %v8732
    %v8734 = vrot.slane %v8733, 1
    %v8735 = vadd.f32 %v8733, %v8734
    %v8736 = vadd.f32 %v8682, %v8686
    %v8737 = vrot.slane %v8736, 4
    %v8738 = vadd.f32 %v8736, %v8737
    %v8739 = vrot.slane %v8738, 2
    %v8740 = vadd.f32 %v8738, %v8739
    %v8741 = vrot.slane %v8740, 1
    %v8742 = vadd.f32 %v8740, %v8741
    %v8743 = vmul.f32 %v8693, 0.0625
    %v8744 = vmul.f32 %v8700, 0.0625
    %v8745 = vmul.f32 %v8707, 0.0625
    %v8746 = vmul.f32 %v8714, 0.0625
    %v8747 = vmul.f32 %v8721, 0.0625
    %v8748 = vmul.f32 %v8728, 0.0625
    %v8749 = vmul.f32 %v8735, 0.0625
    %v8750 = vmul.f32 %v8742, 0.0625
    %v8751 = vld [vmem:[%s19] sm:$0xff]
    %v8752 = vld [vmem:[%s19 + $0x8] sm:$0xff]
    %v8753 = vld [vmem:[%s19 + $0x10] sm:$0xff]
    %v8754 = vld [vmem:[%s19 + $0x18] sm:$0xff]
    %v8755 = vld [vmem:[%s19 + $0x20] sm:$0xff]
    %v8756 = vld [vmem:[%s19 + $0x28] sm:$0xff]
    %v8757 = vld [vmem:[%s19 + $0x30] sm:$0xff]
    %v8758 = vld [vmem:[%s19 + $0x38] sm:$0xff]
    %v8759 = vld [vmem:[%s19 + $0x40] sm:$0xff]
    %v8760 = vld [vmem:[%s19 + $0x48] sm:$0xff]
    %v8761 = vld [vmem:[%s19 + $0x50] sm:$0xff]
    %v8762 = vld [vmem:[%s19 + $0x58] sm:$0xff]
    %v8763 = vld [vmem:[%s19 + $0x60] sm:$0xff]
    %v8764 = vld [vmem:[%s19 + $0x68] sm:$0xff]
    %v8765 = vld [vmem:[%s19 + $0x70] sm:$0xff]
    %v8766 = vld [vmem:[%s19 + $0x78] sm:$0xff]
    %v8767 = vld [vmem:[%s19 + $0x80] sm:$0xff]
    %v8768 = vld [vmem:[%s19 + $0x88] sm:$0xff]
    %v8769 = vld [vmem:[%s19 + $0x90] sm:$0xff]
    %v8770 = vld [vmem:[%s19 + $0x98] sm:$0xff]
    %v8771 = vld [vmem:[%s19 + $0xa0] sm:$0xff]
    %v8772 = vld [vmem:[%s19 + $0xa8] sm:$0xff]
    %v8773 = vld [vmem:[%s19 + $0xb0] sm:$0xff]
    %v8774 = vld [vmem:[%s19 + $0xb8] sm:$0xff]
    %v8775 = vld [vmem:[%s19 + $0xc0] sm:$0xff]
    %v8776 = vld [vmem:[%s19 + $0xc8] sm:$0xff]
    %v8777 = vld [vmem:[%s19 + $0xd0] sm:$0xff]
    %v8778 = vld [vmem:[%s19 + $0xd8] sm:$0xff]
    %v8779 = vld [vmem:[%s19 + $0xe0] sm:$0xff]
    %v8780 = vld [vmem:[%s19 + $0xe8] sm:$0xff]
    %v8781 = vld [vmem:[%s19 + $0xf0] sm:$0xff]
    %v8782 = vld [vmem:[%s19 + $0xf8] sm:$0xff]
    %v8783 = vld [vmem:[%s19 + $0x100] sm:$0xff]
    %v8784 = vld [vmem:[%s19 + $0x108] sm:$0xff]
    %v8785 = vld [vmem:[%s19 + $0x110] sm:$0xff]
    %v8786 = vld [vmem:[%s19 + $0x118] sm:$0xff]
    %v8787 = vld [vmem:[%s19 + $0x120] sm:$0xff]
    %v8788 = vld [vmem:[%s19 + $0x128] sm:$0xff]
    %v8789 = vld [vmem:[%s19 + $0x130] sm:$0xff]
    %v8790 = vld [vmem:[%s19 + $0x138] sm:$0xff]
    %v8791 = vld [vmem:[%s19 + $0x140] sm:$0xff]
    %v8792 = vld [vmem:[%s19 + $0x148] sm:$0xff]
    %v8793 = vld [vmem:[%s19 + $0x150] sm:$0xff]
    %v8794 = vld [vmem:[%s19 + $0x158] sm:$0xff]
    %v8795 = vld [vmem:[%s19 + $0x160] sm:$0xff]
    %v8796 = vld [vmem:[%s19 + $0x168] sm:$0xff]
    %v8797 = vld [vmem:[%s19 + $0x170] sm:$0xff]
    %v8798 = vld [vmem:[%s19 + $0x178] sm:$0xff]
    %v8799 = vld [vmem:[%s19 + $0x180] sm:$0xff]
    %v8800 = vld [vmem:[%s19 + $0x188] sm:$0xff]
    %v8801 = vld [vmem:[%s19 + $0x190] sm:$0xff]
    %v8802 = vld [vmem:[%s19 + $0x198] sm:$0xff]
    %v8803 = vld [vmem:[%s19 + $0x1a0] sm:$0xff]
    %v8804 = vld [vmem:[%s19 + $0x1a8] sm:$0xff]
    %v8805 = vld [vmem:[%s19 + $0x1b0] sm:$0xff]
    %v8806 = vld [vmem:[%s19 + $0x1b8] sm:$0xff]
    %v8807 = vld [vmem:[%s19 + $0x1c0] sm:$0xff]
    %v8808 = vld [vmem:[%s19 + $0x1c8] sm:$0xff]
    %v8809 = vld [vmem:[%s19 + $0x1d0] sm:$0xff]
    %v8810 = vld [vmem:[%s19 + $0x1d8] sm:$0xff]
    %v8811 = vld [vmem:[%s19 + $0x1e0] sm:$0xff]
    %v8812 = vld [vmem:[%s19 + $0x1e8] sm:$0xff]
    %v8813 = vld [vmem:[%s19 + $0x1f0] sm:$0xff]
    %v8814 = vld [vmem:[%s19 + $0x1f8] sm:$0xff]
    %v8815 = vld [vmem:[%s20] sm:$0x1]
    %v8817 = vlaneseq
    %v8818 = vshrl.u32 %v8817, 7
    %v8819 = vsub.s32 0, %v8818
    %v8820 = vrot.slane %v8815, %v8819
    %vm8830 = vcmask 1041409
    %v8831 = vsel %vm8830, %v8747, %v8743
    %v8832 = vsel %vm8830, %v8748, %v8744
    %v8833 = vsel %vm8830, %v8749, %v8745
    %v8834 = vsel %vm8830, %v8750, %v8746
    %8839 = vmatprep.subr.mxu0 0.0
    %8840 = vmatpush1.msra.mxu0 %v8751
    %8841 = vmatprep.subr.mxu0 0.0
    %8842 = vmatpush1.msra.mxu0 %v8752
    %8843 = vmatprep.subr.mxu0 0.0
    %8844 = vmatpush1.msra.mxu0 %v8753
    %8845 = vmatprep.subr.mxu0 0.0
    %8846 = vmatpush1.msra.mxu0 %v8754
    %8847 = vmatprep.subr.mxu0 0.0
    %8848 = vmatpush1.msra.mxu0 %v8755
    %8849 = vmatprep.subr.mxu0 0.0
    %8850 = vmatpush1.msra.mxu0 %v8756
    %8851 = vmatprep.subr.mxu0 0.0
    %8852 = vmatpush1.msra.mxu0 %v8757
    %8853 = vmatprep.subr.mxu0 0.0
    %8854 = vmatpush1.msra.mxu0 %v8758
    %8855 = vmatprep.subr.mxu0 0.0
    %8856 = vmatpush1.msra.mxu0 %v8759
    %8857 = vmatprep.subr.mxu0 0.0
    %8858 = vmatpush1.msra.mxu0 %v8760
    %8859 = vmatprep.subr.mxu0 0.0
    %8860 = vmatpush1.msra.mxu0 %v8761
    %8861 = vmatprep.subr.mxu0 0.0
    %8862 = vmatpush1.msra.mxu0 %v8762
    %8863 = vmatprep.subr.mxu0 0.0
    %8864 = vmatpush1.msra.mxu0 %v8763
    %8865 = vmatprep.subr.mxu0 0.0
    %8866 = vmatpush1.msra.mxu0 %v8764
    %8867 = vmatprep.subr.mxu0 0.0
    %8868 = vmatpush1.msra.mxu0 %v8765
    %8869 = vmatprep.subr.mxu0 0.0
    %8870 = vmatpush1.msra.mxu0 %v8766
    %8871 = vmatprep.subr.mxu0 0.0
    %8872 = vmatpush1.msra.mxu0 %v8767
    %8873 = vmatprep.subr.mxu0 0.0
    %8874 = vmatpush1.msra.mxu0 %v8768
    %8875 = vmatprep.subr.mxu0 0.0
    %8876 = vmatpush1.msra.mxu0 %v8769
    %8877 = vmatprep.subr.mxu0 0.0
    %8878 = vmatpush1.msra.mxu0 %v8770
    %8879 = vmatprep.subr.mxu0 0.0
    %8880 = vmatpush1.msra.mxu0 %v8771
    %8881 = vmatprep.subr.mxu0 0.0
    %8882 = vmatpush1.msra.mxu0 %v8772
    %8883 = vmatprep.subr.mxu0 0.0
    %8884 = vmatpush1.msra.mxu0 %v8773
    %8885 = vmatprep.subr.mxu0 0.0
    %8886 = vmatpush1.msra.mxu0 %v8774
    %8887 = vmatprep.subr.mxu0 0.0
    %8888 = vmatpush1.msra.mxu0 %v8775
    %8889 = vmatprep.subr.mxu0 0.0
    %8890 = vmatpush1.msra.mxu0 %v8776
    %8891 = vmatprep.subr.mxu0 0.0
    %8892 = vmatpush1.msra.mxu0 %v8777
    %8893 = vmatprep.subr.mxu0 0.0
    %8894 = vmatpush1.msra.mxu0 %v8778
    %8895 = vmatprep.subr.mxu0 0.0
    %8896 = vmatpush1.msra.mxu0 %v8779
    %8897 = vmatprep.subr.mxu0 0.0
    %8898 = vmatpush1.msra.mxu0 %v8780
    %8899 = vmatprep.subr.mxu0 0.0
    %8900 = vmatpush1.msra.mxu0 %v8781
    %8901 = vmatprep.subr.mxu0 0.0
    %8902 = vmatpush1.msra.mxu0 %v8782
    %8903 = vmatprep.mubr.f32.mxu0 %v8832
    %8904 = vmatmul.mubr.f32.gmra.mrb[0].mxu0 %v8831
    %v8905 = vpop.f32.mrb[0].mxu0
    %v8906 = vadd.f32 %v8820, %v8905
    %v8907 = vpop.f32.mrb[0].mxu0
    %8908 = vdwg.mxu0
    %8909 = vmatprep.subr.mxu0 0.0
    %8910 = vmatpush1.msra.mxu0 %v8783
    %8911 = vmatprep.subr.mxu0 0.0
    %8912 = vmatpush1.msra.mxu0 %v8784
    %8913 = vmatprep.subr.mxu0 0.0
    %8914 = vmatpush1.msra.mxu0 %v8785
    %8915 = vmatprep.subr.mxu0 0.0
    %8916 = vmatpush1.msra.mxu0 %v8786
    %8917 = vmatprep.subr.mxu0 0.0
    %8918 = vmatpush1.msra.mxu0 %v8787
    %8919 = vmatprep.subr.mxu0 0.0
    %8920 = vmatpush1.msra.mxu0 %v8788
    %8921 = vmatprep.subr.mxu0 0.0
    %8922 = vmatpush1.msra.mxu0 %v8789
    %8923 = vmatprep.subr.mxu0 0.0
    %8924 = vmatpush1.msra.mxu0 %v8790
    %8925 = vmatprep.subr.mxu0 0.0
    %8926 = vmatpush1.msra.mxu0 %v8791
    %8927 = vmatprep.subr.mxu0 0.0
    %8928 = vmatpush1.msra.mxu0 %v8792
    %8929 = vmatprep.subr.mxu0 0.0
    %8930 = vmatpush1.msra.mxu0 %v8793
    %8931 = vmatprep.subr.mxu0 0.0
    %8932 = vmatpush1.msra.mxu0 %v8794
    %8933 = vmatprep.subr.mxu0 0.0
    %8934 = vmatpush1.msra.mxu0 %v8795
    %8935 = vmatprep.subr.mxu0 0.0
    %8936 = vmatpush1.msra.mxu0 %v8796
    %8937 = vmatprep.subr.mxu0 0.0
    %8938 = vmatpush1.msra.mxu0 %v8797
    %8939 = vmatprep.subr.mxu0 0.0
    %8940 = vmatpush1.msra.mxu0 %v8798
    %8941 = vmatprep.subr.mxu0 0.0
    %8942 = vmatpush1.msra.mxu0 %v8799
    %8943 = vmatprep.subr.mxu0 0.0
    %8944 = vmatpush1.msra.mxu0 %v8800
    %8945 = vmatprep.subr.mxu0 0.0
    %8946 = vmatpush1.msra.mxu0 %v8801
    %8947 = vmatprep.subr.mxu0 0.0
    %8948 = vmatpush1.msra.mxu0 %v8802
    %8949 = vmatprep.subr.mxu0 0.0
    %8950 = vmatpush1.msra.mxu0 %v8803
    %8951 = vmatprep.subr.mxu0 0.0
    %8952 = vmatpush1.msra.mxu0 %v8804
    %8953 = vmatprep.subr.mxu0 0.0
    %8954 = vmatpush1.msra.mxu0 %v8805
    %8955 = vmatprep.subr.mxu0 0.0
    %8956 = vmatpush1.msra.mxu0 %v8806
    %8957 = vmatprep.subr.mxu0 0.0
    %8958 = vmatpush1.msra.mxu0 %v8807
    %8959 = vmatprep.subr.mxu0 0.0
    %8960 = vmatpush1.msra.mxu0 %v8808
    %8961 = vmatprep.subr.mxu0 0.0
    %8962 = vmatpush1.msra.mxu0 %v8809
    %8963 = vmatprep.subr.mxu0 0.0
    %8964 = vmatpush1.msra.mxu0 %v8810
    %8965 = vmatprep.subr.mxu0 0.0
    %8966 = vmatpush1.msra.mxu0 %v8811
    %8967 = vmatprep.subr.mxu0 0.0
    %8968 = vmatpush1.msra.mxu0 %v8812
    %8969 = vmatprep.subr.mxu0 0.0
    %8970 = vmatpush1.msra.mxu0 %v8813
    %8971 = vmatprep.subr.mxu0 0.0
    %8972 = vmatpush1.msra.mxu0 %v8814
    %8973 = vmatprep.mubr.f32.mxu0 %v8834
    %8974 = vmatmul.mubr.f32.gmra.mrb[0].mxu0 %v8833
    %v8975 = vpop.f32.mrb[0].mxu0
    %v8976 = vadd.f32 %v8906, %v8975
    %v8977 = vpop.f32.mrb[0].mxu0
    %8978 = vdwg.mxu0
    %vm8979 = vcmask 812032
    %8980 = vst.msk [vmem:[#allocation5] sm:$0x3] %vm8979, %v8976
    // Predicated region
    $region90: #{simplenet_forward.1} parent=1 // pred_check
      _
    $region91: #{simplenet_forward.1} parent=1 // pred_check_branch
      %8982 = sbr.rel (0) target = $region93
    $region92: #{simplenet_forward.1} parent=1 // pred_region
      %s8984 = ssub.s32 32, 32
      %8985 = vsyncadd [#allocation4], %s8984
      %s8987 = sshll.u32 [#allocation5], 4
      %s8988 = int_to_ptr.vmem [resolvable:$true] %s8987
      %8990 = dma.vmem_to_hbm [thread:$0]  %s8988, 32, %s21, [#allocation4]
    $region93: #{simplenet_forward.1} parent=1 // pred_fallthru
      _
    // Predicated region
    $region94: #{simplenet_forward.1} parent=1 // pred_check
      _
    $region95: #{simplenet_forward.1} parent=1 // pred_check_branch
      %8992 = sbr.rel (0) target = $region97
    $region96: #{simplenet_forward.1} parent=1 // pred_region
      %8993 = dma.done [#allocation4], 32
    $region97: #{simplenet_forward.1} parent=1 // pred_fallthru
      _
    %8994 = vsyncpa [#allocation3], 1
    %8995 = vsyncpa [#allocation4], 1

</llo_original>
